<compile_context>
chip_gen: v5e
topology: v5e:2x2
jax: 0.10.0
libtpu: 0.0.40
codegen_flags: <defaults>
</compile_context>

<pallas_src>
import math
from functools import partial

import jax
import jax.numpy as jnp
from jax.experimental import pallas as pl
from jax.experimental.pallas import tpu as pltpu

# ----------------------------- model config (small) -------------------------
INPUT_CHANNELS = 4                       # [x, y, z, intensity]
SA_NPOINTS = [32, 16]
SA_RADIUS  = [[0.5, 1.0], [1.0, 2.0]]
SA_NSAMPLE = [[8, 16], [8, 16]]
SA_MLPS    = [[[8, 8, 16], [8, 8, 16]], [[16, 16, 32], [16, 16, 32]]]
FP_MLPS    = [[32, 32], [32, 32]]
IMG_CH_BU  = [8, 8]
IMG_CH_TD  = [8, 8]
USE_XYZ    = True
IMG_H, IMG_W = 16, 16

COMPUTE_DTYPE = jnp.bfloat16             # MXU input dtype (f32 accumulation/epilogue)
# TODO(synk): on v5e (no bf16 VPU) profile CAST_HIDDEN=False — the inter-layer bf16
# round-trips are pure VALU work at these tiny contraction sizes.
CAST_HIDDEN = True
MAX_TM_SA = 512                          # row tile for the SA kernel (x nsample rows)
MAX_TM_FP = 1024                         # row tile for the FP / pointwise kernel
VMEM_LIMIT_BYTES = 48 * 1024 * 1024      # headroom on v7x (64 MiB phys) / v5e (16 MiB default)


def _row_tiling(R, max_tm):
    """Pick a row tile for the flattened point-row axis.

    Small R: a single full-R tile (block dims == array dims are always legal).
    Large R: a multiple of 128 so the channels-first output stores stay lane-dense,
    capped so that there are >= 2 tiles (keeps both v7x TensorCores busy); the
    boundary block may be partial — all kernel ops are row-wise so padded rows are
    simply never stored.
    """
    if R < 256:
        return R, 1
    tm = min(max_tm, max(128, (R // 2) // 128 * 128))
    return tm, pl.cdiv(R, tm)


# ============================ Pallas kernels ================================
def _make_sa_fused_kernel(n_layers_list, ns_list, compute_dtype, cast_hidden):
    """Multi-scale grouped MLP + max over nsample + fused sigmoid image gate.

    refs = [g_0..g_{S-1}, img_cf,
            scale0: (w, b) * n_layers_0, wgT_0, bg_0,
            scale1: (w, b) * n_layers_1, wgT_1, bg_1, ...,
            out]
    g_s   : (ns_s, tm, C0)   rows-major grouped points (f32)
    img_cf: (Cimg, tm)       channels-first image features (f32)
    w     : (Cin, Cout) bf16     b  : (1, Cout) f32
    wgT   : (Cout_s, Cimg) bf16  bg : (Cout_s, 1) f32
    out   : (Ctot, tm)       channels-first (lane-dense stores)
    """
    n_scales = len(ns_list)

    def kernel(*refs):
        out_ref = refs[-1]
        g_refs = refs[:n_scales]
        img_ref = refs[n_scales]
        img_bf = img_ref[...].astype(compute_dtype)              # (Cimg, tm)
        pos = n_scales + 1

        off = 0
        for s in range(n_scales):
            nl = n_layers_list[s]
            ns = ns_list[s]
            wb = refs[pos:pos + 2 * nl]
            wg_ref, bg_ref = refs[pos + 2 * nl], refs[pos + 2 * nl + 1]
            pos += 2 * nl + 2

            g = g_refs[s][...]                                   # (ns, tm, C0) f32
            tm = g.shape[1]
            c0 = g.shape[-1]
            # one matmul per layer over all ns*tm rows (free reshape: ns is outer dim)
            h = g.reshape(ns * tm, c0).astype(compute_dtype)
            for l in range(nl):
                w = wb[2 * l][...]                               # (Cin, Cout) bf16
                b = wb[2 * l + 1][...]                           # (1, Cout) f32
                h = jnp.maximum(
                    jnp.dot(h, w, preferred_element_type=jnp.float32) + b, 0.0)
                if l + 1 < nl and cast_hidden:
                    h = h.astype(compute_dtype)
            cs = h.shape[-1]
            # max-pool over the nsample axis
            feat = jnp.max(h.reshape(ns, tm, cs), axis=0)        # (tm, cs) f32

            # fused PWG gate, computed channels-first: (cs, tm)
            gate = jax.nn.sigmoid(
                jnp.dot(wg_ref[...], img_bf,
                        preferred_element_type=jnp.float32) + bg_ref[...])

            # channels-first, lane-dense store into this scale's channel slice
            out_ref[off:off + cs, :] = gate * feat.T
            off += cs

    return kernel


def _make_fp_fused_kernel(n_layers, compute_dtype, cast_hidden):
    """Pointwise MLP stack + fused sigmoid image gate.

    refs = [x, img_cf, (w, b) * n_layers, wgT, bg, out]
    x     : (tm, Cin)    rows-major point features
    img_cf: (Cimg, tm)   channels-first image features
    out   : (Cout, tm)   channels-first (lane-dense stores)
    """
    def kernel(*refs):
        x_ref, img_ref = refs[0], refs[1]
        wb = refs[2:2 + 2 * n_layers]
        wg_ref = refs[2 + 2 * n_layers]
        bg_ref = refs[3 + 2 * n_layers]
        out_ref = refs[-1]

        h = x_ref[...].astype(compute_dtype)                     # (tm, Cin)
        for l in range(n_layers):
            w = wb[2 * l][...]                                   # (Cin, Cout) bf16
            b = wb[2 * l + 1][...]                               # (1, Cout) f32
            h = jnp.maximum(
                jnp.dot(h, w, preferred_element_type=jnp.float32) + b, 0.0)
            if l + 1 < n_layers and cast_hidden:
                h = h.astype(compute_dtype)

        gate = jax.nn.sigmoid(
            jnp.dot(wg_ref[...], img_ref[...].astype(compute_dtype),
                    preferred_element_type=jnp.float32) + bg_ref[...])   # (Cout, tm)
        out_ref[...] = gate * h.T

    return kernel


# ============================ kernel wrappers ===============================
def sa_fused(grouped_list, img_cf, scale_params, gate_params,
             compute_dtype=COMPUTE_DTYPE):
    """grouped_list: list of (ns_j, R, C0_j) arrays (R = B*S flattened rows);
    img_cf: (Cimg, R) channels-first image features at the selected points.
    Returns gated multi-scale features, channels-first (Ctot, R)."""
    cimg, R = img_cf.shape
    tm, n_tiles = _row_tiling(R, MAX_TM_SA)

    ns_list = [int(g.shape[0]) for g in grouped_list]
    n_layers_list = [len(ws) for (ws, _bs) in scale_params]
    ctot = sum(ws[-1].shape[1] for (ws, _bs) in scale_params)

    args, in_specs = [], []
    for g in grouped_list:
        ns, _, c0 = g.shape
        args.append(g)
        in_specs.append(pl.BlockSpec((ns, tm, c0), lambda i: (0, i, 0)))
    args.append(img_cf)
    in_specs.append(pl.BlockSpec((cimg, tm), lambda i: (0, i)))
    for (ws, bs), (wgT, bg) in zip(scale_params, gate_params):
        for w, b in zip(ws, bs):
            args += [w, b]
            in_specs += [pl.BlockSpec(w.shape, lambda i: (0, 0)),
                         pl.BlockSpec(b.shape, lambda i: (0, 0))]
        args += [wgT, bg]
        in_specs += [pl.BlockSpec(wgT.shape, lambda i: (0, 0)),
                     pl.BlockSpec(bg.shape, lambda i: (0, 0))]

    out = pl.pallas_call(
        _make_sa_fused_kernel(n_layers_list, ns_list, compute_dtype, CAST_HIDDEN),
        out_shape=jax.ShapeDtypeStruct((ctot, R), jnp.float32),
        grid=(n_tiles,),
        in_specs=in_specs,
        out_specs=pl.BlockSpec((ctot, tm), lambda i: (0, i)),
        compiler_params=pltpu.CompilerParams(
            dimension_semantics=("parallel",),
            vmem_limit_bytes=VMEM_LIMIT_BYTES),
    )(*args)
    return out                                                  # (Ctot, R)


def fp_fused(x, img_cf, mlp_params, gate_params, compute_dtype=COMPUTE_DTYPE):
    """x: (R, Cin) flattened point features; img_cf: (Cimg, R).
    Returns gated MLP output, channels-first (Cout, R)."""
    R, cin = x.shape
    cimg = img_cf.shape[0]
    tm, n_tiles = _row_tiling(R, MAX_TM_FP)
    ws, bs = mlp_params
    cout = ws[-1].shape[1]
    wgT, bg = gate_params

    args = [x, img_cf]
    in_specs = [pl.BlockSpec((tm, cin), lambda i: (i, 0)),
                pl.BlockSpec((cimg, tm), lambda i: (0, i))]
    for w, b in zip(ws, bs):
        args += [w, b]
        in_specs += [pl.BlockSpec(w.shape, lambda i: (0, 0)),
                     pl.BlockSpec(b.shape, lambda i: (0, 0))]
    args += [wgT, bg]
    in_specs += [pl.BlockSpec(wgT.shape, lambda i: (0, 0)),
                 pl.BlockSpec(bg.shape, lambda i: (0, 0))]

    out = pl.pallas_call(
        _make_fp_fused_kernel(len(ws), compute_dtype, CAST_HIDDEN),
        out_shape=jax.ShapeDtypeStruct((cout, R), jnp.float32),
        grid=(n_tiles,),
        in_specs=in_specs,
        out_specs=pl.BlockSpec((cout, tm), lambda i: (0, i)),
        compiler_params=pltpu.CompilerParams(
            dimension_semantics=("parallel",),
            vmem_limit_bytes=VMEM_LIMIT_BYTES),
    )(*args)
    return out                                                  # (Cout, R)


# ============================ JAX glue (index machinery) ====================
def gather_points(x, idx):
    # x: (B, N, C), idx: (B, S) -> (B, S, C)
    return jax.vmap(lambda xb, ib: xb[ib])(x, idx)


def farthest_point_sample(xyz, npoint):
    B, N, _ = xyz.shape

    def body(i, state):
        idxs, dists, farthest = state
        idxs = idxs.at[:, i].set(farthest)
        centroid = gather_points(xyz, farthest[:, None])          # (B, 1, 3)
        d = jnp.sum((xyz - centroid) ** 2, axis=-1)                # (B, N)
        dists = jnp.minimum(dists, d)
        farthest = jnp.argmax(dists, axis=-1).astype(jnp.int32)
        return idxs, dists, farthest

    idxs0 = jnp.zeros((B, npoint), jnp.int32)
    dist0 = jnp.full((B, N), 1e10, jnp.float32)
    far0 = jnp.zeros((B,), jnp.int32)
    idxs, _, _ = jax.lax.fori_loop(0, npoint, body, (idxs0, dist0, far0))
    return idxs


def ball_query(radius, nsample, xyz, new_xyz):
    # xyz: (B, N, 3), new_xyz: (B, S, 3) -> idx: (B, S, nsample)
    N = xyz.shape[1]
    d2 = jnp.sum((new_xyz[:, :, None, :] - xyz[:, None, :, :]) ** 2, axis=-1)
    mask = d2 <= radius ** 2
    key = jnp.where(mask, jnp.arange(N, dtype=jnp.int32)[None, None, :], N)
    order = jnp.argsort(key, axis=-1)
    idx = order[:, :, :nsample]
    key_sorted = jnp.take_along_axis(key, order, axis=-1)[:, :, :nsample]
    valid = key_sorted < N
    first = idx[:, :, :1]
    return jnp.where(valid, idx, first).astype(jnp.int32)


def three_interpolate(xyz1, xyz2, feats2):
    # xyz1: (B, n, 3), xyz2: (B, m, 3), feats2: (B, m, C) -> (B, n, C)
    d2 = jnp.sum((xyz1[:, :, None, :] - xyz2[:, None, :, :]) ** 2, axis=-1)
    neg_vals, idx = jax.lax.top_k(-d2, 3)
    dist_recip = 1.0 / (-neg_vals + 1e-8)
    weight = dist_recip / jnp.sum(dist_recip, axis=-1, keepdims=True)
    gathered = jax.vmap(lambda f, i: f[i])(feats2, idx)            # (B, n, 3, C)
    return jnp.sum(gathered * weight[..., None], axis=2)


def grid_sample_bilinear(img, grid):
    # img: (B, C, H, W), grid: (B, N, 2) in [-1,1] (align_corners=False, zero pad)
    B, C, H, W = img.shape
    x, y = grid[..., 0], grid[..., 1]
    ix = ((x + 1.0) * W - 1.0) / 2.0
    iy = ((y + 1.0) * H - 1.0) / 2.0
    x0 = jnp.floor(ix).astype(jnp.int32); x1 = x0 + 1
    y0 = jnp.floor(iy).astype(jnp.int32); y1 = y0 + 1
    wx1 = ix - x0; wx0 = 1.0 - wx1
    wy1 = iy - y0; wy0 = 1.0 - wy1

    def gather(xi, yi):
        valid = (xi >= 0) & (xi < W) & (yi >= 0) & (yi < H)
        xc = jnp.clip(xi, 0, W - 1)
        yc = jnp.clip(yi, 0, H - 1)
        g = jax.vmap(lambda im, yy, xx: im[:, yy, xx])(img, yc, xc)  # (B, C, N)
        return jnp.where(valid[:, None, :], g, 0.0)

    return (gather(x0, y0) * (wx0 * wy0)[:, None, :]
            + gather(x1, y0) * (wx1 * wy0)[:, None, :]
            + gather(x0, y1) * (wx0 * wy1)[:, None, :]
            + gather(x1, y1) * (wx1 * wy1)[:, None, :])             # (B, C, N)


def sample_image_features_cf(img, pts):
    """img: (B, C, H, W); pts: (B, S, 2) in [-1, 1] -> channels-first (C, B*S)."""
    g = grid_sample_bilinear(img, pts)                             # (B, C, S)
    B, C, S = g.shape
    return jnp.transpose(g, (1, 0, 2)).reshape(C, B * S)


# ============================ module forward ================================
def break_up_pc(points):
    batch_idx = points[:, 0]
    xyz = points[:, 1:4]
    feats = points[:, 4:] if points.shape[-1] > 4 else None
    return batch_idx, xyz, feats


def sa_stage_forward(scale_params, gate_params, xyz, feats, pts_img, img_map,
                     npoint, radii, nsamples, use_xyz):
    """One MSG set-abstraction stage + fused PWG bottom-up gate."""
    B, N, _ = xyz.shape
    S = npoint
    fps_idx = farthest_point_sample(xyz, npoint)                   # (B, S)
    new_xyz = gather_points(xyz, fps_idx)                          # (B, S, 3)
    new_pts_img = gather_points(pts_img, fps_idx)                  # (B, S, 2)

    # gather grouped features directly in (ns, B*S, C0) layout via flat indices
    base = (jnp.arange(B, dtype=jnp.int32) * N)[:, None, None]     # (B, 1, 1)
    xyz_flat = xyz.reshape(B * N, 3)
    feats_flat = feats.reshape(B * N, feats.shape[-1]) if feats is not None else None
    new_xyz_flat = new_xyz.reshape(B * S, 3)

    grouped_list = []
    for r, ns in zip(radii, nsamples):
        idx = ball_query(r, ns, xyz, new_xyz)                      # (B, S, ns)
        gidx = jnp.transpose(idx + base, (2, 0, 1)).reshape(ns, B * S)
        g_xyz = xyz_flat[gidx] - new_xyz_flat[None, :, :]          # (ns, B*S, 3)
        if feats_flat is not None:
            g_feat = feats_flat[gidx]                              # (ns, B*S, Cf)
            grouped = (jnp.concatenate([g_xyz, g_feat], axis=-1)
                       if use_xyz else g_feat)
        else:
            grouped = g_xyz
        grouped_list.append(grouped)

    img_cf = sample_image_features_cf(img_map, new_pts_img)        # (Cimg, B*S)
    new_feats_cf = sa_fused(grouped_list, img_cf, scale_params, gate_params)
    return new_xyz, new_feats_cf.T.reshape(B, S, -1), new_pts_img


def fp_stage_forward(fp_params, gate_params, xyz1, xyz2, feats1, feats2,
                     pts_img1, img_map):
    """One feature-propagation stage + fused PWG top-down gate."""
    B, n, _ = xyz1.shape
    interp = three_interpolate(xyz1, xyz2, feats2)                 # (B, n, C2)
    x = jnp.concatenate([interp, feats1], axis=-1) if feats1 is not None else interp
    img_cf = sample_image_features_cf(img_map, pts_img1)           # (Cimg, B*n)
    out_cf = fp_fused(x.reshape(B * n, -1), img_cf, fp_params, gate_params)
    return out_cf.T.reshape(B, n, -1)


def pointnet2_msg_forward(params, batch_dict):
    B = batch_dict['batch_size']
    points = batch_dict['points']
    batch_idx, xyz_flat, feat_flat = break_up_pc(points)
    pts_img = batch_dict['pts_img'][:, 1:]
    img_bu = batch_dict['bottom_up_features']
    img_td = batch_dict['top_down_features']
    h, w = batch_dict['image_size']

    xyz = xyz_flat.reshape(B, -1, 3)
    pts_img = pts_img.reshape(B, -1, 2)
    pts_img = pts_img.at[..., 0].set(2.0 * (pts_img[..., 0] / w) - 1.0)
    pts_img = pts_img.at[..., 1].set(2.0 * (pts_img[..., 1] / h) - 1.0)
    feats = (feat_flat.reshape(B, -1, feat_flat.shape[-1])
             if feat_flat is not None else None)

    l_xyz, l_feats, selected_pts = [xyz], [feats], [pts_img]
    for i in range(len(SA_NPOINTS)):
        li_xyz, li_feats, li_pts = sa_stage_forward(
            params['sa'][i], params['pwg_bu'][i],
            l_xyz[i], l_feats[i], selected_pts[-1], img_bu[i],
            SA_NPOINTS[i], SA_RADIUS[i], SA_NSAMPLE[i], USE_XYZ)
        l_xyz.append(li_xyz)
        l_feats.append(li_feats)
        selected_pts.append(li_pts)

    n_fp = len(FP_MLPS)
    for i in range(-1, -(n_fp + 1), -1):
        l_feats[i - 1] = fp_stage_forward(
            params['fp'][i], params['pwg_td'][i],
            l_xyz[i - 1], l_xyz[i], l_feats[i - 1], l_feats[i],
            selected_pts[i - 1], img_td[i])

    point_features = l_feats[0].reshape(-1, l_feats[0].shape[-1])
    point_coords = jnp.concatenate(
        [batch_idx[:, None].astype(jnp.float32), l_xyz[0].reshape(-1, 3)], axis=1)
    return point_features, point_coords


# ============================ parameter init ================================
def dense_init(key, cin, cout):
    kw, kb = jax.random.split(key)
    w = jax.random.normal(kw, (cin, cout), jnp.float32) / math.sqrt(cin)
    b = jax.random.normal(kb, (1, cout), jnp.float32) * 0.01
    return w, b


def build_params(key):
    """Parameters are built directly in kernel-ready layout/dtype:
    MLP weights (Cin, Cout) bf16, biases (1, Cout) f32;
    PWG gate weights transposed (Cout, Cimg) bf16, biases (Cout, 1) f32."""
    params = {'sa': [], 'pwg_bu': [], 'fp': [], 'pwg_td': []}
    channel_in = INPUT_CHANNELS - 3
    skip = [channel_in]
    channel_out = channel_in
    for k in range(len(SA_NPOINTS)):
        scale_params, gate_params = [], []
        channel_out = 0
        for m in SA_MLPS[k]:
            dims = [channel_in + (3 if USE_XYZ else 0)] + list(m)
            ws, bs = [], []
            for l in range(len(dims) - 1):
                key, sub = jax.random.split(key)
                wl, bl = dense_init(sub, dims[l], dims[l + 1])
                ws.append(wl.astype(COMPUTE_DTYPE))
                bs.append(bl)
            scale_params.append((ws, bs))
            key, sub = jax.random.split(key)
            wg, bg = dense_init(sub, IMG_CH_BU[k], m[-1])
            gate_params.append((wg.T.astype(COMPUTE_DTYPE), bg.T))
            channel_out += m[-1]
        params['sa'].append(scale_params)
        params['pwg_bu'].append(gate_params)
        skip.append(channel_out)
        channel_in = channel_out
    for k in range(len(FP_MLPS)):
        pre = FP_MLPS[k + 1][-1] if k + 1 < len(FP_MLPS) else channel_out
        dims = [pre + skip[k]] + list(FP_MLPS[k])
        ws, bs = [], []
        for l in range(len(dims) - 1):
            key, sub = jax.random.split(key)
            wl, bl = dense_init(sub, dims[l], dims[l + 1])
            ws.append(wl.astype(COMPUTE_DTYPE))
            bs.append(bl)
        params['fp'].append((ws, bs))
        key, sub = jax.random.split(key)
        wg, bg = dense_init(sub, IMG_CH_TD[k], FP_MLPS[k][-1])
        params['pwg_td'].append((wg.T.astype(COMPUTE_DTYPE), bg.T))
    return params


# ============================ main ==========================================
if __name__ == "__main__":
    key = jax.random.PRNGKey(0)
    B, N = 2, 64
    key, k1, k2, k3a, k3b, k4, k5 = jax.random.split(key, 7)
    params = build_params(k5)

    batch_idx = jnp.repeat(jnp.arange(B, dtype=jnp.float32), N)[:, None]
    xyz = jax.random.uniform(k1, (B * N, 3), jnp.float32, -2.0, 2.0)
    feat = jax.random.uniform(k2, (B * N, INPUT_CHANNELS - 3), jnp.float32)
    points = jnp.concatenate([batch_idx, xyz, feat], axis=1)          # (B*N, 5)

    u = jax.random.uniform(k3a, (B * N, 1), jnp.float32, 0.5, IMG_W - 0.5)
    v = jax.random.uniform(k3b, (B * N, 1), jnp.float32, 0.5, IMG_H - 0.5)
    pts_img = jnp.concatenate([batch_idx, u, v], axis=1)              # (B*N, 3)

    img_bu = [jax.random.normal(jax.random.fold_in(k4, 10 + i),
                                (B, c, IMG_H, IMG_W), jnp.float32)
              for i, c in enumerate(IMG_CH_BU)]
    img_td = [jax.random.normal(jax.random.fold_in(k4, 20 + i),
                                (B, c, IMG_H, IMG_W), jnp.float32)
              for i, c in enumerate(IMG_CH_TD)]

    # whole forward (glue + Pallas kernels) under a single jit
    @jax.jit
    def forward(params, points, pts_img, img_bu, img_td):
        batch_dict = dict(batch_size=B, points=points, pts_img=pts_img,
                          bottom_up_features=img_bu, top_down_features=img_td,
                          image_size=(IMG_H, IMG_W))
        return pointnet2_msg_forward(params, batch_dict)

    pf, pc = forward(params, points, pts_img, img_bu, img_td)
    jax.block_until_ready((pf, pc))
    assert pf.shape == (B * N, FP_MLPS[0][-1]), pf.shape
    assert pc.shape == (B * N, 4), pc.shape
    assert bool(jnp.all(jnp.isfinite(pf))) and bool(jnp.all(jnp.isfinite(pc)))
    print("KERNEL_OK")
</pallas_src>

<mosaic_0001>
module attributes {stable_mosaic.version = 11 : i64} {
  func.func @kernel(%arg0: i32, %arg1: memref<8x64x4xf32, #tpu.memory_space<vmem>>, %arg2: memref<16x64x4xf32, #tpu.memory_space<vmem>>, %arg3: memref<8x64xf32, #tpu.memory_space<vmem>>, %arg4: memref<4x8xbf16, #tpu.memory_space<vmem>>, %arg5: memref<1x8xf32, #tpu.memory_space<vmem>>, %arg6: memref<8x8xbf16, #tpu.memory_space<vmem>>, %arg7: memref<1x8xf32, #tpu.memory_space<vmem>>, %arg8: memref<8x16xbf16, #tpu.memory_space<vmem>>, %arg9: memref<1x16xf32, #tpu.memory_space<vmem>>, %arg10: memref<16x8xbf16, #tpu.memory_space<vmem>>, %arg11: memref<16x1xf32, #tpu.memory_space<vmem>>, %arg12: memref<4x8xbf16, #tpu.memory_space<vmem>>, %arg13: memref<1x8xf32, #tpu.memory_space<vmem>>, %arg14: memref<8x8xbf16, #tpu.memory_space<vmem>>, %arg15: memref<1x8xf32, #tpu.memory_space<vmem>>, %arg16: memref<8x16xbf16, #tpu.memory_space<vmem>>, %arg17: memref<1x16xf32, #tpu.memory_space<vmem>>, %arg18: memref<16x8xbf16, #tpu.memory_space<vmem>>, %arg19: memref<16x1xf32, #tpu.memory_space<vmem>>, %arg20: memref<32x64xf32, #tpu.memory_space<vmem>>) attributes {dimension_semantics = [#tpu.dimension_semantics<parallel>], iteration_bounds = array<i64: 1>, scalar_prefetch = 0 : i64, scratch_operands = 0 : i64, tpu.core_type = #tpu.core_type<tc>, window_params = [{transform_indices = @transform_0, window_bounds = array<i64: 8, 64, 4>}, {transform_indices = @transform_1, window_bounds = array<i64: 16, 64, 4>}, {transform_indices = @transform_2, window_bounds = array<i64: 8, 64>}, {pipeline_mode = #tpu.pipeline_mode<synchronous>, transform_indices = @transform_3, window_bounds = array<i64: 4, 8>}, {pipeline_mode = #tpu.pipeline_mode<synchronous>, transform_indices = @transform_4, window_bounds = array<i64: 1, 8>}, {pipeline_mode = #tpu.pipeline_mode<synchronous>, transform_indices = @transform_5, window_bounds = array<i64: 8, 8>}, {pipeline_mode = #tpu.pipeline_mode<synchronous>, transform_indices = @transform_6, window_bounds = array<i64: 1, 8>}, {pipeline_mode = #tpu.pipeline_mode<synchronous>, transform_indices = @transform_7, window_bounds = array<i64: 8, 16>}, {pipeline_mode = #tpu.pipeline_mode<synchronous>, transform_indices = @transform_8, window_bounds = array<i64: 1, 16>}, {pipeline_mode = #tpu.pipeline_mode<synchronous>, transform_indices = @transform_9, window_bounds = array<i64: 16, 8>}, {pipeline_mode = #tpu.pipeline_mode<synchronous>, transform_indices = @transform_10, window_bounds = array<i64: 16, 1>}, {pipeline_mode = #tpu.pipeline_mode<synchronous>, transform_indices = @transform_11, window_bounds = array<i64: 4, 8>}, {pipeline_mode = #tpu.pipeline_mode<synchronous>, transform_indices = @transform_12, window_bounds = array<i64: 1, 8>}, {pipeline_mode = #tpu.pipeline_mode<synchronous>, transform_indices = @transform_13, window_bounds = array<i64: 8, 8>}, {pipeline_mode = #tpu.pipeline_mode<synchronous>, transform_indices = @transform_14, window_bounds = array<i64: 1, 8>}, {pipeline_mode = #tpu.pipeline_mode<synchronous>, transform_indices = @transform_15, window_bounds = array<i64: 8, 16>}, {pipeline_mode = #tpu.pipeline_mode<synchronous>, transform_indices = @transform_16, window_bounds = array<i64: 1, 16>}, {pipeline_mode = #tpu.pipeline_mode<synchronous>, transform_indices = @transform_17, window_bounds = array<i64: 16, 8>}, {pipeline_mode = #tpu.pipeline_mode<synchronous>, transform_indices = @transform_18, window_bounds = array<i64: 16, 1>}, {transform_indices = @transform_19, window_bounds = array<i64: 32, 64>}]} {
    %c0 = arith.constant 0 : index
    %c0_0 = arith.constant 0 : index
    %0 = vector.load %arg3[%c0, %c0_0] : memref<8x64xf32, #tpu.memory_space<vmem>>, vector<8x64xf32>
    %1 = arith.truncf %0 : vector<8x64xf32> to vector<8x64xbf16>
    %c0_1 = arith.constant 0 : index
    %c0_2 = arith.constant 0 : index
    %c0_3 = arith.constant 0 : index
    %2 = vector.load %arg1[%c0_1, %c0_2, %c0_3] : memref<8x64x4xf32, #tpu.memory_space<vmem>>, vector<8x64x4xf32>
    %3 = vector.shape_cast %2 : vector<8x64x4xf32> to vector<512x4xf32>
    %4 = arith.truncf %3 : vector<512x4xf32> to vector<512x4xbf16>
    %c0_4 = arith.constant 0 : index
    %c0_5 = arith.constant 0 : index
    %5 = vector.load %arg4[%c0_4, %c0_5] : memref<4x8xbf16, #tpu.memory_space<vmem>>, vector<4x8xbf16>
    %c0_6 = arith.constant 0 : index
    %c0_7 = arith.constant 0 : index
    %6 = vector.load %arg5[%c0_6, %c0_7] : memref<1x8xf32, #tpu.memory_space<vmem>>, vector<1x8xf32>
    %cst = arith.constant dense<0.000000e+00> : vector<512x8xf32>
    %7 = tpu.matmul %4, %5, %cst {dimension_numbers = #tpu.dot_dimension_numbers<[1], [0], [0], [1], [0, 0, 1, 1], [], []>} : vector<512x4xbf16>, vector<4x8xbf16>, vector<512x8xf32> -> vector<512x8xf32>
    %8 = vector.broadcast %6 : vector<1x8xf32> to vector<512x8xf32>
    %9 = arith.addf %7, %8 : vector<512x8xf32>
    %cst_8 = arith.constant 0.000000e+00 : f32
    %10 = vector.broadcast %cst_8 : f32 to vector<512x8xf32>
    %11 = arith.maximumf %9, %10 : vector<512x8xf32>
    %12 = arith.truncf %11 : vector<512x8xf32> to vector<512x8xbf16>
    %c0_9 = arith.constant 0 : index
    %c0_10 = arith.constant 0 : index
    %13 = vector.load %arg6[%c0_9, %c0_10] : memref<8x8xbf16, #tpu.memory_space<vmem>>, vector<8x8xbf16>
    %c0_11 = arith.constant 0 : index
    %c0_12 = arith.constant 0 : index
    %14 = vector.load %arg7[%c0_11, %c0_12] : memref<1x8xf32, #tpu.memory_space<vmem>>, vector<1x8xf32>
    %cst_13 = arith.constant dense<0.000000e+00> : vector<512x8xf32>
    %15 = tpu.matmul %12, %13, %cst_13 {dimension_numbers = #tpu.dot_dimension_numbers<[1], [0], [0], [1], [0, 0, 1, 1], [], []>} : vector<512x8xbf16>, vector<8x8xbf16>, vector<512x8xf32> -> vector<512x8xf32>
    %16 = vector.broadcast %14 : vector<1x8xf32> to vector<512x8xf32>
    %17 = arith.addf %15, %16 : vector<512x8xf32>
    %cst_14 = arith.constant 0.000000e+00 : f32
    %18 = vector.broadcast %cst_14 : f32 to vector<512x8xf32>
    %19 = arith.maximumf %17, %18 : vector<512x8xf32>
    %20 = arith.truncf %19 : vector<512x8xf32> to vector<512x8xbf16>
    %c0_15 = arith.constant 0 : index
    %c0_16 = arith.constant 0 : index
    %21 = vector.load %arg8[%c0_15, %c0_16] : memref<8x16xbf16, #tpu.memory_space<vmem>>, vector<8x16xbf16>
    %c0_17 = arith.constant 0 : index
    %c0_18 = arith.constant 0 : index
    %22 = vector.load %arg9[%c0_17, %c0_18] : memref<1x16xf32, #tpu.memory_space<vmem>>, vector<1x16xf32>
    %cst_19 = arith.constant dense<0.000000e+00> : vector<512x16xf32>
    %23 = tpu.matmul %20, %21, %cst_19 {dimension_numbers = #tpu.dot_dimension_numbers<[1], [0], [0], [1], [0, 0, 1, 1], [], []>} : vector<512x8xbf16>, vector<8x16xbf16>, vector<512x16xf32> -> vector<512x16xf32>
    %24 = vector.broadcast %22 : vector<1x16xf32> to vector<512x16xf32>
    %25 = arith.addf %23, %24 : vector<512x16xf32>
    %cst_20 = arith.constant 0.000000e+00 : f32
    %26 = vector.broadcast %cst_20 : f32 to vector<512x16xf32>
    %27 = arith.maximumf %25, %26 : vector<512x16xf32>
    %28 = vector.shape_cast %27 : vector<512x16xf32> to vector<8x64x16xf32>
    %cst_21 = arith.constant dense<0xFF800000> : vector<64x16xf32>
    %29 = vector.multi_reduction <maximumf>, %28, %cst_21 [0] : vector<8x64x16xf32> to vector<64x16xf32>
    %c0_22 = arith.constant 0 : index
    %c0_23 = arith.constant 0 : index
    %30 = vector.load %arg10[%c0_22, %c0_23] : memref<16x8xbf16, #tpu.memory_space<vmem>>, vector<16x8xbf16>
    %cst_24 = arith.constant dense<0.000000e+00> : vector<16x64xf32>
    %31 = tpu.matmul %30, %1, %cst_24 {dimension_numbers = #tpu.dot_dimension_numbers<[1], [0], [0], [1], [0, 0, 1, 1], [], []>} : vector<16x8xbf16>, vector<8x64xbf16>, vector<16x64xf32> -> vector<16x64xf32>
    %c0_25 = arith.constant 0 : index
    %c0_26 = arith.constant 0 : index
    %32 = vector.load %arg11[%c0_25, %c0_26] : memref<16x1xf32, #tpu.memory_space<vmem>>, vector<16x1xf32>
    %33 = vector.broadcast %32 : vector<16x1xf32> to vector<16x64xf32>
    %34 = arith.addf %31, %33 : vector<16x64xf32>
    %35 = arith.negf %34 : vector<16x64xf32>
    %36 = math.exp %35 : vector<16x64xf32>
    %cst_27 = arith.constant 1.000000e+00 : f32
    %37 = vector.broadcast %cst_27 : f32 to vector<16x64xf32>
    %38 = arith.addf %37, %36 : vector<16x64xf32>
    %39 = arith.divf %37, %38 : vector<16x64xf32>
    %40 = tpu.transpose %29, [1, 0] : vector<64x16xf32> -> vector<16x64xf32>
    %41 = arith.mulf %39, %40 : vector<16x64xf32>
    %c0_28 = arith.constant 0 : index
    %c0_29 = arith.constant 0 : index
    %42 = vector.load %arg20[%c0_28, %c0_29] : memref<32x64xf32, #tpu.memory_space<vmem>>, vector<16x64xf32>
    tpu.vector_store %arg20[%c0_28, %c0_29], %41 {strides = array<i32>} : memref<32x64xf32, #tpu.memory_space<vmem>>, vector<16x64xf32>,
    %c0_30 = arith.constant 0 : index
    %c0_31 = arith.constant 0 : index
    %c0_32 = arith.constant 0 : index
    %43 = vector.load %arg2[%c0_30, %c0_31, %c0_32] : memref<16x64x4xf32, #tpu.memory_space<vmem>>, vector<16x64x4xf32>
    %44 = vector.shape_cast %43 : vector<16x64x4xf32> to vector<1024x4xf32>
    %45 = arith.truncf %44 : vector<1024x4xf32> to vector<1024x4xbf16>
    %c0_33 = arith.constant 0 : index
    %c0_34 = arith.constant 0 : index
    %46 = vector.load %arg12[%c0_33, %c0_34] : memref<4x8xbf16, #tpu.memory_space<vmem>>, vector<4x8xbf16>
    %c0_35 = arith.constant 0 : index
    %c0_36 = arith.constant 0 : index
    %47 = vector.load %arg13[%c0_35, %c0_36] : memref<1x8xf32, #tpu.memory_space<vmem>>, vector<1x8xf32>
    %cst_37 = arith.constant dense<0.000000e+00> : vector<1024x8xf32>
    %48 = tpu.matmul %45, %46, %cst_37 {dimension_numbers = #tpu.dot_dimension_numbers<[1], [0], [0], [1], [0, 0, 1, 1], [], []>} : vector<1024x4xbf16>, vector<4x8xbf16>, vector<1024x8xf32> -> vector<1024x8xf32>
    %49 = vector.broadcast %47 : vector<1x8xf32> to vector<1024x8xf32>
    %50 = arith.addf %48, %49 : vector<1024x8xf32>
    %cst_38 = arith.constant 0.000000e+00 : f32
    %51 = vector.broadcast %cst_38 : f32 to vector<1024x8xf32>
    %52 = arith.maximumf %50, %51 : vector<1024x8xf32>
    %53 = arith.truncf %52 : vector<1024x8xf32> to vector<1024x8xbf16>
    %c0_39 = arith.constant 0 : index
    %c0_40 = arith.constant 0 : index
    %54 = vector.load %arg14[%c0_39, %c0_40] : memref<8x8xbf16, #tpu.memory_space<vmem>>, vector<8x8xbf16>
    %c0_41 = arith.constant 0 : index
    %c0_42 = arith.constant 0 : index
    %55 = vector.load %arg15[%c0_41, %c0_42] : memref<1x8xf32, #tpu.memory_space<vmem>>, vector<1x8xf32>
    %cst_43 = arith.constant dense<0.000000e+00> : vector<1024x8xf32>
    %56 = tpu.matmul %53, %54, %cst_43 {dimension_numbers = #tpu.dot_dimension_numbers<[1], [0], [0], [1], [0, 0, 1, 1], [], []>} : vector<1024x8xbf16>, vector<8x8xbf16>, vector<1024x8xf32> -> vector<1024x8xf32>
    %57 = vector.broadcast %55 : vector<1x8xf32> to vector<1024x8xf32>
    %58 = arith.addf %56, %57 : vector<1024x8xf32>
    %cst_44 = arith.constant 0.000000e+00 : f32
    %59 = vector.broadcast %cst_44 : f32 to vector<1024x8xf32>
    %60 = arith.maximumf %58, %59 : vector<1024x8xf32>
    %61 = arith.truncf %60 : vector<1024x8xf32> to vector<1024x8xbf16>
    %c0_45 = arith.constant 0 : index
    %c0_46 = arith.constant 0 : index
    %62 = vector.load %arg16[%c0_45, %c0_46] : memref<8x16xbf16, #tpu.memory_space<vmem>>, vector<8x16xbf16>
    %c0_47 = arith.constant 0 : index
    %c0_48 = arith.constant 0 : index
    %63 = vector.load %arg17[%c0_47, %c0_48] : memref<1x16xf32, #tpu.memory_space<vmem>>, vector<1x16xf32>
    %cst_49 = arith.constant dense<0.000000e+00> : vector<1024x16xf32>
    %64 = tpu.matmul %61, %62, %cst_49 {dimension_numbers = #tpu.dot_dimension_numbers<[1], [0], [0], [1], [0, 0, 1, 1], [], []>} : vector<1024x8xbf16>, vector<8x16xbf16>, vector<1024x16xf32> -> vector<1024x16xf32>
    %65 = vector.broadcast %63 : vector<1x16xf32> to vector<1024x16xf32>
    %66 = arith.addf %64, %65 : vector<1024x16xf32>
    %cst_50 = arith.constant 0.000000e+00 : f32
    %67 = vector.broadcast %cst_50 : f32 to vector<1024x16xf32>
    %68 = arith.maximumf %66, %67 : vector<1024x16xf32>
    %69 = vector.shape_cast %68 : vector<1024x16xf32> to vector<16x64x16xf32>
    %cst_51 = arith.constant dense<0xFF800000> : vector<64x16xf32>
    %70 = vector.multi_reduction <maximumf>, %69, %cst_51 [0] : vector<16x64x16xf32> to vector<64x16xf32>
    %c0_52 = arith.constant 0 : index
    %c0_53 = arith.constant 0 : index
    %71 = vector.load %arg18[%c0_52, %c0_53] : memref<16x8xbf16, #tpu.memory_space<vmem>>, vector<16x8xbf16>
    %cst_54 = arith.constant dense<0.000000e+00> : vector<16x64xf32>
    %72 = tpu.matmul %71, %1, %cst_54 {dimension_numbers = #tpu.dot_dimension_numbers<[1], [0], [0], [1], [0, 0, 1, 1], [], []>} : vector<16x8xbf16>, vector<8x64xbf16>, vector<16x64xf32> -> vector<16x64xf32>
    %c0_55 = arith.constant 0 : index
    %c0_56 = arith.constant 0 : index
    %73 = vector.load %arg19[%c0_55, %c0_56] : memref<16x1xf32, #tpu.memory_space<vmem>>, vector<16x1xf32>
    %74 = vector.broadcast %73 : vector<16x1xf32> to vector<16x64xf32>
    %75 = arith.addf %72, %74 : vector<16x64xf32>
    %76 = arith.negf %75 : vector<16x64xf32>
    %77 = math.exp %76 : vector<16x64xf32>
    %cst_57 = arith.constant 1.000000e+00 : f32
    %78 = vector.broadcast %cst_57 : f32 to vector<16x64xf32>
    %79 = arith.addf %78, %77 : vector<16x64xf32>
    %80 = arith.divf %78, %79 : vector<16x64xf32>
    %81 = tpu.transpose %70, [1, 0] : vector<64x16xf32> -> vector<16x64xf32>
    %82 = arith.mulf %80, %81 : vector<16x64xf32>
    %c16 = arith.constant 16 : index
    %c0_58 = arith.constant 0 : index
    %83 = vector.load %arg20[%c16, %c0_58] : memref<32x64xf32, #tpu.memory_space<vmem>>, vector<16x64xf32>
    tpu.vector_store %arg20[%c16, %c0_58], %82 {strides = array<i32>} : memref<32x64xf32, #tpu.memory_space<vmem>>, vector<16x64xf32>,
    return
  }
  func.func @transform_0(%arg0: i32) -> (i32, i32, i32) {
    %c0_i32 = arith.constant 0 : i32
    %c0_i32_0 = arith.constant 0 : i32
    %c0_i32_1 = arith.constant 0 : i32
    return %c0_i32, %arg0, %c0_i32_0 : i32, i32, i32
  }
  func.func @transform_1(%arg0: i32) -> (i32, i32, i32) {
    %c0_i32 = arith.constant 0 : i32
    %c0_i32_0 = arith.constant 0 : i32
    %c0_i32_1 = arith.constant 0 : i32
    return %c0_i32, %arg0, %c0_i32_0 : i32, i32, i32
  }
  func.func @transform_2(%arg0: i32) -> (i32, i32) {
    %c0_i32 = arith.constant 0 : i32
    %c0_i32_0 = arith.constant 0 : i32
    return %c0_i32, %arg0 : i32, i32
  }
  func.func @transform_3(%arg0: i32) -> (i32, i32) {
    %c0_i32 = arith.constant 0 : i32
    %c0_i32_0 = arith.constant 0 : i32
    %c0_i32_1 = arith.constant 0 : i32
    return %c0_i32, %c0_i32_0 : i32, i32
  }
  func.func @transform_4(%arg0: i32) -> (i32, i32) {
    %c0_i32 = arith.constant 0 : i32
    %c0_i32_0 = arith.constant 0 : i32
    %c0_i32_1 = arith.constant 0 : i32
    return %c0_i32, %c0_i32_0 : i32, i32
  }
  func.func @transform_5(%arg0: i32) -> (i32, i32) {
    %c0_i32 = arith.constant 0 : i32
    %c0_i32_0 = arith.constant 0 : i32
    %c0_i32_1 = arith.constant 0 : i32
    return %c0_i32, %c0_i32_0 : i32, i32
  }
  func.func @transform_6(%arg0: i32) -> (i32, i32) {
    %c0_i32 = arith.constant 0 : i32
    %c0_i32_0 = arith.constant 0 : i32
    %c0_i32_1 = arith.constant 0 : i32
    return %c0_i32, %c0_i32_0 : i32, i32
  }
  func.func @transform_7(%arg0: i32) -> (i32, i32) {
    %c0_i32 = arith.constant 0 : i32
    %c0_i32_0 = arith.constant 0 : i32
    %c0_i32_1 = arith.constant 0 : i32
    return %c0_i32, %c0_i32_0 : i32, i32
  }
  func.func @transform_8(%arg0: i32) -> (i32, i32) {
    %c0_i32 = arith.constant 0 : i32
    %c0_i32_0 = arith.constant 0 : i32
    %c0_i32_1 = arith.constant 0 : i32
    return %c0_i32, %c0_i32_0 : i32, i32
  }
  func.func @transform_9(%arg0: i32) -> (i32, i32) {
    %c0_i32 = arith.constant 0 : i32
    %c0_i32_0 = arith.constant 0 : i32
    %c0_i32_1 = arith.constant 0 : i32
    return %c0_i32, %c0_i32_0 : i32, i32
  }
  func.func @transform_10(%arg0: i32) -> (i32, i32) {
    %c0_i32 = arith.constant 0 : i32
    %c0_i32_0 = arith.constant 0 : i32
    %c0_i32_1 = arith.constant 0 : i32
    return %c0_i32, %c0_i32_0 : i32, i32
  }
  func.func @transform_11(%arg0: i32) -> (i32, i32) {
    %c0_i32 = arith.constant 0 : i32
    %c0_i32_0 = arith.constant 0 : i32
    %c0_i32_1 = arith.constant 0 : i32
    return %c0_i32, %c0_i32_0 : i32, i32
  }
  func.func @transform_12(%arg0: i32) -> (i32, i32) {
    %c0_i32 = arith.constant 0 : i32
    %c0_i32_0 = arith.constant 0 : i32
    %c0_i32_1 = arith.constant 0 : i32
    return %c0_i32, %c0_i32_0 : i32, i32
  }
  func.func @transform_13(%arg0: i32) -> (i32, i32) {
    %c0_i32 = arith.constant 0 : i32
    %c0_i32_0 = arith.constant 0 : i32
    %c0_i32_1 = arith.constant 0 : i32
    return %c0_i32, %c0_i32_0 : i32, i32
  }
  func.func @transform_14(%arg0: i32) -> (i32, i32) {
    %c0_i32 = arith.constant 0 : i32
    %c0_i32_0 = arith.constant 0 : i32
    %c0_i32_1 = arith.constant 0 : i32
    return %c0_i32, %c0_i32_0 : i32, i32
  }
  func.func @transform_15(%arg0: i32) -> (i32, i32) {
    %c0_i32 = arith.constant 0 : i32
    %c0_i32_0 = arith.constant 0 : i32
    %c0_i32_1 = arith.constant 0 : i32
    return %c0_i32, %c0_i32_0 : i32, i32
  }
  func.func @transform_16(%arg0: i32) -> (i32, i32) {
    %c0_i32 = arith.constant 0 : i32
    %c0_i32_0 = arith.constant 0 : i32
    %c0_i32_1 = arith.constant 0 : i32
    return %c0_i32, %c0_i32_0 : i32, i32
  }
  func.func @transform_17(%arg0: i32) -> (i32, i32) {
    %c0_i32 = arith.constant 0 : i32
    %c0_i32_0 = arith.constant 0 : i32
    %c0_i32_1 = arith.constant 0 : i32
    return %c0_i32, %c0_i32_0 : i32, i32
  }
  func.func @transform_18(%arg0: i32) -> (i32, i32) {
    %c0_i32 = arith.constant 0 : i32
    %c0_i32_0 = arith.constant 0 : i32
    %c0_i32_1 = arith.constant 0 : i32
    return %c0_i32, %c0_i32_0 : i32, i32
  }
  func.func @transform_19(%arg0: i32) -> (i32, i32) {
    %c0_i32 = arith.constant 0 : i32
    %c0_i32_0 = arith.constant 0 : i32
    return %c0_i32, %arg0 : i32, i32
  }
}

module attributes {stable_mosaic.version = 11 : i64} {
  func.func @kernel(%arg0: i32, %arg1: memref<8x32x35xf32, #tpu.memory_space<vmem>>, %arg2: memref<16x32x35xf32, #tpu.memory_space<vmem>>, %arg3: memref<8x32xf32, #tpu.memory_space<vmem>>, %arg4: memref<35x16xbf16, #tpu.memory_space<vmem>>, %arg5: memref<1x16xf32, #tpu.memory_space<vmem>>, %arg6: memref<16x16xbf16, #tpu.memory_space<vmem>>, %arg7: memref<1x16xf32, #tpu.memory_space<vmem>>, %arg8: memref<16x32xbf16, #tpu.memory_space<vmem>>, %arg9: memref<1x32xf32, #tpu.memory_space<vmem>>, %arg10: memref<32x8xbf16, #tpu.memory_space<vmem>>, %arg11: memref<32x1xf32, #tpu.memory_space<vmem>>, %arg12: memref<35x16xbf16, #tpu.memory_space<vmem>>, %arg13: memref<1x16xf32, #tpu.memory_space<vmem>>, %arg14: memref<16x16xbf16, #tpu.memory_space<vmem>>, %arg15: memref<1x16xf32, #tpu.memory_space<vmem>>, %arg16: memref<16x32xbf16, #tpu.memory_space<vmem>>, %arg17: memref<1x32xf32, #tpu.memory_space<vmem>>, %arg18: memref<32x8xbf16, #tpu.memory_space<vmem>>, %arg19: memref<32x1xf32, #tpu.memory_space<vmem>>, %arg20: memref<64x32xf32, #tpu.memory_space<vmem>>) attributes {dimension_semantics = [#tpu.dimension_semantics<parallel>], iteration_bounds = array<i64: 1>, scalar_prefetch = 0 : i64, scratch_operands = 0 : i64, tpu.core_type = #tpu.core_type<tc>, window_params = [{transform_indices = @transform_0, window_bounds = array<i64: 8, 32, 35>}, {transform_indices = @transform_1, window_bounds = array<i64: 16, 32, 35>}, {transform_indices = @transform_2, window_bounds = array<i64: 8, 32>}, {pipeline_mode = #tpu.pipeline_mode<synchronous>, transform_indices = @transform_3, window_bounds = array<i64: 35, 16>}, {pipeline_mode = #tpu.pipeline_mode<synchronous>, transform_indices = @transform_4, window_bounds = array<i64: 1, 16>}, {pipeline_mode = #tpu.pipeline_mode<synchronous>, transform_indices = @transform_5, window_bounds = array<i64: 16, 16>}, {pipeline_mode = #tpu.pipeline_mode<synchronous>, transform_indices = @transform_6, window_bounds = array<i64: 1, 16>}, {pipeline_mode = #tpu.pipeline_mode<synchronous>, transform_indices = @transform_7, window_bounds = array<i64: 16, 32>}, {pipeline_mode = #tpu.pipeline_mode<synchronous>, transform_indices = @transform_8, window_bounds = array<i64: 1, 32>}, {pipeline_mode = #tpu.pipeline_mode<synchronous>, transform_indices = @transform_9, window_bounds = array<i64: 32, 8>}, {pipeline_mode = #tpu.pipeline_mode<synchronous>, transform_indices = @transform_10, window_bounds = array<i64: 32, 1>}, {pipeline_mode = #tpu.pipeline_mode<synchronous>, transform_indices = @transform_11, window_bounds = array<i64: 35, 16>}, {pipeline_mode = #tpu.pipeline_mode<synchronous>, transform_indices = @transform_12, window_bounds = array<i64: 1, 16>}, {pipeline_mode = #tpu.pipeline_mode<synchronous>, transform_indices = @transform_13, window_bounds = array<i64: 16, 16>}, {pipeline_mode = #tpu.pipeline_mode<synchronous>, transform_indices = @transform_14, window_bounds = array<i64: 1, 16>}, {pipeline_mode = #tpu.pipeline_mode<synchronous>, transform_indices = @transform_15, window_bounds = array<i64: 16, 32>}, {pipeline_mode = #tpu.pipeline_mode<synchronous>, transform_indices = @transform_16, window_bounds = array<i64: 1, 32>}, {pipeline_mode = #tpu.pipeline_mode<synchronous>, transform_indices = @transform_17, window_bounds = array<i64: 32, 8>}, {pipeline_mode = #tpu.pipeline_mode<synchronous>, transform_indices = @transform_18, window_bounds = array<i64: 32, 1>}, {transform_indices = @transform_19, window_bounds = array<i64: 64, 32>}]} {
    %c0 = arith.constant 0 : index
    %c0_0 = arith.constant 0 : index
    %0 = vector.load %arg3[%c0, %c0_0] : memref<8x32xf32, #tpu.memory_space<vmem>>, vector<8x32xf32>
    %1 = arith.truncf %0 : vector<8x32xf32> to vector<8x32xbf16>
    %c0_1 = arith.constant 0 : index
    %c0_2 = arith.constant 0 : index
    %c0_3 = arith.constant 0 : index
    %2 = vector.load %arg1[%c0_1, %c0_2, %c0_3] : memref<8x32x35xf32, #tpu.memory_space<vmem>>, vector<8x32x35xf32>
    %3 = vector.shape_cast %2 : vector<8x32x35xf32> to vector<256x35xf32>
    %4 = arith.truncf %3 : vector<256x35xf32> to vector<256x35xbf16>
    %c0_4 = arith.constant 0 : index
    %c0_5 = arith.constant 0 : index
    %5 = vector.load %arg4[%c0_4, %c0_5] : memref<35x16xbf16, #tpu.memory_space<vmem>>, vector<35x16xbf16>
    %c0_6 = arith.constant 0 : index
    %c0_7 = arith.constant 0 : index
    %6 = vector.load %arg5[%c0_6, %c0_7] : memref<1x16xf32, #tpu.memory_space<vmem>>, vector<1x16xf32>
    %cst = arith.constant dense<0.000000e+00> : vector<256x16xf32>
    %7 = tpu.matmul %4, %5, %cst {dimension_numbers = #tpu.dot_dimension_numbers<[1], [0], [0], [1], [0, 0, 1, 1], [], []>} : vector<256x35xbf16>, vector<35x16xbf16>, vector<256x16xf32> -> vector<256x16xf32>
    %8 = vector.broadcast %6 : vector<1x16xf32> to vector<256x16xf32>
    %9 = arith.addf %7, %8 : vector<256x16xf32>
    %cst_8 = arith.constant 0.000000e+00 : f32
    %10 = vector.broadcast %cst_8 : f32 to vector<256x16xf32>
    %11 = arith.maximumf %9, %10 : vector<256x16xf32>
    %12 = arith.truncf %11 : vector<256x16xf32> to vector<256x16xbf16>
    %c0_9 = arith.constant 0 : index
    %c0_10 = arith.constant 0 : index
    %13 = vector.load %arg6[%c0_9, %c0_10] : memref<16x16xbf16, #tpu.memory_space<vmem>>, vector<16x16xbf16>
    %c0_11 = arith.constant 0 : index
    %c0_12 = arith.constant 0 : index
    %14 = vector.load %arg7[%c0_11, %c0_12] : memref<1x16xf32, #tpu.memory_space<vmem>>, vector<1x16xf32>
    %cst_13 = arith.constant dense<0.000000e+00> : vector<256x16xf32>
    %15 = tpu.matmul %12, %13, %cst_13 {dimension_numbers = #tpu.dot_dimension_numbers<[1], [0], [0], [1], [0, 0, 1, 1], [], []>} : vector<256x16xbf16>, vector<16x16xbf16>, vector<256x16xf32> -> vector<256x16xf32>
    %16 = vector.broadcast %14 : vector<1x16xf32> to vector<256x16xf32>
    %17 = arith.addf %15, %16 : vector<256x16xf32>
    %cst_14 = arith.constant 0.000000e+00 : f32
    %18 = vector.broadcast %cst_14 : f32 to vector<256x16xf32>
    %19 = arith.maximumf %17, %18 : vector<256x16xf32>
    %20 = arith.truncf %19 : vector<256x16xf32> to vector<256x16xbf16>
    %c0_15 = arith.constant 0 : index
    %c0_16 = arith.constant 0 : index
    %21 = vector.load %arg8[%c0_15, %c0_16] : memref<16x32xbf16, #tpu.memory_space<vmem>>, vector<16x32xbf16>
    %c0_17 = arith.constant 0 : index
    %c0_18 = arith.constant 0 : index
    %22 = vector.load %arg9[%c0_17, %c0_18] : memref<1x32xf32, #tpu.memory_space<vmem>>, vector<1x32xf32>
    %cst_19 = arith.constant dense<0.000000e+00> : vector<256x32xf32>
    %23 = tpu.matmul %20, %21, %cst_19 {dimension_numbers = #tpu.dot_dimension_numbers<[1], [0], [0], [1], [0, 0, 1, 1], [], []>} : vector<256x16xbf16>, vector<16x32xbf16>, vector<256x32xf32> -> vector<256x32xf32>
    %24 = vector.broadcast %22 : vector<1x32xf32> to vector<256x32xf32>
    %25 = arith.addf %23, %24 : vector<256x32xf32>
    %cst_20 = arith.constant 0.000000e+00 : f32
    %26 = vector.broadcast %cst_20 : f32 to vector<256x32xf32>
    %27 = arith.maximumf %25, %26 : vector<256x32xf32>
    %28 = vector.shape_cast %27 : vector<256x32xf32> to vector<8x32x32xf32>
    %cst_21 = arith.constant dense<0xFF800000> : vector<32x32xf32>
    %29 = vector.multi_reduction <maximumf>, %28, %cst_21 [0] : vector<8x32x32xf32> to vector<32x32xf32>
    %c0_22 = arith.constant 0 : index
    %c0_23 = arith.constant 0 : index
    %30 = vector.load %arg10[%c0_22, %c0_23] : memref<32x8xbf16, #tpu.memory_space<vmem>>, vector<32x8xbf16>
    %cst_24 = arith.constant dense<0.000000e+00> : vector<32x32xf32>
    %31 = tpu.matmul %30, %1, %cst_24 {dimension_numbers = #tpu.dot_dimension_numbers<[1], [0], [0], [1], [0, 0, 1, 1], [], []>} : vector<32x8xbf16>, vector<8x32xbf16>, vector<32x32xf32> -> vector<32x32xf32>
    %c0_25 = arith.constant 0 : index
    %c0_26 = arith.constant 0 : index
    %32 = vector.load %arg11[%c0_25, %c0_26] : memref<32x1xf32, #tpu.memory_space<vmem>>, vector<32x1xf32>
    %33 = vector.broadcast %32 : vector<32x1xf32> to vector<32x32xf32>
    %34 = arith.addf %31, %33 : vector<32x32xf32>
    %35 = arith.negf %34 : vector<32x32xf32>
    %36 = math.exp %35 : vector<32x32xf32>
    %cst_27 = arith.constant 1.000000e+00 : f32
    %37 = vector.broadcast %cst_27 : f32 to vector<32x32xf32>
    %38 = arith.addf %37, %36 : vector<32x32xf32>
    %39 = arith.divf %37, %38 : vector<32x32xf32>
    %40 = tpu.transpose %29, [1, 0] : vector<32x32xf32> -> vector<32x32xf32>
    %41 = arith.mulf %39, %40 : vector<32x32xf32>
    %c0_28 = arith.constant 0 : index
    %c0_29 = arith.constant 0 : index
    %42 = vector.load %arg20[%c0_28, %c0_29] : memref<64x32xf32, #tpu.memory_space<vmem>>, vector<32x32xf32>
    tpu.vector_store %arg20[%c0_28, %c0_29], %41 {strides = array<i32>} : memref<64x32xf32, #tpu.memory_space<vmem>>, vector<32x32xf32>,
    %c0_30 = arith.constant 0 : index
    %c0_31 = arith.constant 0 : index
    %c0_32 = arith.constant 0 : index
    %43 = vector.load %arg2[%c0_30, %c0_31, %c0_32] : memref<16x32x35xf32, #tpu.memory_space<vmem>>, vector<16x32x35xf32>
    %44 = vector.shape_cast %43 : vector<16x32x35xf32> to vector<512x35xf32>
    %45 = arith.truncf %44 : vector<512x35xf32> to vector<512x35xbf16>
    %c0_33 = arith.constant 0 : index
    %c0_34 = arith.constant 0 : index
    %46 = vector.load %arg12[%c0_33, %c0_34] : memref<35x16xbf16, #tpu.memory_space<vmem>>, vector<35x16xbf16>
    %c0_35 = arith.constant 0 : index
    %c0_36 = arith.constant 0 : index
    %47 = vector.load %arg13[%c0_35, %c0_36] : memref<1x16xf32, #tpu.memory_space<vmem>>, vector<1x16xf32>
    %cst_37 = arith.constant dense<0.000000e+00> : vector<512x16xf32>
    %48 = tpu.matmul %45, %46, %cst_37 {dimension_numbers = #tpu.dot_dimension_numbers<[1], [0], [0], [1], [0, 0, 1, 1], [], []>} : vector<512x35xbf16>, vector<35x16xbf16>, vector<512x16xf32> -> vector<512x16xf32>
    %49 = vector.broadcast %47 : vector<1x16xf32> to vector<512x16xf32>
    %50 = arith.addf %48, %49 : vector<512x16xf32>
    %cst_38 = arith.constant 0.000000e+00 : f32
    %51 = vector.broadcast %cst_38 : f32 to vector<512x16xf32>
    %52 = arith.maximumf %50, %51 : vector<512x16xf32>
    %53 = arith.truncf %52 : vector<512x16xf32> to vector<512x16xbf16>
    %c0_39 = arith.constant 0 : index
    %c0_40 = arith.constant 0 : index
    %54 = vector.load %arg14[%c0_39, %c0_40] : memref<16x16xbf16, #tpu.memory_space<vmem>>, vector<16x16xbf16>
    %c0_41 = arith.constant 0 : index
    %c0_42 = arith.constant 0 : index
    %55 = vector.load %arg15[%c0_41, %c0_42] : memref<1x16xf32, #tpu.memory_space<vmem>>, vector<1x16xf32>
    %cst_43 = arith.constant dense<0.000000e+00> : vector<512x16xf32>
    %56 = tpu.matmul %53, %54, %cst_43 {dimension_numbers = #tpu.dot_dimension_numbers<[1], [0], [0], [1], [0, 0, 1, 1], [], []>} : vector<512x16xbf16>, vector<16x16xbf16>, vector<512x16xf32> -> vector<512x16xf32>
    %57 = vector.broadcast %55 : vector<1x16xf32> to vector<512x16xf32>
    %58 = arith.addf %56, %57 : vector<512x16xf32>
    %cst_44 = arith.constant 0.000000e+00 : f32
    %59 = vector.broadcast %cst_44 : f32 to vector<512x16xf32>
    %60 = arith.maximumf %58, %59 : vector<512x16xf32>
    %61 = arith.truncf %60 : vector<512x16xf32> to vector<512x16xbf16>
    %c0_45 = arith.constant 0 : index
    %c0_46 = arith.constant 0 : index
    %62 = vector.load %arg16[%c0_45, %c0_46] : memref<16x32xbf16, #tpu.memory_space<vmem>>, vector<16x32xbf16>
    %c0_47 = arith.constant 0 : index
    %c0_48 = arith.constant 0 : index
    %63 = vector.load %arg17[%c0_47, %c0_48] : memref<1x32xf32, #tpu.memory_space<vmem>>, vector<1x32xf32>
    %cst_49 = arith.constant dense<0.000000e+00> : vector<512x32xf32>
    %64 = tpu.matmul %61, %62, %cst_49 {dimension_numbers = #tpu.dot_dimension_numbers<[1], [0], [0], [1], [0, 0, 1, 1], [], []>} : vector<512x16xbf16>, vector<16x32xbf16>, vector<512x32xf32> -> vector<512x32xf32>
    %65 = vector.broadcast %63 : vector<1x32xf32> to vector<512x32xf32>
    %66 = arith.addf %64, %65 : vector<512x32xf32>
    %cst_50 = arith.constant 0.000000e+00 : f32
    %67 = vector.broadcast %cst_50 : f32 to vector<512x32xf32>
    %68 = arith.maximumf %66, %67 : vector<512x32xf32>
    %69 = vector.shape_cast %68 : vector<512x32xf32> to vector<16x32x32xf32>
    %cst_51 = arith.constant dense<0xFF800000> : vector<32x32xf32>
    %70 = vector.multi_reduction <maximumf>, %69, %cst_51 [0] : vector<16x32x32xf32> to vector<32x32xf32>
    %c0_52 = arith.constant 0 : index
    %c0_53 = arith.constant 0 : index
    %71 = vector.load %arg18[%c0_52, %c0_53] : memref<32x8xbf16, #tpu.memory_space<vmem>>, vector<32x8xbf16>
    %cst_54 = arith.constant dense<0.000000e+00> : vector<32x32xf32>
    %72 = tpu.matmul %71, %1, %cst_54 {dimension_numbers = #tpu.dot_dimension_numbers<[1], [0], [0], [1], [0, 0, 1, 1], [], []>} : vector<32x8xbf16>, vector<8x32xbf16>, vector<32x32xf32> -> vector<32x32xf32>
    %c0_55 = arith.constant 0 : index
    %c0_56 = arith.constant 0 : index
    %73 = vector.load %arg19[%c0_55, %c0_56] : memref<32x1xf32, #tpu.memory_space<vmem>>, vector<32x1xf32>
    %74 = vector.broadcast %73 : vector<32x1xf32> to vector<32x32xf32>
    %75 = arith.addf %72, %74 : vector<32x32xf32>
    %76 = arith.negf %75 : vector<32x32xf32>
    %77 = math.exp %76 : vector<32x32xf32>
    %cst_57 = arith.constant 1.000000e+00 : f32
    %78 = vector.broadcast %cst_57 : f32 to vector<32x32xf32>
    %79 = arith.addf %78, %77 : vector<32x32xf32>
    %80 = arith.divf %78, %79 : vector<32x32xf32>
    %81 = tpu.transpose %70, [1, 0] : vector<32x32xf32> -> vector<32x32xf32>
    %82 = arith.mulf %80, %81 : vector<32x32xf32>
    %c32 = arith.constant 32 : index
    %c0_58 = arith.constant 0 : index
    %83 = vector.load %arg20[%c32, %c0_58] : memref<64x32xf32, #tpu.memory_space<vmem>>, vector<32x32xf32>
    tpu.vector_store %arg20[%c32, %c0_58], %82 {strides = array<i32>} : memref<64x32xf32, #tpu.memory_space<vmem>>, vector<32x32xf32>,
    return
  }
  func.func @transform_0(%arg0: i32) -> (i32, i32, i32) {
    %c0_i32 = arith.constant 0 : i32
    %c0_i32_0 = arith.constant 0 : i32
    %c0_i32_1 = arith.constant 0 : i32
    return %c0_i32, %arg0, %c0_i32_0 : i32, i32, i32
  }
  func.func @transform_1(%arg0: i32) -> (i32, i32, i32) {
    %c0_i32 = arith.constant 0 : i32
    %c0_i32_0 = arith.constant 0 : i32
    %c0_i32_1 = arith.constant 0 : i32
    return %c0_i32, %arg0, %c0_i32_0 : i32, i32, i32
  }
  func.func @transform_2(%arg0: i32) -> (i32, i32) {
    %c0_i32 = arith.constant 0 : i32
    %c0_i32_0 = arith.constant 0 : i32
    return %c0_i32, %arg0 : i32, i32
  }
  func.func @transform_3(%arg0: i32) -> (i32, i32) {
    %c0_i32 = arith.constant 0 : i32
    %c0_i32_0 = arith.constant 0 : i32
    %c0_i32_1 = arith.constant 0 : i32
    return %c0_i32, %c0_i32_0 : i32, i32
  }
  func.func @transform_4(%arg0: i32) -> (i32, i32) {
    %c0_i32 = arith.constant 0 : i32
    %c0_i32_0 = arith.constant 0 : i32
    %c0_i32_1 = arith.constant 0 : i32
    return %c0_i32, %c0_i32_0 : i32, i32
  }
  func.func @transform_5(%arg0: i32) -> (i32, i32) {
    %c0_i32 = arith.constant 0 : i32
    %c0_i32_0 = arith.constant 0 : i32
    %c0_i32_1 = arith.constant 0 : i32
    return %c0_i32, %c0_i32_0 : i32, i32
  }
  func.func @transform_6(%arg0: i32) -> (i32, i32) {
    %c0_i32 = arith.constant 0 : i32
    %c0_i32_0 = arith.constant 0 : i32
    %c0_i32_1 = arith.constant 0 : i32
    return %c0_i32, %c0_i32_0 : i32, i32
  }
  func.func @transform_7(%arg0: i32) -> (i32, i32) {
    %c0_i32 = arith.constant 0 : i32
    %c0_i32_0 = arith.constant 0 : i32
    %c0_i32_1 = arith.constant 0 : i32
    return %c0_i32, %c0_i32_0 : i32, i32
  }
  func.func @transform_8(%arg0: i32) -> (i32, i32) {
    %c0_i32 = arith.constant 0 : i32
    %c0_i32_0 = arith.constant 0 : i32
    %c0_i32_1 = arith.constant 0 : i32
    return %c0_i32, %c0_i32_0 : i32, i32
  }
  func.func @transform_9(%arg0: i32) -> (i32, i32) {
    %c0_i32 = arith.constant 0 : i32
    %c0_i32_0 = arith.constant 0 : i32
    %c0_i32_1 = arith.constant 0 : i32
    return %c0_i32, %c0_i32_0 : i32, i32
  }
  func.func @transform_10(%arg0: i32) -> (i32, i32) {
    %c0_i32 = arith.constant 0 : i32
    %c0_i32_0 = arith.constant 0 : i32
    %c0_i32_1 = arith.constant 0 : i32
    return %c0_i32, %c0_i32_0 : i32, i32
  }
  func.func @transform_11(%arg0: i32) -> (i32, i32) {
    %c0_i32 = arith.constant 0 : i32
    %c0_i32_0 = arith.constant 0 : i32
    %c0_i32_1 = arith.constant 0 : i32
    return %c0_i32, %c0_i32_0 : i32, i32
  }
  func.func @transform_12(%arg0: i32) -> (i32, i32) {
    %c0_i32 = arith.constant 0 : i32
    %c0_i32_0 = arith.constant 0 : i32
    %c0_i32_1 = arith.constant 0 : i32
    return %c0_i32, %c0_i32_0 : i32, i32
  }
  func.func @transform_13(%arg0: i32) -> (i32, i32) {
    %c0_i32 = arith.constant 0 : i32
    %c0_i32_0 = arith.constant 0 : i32
    %c0_i32_1 = arith.constant 0 : i32
    return %c0_i32, %c0_i32_0 : i32, i32
  }
  func.func @transform_14(%arg0: i32) -> (i32, i32) {
    %c0_i32 = arith.constant 0 : i32
    %c0_i32_0 = arith.constant 0 : i32
    %c0_i32_1 = arith.constant 0 : i32
    return %c0_i32, %c0_i32_0 : i32, i32
  }
  func.func @transform_15(%arg0: i32) -> (i32, i32) {
    %c0_i32 = arith.constant 0 : i32
    %c0_i32_0 = arith.constant 0 : i32
    %c0_i32_1 = arith.constant 0 : i32
    return %c0_i32, %c0_i32_0 : i32, i32
  }
  func.func @transform_16(%arg0: i32) -> (i32, i32) {
    %c0_i32 = arith.constant 0 : i32
    %c0_i32_0 = arith.constant 0 : i32
    %c0_i32_1 = arith.constant 0 : i32
    return %c0_i32, %c0_i32_0 : i32, i32
  }
  func.func @transform_17(%arg0: i32) -> (i32, i32) {
    %c0_i32 = arith.constant 0 : i32
    %c0_i32_0 = arith.constant 0 : i32
    %c0_i32_1 = arith.constant 0 : i32
    return %c0_i32, %c0_i32_0 : i32, i32
  }
  func.func @transform_18(%arg0: i32) -> (i32, i32) {
    %c0_i32 = arith.constant 0 : i32
    %c0_i32_0 = arith.constant 0 : i32
    %c0_i32_1 = arith.constant 0 : i32
    return %c0_i32, %c0_i32_0 : i32, i32
  }
  func.func @transform_19(%arg0: i32) -> (i32, i32) {
    %c0_i32 = arith.constant 0 : i32
    %c0_i32_0 = arith.constant 0 : i32
    return %c0_i32, %arg0 : i32, i32
  }
}

module attributes {stable_mosaic.version = 11 : i64} {
  func.func @kernel(%arg0: i32, %arg1: memref<64x96xf32, #tpu.memory_space<vmem>>, %arg2: memref<8x64xf32, #tpu.memory_space<vmem>>, %arg3: memref<96x32xbf16, #tpu.memory_space<vmem>>, %arg4: memref<1x32xf32, #tpu.memory_space<vmem>>, %arg5: memref<32x32xbf16, #tpu.memory_space<vmem>>, %arg6: memref<1x32xf32, #tpu.memory_space<vmem>>, %arg7: memref<32x8xbf16, #tpu.memory_space<vmem>>, %arg8: memref<32x1xf32, #tpu.memory_space<vmem>>, %arg9: memref<32x64xf32, #tpu.memory_space<vmem>>) attributes {dimension_semantics = [#tpu.dimension_semantics<parallel>], iteration_bounds = array<i64: 1>, scalar_prefetch = 0 : i64, scratch_operands = 0 : i64, tpu.core_type = #tpu.core_type<tc>, window_params = [{transform_indices = @transform_0, window_bounds = array<i64: 64, 96>}, {transform_indices = @transform_1, window_bounds = array<i64: 8, 64>}, {pipeline_mode = #tpu.pipeline_mode<synchronous>, transform_indices = @transform_2, window_bounds = array<i64: 96, 32>}, {pipeline_mode = #tpu.pipeline_mode<synchronous>, transform_indices = @transform_3, window_bounds = array<i64: 1, 32>}, {pipeline_mode = #tpu.pipeline_mode<synchronous>, transform_indices = @transform_4, window_bounds = array<i64: 32, 32>}, {pipeline_mode = #tpu.pipeline_mode<synchronous>, transform_indices = @transform_5, window_bounds = array<i64: 1, 32>}, {pipeline_mode = #tpu.pipeline_mode<synchronous>, transform_indices = @transform_6, window_bounds = array<i64: 32, 8>}, {pipeline_mode = #tpu.pipeline_mode<synchronous>, transform_indices = @transform_7, window_bounds = array<i64: 32, 1>}, {transform_indices = @transform_8, window_bounds = array<i64: 32, 64>}]} {
    %c0 = arith.constant 0 : index
    %c0_0 = arith.constant 0 : index
    %0 = vector.load %arg1[%c0, %c0_0] : memref<64x96xf32, #tpu.memory_space<vmem>>, vector<64x96xf32>
    %1 = arith.truncf %0 : vector<64x96xf32> to vector<64x96xbf16>
    %c0_1 = arith.constant 0 : index
    %c0_2 = arith.constant 0 : index
    %2 = vector.load %arg3[%c0_1, %c0_2] : memref<96x32xbf16, #tpu.memory_space<vmem>>, vector<96x32xbf16>
    %c0_3 = arith.constant 0 : index
    %c0_4 = arith.constant 0 : index
    %3 = vector.load %arg4[%c0_3, %c0_4] : memref<1x32xf32, #tpu.memory_space<vmem>>, vector<1x32xf32>
    %cst = arith.constant dense<0.000000e+00> : vector<64x32xf32>
    %4 = tpu.matmul %1, %2, %cst {dimension_numbers = #tpu.dot_dimension_numbers<[1], [0], [0], [1], [0, 0, 1, 1], [], []>} : vector<64x96xbf16>, vector<96x32xbf16>, vector<64x32xf32> -> vector<64x32xf32>
    %5 = vector.broadcast %3 : vector<1x32xf32> to vector<64x32xf32>
    %6 = arith.addf %4, %5 : vector<64x32xf32>
    %cst_5 = arith.constant 0.000000e+00 : f32
    %7 = vector.broadcast %cst_5 : f32 to vector<64x32xf32>
    %8 = arith.maximumf %6, %7 : vector<64x32xf32>
    %9 = arith.truncf %8 : vector<64x32xf32> to vector<64x32xbf16>
    %c0_6 = arith.constant 0 : index
    %c0_7 = arith.constant 0 : index
    %10 = vector.load %arg5[%c0_6, %c0_7] : memref<32x32xbf16, #tpu.memory_space<vmem>>, vector<32x32xbf16>
    %c0_8 = arith.constant 0 : index
    %c0_9 = arith.constant 0 : index
    %11 = vector.load %arg6[%c0_8, %c0_9] : memref<1x32xf32, #tpu.memory_space<vmem>>, vector<1x32xf32>
    %cst_10 = arith.constant dense<0.000000e+00> : vector<64x32xf32>
    %12 = tpu.matmul %9, %10, %cst_10 {dimension_numbers = #tpu.dot_dimension_numbers<[1], [0], [0], [1], [0, 0, 1, 1], [], []>} : vector<64x32xbf16>, vector<32x32xbf16>, vector<64x32xf32> -> vector<64x32xf32>
    %13 = vector.broadcast %11 : vector<1x32xf32> to vector<64x32xf32>
    %14 = arith.addf %12, %13 : vector<64x32xf32>
    %cst_11 = arith.constant 0.000000e+00 : f32
    %15 = vector.broadcast %cst_11 : f32 to vector<64x32xf32>
    %16 = arith.maximumf %14, %15 : vector<64x32xf32>
    %c0_12 = arith.constant 0 : index
    %c0_13 = arith.constant 0 : index
    %17 = vector.load %arg7[%c0_12, %c0_13] : memref<32x8xbf16, #tpu.memory_space<vmem>>, vector<32x8xbf16>
    %c0_14 = arith.constant 0 : index
    %c0_15 = arith.constant 0 : index
    %18 = vector.load %arg2[%c0_14, %c0_15] : memref<8x64xf32, #tpu.memory_space<vmem>>, vector<8x64xf32>
    %19 = arith.truncf %18 : vector<8x64xf32> to vector<8x64xbf16>
    %cst_16 = arith.constant dense<0.000000e+00> : vector<32x64xf32>
    %20 = tpu.matmul %17, %19, %cst_16 {dimension_numbers = #tpu.dot_dimension_numbers<[1], [0], [0], [1], [0, 0, 1, 1], [], []>} : vector<32x8xbf16>, vector<8x64xbf16>, vector<32x64xf32> -> vector<32x64xf32>
    %c0_17 = arith.constant 0 : index
    %c0_18 = arith.constant 0 : index
    %21 = vector.load %arg8[%c0_17, %c0_18] : memref<32x1xf32, #tpu.memory_space<vmem>>, vector<32x1xf32>
    %22 = vector.broadcast %21 : vector<32x1xf32> to vector<32x64xf32>
    %23 = arith.addf %20, %22 : vector<32x64xf32>
    %24 = arith.negf %23 : vector<32x64xf32>
    %25 = math.exp %24 : vector<32x64xf32>
    %cst_19 = arith.constant 1.000000e+00 : f32
    %26 = vector.broadcast %cst_19 : f32 to vector<32x64xf32>
    %27 = arith.addf %26, %25 : vector<32x64xf32>
    %28 = arith.divf %26, %27 : vector<32x64xf32>
    %29 = tpu.transpose %16, [1, 0] : vector<64x32xf32> -> vector<32x64xf32>
    %30 = arith.mulf %28, %29 : vector<32x64xf32>
    %c0_20 = arith.constant 0 : index
    %c0_21 = arith.constant 0 : index
    %31 = vector.load %arg9[%c0_20, %c0_21] : memref<32x64xf32, #tpu.memory_space<vmem>>, vector<32x64xf32>
    tpu.vector_store %arg9[%c0_20, %c0_21], %30 {strides = array<i32>} : memref<32x64xf32, #tpu.memory_space<vmem>>, vector<32x64xf32>,
    return
  }
  func.func @transform_0(%arg0: i32) -> (i32, i32) {
    %c0_i32 = arith.constant 0 : i32
    %c0_i32_0 = arith.constant 0 : i32
    return %arg0, %c0_i32 : i32, i32
  }
  func.func @transform_1(%arg0: i32) -> (i32, i32) {
    %c0_i32 = arith.constant 0 : i32
    %c0_i32_0 = arith.constant 0 : i32
    return %c0_i32, %arg0 : i32, i32
  }
  func.func @transform_2(%arg0: i32) -> (i32, i32) {
    %c0_i32 = arith.constant 0 : i32
    %c0_i32_0 = arith.constant 0 : i32
    %c0_i32_1 = arith.constant 0 : i32
    return %c0_i32, %c0_i32_0 : i32, i32
  }
  func.func @transform_3(%arg0: i32) -> (i32, i32) {
    %c0_i32 = arith.constant 0 : i32
    %c0_i32_0 = arith.constant 0 : i32
    %c0_i32_1 = arith.constant 0 : i32
    return %c0_i32, %c0_i32_0 : i32, i32
  }
  func.func @transform_4(%arg0: i32) -> (i32, i32) {
    %c0_i32 = arith.constant 0 : i32
    %c0_i32_0 = arith.constant 0 : i32
    %c0_i32_1 = arith.constant 0 : i32
    return %c0_i32, %c0_i32_0 : i32, i32
  }
  func.func @transform_5(%arg0: i32) -> (i32, i32) {
    %c0_i32 = arith.constant 0 : i32
    %c0_i32_0 = arith.constant 0 : i32
    %c0_i32_1 = arith.constant 0 : i32
    return %c0_i32, %c0_i32_0 : i32, i32
  }
  func.func @transform_6(%arg0: i32) -> (i32, i32) {
    %c0_i32 = arith.constant 0 : i32
    %c0_i32_0 = arith.constant 0 : i32
    %c0_i32_1 = arith.constant 0 : i32
    return %c0_i32, %c0_i32_0 : i32, i32
  }
  func.func @transform_7(%arg0: i32) -> (i32, i32) {
    %c0_i32 = arith.constant 0 : i32
    %c0_i32_0 = arith.constant 0 : i32
    %c0_i32_1 = arith.constant 0 : i32
    return %c0_i32, %c0_i32_0 : i32, i32
  }
  func.func @transform_8(%arg0: i32) -> (i32, i32) {
    %c0_i32 = arith.constant 0 : i32
    %c0_i32_0 = arith.constant 0 : i32
    return %c0_i32, %arg0 : i32, i32
  }
}

module attributes {stable_mosaic.version = 11 : i64} {
  func.func @kernel(%arg0: i32, %arg1: memref<128x33xf32, #tpu.memory_space<vmem>>, %arg2: memref<8x128xf32, #tpu.memory_space<vmem>>, %arg3: memref<33x32xbf16, #tpu.memory_space<vmem>>, %arg4: memref<1x32xf32, #tpu.memory_space<vmem>>, %arg5: memref<32x32xbf16, #tpu.memory_space<vmem>>, %arg6: memref<1x32xf32, #tpu.memory_space<vmem>>, %arg7: memref<32x8xbf16, #tpu.memory_space<vmem>>, %arg8: memref<32x1xf32, #tpu.memory_space<vmem>>, %arg9: memref<32x128xf32, #tpu.memory_space<vmem>>) attributes {dimension_semantics = [#tpu.dimension_semantics<parallel>], iteration_bounds = array<i64: 1>, scalar_prefetch = 0 : i64, scratch_operands = 0 : i64, tpu.core_type = #tpu.core_type<tc>, window_params = [{transform_indices = @transform_0, window_bounds = array<i64: 128, 33>}, {transform_indices = @transform_1, window_bounds = array<i64: 8, 128>}, {pipeline_mode = #tpu.pipeline_mode<synchronous>, transform_indices = @transform_2, window_bounds = array<i64: 33, 32>}, {pipeline_mode = #tpu.pipeline_mode<synchronous>, transform_indices = @transform_3, window_bounds = array<i64: 1, 32>}, {pipeline_mode = #tpu.pipeline_mode<synchronous>, transform_indices = @transform_4, window_bounds = array<i64: 32, 32>}, {pipeline_mode = #tpu.pipeline_mode<synchronous>, transform_indices = @transform_5, window_bounds = array<i64: 1, 32>}, {pipeline_mode = #tpu.pipeline_mode<synchronous>, transform_indices = @transform_6, window_bounds = array<i64: 32, 8>}, {pipeline_mode = #tpu.pipeline_mode<synchronous>, transform_indices = @transform_7, window_bounds = array<i64: 32, 1>}, {transform_indices = @transform_8, window_bounds = array<i64: 32, 128>}]} {
    %c0 = arith.constant 0 : index
    %c0_0 = arith.constant 0 : index
    %0 = vector.load %arg1[%c0, %c0_0] : memref<128x33xf32, #tpu.memory_space<vmem>>, vector<128x33xf32>
    %1 = arith.truncf %0 : vector<128x33xf32> to vector<128x33xbf16>
    %c0_1 = arith.constant 0 : index
    %c0_2 = arith.constant 0 : index
    %2 = vector.load %arg3[%c0_1, %c0_2] : memref<33x32xbf16, #tpu.memory_space<vmem>>, vector<33x32xbf16>
    %c0_3 = arith.constant 0 : index
    %c0_4 = arith.constant 0 : index
    %3 = vector.load %arg4[%c0_3, %c0_4] : memref<1x32xf32, #tpu.memory_space<vmem>>, vector<1x32xf32>
    %cst = arith.constant dense<0.000000e+00> : vector<128x32xf32>
    %4 = tpu.matmul %1, %2, %cst {dimension_numbers = #tpu.dot_dimension_numbers<[1], [0], [0], [1], [0, 0, 1, 1], [], []>} : vector<128x33xbf16>, vector<33x32xbf16>, vector<128x32xf32> -> vector<128x32xf32>
    %5 = vector.broadcast %3 : vector<1x32xf32> to vector<128x32xf32>
    %6 = arith.addf %4, %5 : vector<128x32xf32>
    %cst_5 = arith.constant 0.000000e+00 : f32
    %7 = vector.broadcast %cst_5 : f32 to vector<128x32xf32>
    %8 = arith.maximumf %6, %7 : vector<128x32xf32>
    %9 = arith.truncf %8 : vector<128x32xf32> to vector<128x32xbf16>
    %c0_6 = arith.constant 0 : index
    %c0_7 = arith.constant 0 : index
    %10 = vector.load %arg5[%c0_6, %c0_7] : memref<32x32xbf16, #tpu.memory_space<vmem>>, vector<32x32xbf16>
    %c0_8 = arith.constant 0 : index
    %c0_9 = arith.constant 0 : index
    %11 = vector.load %arg6[%c0_8, %c0_9] : memref<1x32xf32, #tpu.memory_space<vmem>>, vector<1x32xf32>
    %cst_10 = arith.constant dense<0.000000e+00> : vector<128x32xf32>
    %12 = tpu.matmul %9, %10, %cst_10 {dimension_numbers = #tpu.dot_dimension_numbers<[1], [0], [0], [1], [0, 0, 1, 1], [], []>} : vector<128x32xbf16>, vector<32x32xbf16>, vector<128x32xf32> -> vector<128x32xf32>
    %13 = vector.broadcast %11 : vector<1x32xf32> to vector<128x32xf32>
    %14 = arith.addf %12, %13 : vector<128x32xf32>
    %cst_11 = arith.constant 0.000000e+00 : f32
    %15 = vector.broadcast %cst_11 : f32 to vector<128x32xf32>
    %16 = arith.maximumf %14, %15 : vector<128x32xf32>
    %c0_12 = arith.constant 0 : index
    %c0_13 = arith.constant 0 : index
    %17 = vector.load %arg7[%c0_12, %c0_13] : memref<32x8xbf16, #tpu.memory_space<vmem>>, vector<32x8xbf16>
    %c0_14 = arith.constant 0 : index
    %c0_15 = arith.constant 0 : index
    %18 = vector.load %arg2[%c0_14, %c0_15] : memref<8x128xf32, #tpu.memory_space<vmem>>, vector<8x128xf32>
    %19 = arith.truncf %18 : vector<8x128xf32> to vector<8x128xbf16>
    %cst_16 = arith.constant dense<0.000000e+00> : vector<32x128xf32>
    %20 = tpu.matmul %17, %19, %cst_16 {dimension_numbers = #tpu.dot_dimension_numbers<[1], [0], [0], [1], [0, 0, 1, 1], [], []>} : vector<32x8xbf16>, vector<8x128xbf16>, vector<32x128xf32> -> vector<32x128xf32>
    %c0_17 = arith.constant 0 : index
    %c0_18 = arith.constant 0 : index
    %21 = vector.load %arg8[%c0_17, %c0_18] : memref<32x1xf32, #tpu.memory_space<vmem>>, vector<32x1xf32>
    %22 = vector.broadcast %21 : vector<32x1xf32> to vector<32x128xf32>
    %23 = arith.addf %20, %22 : vector<32x128xf32>
    %24 = arith.negf %23 : vector<32x128xf32>
    %25 = math.exp %24 : vector<32x128xf32>
    %cst_19 = arith.constant 1.000000e+00 : f32
    %26 = vector.broadcast %cst_19 : f32 to vector<32x128xf32>
    %27 = arith.addf %26, %25 : vector<32x128xf32>
    %28 = arith.divf %26, %27 : vector<32x128xf32>
    %29 = tpu.transpose %16, [1, 0] : vector<128x32xf32> -> vector<32x128xf32>
    %30 = arith.mulf %28, %29 : vector<32x128xf32>
    %c0_20 = arith.constant 0 : index
    %c0_21 = arith.constant 0 : index
    %31 = vector.load %arg9[%c0_20, %c0_21] : memref<32x128xf32, #tpu.memory_space<vmem>>, vector<32x128xf32>
    tpu.vector_store %arg9[%c0_20, %c0_21], %30 {strides = array<i32>} : memref<32x128xf32, #tpu.memory_space<vmem>>, vector<32x128xf32>,
    return
  }
  func.func @transform_0(%arg0: i32) -> (i32, i32) {
    %c0_i32 = arith.constant 0 : i32
    %c0_i32_0 = arith.constant 0 : i32
    return %arg0, %c0_i32 : i32, i32
  }
  func.func @transform_1(%arg0: i32) -> (i32, i32) {
    %c0_i32 = arith.constant 0 : i32
    %c0_i32_0 = arith.constant 0 : i32
    return %c0_i32, %arg0 : i32, i32
  }
  func.func @transform_2(%arg0: i32) -> (i32, i32) {
    %c0_i32 = arith.constant 0 : i32
    %c0_i32_0 = arith.constant 0 : i32
    %c0_i32_1 = arith.constant 0 : i32
    return %c0_i32, %c0_i32_0 : i32, i32
  }
  func.func @transform_3(%arg0: i32) -> (i32, i32) {
    %c0_i32 = arith.constant 0 : i32
    %c0_i32_0 = arith.constant 0 : i32
    %c0_i32_1 = arith.constant 0 : i32
    return %c0_i32, %c0_i32_0 : i32, i32
  }
  func.func @transform_4(%arg0: i32) -> (i32, i32) {
    %c0_i32 = arith.constant 0 : i32
    %c0_i32_0 = arith.constant 0 : i32
    %c0_i32_1 = arith.constant 0 : i32
    return %c0_i32, %c0_i32_0 : i32, i32
  }
  func.func @transform_5(%arg0: i32) -> (i32, i32) {
    %c0_i32 = arith.constant 0 : i32
    %c0_i32_0 = arith.constant 0 : i32
    %c0_i32_1 = arith.constant 0 : i32
    return %c0_i32, %c0_i32_0 : i32, i32
  }
  func.func @transform_6(%arg0: i32) -> (i32, i32) {
    %c0_i32 = arith.constant 0 : i32
    %c0_i32_0 = arith.constant 0 : i32
    %c0_i32_1 = arith.constant 0 : i32
    return %c0_i32, %c0_i32_0 : i32, i32
  }
  func.func @transform_7(%arg0: i32) -> (i32, i32) {
    %c0_i32 = arith.constant 0 : i32
    %c0_i32_0 = arith.constant 0 : i32
    %c0_i32_1 = arith.constant 0 : i32
    return %c0_i32, %c0_i32_0 : i32, i32
  }
  func.func @transform_8(%arg0: i32) -> (i32, i32) {
    %c0_i32 = arith.constant 0 : i32
    %c0_i32_0 = arith.constant 0 : i32
    return %c0_i32, %arg0 : i32, i32
  }
}

</mosaic_0001>

<llo_original>
// kernel: custom-call.56
$region0: #{custom-call.56}
  %s0 = inlined_call_operand.vmem [shape: f32[2,64], index: 0, kind: output, shape index: {}]

// kernel: custom-call.57
$region0: #{custom-call.57}
  %s0 = inlined_call_operand.vmem [shape: f32[2,32], index: 0, kind: output, shape index: {}]

// kernel: forward.4
$region0: #{forward.4}
  #allocation0 [shape = 'u32[]', space=smem, size = 0x4, offset = 0x4, fixed_abs, tag = 'smem constant byte address 0x4 - core index']
  #allocation1 [shape = 'u32[72,128]{1,0:T(1,128)}', space=vmem, size = 0x9000, scoped, tag = 'internal scratch']
  %s0 = inlined_call_operand.vmem [shape: f32[8,64,4], index: 0, kind: input, shape index: {}]
  %s1 = inlined_call_operand.vmem [shape: f32[16,64,4], index: 1, kind: input, shape index: {}]
  %s2 = inlined_call_operand.vmem [shape: f32[8,64], index: 2, kind: input, shape index: {}]
  %s3 = inlined_call_operand.vmem [shape: bf16[4,8], index: 3, kind: input, shape index: {}]
  %s4 = inlined_call_operand.vmem [shape: f32[1,8], index: 4, kind: input, shape index: {}]
  %s5 = inlined_call_operand.vmem [shape: bf16[8,8], index: 5, kind: input, shape index: {}]
  %s6 = inlined_call_operand.vmem [shape: f32[1,8], index: 6, kind: input, shape index: {}]
  %s7 = inlined_call_operand.vmem [shape: bf16[8,16], index: 7, kind: input, shape index: {}]
  %s8 = inlined_call_operand.vmem [shape: f32[1,16], index: 8, kind: input, shape index: {}]
  %s9 = inlined_call_operand.vmem [shape: bf16[16,8], index: 9, kind: input, shape index: {}]
  %s10 = inlined_call_operand.vmem [shape: f32[16,1], index: 10, kind: input, shape index: {}]
  %s11 = inlined_call_operand.vmem [shape: bf16[4,8], index: 11, kind: input, shape index: {}]
  %s12 = inlined_call_operand.vmem [shape: f32[1,8], index: 12, kind: input, shape index: {}]
  %s13 = inlined_call_operand.vmem [shape: bf16[8,8], index: 13, kind: input, shape index: {}]
  %s14 = inlined_call_operand.vmem [shape: f32[1,8], index: 14, kind: input, shape index: {}]
  %s15 = inlined_call_operand.vmem [shape: bf16[8,16], index: 15, kind: input, shape index: {}]
  %s16 = inlined_call_operand.vmem [shape: f32[1,16], index: 16, kind: input, shape index: {}]
  %s17 = inlined_call_operand.vmem [shape: bf16[16,8], index: 17, kind: input, shape index: {}]
  %s18 = inlined_call_operand.vmem [shape: f32[16,1], index: 18, kind: input, shape index: {}]
  %s19 = inlined_call_operand.vmem [shape: f32[32,64], index: 19, kind: output, shape index: {}]
  %s20 = sld [smem:[#allocation0]]
  $region86: #{forward.4} parent=0
    _
  %s22 = ssub.s32 1, %s20
  %s23 = scalar_select 0, %s22, %s20
  // Predicated region
  $region2: #{forward.4} parent=0 // pred_check
    _
  $region3: #{forward.4} parent=0 // pred_check_branch
    %25 = sbr.rel (0) target = $region5
  $region4: #{forward.4} parent=0 // pred_region
    _
  $region5: #{forward.4} parent=0 // pred_fallthru
    _
  // Predicated region
  $region6: #{forward.4} parent=0 // pred_check
    _
  $region7: #{forward.4} parent=0 // pred_check_branch
    %27 = sbr.rel (0) target = $region9
  $region8: #{forward.4} parent=0 // pred_region
    _
  $region9: #{forward.4} parent=0 // pred_fallthru
    _
  // Predicated region
  $region10: #{forward.4} parent=0 // pred_check
    _
  $region11: #{forward.4} parent=0 // pred_check_branch
    %29 = sbr.rel (0) target = $region13
  $region12: #{forward.4} parent=0 // pred_region
    _
  $region13: #{forward.4} parent=0 // pred_fallthru
    _
  // Predicated region
  $region14: #{forward.4} parent=0 // pred_check
    _
  $region15: #{forward.4} parent=0 // pred_check_branch
    %31 = sbr.rel (0) target = $region17
  $region16: #{forward.4} parent=0 // pred_region
    _
  $region17: #{forward.4} parent=0 // pred_fallthru
    _
  // Predicated region
  $region18: #{forward.4} parent=0 // pred_check
    _
  $region19: #{forward.4} parent=0 // pred_check_branch
    %33 = sbr.rel (0) target = $region21
  $region20: #{forward.4} parent=0 // pred_region
    _
  $region21: #{forward.4} parent=0 // pred_fallthru
    _
  // Predicated region
  $region22: #{forward.4} parent=0 // pred_check
    _
  $region23: #{forward.4} parent=0 // pred_check_branch
    %35 = sbr.rel (0) target = $region25
  $region24: #{forward.4} parent=0 // pred_region
    _
  $region25: #{forward.4} parent=0 // pred_fallthru
    _
  // Predicated region
  $region26: #{forward.4} parent=0 // pred_check
    _
  $region27: #{forward.4} parent=0 // pred_check_branch
    %37 = sbr.rel (0) target = $region29
  $region28: #{forward.4} parent=0 // pred_region
    _
  $region29: #{forward.4} parent=0 // pred_fallthru
    _
  // Predicated region
  $region30: #{forward.4} parent=0 // pred_check
    _
  $region31: #{forward.4} parent=0 // pred_check_branch
    %39 = sbr.rel (0) target = $region33
  $region32: #{forward.4} parent=0 // pred_region
    _
  $region33: #{forward.4} parent=0 // pred_fallthru
    _
  // Predicated region
  $region34: #{forward.4} parent=0 // pred_check
    _
  $region35: #{forward.4} parent=0 // pred_check_branch
    %41 = sbr.rel (0) target = $region37
  $region36: #{forward.4} parent=0 // pred_region
    _
  $region37: #{forward.4} parent=0 // pred_fallthru
    _
  // Predicated region
  $region38: #{forward.4} parent=0 // pred_check
    _
  $region39: #{forward.4} parent=0 // pred_check_branch
    %43 = sbr.rel (0) target = $region41
  $region40: #{forward.4} parent=0 // pred_region
    _
  $region41: #{forward.4} parent=0 // pred_fallthru
    _
  // Predicated region
  $region42: #{forward.4} parent=0 // pred_check
    _
  $region43: #{forward.4} parent=0 // pred_check_branch
    %45 = sbr.rel (0) target = $region45
  $region44: #{forward.4} parent=0 // pred_region
    _
  $region45: #{forward.4} parent=0 // pred_fallthru
    _
  // Predicated region
  $region46: #{forward.4} parent=0 // pred_check
    _
  $region47: #{forward.4} parent=0 // pred_check_branch
    %47 = sbr.rel (0) target = $region49
  $region48: #{forward.4} parent=0 // pred_region
    _
  $region49: #{forward.4} parent=0 // pred_fallthru
    _
  // Predicated region
  $region50: #{forward.4} parent=0 // pred_check
    _
  $region51: #{forward.4} parent=0 // pred_check_branch
    %49 = sbr.rel (0) target = $region53
  $region52: #{forward.4} parent=0 // pred_region
    _
  $region53: #{forward.4} parent=0 // pred_fallthru
    _
  // Predicated region
  $region54: #{forward.4} parent=0 // pred_check
    _
  $region55: #{forward.4} parent=0 // pred_check_branch
    %51 = sbr.rel (0) target = $region57
  $region56: #{forward.4} parent=0 // pred_region
    _
  $region57: #{forward.4} parent=0 // pred_fallthru
    _
  // Predicated region
  $region58: #{forward.4} parent=0 // pred_check
    _
  $region59: #{forward.4} parent=0 // pred_check_branch
    %53 = sbr.rel (0) target = $region61
  $region60: #{forward.4} parent=0 // pred_region
    _
  $region61: #{forward.4} parent=0 // pred_fallthru
    _
  // Predicated region
  $region62: #{forward.4} parent=0 // pred_check
    _
  $region63: #{forward.4} parent=0 // pred_check_branch
    %55 = sbr.rel (0) target = $region65
  $region64: #{forward.4} parent=0 // pred_region
    _
  $region65: #{forward.4} parent=0 // pred_fallthru
    _
  // Predicated region
  $region66: #{forward.4} parent=0 // pred_check
    _
  $region67: #{forward.4} parent=0 // pred_check_branch
    %57 = sbr.rel (0) target = $region69
  $region68: #{forward.4} parent=0 // pred_region
    _
  $region69: #{forward.4} parent=0 // pred_fallthru
    _
  // Predicated region
  $region70: #{forward.4} parent=0 // pred_check
    _
  $region71: #{forward.4} parent=0 // pred_check_branch
    %59 = sbr.rel (0) target = $region73
  $region72: #{forward.4} parent=0 // pred_region
    _
  $region73: #{forward.4} parent=0 // pred_fallthru
    _
  // Predicated region
  $region74: #{forward.4} parent=0 // pred_check
    _
  $region75: #{forward.4} parent=0 // pred_check_branch
    %61 = sbr.rel (0) target = $region77
  $region76: #{forward.4} parent=0 // pred_region
    _
  $region77: #{forward.4} parent=0 // pred_fallthru
    _
  %v63 = vld [vmem:[%s2] sm:$0xff]
  %v64 = vpack.c.bf16 %v63, %v63
  %v65 = vld [vmem:[%s0] sm:$0xff]
  %v66 = vld [vmem:[%s0 + $0x8] sm:$0xff]
  %v67 = vld [vmem:[%s0 + $0x10] sm:$0xff]
  %v68 = vld [vmem:[%s0 + $0x18] sm:$0xff]
  %v69 = vld [vmem:[%s0 + $0x20] sm:$0xff]
  %v70 = vld [vmem:[%s0 + $0x28] sm:$0xff]
  %v71 = vld [vmem:[%s0 + $0x30] sm:$0xff]
  %v72 = vld [vmem:[%s0 + $0x38] sm:$0xff]
  %v73 = vld [vmem:[%s0 + $0x40] sm:$0xff]
  %v74 = vld [vmem:[%s0 + $0x48] sm:$0xff]
  %v75 = vld [vmem:[%s0 + $0x50] sm:$0xff]
  %v76 = vld [vmem:[%s0 + $0x58] sm:$0xff]
  %v77 = vld [vmem:[%s0 + $0x60] sm:$0xff]
  %v78 = vld [vmem:[%s0 + $0x68] sm:$0xff]
  %v79 = vld [vmem:[%s0 + $0x70] sm:$0xff]
  %v80 = vld [vmem:[%s0 + $0x78] sm:$0xff]
  %v81 = vld [vmem:[%s0 + $0x80] sm:$0xff]
  %v82 = vld [vmem:[%s0 + $0x88] sm:$0xff]
  %v83 = vld [vmem:[%s0 + $0x90] sm:$0xff]
  %v84 = vld [vmem:[%s0 + $0x98] sm:$0xff]
  %v85 = vld [vmem:[%s0 + $0xa0] sm:$0xff]
  %v86 = vld [vmem:[%s0 + $0xa8] sm:$0xff]
  %v87 = vld [vmem:[%s0 + $0xb0] sm:$0xff]
  %v88 = vld [vmem:[%s0 + $0xb8] sm:$0xff]
  %v89 = vld [vmem:[%s0 + $0xc0] sm:$0xff]
  %v90 = vld [vmem:[%s0 + $0xc8] sm:$0xff]
  %v91 = vld [vmem:[%s0 + $0xd0] sm:$0xff]
  %v92 = vld [vmem:[%s0 + $0xd8] sm:$0xff]
  %v93 = vld [vmem:[%s0 + $0xe0] sm:$0xff]
  %v94 = vld [vmem:[%s0 + $0xe8] sm:$0xff]
  %v95 = vld [vmem:[%s0 + $0xf0] sm:$0xff]
  %v96 = vld [vmem:[%s0 + $0xf8] sm:$0xff]
  %v97 = vld [vmem:[%s0 + $0x100] sm:$0xff]
  %v98 = vld [vmem:[%s0 + $0x108] sm:$0xff]
  %v99 = vld [vmem:[%s0 + $0x110] sm:$0xff]
  %v100 = vld [vmem:[%s0 + $0x118] sm:$0xff]
  %v101 = vld [vmem:[%s0 + $0x120] sm:$0xff]
  %v102 = vld [vmem:[%s0 + $0x128] sm:$0xff]
  %v103 = vld [vmem:[%s0 + $0x130] sm:$0xff]
  %v104 = vld [vmem:[%s0 + $0x138] sm:$0xff]
  %v105 = vld [vmem:[%s0 + $0x140] sm:$0xff]
  %v106 = vld [vmem:[%s0 + $0x148] sm:$0xff]
  %v107 = vld [vmem:[%s0 + $0x150] sm:$0xff]
  %v108 = vld [vmem:[%s0 + $0x158] sm:$0xff]
  %v109 = vld [vmem:[%s0 + $0x160] sm:$0xff]
  %v110 = vld [vmem:[%s0 + $0x168] sm:$0xff]
  %v111 = vld [vmem:[%s0 + $0x170] sm:$0xff]
  %v112 = vld [vmem:[%s0 + $0x178] sm:$0xff]
  %v113 = vld [vmem:[%s0 + $0x180] sm:$0xff]
  %v114 = vld [vmem:[%s0 + $0x188] sm:$0xff]
  %v115 = vld [vmem:[%s0 + $0x190] sm:$0xff]
  %v116 = vld [vmem:[%s0 + $0x198] sm:$0xff]
  %v117 = vld [vmem:[%s0 + $0x1a0] sm:$0xff]
  %v118 = vld [vmem:[%s0 + $0x1a8] sm:$0xff]
  %v119 = vld [vmem:[%s0 + $0x1b0] sm:$0xff]
  %v120 = vld [vmem:[%s0 + $0x1b8] sm:$0xff]
  %v121 = vld [vmem:[%s0 + $0x1c0] sm:$0xff]
  %v122 = vld [vmem:[%s0 + $0x1c8] sm:$0xff]
  %v123 = vld [vmem:[%s0 + $0x1d0] sm:$0xff]
  %v124 = vld [vmem:[%s0 + $0x1d8] sm:$0xff]
  %v125 = vld [vmem:[%s0 + $0x1e0] sm:$0xff]
  %v126 = vld [vmem:[%s0 + $0x1e8] sm:$0xff]
  %v127 = vld [vmem:[%s0 + $0x1f0] sm:$0xff]
  %v128 = vld [vmem:[%s0 + $0x1f8] sm:$0xff]
  %v129 = vpack.c.bf16 %v66, %v65
  %v130 = vpack.c.bf16 %v68, %v67
  %v131 = vpack.c.bf16 %v70, %v69
  %v132 = vpack.c.bf16 %v72, %v71
  %v133 = vpack.c.bf16 %v74, %v73
  %v134 = vpack.c.bf16 %v76, %v75
  %v135 = vpack.c.bf16 %v78, %v77
  %v136 = vpack.c.bf16 %v80, %v79
  %v137 = vpack.c.bf16 %v82, %v81
  %v138 = vpack.c.bf16 %v84, %v83
  %v139 = vpack.c.bf16 %v86, %v85
  %v140 = vpack.c.bf16 %v88, %v87
  %v141 = vpack.c.bf16 %v90, %v89
  %v142 = vpack.c.bf16 %v92, %v91
  %v143 = vpack.c.bf16 %v94, %v93
  %v144 = vpack.c.bf16 %v96, %v95
  %v145 = vpack.c.bf16 %v98, %v97
  %v146 = vpack.c.bf16 %v100, %v99
  %v147 = vpack.c.bf16 %v102, %v101
  %v148 = vpack.c.bf16 %v104, %v103
  %v149 = vpack.c.bf16 %v106, %v105
  %v150 = vpack.c.bf16 %v108, %v107
  %v151 = vpack.c.bf16 %v110, %v109
  %v152 = vpack.c.bf16 %v112, %v111
  %v153 = vpack.c.bf16 %v114, %v113
  %v154 = vpack.c.bf16 %v116, %v115
  %v155 = vpack.c.bf16 %v118, %v117
  %v156 = vpack.c.bf16 %v120, %v119
  %v157 = vpack.c.bf16 %v122, %v121
  %v158 = vpack.c.bf16 %v124, %v123
  %v159 = vpack.c.bf16 %v126, %v125
  %v160 = vpack.c.bf16 %v128, %v127
  %v161 = vld [vmem:[%s3] sm:$0x3]
  %v162 = vld [vmem:[%s4] sm:$0x1]
  %v164 = vperm.slane %v162, 0
  %vm166 = vcmask 31744
  %v168 = vsel %vm166, %v129, 0
  %v171 = vsel %vm166, %v130, 0
  %v174 = vsel %vm166, %v131, 0
  %v177 = vsel %vm166, %v132, 0
  %v180 = vsel %vm166, %v133, 0
  %v183 = vsel %vm166, %v134, 0
  %v186 = vsel %vm166, %v135, 0
  %v189 = vsel %vm166, %v136, 0
  %v192 = vsel %vm166, %v137, 0
  %v195 = vsel %vm166, %v138, 0
  %v198 = vsel %vm166, %v139, 0
  %v201 = vsel %vm166, %v140, 0
  %v204 = vsel %vm166, %v141, 0
  %v207 = vsel %vm166, %v142, 0
  %v210 = vsel %vm166, %v143, 0
  %v213 = vsel %vm166, %v144, 0
  %v216 = vsel %vm166, %v145, 0
  %v219 = vsel %vm166, %v146, 0
  %v222 = vsel %vm166, %v147, 0
  %v225 = vsel %vm166, %v148, 0
  %v228 = vsel %vm166, %v149, 0
  %v231 = vsel %vm166, %v150, 0
  %v234 = vsel %vm166, %v151, 0
  %v237 = vsel %vm166, %v152, 0
  %v240 = vsel %vm166, %v153, 0
  %v243 = vsel %vm166, %v154, 0
  %v246 = vsel %vm166, %v155, 0
  %v249 = vsel %vm166, %v156, 0
  %v252 = vsel %vm166, %v157, 0
  %v255 = vsel %vm166, %v158, 0
  %v258 = vsel %vm166, %v159, 0
  %v261 = vsel %vm166, %v160, 0
  %vm263 = vcmask 1041408
  %v265 = vsel %vm263, %v161, 0
  %267 = vmatpush.bf16.msra.mxu0 0
  %268 = vmatpush.bf16.msra.mxu0 0
  %269 = vmatpush.bf16.msra.mxu0 0
  %270 = vmatpush.bf16.msra.mxu0 0
  %271 = vmatpush.bf16.msra.mxu0 0
  %272 = vmatpush.bf16.msra.mxu0 0
  %273 = vmatpush.bf16.msra.mxu0 0
  %274 = vmatpush.bf16.msra.mxu0 %v265
  %275 = vmatmul.bf16.gmra.mxu0 %v168
  %v276 = vpop.f32.mrf.mxu0
  %v277 = vadd.f32 %v164, %v276
  %v278 = vpop.f32.mrf.mxu0
  %v279 = vadd.f32 %v164, %v278
  %280 = vmatmul.bf16.gmra.mxu0 %v171
  %v281 = vpop.f32.mrf.mxu0
  %v282 = vadd.f32 %v164, %v281
  %v283 = vpop.f32.mrf.mxu0
  %v284 = vadd.f32 %v164, %v283
  %285 = vmatmul.bf16.gmra.mxu0 %v174
  %v286 = vpop.f32.mrf.mxu0
  %v287 = vadd.f32 %v164, %v286
  %v288 = vpop.f32.mrf.mxu0
  %v289 = vadd.f32 %v164, %v288
  %290 = vmatmul.bf16.gmra.mxu0 %v177
  %v291 = vpop.f32.mrf.mxu0
  %v292 = vadd.f32 %v164, %v291
  %v293 = vpop.f32.mrf.mxu0
  %v294 = vadd.f32 %v164, %v293
  %295 = vmatmul.bf16.gmra.mxu0 %v180
  %v296 = vpop.f32.mrf.mxu0
  %v297 = vadd.f32 %v164, %v296
  %v298 = vpop.f32.mrf.mxu0
  %v299 = vadd.f32 %v164, %v298
  %300 = vmatmul.bf16.gmra.mxu0 %v183
  %v301 = vpop.f32.mrf.mxu0
  %v302 = vadd.f32 %v164, %v301
  %v303 = vpop.f32.mrf.mxu0
  %v304 = vadd.f32 %v164, %v303
  %305 = vmatmul.bf16.gmra.mxu0 %v186
  %v306 = vpop.f32.mrf.mxu0
  %v307 = vadd.f32 %v164, %v306
  %v308 = vpop.f32.mrf.mxu0
  %v309 = vadd.f32 %v164, %v308
  %310 = vmatmul.bf16.gmra.mxu0 %v189
  %v311 = vpop.f32.mrf.mxu0
  %v312 = vadd.f32 %v164, %v311
  %v313 = vpop.f32.mrf.mxu0
  %v314 = vadd.f32 %v164, %v313
  %315 = vmatmul.bf16.gmra.mxu0 %v192
  %v316 = vpop.f32.mrf.mxu0
  %v317 = vadd.f32 %v164, %v316
  %v318 = vpop.f32.mrf.mxu0
  %v319 = vadd.f32 %v164, %v318
  %320 = vmatmul.bf16.gmra.mxu0 %v195
  %v321 = vpop.f32.mrf.mxu0
  %v322 = vadd.f32 %v164, %v321
  %v323 = vpop.f32.mrf.mxu0
  %v324 = vadd.f32 %v164, %v323
  %325 = vmatmul.bf16.gmra.mxu0 %v198
  %v326 = vpop.f32.mrf.mxu0
  %v327 = vadd.f32 %v164, %v326
  %v328 = vpop.f32.mrf.mxu0
  %v329 = vadd.f32 %v164, %v328
  %330 = vmatmul.bf16.gmra.mxu0 %v201
  %v331 = vpop.f32.mrf.mxu0
  %v332 = vadd.f32 %v164, %v331
  %v333 = vpop.f32.mrf.mxu0
  %v334 = vadd.f32 %v164, %v333
  %335 = vmatmul.bf16.gmra.mxu0 %v204
  %v336 = vpop.f32.mrf.mxu0
  %v337 = vadd.f32 %v164, %v336
  %v338 = vpop.f32.mrf.mxu0
  %v339 = vadd.f32 %v164, %v338
  %340 = vmatmul.bf16.gmra.mxu0 %v207
  %v341 = vpop.f32.mrf.mxu0
  %v342 = vadd.f32 %v164, %v341
  %v343 = vpop.f32.mrf.mxu0
  %v344 = vadd.f32 %v164, %v343
  %345 = vmatmul.bf16.gmra.mxu0 %v210
  %v346 = vpop.f32.mrf.mxu0
  %v347 = vadd.f32 %v164, %v346
  %v348 = vpop.f32.mrf.mxu0
  %v349 = vadd.f32 %v164, %v348
  %350 = vmatmul.bf16.gmra.mxu0 %v213
  %v351 = vpop.f32.mrf.mxu0
  %v352 = vadd.f32 %v164, %v351
  %v353 = vpop.f32.mrf.mxu0
  %v354 = vadd.f32 %v164, %v353
  %355 = vmatmul.bf16.gmra.mxu0 %v216
  %v356 = vpop.f32.mrf.mxu0
  %v357 = vadd.f32 %v164, %v356
  %v358 = vpop.f32.mrf.mxu0
  %v359 = vadd.f32 %v164, %v358
  %360 = vmatmul.bf16.gmra.mxu0 %v219
  %v361 = vpop.f32.mrf.mxu0
  %v362 = vadd.f32 %v164, %v361
  %v363 = vpop.f32.mrf.mxu0
  %v364 = vadd.f32 %v164, %v363
  %365 = vmatmul.bf16.gmra.mxu0 %v222
  %v366 = vpop.f32.mrf.mxu0
  %v367 = vadd.f32 %v164, %v366
  %v368 = vpop.f32.mrf.mxu0
  %v369 = vadd.f32 %v164, %v368
  %370 = vmatmul.bf16.gmra.mxu0 %v225
  %v371 = vpop.f32.mrf.mxu0
  %v372 = vadd.f32 %v164, %v371
  %v373 = vpop.f32.mrf.mxu0
  %v374 = vadd.f32 %v164, %v373
  %375 = vmatmul.bf16.gmra.mxu0 %v228
  %v376 = vpop.f32.mrf.mxu0
  %v377 = vadd.f32 %v164, %v376
  %v378 = vpop.f32.mrf.mxu0
  %v379 = vadd.f32 %v164, %v378
  %380 = vmatmul.bf16.gmra.mxu0 %v231
  %v381 = vpop.f32.mrf.mxu0
  %v382 = vadd.f32 %v164, %v381
  %v383 = vpop.f32.mrf.mxu0
  %v384 = vadd.f32 %v164, %v383
  %385 = vmatmul.bf16.gmra.mxu0 %v234
  %v386 = vpop.f32.mrf.mxu0
  %v387 = vadd.f32 %v164, %v386
  %v388 = vpop.f32.mrf.mxu0
  %v389 = vadd.f32 %v164, %v388
  %390 = vmatmul.bf16.gmra.mxu0 %v237
  %v391 = vpop.f32.mrf.mxu0
  %v392 = vadd.f32 %v164, %v391
  %v393 = vpop.f32.mrf.mxu0
  %v394 = vadd.f32 %v164, %v393
  %395 = vmatmul.bf16.gmra.mxu0 %v240
  %v396 = vpop.f32.mrf.mxu0
  %v397 = vadd.f32 %v164, %v396
  %v398 = vpop.f32.mrf.mxu0
  %v399 = vadd.f32 %v164, %v398
  %400 = vmatmul.bf16.gmra.mxu0 %v243
  %v401 = vpop.f32.mrf.mxu0
  %v402 = vadd.f32 %v164, %v401
  %v403 = vpop.f32.mrf.mxu0
  %v404 = vadd.f32 %v164, %v403
  %405 = vmatmul.bf16.gmra.mxu0 %v246
  %v406 = vpop.f32.mrf.mxu0
  %v407 = vadd.f32 %v164, %v406
  %v408 = vpop.f32.mrf.mxu0
  %v409 = vadd.f32 %v164, %v408
  %410 = vmatmul.bf16.gmra.mxu0 %v249
  %v411 = vpop.f32.mrf.mxu0
  %v412 = vadd.f32 %v164, %v411
  %v413 = vpop.f32.mrf.mxu0
  %v414 = vadd.f32 %v164, %v413
  %415 = vmatmul.bf16.gmra.mxu0 %v252
  %v416 = vpop.f32.mrf.mxu0
  %v417 = vadd.f32 %v164, %v416
  %v418 = vpop.f32.mrf.mxu0
  %v419 = vadd.f32 %v164, %v418
  %420 = vmatmul.bf16.gmra.mxu0 %v255
  %v421 = vpop.f32.mrf.mxu0
  %v422 = vadd.f32 %v164, %v421
  %v423 = vpop.f32.mrf.mxu0
  %v424 = vadd.f32 %v164, %v423
  %425 = vmatmul.bf16.gmra.mxu0 %v258
  %v426 = vpop.f32.mrf.mxu0
  %v427 = vadd.f32 %v164, %v426
  %v428 = vpop.f32.mrf.mxu0
  %v429 = vadd.f32 %v164, %v428
  %430 = vmatmul.bf16.gmra.mxu0 %v261
  %v431 = vpop.f32.mrf.mxu0
  %v432 = vadd.f32 %v164, %v431
  %v433 = vpop.f32.mrf.mxu0
  %v434 = vadd.f32 %v164, %v433
  %435 = vdwg.mxu0
  %v436 = vmax.f32 %v277, 0.0
  %v437 = vmax.f32 %v279, 0.0
  %v438 = vmax.f32 %v282, 0.0
  %v439 = vmax.f32 %v284, 0.0
  %v440 = vmax.f32 %v287, 0.0
  %v441 = vmax.f32 %v289, 0.0
  %v442 = vmax.f32 %v292, 0.0
  %v443 = vmax.f32 %v294, 0.0
  %v444 = vmax.f32 %v297, 0.0
  %v445 = vmax.f32 %v299, 0.0
  %v446 = vmax.f32 %v302, 0.0
  %v447 = vmax.f32 %v304, 0.0
  %v448 = vmax.f32 %v307, 0.0
  %v449 = vmax.f32 %v309, 0.0
  %v450 = vmax.f32 %v312, 0.0
  %v451 = vmax.f32 %v314, 0.0
  %v452 = vmax.f32 %v317, 0.0
  %v453 = vmax.f32 %v319, 0.0
  %v454 = vmax.f32 %v322, 0.0
  %v455 = vmax.f32 %v324, 0.0
  %v456 = vmax.f32 %v327, 0.0
  %v457 = vmax.f32 %v329, 0.0
  %v458 = vmax.f32 %v332, 0.0
  %v459 = vmax.f32 %v334, 0.0
  %v460 = vmax.f32 %v337, 0.0
  %v461 = vmax.f32 %v339, 0.0
  %v462 = vmax.f32 %v342, 0.0
  %v463 = vmax.f32 %v344, 0.0
  %v464 = vmax.f32 %v347, 0.0
  %v465 = vmax.f32 %v349, 0.0
  %v466 = vmax.f32 %v352, 0.0
  %v467 = vmax.f32 %v354, 0.0
  %v468 = vmax.f32 %v357, 0.0
  %v469 = vmax.f32 %v359, 0.0
  %v470 = vmax.f32 %v362, 0.0
  %v471 = vmax.f32 %v364, 0.0
  %v472 = vmax.f32 %v367, 0.0
  %v473 = vmax.f32 %v369, 0.0
  %v474 = vmax.f32 %v372, 0.0
  %v475 = vmax.f32 %v374, 0.0
  %v476 = vmax.f32 %v377, 0.0
  %v477 = vmax.f32 %v379, 0.0
  %v478 = vmax.f32 %v382, 0.0
  %v479 = vmax.f32 %v384, 0.0
  %v480 = vmax.f32 %v387, 0.0
  %v481 = vmax.f32 %v389, 0.0
  %v482 = vmax.f32 %v392, 0.0
  %v483 = vmax.f32 %v394, 0.0
  %v484 = vmax.f32 %v397, 0.0
  %v485 = vmax.f32 %v399, 0.0
  %v486 = vmax.f32 %v402, 0.0
  %v487 = vmax.f32 %v404, 0.0
  %v488 = vmax.f32 %v407, 0.0
  %v489 = vmax.f32 %v409, 0.0
  %v490 = vmax.f32 %v412, 0.0
  %v491 = vmax.f32 %v414, 0.0
  %v492 = vmax.f32 %v417, 0.0
  %v493 = vmax.f32 %v419, 0.0
  %v494 = vmax.f32 %v422, 0.0
  %v495 = vmax.f32 %v424, 0.0
  %v496 = vmax.f32 %v427, 0.0
  %v497 = vmax.f32 %v429, 0.0
  %v498 = vmax.f32 %v432, 0.0
  %v499 = vmax.f32 %v434, 0.0
  %v500 = vpack.c.bf16 %v437, %v436
  %v501 = vpack.c.bf16 %v439, %v438
  %v502 = vpack.c.bf16 %v441, %v440
  %v503 = vpack.c.bf16 %v443, %v442
  %v504 = vpack.c.bf16 %v445, %v444
  %v505 = vpack.c.bf16 %v447, %v446
  %v506 = vpack.c.bf16 %v449, %v448
  %v507 = vpack.c.bf16 %v451, %v450
  %v508 = vpack.c.bf16 %v453, %v452
  %v509 = vpack.c.bf16 %v455, %v454
  %v510 = vpack.c.bf16 %v457, %v456
  %v511 = vpack.c.bf16 %v459, %v458
  %v512 = vpack.c.bf16 %v461, %v460
  %v513 = vpack.c.bf16 %v463, %v462
  %v514 = vpack.c.bf16 %v465, %v464
  %v515 = vpack.c.bf16 %v467, %v466
  %v516 = vpack.c.bf16 %v469, %v468
  %v517 = vpack.c.bf16 %v471, %v470
  %v518 = vpack.c.bf16 %v473, %v472
  %v519 = vpack.c.bf16 %v475, %v474
  %v520 = vpack.c.bf16 %v477, %v476
  %v521 = vpack.c.bf16 %v479, %v478
  %v522 = vpack.c.bf16 %v481, %v480
  %v523 = vpack.c.bf16 %v483, %v482
  %v524 = vpack.c.bf16 %v485, %v484
  %v525 = vpack.c.bf16 %v487, %v486
  %v526 = vpack.c.bf16 %v489, %v488
  %v527 = vpack.c.bf16 %v491, %v490
  %v528 = vpack.c.bf16 %v493, %v492
  %v529 = vpack.c.bf16 %v495, %v494
  %v530 = vpack.c.bf16 %v497, %v496
  %v531 = vpack.c.bf16 %v499, %v498
  %v532 = vld [vmem:[%s5] sm:$0xf]
  %v533 = vld [vmem:[%s6] sm:$0x1]
  %v535 = vperm.slane %v533, 0
  %vm537 = vcmask 64512
  %v539 = vsel %vm537, %v500, 0
  %v542 = vsel %vm537, %v501, 0
  %v545 = vsel %vm537, %v502, 0
  %v548 = vsel %vm537, %v503, 0
  %v551 = vsel %vm537, %v504, 0
  %v554 = vsel %vm537, %v505, 0
  %v557 = vsel %vm537, %v506, 0
  %v560 = vsel %vm537, %v507, 0
  %v563 = vsel %vm537, %v508, 0
  %v566 = vsel %vm537, %v509, 0
  %v569 = vsel %vm537, %v510, 0
  %v572 = vsel %vm537, %v511, 0
  %v575 = vsel %vm537, %v512, 0
  %v578 = vsel %vm537, %v513, 0
  %v581 = vsel %vm537, %v514, 0
  %v584 = vsel %vm537, %v515, 0
  %v587 = vsel %vm537, %v516, 0
  %v590 = vsel %vm537, %v517, 0
  %v593 = vsel %vm537, %v518, 0
  %v596 = vsel %vm537, %v519, 0
  %v599 = vsel %vm537, %v520, 0
  %v602 = vsel %vm537, %v521, 0
  %v605 = vsel %vm537, %v522, 0
  %v608 = vsel %vm537, %v523, 0
  %v611 = vsel %vm537, %v524, 0
  %v614 = vsel %vm537, %v525, 0
  %v617 = vsel %vm537, %v526, 0
  %v620 = vsel %vm537, %v527, 0
  %v623 = vsel %vm537, %v528, 0
  %v626 = vsel %vm537, %v529, 0
  %v629 = vsel %vm537, %v530, 0
  %v632 = vsel %vm537, %v531, 0
  %vm634 = vcmask 1043456
  %v636 = vsel %vm634, %v532, 0
  %638 = vmatpush.bf16.msra.mxu0 0
  %639 = vmatpush.bf16.msra.mxu0 0
  %640 = vmatpush.bf16.msra.mxu0 0
  %641 = vmatpush.bf16.msra.mxu0 0
  %642 = vmatpush.bf16.msra.mxu0 0
  %643 = vmatpush.bf16.msra.mxu0 0
  %644 = vmatpush.bf16.msra.mxu0 0
  %645 = vmatpush.bf16.msra.mxu0 %v636
  %646 = vmatmul.bf16.gmra.mxu0 %v539
  %v647 = vpop.f32.mrf.mxu0
  %v648 = vadd.f32 %v535, %v647
  %v649 = vpop.f32.mrf.mxu0
  %v650 = vadd.f32 %v535, %v649
  %651 = vmatmul.bf16.gmra.mxu0 %v542
  %v652 = vpop.f32.mrf.mxu0
  %v653 = vadd.f32 %v535, %v652
  %v654 = vpop.f32.mrf.mxu0
  %v655 = vadd.f32 %v535, %v654
  %656 = vmatmul.bf16.gmra.mxu0 %v545
  %v657 = vpop.f32.mrf.mxu0
  %v658 = vadd.f32 %v535, %v657
  %v659 = vpop.f32.mrf.mxu0
  %v660 = vadd.f32 %v535, %v659
  %661 = vmatmul.bf16.gmra.mxu0 %v548
  %v662 = vpop.f32.mrf.mxu0
  %v663 = vadd.f32 %v535, %v662
  %v664 = vpop.f32.mrf.mxu0
  %v665 = vadd.f32 %v535, %v664
  %666 = vmatmul.bf16.gmra.mxu0 %v551
  %v667 = vpop.f32.mrf.mxu0
  %v668 = vadd.f32 %v535, %v667
  %v669 = vpop.f32.mrf.mxu0
  %v670 = vadd.f32 %v535, %v669
  %671 = vmatmul.bf16.gmra.mxu0 %v554
  %v672 = vpop.f32.mrf.mxu0
  %v673 = vadd.f32 %v535, %v672
  %v674 = vpop.f32.mrf.mxu0
  %v675 = vadd.f32 %v535, %v674
  %676 = vmatmul.bf16.gmra.mxu0 %v557
  %v677 = vpop.f32.mrf.mxu0
  %v678 = vadd.f32 %v535, %v677
  %v679 = vpop.f32.mrf.mxu0
  %v680 = vadd.f32 %v535, %v679
  %681 = vmatmul.bf16.gmra.mxu0 %v560
  %v682 = vpop.f32.mrf.mxu0
  %v683 = vadd.f32 %v535, %v682
  %v684 = vpop.f32.mrf.mxu0
  %v685 = vadd.f32 %v535, %v684
  %686 = vmatmul.bf16.gmra.mxu0 %v563
  %v687 = vpop.f32.mrf.mxu0
  %v688 = vadd.f32 %v535, %v687
  %v689 = vpop.f32.mrf.mxu0
  %v690 = vadd.f32 %v535, %v689
  %691 = vmatmul.bf16.gmra.mxu0 %v566
  %v692 = vpop.f32.mrf.mxu0
  %v693 = vadd.f32 %v535, %v692
  %v694 = vpop.f32.mrf.mxu0
  %v695 = vadd.f32 %v535, %v694
  %696 = vmatmul.bf16.gmra.mxu0 %v569
  %v697 = vpop.f32.mrf.mxu0
  %v698 = vadd.f32 %v535, %v697
  %v699 = vpop.f32.mrf.mxu0
  %v700 = vadd.f32 %v535, %v699
  %701 = vmatmul.bf16.gmra.mxu0 %v572
  %v702 = vpop.f32.mrf.mxu0
  %v703 = vadd.f32 %v535, %v702
  %v704 = vpop.f32.mrf.mxu0
  %v705 = vadd.f32 %v535, %v704
  %706 = vmatmul.bf16.gmra.mxu0 %v575
  %v707 = vpop.f32.mrf.mxu0
  %v708 = vadd.f32 %v535, %v707
  %v709 = vpop.f32.mrf.mxu0
  %v710 = vadd.f32 %v535, %v709
  %711 = vmatmul.bf16.gmra.mxu0 %v578
  %v712 = vpop.f32.mrf.mxu0
  %v713 = vadd.f32 %v535, %v712
  %v714 = vpop.f32.mrf.mxu0
  %v715 = vadd.f32 %v535, %v714
  %716 = vmatmul.bf16.gmra.mxu0 %v581
  %v717 = vpop.f32.mrf.mxu0
  %v718 = vadd.f32 %v535, %v717
  %v719 = vpop.f32.mrf.mxu0
  %v720 = vadd.f32 %v535, %v719
  %721 = vmatmul.bf16.gmra.mxu0 %v584
  %v722 = vpop.f32.mrf.mxu0
  %v723 = vadd.f32 %v535, %v722
  %v724 = vpop.f32.mrf.mxu0
  %v725 = vadd.f32 %v535, %v724
  %726 = vmatmul.bf16.gmra.mxu0 %v587
  %v727 = vpop.f32.mrf.mxu0
  %v728 = vadd.f32 %v535, %v727
  %v729 = vpop.f32.mrf.mxu0
  %v730 = vadd.f32 %v535, %v729
  %731 = vmatmul.bf16.gmra.mxu0 %v590
  %v732 = vpop.f32.mrf.mxu0
  %v733 = vadd.f32 %v535, %v732
  %v734 = vpop.f32.mrf.mxu0
  %v735 = vadd.f32 %v535, %v734
  %736 = vmatmul.bf16.gmra.mxu0 %v593
  %v737 = vpop.f32.mrf.mxu0
  %v738 = vadd.f32 %v535, %v737
  %v739 = vpop.f32.mrf.mxu0
  %v740 = vadd.f32 %v535, %v739
  %741 = vmatmul.bf16.gmra.mxu0 %v596
  %v742 = vpop.f32.mrf.mxu0
  %v743 = vadd.f32 %v535, %v742
  %v744 = vpop.f32.mrf.mxu0
  %v745 = vadd.f32 %v535, %v744
  %746 = vmatmul.bf16.gmra.mxu0 %v599
  %v747 = vpop.f32.mrf.mxu0
  %v748 = vadd.f32 %v535, %v747
  %v749 = vpop.f32.mrf.mxu0
  %v750 = vadd.f32 %v535, %v749
  %751 = vmatmul.bf16.gmra.mxu0 %v602
  %v752 = vpop.f32.mrf.mxu0
  %v753 = vadd.f32 %v535, %v752
  %v754 = vpop.f32.mrf.mxu0
  %v755 = vadd.f32 %v535, %v754
  %756 = vmatmul.bf16.gmra.mxu0 %v605
  %v757 = vpop.f32.mrf.mxu0
  %v758 = vadd.f32 %v535, %v757
  %v759 = vpop.f32.mrf.mxu0
  %v760 = vadd.f32 %v535, %v759
  %761 = vmatmul.bf16.gmra.mxu0 %v608
  %v762 = vpop.f32.mrf.mxu0
  %v763 = vadd.f32 %v535, %v762
  %v764 = vpop.f32.mrf.mxu0
  %v765 = vadd.f32 %v535, %v764
  %766 = vmatmul.bf16.gmra.mxu0 %v611
  %v767 = vpop.f32.mrf.mxu0
  %v768 = vadd.f32 %v535, %v767
  %v769 = vpop.f32.mrf.mxu0
  %v770 = vadd.f32 %v535, %v769
  %771 = vmatmul.bf16.gmra.mxu0 %v614
  %v772 = vpop.f32.mrf.mxu0
  %v773 = vadd.f32 %v535, %v772
  %v774 = vpop.f32.mrf.mxu0
  %v775 = vadd.f32 %v535, %v774
  %776 = vmatmul.bf16.gmra.mxu0 %v617
  %v777 = vpop.f32.mrf.mxu0
  %v778 = vadd.f32 %v535, %v777
  %v779 = vpop.f32.mrf.mxu0
  %v780 = vadd.f32 %v535, %v779
  %781 = vmatmul.bf16.gmra.mxu0 %v620
  %v782 = vpop.f32.mrf.mxu0
  %v783 = vadd.f32 %v535, %v782
  %v784 = vpop.f32.mrf.mxu0
  %v785 = vadd.f32 %v535, %v784
  %786 = vmatmul.bf16.gmra.mxu0 %v623
  %v787 = vpop.f32.mrf.mxu0
  %v788 = vadd.f32 %v535, %v787
  %v789 = vpop.f32.mrf.mxu0
  %v790 = vadd.f32 %v535, %v789
  %791 = vmatmul.bf16.gmra.mxu0 %v626
  %v792 = vpop.f32.mrf.mxu0
  %v793 = vadd.f32 %v535, %v792
  %v794 = vpop.f32.mrf.mxu0
  %v795 = vadd.f32 %v535, %v794
  %796 = vmatmul.bf16.gmra.mxu0 %v629
  %v797 = vpop.f32.mrf.mxu0
  %v798 = vadd.f32 %v535, %v797
  %v799 = vpop.f32.mrf.mxu0
  %v800 = vadd.f32 %v535, %v799
  %801 = vmatmul.bf16.gmra.mxu0 %v632
  %v802 = vpop.f32.mrf.mxu0
  %v803 = vadd.f32 %v535, %v802
  %v804 = vpop.f32.mrf.mxu0
  %v805 = vadd.f32 %v535, %v804
  %806 = vdwg.mxu0
  %v807 = vmax.f32 %v648, 0.0
  %v808 = vmax.f32 %v650, 0.0
  %v809 = vmax.f32 %v653, 0.0
  %v810 = vmax.f32 %v655, 0.0
  %v811 = vmax.f32 %v658, 0.0
  %v812 = vmax.f32 %v660, 0.0
  %v813 = vmax.f32 %v663, 0.0
  %v814 = vmax.f32 %v665, 0.0
  %v815 = vmax.f32 %v668, 0.0
  %v816 = vmax.f32 %v670, 0.0
  %v817 = vmax.f32 %v673, 0.0
  %v818 = vmax.f32 %v675, 0.0
  %v819 = vmax.f32 %v678, 0.0
  %v820 = vmax.f32 %v680, 0.0
  %v821 = vmax.f32 %v683, 0.0
  %v822 = vmax.f32 %v685, 0.0
  %v823 = vmax.f32 %v688, 0.0
  %v824 = vmax.f32 %v690, 0.0
  %v825 = vmax.f32 %v693, 0.0
  %v826 = vmax.f32 %v695, 0.0
  %v827 = vmax.f32 %v698, 0.0
  %v828 = vmax.f32 %v700, 0.0
  %v829 = vmax.f32 %v703, 0.0
  %v830 = vmax.f32 %v705, 0.0
  %v831 = vmax.f32 %v708, 0.0
  %v832 = vmax.f32 %v710, 0.0
  %v833 = vmax.f32 %v713, 0.0
  %v834 = vmax.f32 %v715, 0.0
  %v835 = vmax.f32 %v718, 0.0
  %v836 = vmax.f32 %v720, 0.0
  %v837 = vmax.f32 %v723, 0.0
  %v838 = vmax.f32 %v725, 0.0
  %v839 = vmax.f32 %v728, 0.0
  %v840 = vmax.f32 %v730, 0.0
  %v841 = vmax.f32 %v733, 0.0
  %v842 = vmax.f32 %v735, 0.0
  %v843 = vmax.f32 %v738, 0.0
  %v844 = vmax.f32 %v740, 0.0
  %v845 = vmax.f32 %v743, 0.0
  %v846 = vmax.f32 %v745, 0.0
  %v847 = vmax.f32 %v748, 0.0
  %v848 = vmax.f32 %v750, 0.0
  %v849 = vmax.f32 %v753, 0.0
  %v850 = vmax.f32 %v755, 0.0
  %v851 = vmax.f32 %v758, 0.0
  %v852 = vmax.f32 %v760, 0.0
  %v853 = vmax.f32 %v763, 0.0
  %v854 = vmax.f32 %v765, 0.0
  %v855 = vmax.f32 %v768, 0.0
  %v856 = vmax.f32 %v770, 0.0
  %v857 = vmax.f32 %v773, 0.0
  %v858 = vmax.f32 %v775, 0.0
  %v859 = vmax.f32 %v778, 0.0
  %v860 = vmax.f32 %v780, 0.0
  %v861 = vmax.f32 %v783, 0.0
  %v862 = vmax.f32 %v785, 0.0
  %v863 = vmax.f32 %v788, 0.0
  %v864 = vmax.f32 %v790, 0.0
  %v865 = vmax.f32 %v793, 0.0
  %v866 = vmax.f32 %v795, 0.0
  %v867 = vmax.f32 %v798, 0.0
  %v868 = vmax.f32 %v800, 0.0
  %v869 = vmax.f32 %v803, 0.0
  %v870 = vmax.f32 %v805, 0.0
  %v871 = vpack.c.bf16 %v808, %v807
  %v872 = vpack.c.bf16 %v810, %v809
  %v873 = vpack.c.bf16 %v812, %v811
  %v874 = vpack.c.bf16 %v814, %v813
  %v875 = vpack.c.bf16 %v816, %v815
  %v876 = vpack.c.bf16 %v818, %v817
  %v877 = vpack.c.bf16 %v820, %v819
  %v878 = vpack.c.bf16 %v822, %v821
  %v879 = vpack.c.bf16 %v824, %v823
  %v880 = vpack.c.bf16 %v826, %v825
  %v881 = vpack.c.bf16 %v828, %v827
  %v882 = vpack.c.bf16 %v830, %v829
  %v883 = vpack.c.bf16 %v832, %v831
  %v884 = vpack.c.bf16 %v834, %v833
  %v885 = vpack.c.bf16 %v836, %v835
  %v886 = vpack.c.bf16 %v838, %v837
  %v887 = vpack.c.bf16 %v840, %v839
  %v888 = vpack.c.bf16 %v842, %v841
  %v889 = vpack.c.bf16 %v844, %v843
  %v890 = vpack.c.bf16 %v846, %v845
  %v891 = vpack.c.bf16 %v848, %v847
  %v892 = vpack.c.bf16 %v850, %v849
  %v893 = vpack.c.bf16 %v852, %v851
  %v894 = vpack.c.bf16 %v854, %v853
  %v895 = vpack.c.bf16 %v856, %v855
  %v896 = vpack.c.bf16 %v858, %v857
  %v897 = vpack.c.bf16 %v860, %v859
  %v898 = vpack.c.bf16 %v862, %v861
  %v899 = vpack.c.bf16 %v864, %v863
  %v900 = vpack.c.bf16 %v866, %v865
  %v901 = vpack.c.bf16 %v868, %v867
  %v902 = vpack.c.bf16 %v870, %v869
  %v903 = vld [vmem:[%s7] sm:$0xf]
  %v904 = vld [vmem:[%s8] sm:$0x1]
  %v906 = vperm.slane %v904, 0
  %v909 = vsel %vm537, %v871, 0
  %v912 = vsel %vm537, %v872, 0
  %v915 = vsel %vm537, %v873, 0
  %v918 = vsel %vm537, %v874, 0
  %v921 = vsel %vm537, %v875, 0
  %v924 = vsel %vm537, %v876, 0
  %v927 = vsel %vm537, %v877, 0
  %v930 = vsel %vm537, %v878, 0
  %v933 = vsel %vm537, %v879, 0
  %v936 = vsel %vm537, %v880, 0
  %v939 = vsel %vm537, %v881, 0
  %v942 = vsel %vm537, %v882, 0
  %v945 = vsel %vm537, %v883, 0
  %v948 = vsel %vm537, %v884, 0
  %v951 = vsel %vm537, %v885, 0
  %v954 = vsel %vm537, %v886, 0
  %v957 = vsel %vm537, %v887, 0
  %v960 = vsel %vm537, %v888, 0
  %v963 = vsel %vm537, %v889, 0
  %v966 = vsel %vm537, %v890, 0
  %v969 = vsel %vm537, %v891, 0
  %v972 = vsel %vm537, %v892, 0
  %v975 = vsel %vm537, %v893, 0
  %v978 = vsel %vm537, %v894, 0
  %v981 = vsel %vm537, %v895, 0
  %v984 = vsel %vm537, %v896, 0
  %v987 = vsel %vm537, %v897, 0
  %v990 = vsel %vm537, %v898, 0
  %v993 = vsel %vm537, %v899, 0
  %v996 = vsel %vm537, %v900, 0
  %v999 = vsel %vm537, %v901, 0
  %v1002 = vsel %vm537, %v902, 0
  %v1005 = vsel %vm634, %v903, 0
  %1007 = vmatpush.bf16.msra.mxu0 0
  %1008 = vmatpush.bf16.msra.mxu0 0
  %1009 = vmatpush.bf16.msra.mxu0 0
  %1010 = vmatpush.bf16.msra.mxu0 0
  %1011 = vmatpush.bf16.msra.mxu0 0
  %1012 = vmatpush.bf16.msra.mxu0 0
  %1013 = vmatpush.bf16.msra.mxu0 0
  %1014 = vmatpush.bf16.msra.mxu0 %v1005
  %1015 = vmatmul.bf16.gmra.mxu0 %v909
  %v1016 = vpop.f32.mrf.mxu0
  %v1017 = vadd.f32 %v906, %v1016
  %v1018 = vpop.f32.mrf.mxu0
  %v1019 = vadd.f32 %v906, %v1018
  %1020 = vmatmul.bf16.gmra.mxu0 %v912
  %v1021 = vpop.f32.mrf.mxu0
  %v1022 = vadd.f32 %v906, %v1021
  %v1023 = vpop.f32.mrf.mxu0
  %v1024 = vadd.f32 %v906, %v1023
  %1025 = vmatmul.bf16.gmra.mxu0 %v915
  %v1026 = vpop.f32.mrf.mxu0
  %v1027 = vadd.f32 %v906, %v1026
  %v1028 = vpop.f32.mrf.mxu0
  %v1029 = vadd.f32 %v906, %v1028
  %1030 = vmatmul.bf16.gmra.mxu0 %v918
  %v1031 = vpop.f32.mrf.mxu0
  %v1032 = vadd.f32 %v906, %v1031
  %v1033 = vpop.f32.mrf.mxu0
  %v1034 = vadd.f32 %v906, %v1033
  %1035 = vmatmul.bf16.gmra.mxu0 %v921
  %v1036 = vpop.f32.mrf.mxu0
  %v1037 = vadd.f32 %v906, %v1036
  %v1038 = vpop.f32.mrf.mxu0
  %v1039 = vadd.f32 %v906, %v1038
  %1040 = vmatmul.bf16.gmra.mxu0 %v924
  %v1041 = vpop.f32.mrf.mxu0
  %v1042 = vadd.f32 %v906, %v1041
  %v1043 = vpop.f32.mrf.mxu0
  %v1044 = vadd.f32 %v906, %v1043
  %1045 = vmatmul.bf16.gmra.mxu0 %v927
  %v1046 = vpop.f32.mrf.mxu0
  %v1047 = vadd.f32 %v906, %v1046
  %v1048 = vpop.f32.mrf.mxu0
  %v1049 = vadd.f32 %v906, %v1048
  %1050 = vmatmul.bf16.gmra.mxu0 %v930
  %v1051 = vpop.f32.mrf.mxu0
  %v1052 = vadd.f32 %v906, %v1051
  %v1053 = vpop.f32.mrf.mxu0
  %v1054 = vadd.f32 %v906, %v1053
  %1055 = vmatmul.bf16.gmra.mxu0 %v933
  %v1056 = vpop.f32.mrf.mxu0
  %v1057 = vadd.f32 %v906, %v1056
  %v1058 = vpop.f32.mrf.mxu0
  %v1059 = vadd.f32 %v906, %v1058
  %1060 = vmatmul.bf16.gmra.mxu0 %v936
  %v1061 = vpop.f32.mrf.mxu0
  %v1062 = vadd.f32 %v906, %v1061
  %v1063 = vpop.f32.mrf.mxu0
  %v1064 = vadd.f32 %v906, %v1063
  %1065 = vmatmul.bf16.gmra.mxu0 %v939
  %v1066 = vpop.f32.mrf.mxu0
  %v1067 = vadd.f32 %v906, %v1066
  %v1068 = vpop.f32.mrf.mxu0
  %v1069 = vadd.f32 %v906, %v1068
  %1070 = vmatmul.bf16.gmra.mxu0 %v942
  %v1071 = vpop.f32.mrf.mxu0
  %v1072 = vadd.f32 %v906, %v1071
  %v1073 = vpop.f32.mrf.mxu0
  %v1074 = vadd.f32 %v906, %v1073
  %1075 = vmatmul.bf16.gmra.mxu0 %v945
  %v1076 = vpop.f32.mrf.mxu0
  %v1077 = vadd.f32 %v906, %v1076
  %v1078 = vpop.f32.mrf.mxu0
  %v1079 = vadd.f32 %v906, %v1078
  %1080 = vmatmul.bf16.gmra.mxu0 %v948
  %v1081 = vpop.f32.mrf.mxu0
  %v1082 = vadd.f32 %v906, %v1081
  %v1083 = vpop.f32.mrf.mxu0
  %v1084 = vadd.f32 %v906, %v1083
  %1085 = vmatmul.bf16.gmra.mxu0 %v951
  %v1086 = vpop.f32.mrf.mxu0
  %v1087 = vadd.f32 %v906, %v1086
  %v1088 = vpop.f32.mrf.mxu0
  %v1089 = vadd.f32 %v906, %v1088
  %1090 = vmatmul.bf16.gmra.mxu0 %v954
  %v1091 = vpop.f32.mrf.mxu0
  %v1092 = vadd.f32 %v906, %v1091
  %v1093 = vpop.f32.mrf.mxu0
  %v1094 = vadd.f32 %v906, %v1093
  %1095 = vmatmul.bf16.gmra.mxu0 %v957
  %v1096 = vpop.f32.mrf.mxu0
  %v1097 = vadd.f32 %v906, %v1096
  %v1098 = vpop.f32.mrf.mxu0
  %v1099 = vadd.f32 %v906, %v1098
  %1100 = vmatmul.bf16.gmra.mxu0 %v960
  %v1101 = vpop.f32.mrf.mxu0
  %v1102 = vadd.f32 %v906, %v1101
  %v1103 = vpop.f32.mrf.mxu0
  %v1104 = vadd.f32 %v906, %v1103
  %1105 = vmatmul.bf16.gmra.mxu0 %v963
  %v1106 = vpop.f32.mrf.mxu0
  %v1107 = vadd.f32 %v906, %v1106
  %v1108 = vpop.f32.mrf.mxu0
  %v1109 = vadd.f32 %v906, %v1108
  %1110 = vmatmul.bf16.gmra.mxu0 %v966
  %v1111 = vpop.f32.mrf.mxu0
  %v1112 = vadd.f32 %v906, %v1111
  %v1113 = vpop.f32.mrf.mxu0
  %v1114 = vadd.f32 %v906, %v1113
  %1115 = vmatmul.bf16.gmra.mxu0 %v969
  %v1116 = vpop.f32.mrf.mxu0
  %v1117 = vadd.f32 %v906, %v1116
  %v1118 = vpop.f32.mrf.mxu0
  %v1119 = vadd.f32 %v906, %v1118
  %1120 = vmatmul.bf16.gmra.mxu0 %v972
  %v1121 = vpop.f32.mrf.mxu0
  %v1122 = vadd.f32 %v906, %v1121
  %v1123 = vpop.f32.mrf.mxu0
  %v1124 = vadd.f32 %v906, %v1123
  %1125 = vmatmul.bf16.gmra.mxu0 %v975
  %v1126 = vpop.f32.mrf.mxu0
  %v1127 = vadd.f32 %v906, %v1126
  %v1128 = vpop.f32.mrf.mxu0
  %v1129 = vadd.f32 %v906, %v1128
  %1130 = vmatmul.bf16.gmra.mxu0 %v978
  %v1131 = vpop.f32.mrf.mxu0
  %v1132 = vadd.f32 %v906, %v1131
  %v1133 = vpop.f32.mrf.mxu0
  %v1134 = vadd.f32 %v906, %v1133
  %1135 = vmatmul.bf16.gmra.mxu0 %v981
  %v1136 = vpop.f32.mrf.mxu0
  %v1137 = vadd.f32 %v906, %v1136
  %v1138 = vpop.f32.mrf.mxu0
  %v1139 = vadd.f32 %v906, %v1138
  %1140 = vmatmul.bf16.gmra.mxu0 %v984
  %v1141 = vpop.f32.mrf.mxu0
  %v1142 = vadd.f32 %v906, %v1141
  %v1143 = vpop.f32.mrf.mxu0
  %v1144 = vadd.f32 %v906, %v1143
  %1145 = vmatmul.bf16.gmra.mxu0 %v987
  %v1146 = vpop.f32.mrf.mxu0
  %v1147 = vadd.f32 %v906, %v1146
  %v1148 = vpop.f32.mrf.mxu0
  %v1149 = vadd.f32 %v906, %v1148
  %1150 = vmatmul.bf16.gmra.mxu0 %v990
  %v1151 = vpop.f32.mrf.mxu0
  %v1152 = vadd.f32 %v906, %v1151
  %v1153 = vpop.f32.mrf.mxu0
  %v1154 = vadd.f32 %v906, %v1153
  %1155 = vmatmul.bf16.gmra.mxu0 %v993
  %v1156 = vpop.f32.mrf.mxu0
  %v1157 = vadd.f32 %v906, %v1156
  %v1158 = vpop.f32.mrf.mxu0
  %v1159 = vadd.f32 %v906, %v1158
  %1160 = vmatmul.bf16.gmra.mxu0 %v996
  %v1161 = vpop.f32.mrf.mxu0
  %v1162 = vadd.f32 %v906, %v1161
  %v1163 = vpop.f32.mrf.mxu0
  %v1164 = vadd.f32 %v906, %v1163
  %1165 = vmatmul.bf16.gmra.mxu0 %v999
  %v1166 = vpop.f32.mrf.mxu0
  %v1167 = vadd.f32 %v906, %v1166
  %v1168 = vpop.f32.mrf.mxu0
  %v1169 = vadd.f32 %v906, %v1168
  %1170 = vmatmul.bf16.gmra.mxu0 %v1002
  %v1171 = vpop.f32.mrf.mxu0
  %v1172 = vadd.f32 %v906, %v1171
  %v1173 = vpop.f32.mrf.mxu0
  %v1174 = vadd.f32 %v906, %v1173
  %1175 = vdwg.mxu0
  %v1176 = vmax.f32 %v1017, 0.0
  %v1177 = vmax.f32 %v1019, 0.0
  %v1178 = vmax.f32 %v1022, 0.0
  %v1179 = vmax.f32 %v1024, 0.0
  %v1180 = vmax.f32 %v1027, 0.0
  %v1181 = vmax.f32 %v1029, 0.0
  %v1182 = vmax.f32 %v1032, 0.0
  %v1183 = vmax.f32 %v1034, 0.0
  %v1184 = vmax.f32 %v1037, 0.0
  %v1185 = vmax.f32 %v1039, 0.0
  %v1186 = vmax.f32 %v1042, 0.0
  %v1187 = vmax.f32 %v1044, 0.0
  %v1188 = vmax.f32 %v1047, 0.0
  %v1189 = vmax.f32 %v1049, 0.0
  %v1190 = vmax.f32 %v1052, 0.0
  %v1191 = vmax.f32 %v1054, 0.0
  %v1192 = vmax.f32 %v1057, 0.0
  %v1193 = vmax.f32 %v1059, 0.0
  %v1194 = vmax.f32 %v1062, 0.0
  %v1195 = vmax.f32 %v1064, 0.0
  %v1196 = vmax.f32 %v1067, 0.0
  %v1197 = vmax.f32 %v1069, 0.0
  %v1198 = vmax.f32 %v1072, 0.0
  %v1199 = vmax.f32 %v1074, 0.0
  %v1200 = vmax.f32 %v1077, 0.0
  %v1201 = vmax.f32 %v1079, 0.0
  %v1202 = vmax.f32 %v1082, 0.0
  %v1203 = vmax.f32 %v1084, 0.0
  %v1204 = vmax.f32 %v1087, 0.0
  %v1205 = vmax.f32 %v1089, 0.0
  %v1206 = vmax.f32 %v1092, 0.0
  %v1207 = vmax.f32 %v1094, 0.0
  %v1208 = vmax.f32 %v1097, 0.0
  %v1209 = vmax.f32 %v1099, 0.0
  %v1210 = vmax.f32 %v1102, 0.0
  %v1211 = vmax.f32 %v1104, 0.0
  %v1212 = vmax.f32 %v1107, 0.0
  %v1213 = vmax.f32 %v1109, 0.0
  %v1214 = vmax.f32 %v1112, 0.0
  %v1215 = vmax.f32 %v1114, 0.0
  %v1216 = vmax.f32 %v1117, 0.0
  %v1217 = vmax.f32 %v1119, 0.0
  %v1218 = vmax.f32 %v1122, 0.0
  %v1219 = vmax.f32 %v1124, 0.0
  %v1220 = vmax.f32 %v1127, 0.0
  %v1221 = vmax.f32 %v1129, 0.0
  %v1222 = vmax.f32 %v1132, 0.0
  %v1223 = vmax.f32 %v1134, 0.0
  %v1224 = vmax.f32 %v1137, 0.0
  %v1225 = vmax.f32 %v1139, 0.0
  %v1226 = vmax.f32 %v1142, 0.0
  %v1227 = vmax.f32 %v1144, 0.0
  %v1228 = vmax.f32 %v1147, 0.0
  %v1229 = vmax.f32 %v1149, 0.0
  %v1230 = vmax.f32 %v1152, 0.0
  %v1231 = vmax.f32 %v1154, 0.0
  %v1232 = vmax.f32 %v1157, 0.0
  %v1233 = vmax.f32 %v1159, 0.0
  %v1234 = vmax.f32 %v1162, 0.0
  %v1235 = vmax.f32 %v1164, 0.0
  %v1236 = vmax.f32 %v1167, 0.0
  %v1237 = vmax.f32 %v1169, 0.0
  %v1238 = vmax.f32 %v1172, 0.0
  %v1239 = vmax.f32 %v1174, 0.0
  %vm1240 = vcmask 130048
  %v1241 = vsel %vm1240, %v1176, -inf
  %v1242 = vsel %vm1240, %v1184, -inf
  %v1243 = vmax.f32 %v1241, %v1242
  %v1244 = vsel %vm1240, %v1192, -inf
  %v1245 = vmax.f32 %v1243, %v1244
  %v1246 = vsel %vm1240, %v1200, -inf
  %v1247 = vmax.f32 %v1245, %v1246
  %v1248 = vsel %vm1240, %v1208, -inf
  %v1249 = vmax.f32 %v1247, %v1248
  %v1250 = vsel %vm1240, %v1216, -inf
  %v1251 = vmax.f32 %v1249, %v1250
  %v1252 = vsel %vm1240, %v1224, -inf
  %v1253 = vmax.f32 %v1251, %v1252
  %v1254 = vsel %vm1240, %v1232, -inf
  %v1255 = vmax.f32 %v1253, %v1254
  %v1256 = vsel %vm1240, %v1177, -inf
  %v1257 = vsel %vm1240, %v1185, -inf
  %v1258 = vmax.f32 %v1256, %v1257
  %v1259 = vsel %vm1240, %v1193, -inf
  %v1260 = vmax.f32 %v1258, %v1259
  %v1261 = vsel %vm1240, %v1201, -inf
  %v1262 = vmax.f32 %v1260, %v1261
  %v1263 = vsel %vm1240, %v1209, -inf
  %v1264 = vmax.f32 %v1262, %v1263
  %v1265 = vsel %vm1240, %v1217, -inf
  %v1266 = vmax.f32 %v1264, %v1265
  %v1267 = vsel %vm1240, %v1225, -inf
  %v1268 = vmax.f32 %v1266, %v1267
  %v1269 = vsel %vm1240, %v1233, -inf
  %v1270 = vmax.f32 %v1268, %v1269
  %v1271 = vsel %vm1240, %v1178, -inf
  %v1272 = vsel %vm1240, %v1186, -inf
  %v1273 = vmax.f32 %v1271, %v1272
  %v1274 = vsel %vm1240, %v1194, -inf
  %v1275 = vmax.f32 %v1273, %v1274
  %v1276 = vsel %vm1240, %v1202, -inf
  %v1277 = vmax.f32 %v1275, %v1276
  %v1278 = vsel %vm1240, %v1210, -inf
  %v1279 = vmax.f32 %v1277, %v1278
  %v1280 = vsel %vm1240, %v1218, -inf
  %v1281 = vmax.f32 %v1279, %v1280
  %v1282 = vsel %vm1240, %v1226, -inf
  %v1283 = vmax.f32 %v1281, %v1282
  %v1284 = vsel %vm1240, %v1234, -inf
  %v1285 = vmax.f32 %v1283, %v1284
  %v1286 = vsel %vm1240, %v1179, -inf
  %v1287 = vsel %vm1240, %v1187, -inf
  %v1288 = vmax.f32 %v1286, %v1287
  %v1289 = vsel %vm1240, %v1195, -inf
  %v1290 = vmax.f32 %v1288, %v1289
  %v1291 = vsel %vm1240, %v1203, -inf
  %v1292 = vmax.f32 %v1290, %v1291
  %v1293 = vsel %vm1240, %v1211, -inf
  %v1294 = vmax.f32 %v1292, %v1293
  %v1295 = vsel %vm1240, %v1219, -inf
  %v1296 = vmax.f32 %v1294, %v1295
  %v1297 = vsel %vm1240, %v1227, -inf
  %v1298 = vmax.f32 %v1296, %v1297
  %v1299 = vsel %vm1240, %v1235, -inf
  %v1300 = vmax.f32 %v1298, %v1299
  %v1301 = vsel %vm1240, %v1180, -inf
  %v1302 = vsel %vm1240, %v1188, -inf
  %v1303 = vmax.f32 %v1301, %v1302
  %v1304 = vsel %vm1240, %v1196, -inf
  %v1305 = vmax.f32 %v1303, %v1304
  %v1306 = vsel %vm1240, %v1204, -inf
  %v1307 = vmax.f32 %v1305, %v1306
  %v1308 = vsel %vm1240, %v1212, -inf
  %v1309 = vmax.f32 %v1307, %v1308
  %v1310 = vsel %vm1240, %v1220, -inf
  %v1311 = vmax.f32 %v1309, %v1310
  %v1312 = vsel %vm1240, %v1228, -inf
  %v1313 = vmax.f32 %v1311, %v1312
  %v1314 = vsel %vm1240, %v1236, -inf
  %v1315 = vmax.f32 %v1313, %v1314
  %v1316 = vsel %vm1240, %v1181, -inf
  %v1317 = vsel %vm1240, %v1189, -inf
  %v1318 = vmax.f32 %v1316, %v1317
  %v1319 = vsel %vm1240, %v1197, -inf
  %v1320 = vmax.f32 %v1318, %v1319
  %v1321 = vsel %vm1240, %v1205, -inf
  %v1322 = vmax.f32 %v1320, %v1321
  %v1323 = vsel %vm1240, %v1213, -inf
  %v1324 = vmax.f32 %v1322, %v1323
  %v1325 = vsel %vm1240, %v1221, -inf
  %v1326 = vmax.f32 %v1324, %v1325
  %v1327 = vsel %vm1240, %v1229, -inf
  %v1328 = vmax.f32 %v1326, %v1327
  %v1329 = vsel %vm1240, %v1237, -inf
  %v1330 = vmax.f32 %v1328, %v1329
  %v1331 = vsel %vm1240, %v1182, -inf
  %v1332 = vsel %vm1240, %v1190, -inf
  %v1333 = vmax.f32 %v1331, %v1332
  %v1334 = vsel %vm1240, %v1198, -inf
  %v1335 = vmax.f32 %v1333, %v1334
  %v1336 = vsel %vm1240, %v1206, -inf
  %v1337 = vmax.f32 %v1335, %v1336
  %v1338 = vsel %vm1240, %v1214, -inf
  %v1339 = vmax.f32 %v1337, %v1338
  %v1340 = vsel %vm1240, %v1222, -inf
  %v1341 = vmax.f32 %v1339, %v1340
  %v1342 = vsel %vm1240, %v1230, -inf
  %v1343 = vmax.f32 %v1341, %v1342
  %v1344 = vsel %vm1240, %v1238, -inf
  %v1345 = vmax.f32 %v1343, %v1344
  %v1346 = vsel %vm1240, %v1183, -inf
  %v1347 = vsel %vm1240, %v1191, -inf
  %v1348 = vmax.f32 %v1346, %v1347
  %v1349 = vsel %vm1240, %v1199, -inf
  %v1350 = vmax.f32 %v1348, %v1349
  %v1351 = vsel %vm1240, %v1207, -inf
  %v1352 = vmax.f32 %v1350, %v1351
  %v1353 = vsel %vm1240, %v1215, -inf
  %v1354 = vmax.f32 %v1352, %v1353
  %v1355 = vsel %vm1240, %v1223, -inf
  %v1356 = vmax.f32 %v1354, %v1355
  %v1357 = vsel %vm1240, %v1231, -inf
  %v1358 = vmax.f32 %v1356, %v1357
  %v1359 = vsel %vm1240, %v1239, -inf
  %v1360 = vmax.f32 %v1358, %v1359
  %v1361 = vld [vmem:[%s9] sm:$0xf]
  %v1362 = vld [vmem:[%s9 + $0x4] sm:$0xf]
  %v1363 = vld [vmem:[%s10] sm:$0xff]
  %v1364 = vld [vmem:[%s10 + $0x8] sm:$0xff]
  %1366 = vset.pattern.permute.xlu0 0
  %1367 = vperm.xlu0 %1366, %v1363
  %v1368 = vpop.permute.xlu0 %1367
  %1371 = vset.pattern.permute.xlu0 0
  %1372 = vperm.xlu0 %1371, %v1364
  %v1373 = vpop.permute.xlu0 %1372
  %v1377 = vunpack.c.l.b16 %v1361
  %v1378 = vunpack.c.l.b16 %v1362
  %v1379 = vpack.c.b16 %v1378, %v1377
  %v1381 = vsel %vm537, %v1379, 0
  %v1384 = vsel %vm634, %v64, 0
  %1386 = vmatpush.bf16.msra.mxu0 0
  %1387 = vmatpush.bf16.msra.mxu0 0
  %1388 = vmatpush.bf16.msra.mxu0 0
  %1389 = vmatpush.bf16.msra.mxu0 0
  %1390 = vmatpush.bf16.msra.mxu0 0
  %1391 = vmatpush.bf16.msra.mxu0 0
  %1392 = vmatpush.bf16.msra.mxu0 0
  %1393 = vmatpush.bf16.msra.mxu0 %v1384
  %1394 = vmatmul.bf16.gmra.mxu0 %v1381
  %v1395 = vpop.f32.mrf.mxu0
  %v1396 = vadd.f32 %v1368, %v1395
  %v1397 = vpop.f32.mrf.mxu0
  %v1398 = vadd.f32 %v1373, %v1397
  %1399 = vdwg.mxu0
  %v1400 = vxor.u32 %v1396, 2147483648
  %v1401 = vxor.u32 %v1398, 2147483648
  %v1402 = vmul.f32 %v1400, 1.442695
  %v1403 = vpow.pop %v1402
  %v1404 = vmul.f32 %v1401, 1.442695
  %v1405 = vpow.pop %v1404
  %v1406 = vadd.f32 %v1403, 1.0
  %v1407 = vadd.f32 %v1405, 1.0
  %v1408 = vrcp.pop %v1406
  %v1409 = vmul.f32 %v1406, %v1408
  %v1410 = vsub.f32 1.0, %v1409
  %v1411 = vmul.f32 %v1408, %v1410
  %v1412 = vadd.f32 %v1408, %v1411
  %vm1413 = vweird.f32 %v1406
  %vm1414 = vweird.f32 %v1408
  %vm1415 = vmor %vm1413, %vm1414
  %v1416 = vsel %vm1415, %v1408, %v1412
  %v1417 = vand.u32 2147483647, %v1406
  %vm1418 = vcmp.eq.f32.partialorder %v1417, 8.507059e+37
  %v1419 = vand.u32 %v1406, 2147483648
  %v1420 = vor.u32 1.1754944e-38, %v1419
  %v1421 = vsel %vm1418, %v1420, %v1416
  %v1422 = vmul.f32 1.0, %v1421
  %v1423 = vrcp.pop %v1407
  %v1424 = vmul.f32 %v1407, %v1423
  %v1425 = vsub.f32 1.0, %v1424
  %v1426 = vmul.f32 %v1423, %v1425
  %v1427 = vadd.f32 %v1423, %v1426
  %vm1428 = vweird.f32 %v1407
  %vm1429 = vweird.f32 %v1423
  %vm1430 = vmor %vm1428, %vm1429
  %v1431 = vsel %vm1430, %v1423, %v1427
  %v1432 = vand.u32 2147483647, %v1407
  %vm1433 = vcmp.eq.f32.partialorder %v1432, 8.507059e+37
  %v1434 = vand.u32 %v1407, 2147483648
  %v1435 = vor.u32 1.1754944e-38, %v1434
  %v1436 = vsel %vm1433, %v1435, %v1431
  %v1437 = vmul.f32 1.0, %v1436
  %1438 = vxpose.xlu0.b32.start [1/16] %v1255, 128
  %1439 = vxpose.xlu0.b32.cont [2/16] %v1270, 128
  %1440 = vxpose.xlu0.b32.cont [3/16] %v1285, 128
  %1441 = vxpose.xlu0.b32.cont [4/16] %v1300, 128
  %1442 = vxpose.xlu0.b32.cont [5/16] %v1315, 128
  %1443 = vxpose.xlu0.b32.cont [6/16] %v1330, 128
  %1444 = vxpose.xlu0.b32.cont [7/16] %v1345, 128
  %1445 = vxpose.xlu0.b32.cont [8/16] %v1360, 128
  %1446 = vxpose.xlu0.b32.cont [9/16] 0.0, 128
  %1447 = vxpose.xlu0.b32.cont [10/16] 0.0, 128
  %1448 = vxpose.xlu0.b32.cont [11/16] 0.0, 128
  %1449 = vxpose.xlu0.b32.cont [12/16] 0.0, 128
  %1450 = vxpose.xlu0.b32.cont [13/16] 0.0, 128
  %1451 = vxpose.xlu0.b32.cont [14/16] 0.0, 128
  %1452 = vxpose.xlu0.b32.cont [15/16] 0.0, 128
  %1453 = vxpose.xlu0.b32.end [16/16] 0.0, 128
  %v1454 = vpop.trf.xlu0
  %v1455 = vpop.trf.xlu0
  %v1456 = vpop.trf.xlu0
  %v1457 = vpop.trf.xlu0
  %v1458 = vpop.trf.xlu0
  %v1459 = vpop.trf.xlu0
  %v1460 = vpop.trf.xlu0
  %v1461 = vpop.trf.xlu0
  %v1462 = vpop.trf.xlu0
  %v1463 = vpop.trf.xlu0
  %v1464 = vpop.trf.xlu0
  %v1465 = vpop.trf.xlu0
  %v1466 = vpop.trf.xlu0
  %v1467 = vpop.trf.xlu0
  %v1468 = vpop.trf.xlu0
  %v1469 = vpop.trf.xlu0
  %v1470 = vmul.f32 %v1422, %v1454
  %v1471 = vmul.f32 %v1437, %v1455
  %vm1472 = vcmask 523264
  %1473 = vst.msk [vmem:[%s19] sm:$0xff] %vm1472, %v1470
  %1474 = vst.msk [vmem:[%s19 + $0x8] sm:$0xff] %vm1472, %v1471
  %v1475 = vld [vmem:[%s1] sm:$0xff]
  %v1476 = vld [vmem:[%s1 + $0x8] sm:$0xff]
  %v1477 = vld [vmem:[%s1 + $0x10] sm:$0xff]
  %v1478 = vld [vmem:[%s1 + $0x18] sm:$0xff]
  %v1479 = vld [vmem:[%s1 + $0x20] sm:$0xff]
  %v1480 = vld [vmem:[%s1 + $0x28] sm:$0xff]
  %v1481 = vld [vmem:[%s1 + $0x30] sm:$0xff]
  %v1482 = vld [vmem:[%s1 + $0x38] sm:$0xff]
  %v1483 = vld [vmem:[%s1 + $0x40] sm:$0xff]
  %v1484 = vld [vmem:[%s1 + $0x48] sm:$0xff]
  %v1485 = vld [vmem:[%s1 + $0x50] sm:$0xff]
  %v1486 = vld [vmem:[%s1 + $0x58] sm:$0xff]
  %v1487 = vld [vmem:[%s1 + $0x60] sm:$0xff]
  %v1488 = vld [vmem:[%s1 + $0x68] sm:$0xff]
  %v1489 = vld [vmem:[%s1 + $0x70] sm:$0xff]
  %v1490 = vld [vmem:[%s1 + $0x78] sm:$0xff]
  %v1491 = vld [vmem:[%s1 + $0x80] sm:$0xff]
  %v1492 = vld [vmem:[%s1 + $0x88] sm:$0xff]
  %v1493 = vld [vmem:[%s1 + $0x90] sm:$0xff]
  %v1494 = vld [vmem:[%s1 + $0x98] sm:$0xff]
  %v1495 = vld [vmem:[%s1 + $0xa0] sm:$0xff]
  %v1496 = vld [vmem:[%s1 + $0xa8] sm:$0xff]
  %v1497 = vld [vmem:[%s1 + $0xb0] sm:$0xff]
  %v1498 = vld [vmem:[%s1 + $0xb8] sm:$0xff]
  %v1499 = vld [vmem:[%s1 + $0xc0] sm:$0xff]
  %v1500 = vld [vmem:[%s1 + $0xc8] sm:$0xff]
  %v1501 = vld [vmem:[%s1 + $0xd0] sm:$0xff]
  %v1502 = vld [vmem:[%s1 + $0xd8] sm:$0xff]
  %v1503 = vld [vmem:[%s1 + $0xe0] sm:$0xff]
  %v1504 = vld [vmem:[%s1 + $0xe8] sm:$0xff]
  %v1505 = vld [vmem:[%s1 + $0xf0] sm:$0xff]
  %v1506 = vld [vmem:[%s1 + $0xf8] sm:$0xff]
  %v1507 = vld [vmem:[%s1 + $0x100] sm:$0xff]
  %v1508 = vld [vmem:[%s1 + $0x108] sm:$0xff]
  %v1509 = vld [vmem:[%s1 + $0x110] sm:$0xff]
  %v1510 = vld [vmem:[%s1 + $0x118] sm:$0xff]
  %v1511 = vld [vmem:[%s1 + $0x120] sm:$0xff]
  %v1512 = vld [vmem:[%s1 + $0x128] sm:$0xff]
  %v1513 = vld [vmem:[%s1 + $0x130] sm:$0xff]
  %v1514 = vld [vmem:[%s1 + $0x138] sm:$0xff]
  %v1515 = vld [vmem:[%s1 + $0x140] sm:$0xff]
  %v1516 = vld [vmem:[%s1 + $0x148] sm:$0xff]
  %v1517 = vld [vmem:[%s1 + $0x150] sm:$0xff]
  %v1518 = vld [vmem:[%s1 + $0x158] sm:$0xff]
  %v1519 = vld [vmem:[%s1 + $0x160] sm:$0xff]
  %v1520 = vld [vmem:[%s1 + $0x168] sm:$0xff]
  %v1521 = vld [vmem:[%s1 + $0x170] sm:$0xff]
  %v1522 = vld [vmem:[%s1 + $0x178] sm:$0xff]
  %v1523 = vld [vmem:[%s1 + $0x180] sm:$0xff]
  %v1524 = vld [vmem:[%s1 + $0x188] sm:$0xff]
  %v1525 = vld [vmem:[%s1 + $0x190] sm:$0xff]
  %v1526 = vld [vmem:[%s1 + $0x198] sm:$0xff]
  %v1527 = vld [vmem:[%s1 + $0x1a0] sm:$0xff]
  %v1528 = vld [vmem:[%s1 + $0x1a8] sm:$0xff]
  %v1529 = vld [vmem:[%s1 + $0x1b0] sm:$0xff]
  %v1530 = vld [vmem:[%s1 + $0x1b8] sm:$0xff]
  %v1531 = vld [vmem:[%s1 + $0x1c0] sm:$0xff]
  %v1532 = vld [vmem:[%s1 + $0x1c8] sm:$0xff]
  %v1533 = vld [vmem:[%s1 + $0x1d0] sm:$0xff]
  %v1534 = vld [vmem:[%s1 + $0x1d8] sm:$0xff]
  %v1535 = vld [vmem:[%s1 + $0x1e0] sm:$0xff]
  %v1536 = vld [vmem:[%s1 + $0x1e8] sm:$0xff]
  %v1537 = vld [vmem:[%s1 + $0x1f0] sm:$0xff]
  %v1538 = vld [vmem:[%s1 + $0x1f8] sm:$0xff]
  %v1539 = vld [vmem:[%s1 + $0x200] sm:$0xff]
  %v1540 = vld [vmem:[%s1 + $0x208] sm:$0xff]
  %v1541 = vld [vmem:[%s1 + $0x210] sm:$0xff]
  %v1542 = vld [vmem:[%s1 + $0x218] sm:$0xff]
  %v1543 = vld [vmem:[%s1 + $0x220] sm:$0xff]
  %v1544 = vld [vmem:[%s1 + $0x228] sm:$0xff]
  %v1545 = vld [vmem:[%s1 + $0x230] sm:$0xff]
  %v1546 = vld [vmem:[%s1 + $0x238] sm:$0xff]
  %v1547 = vld [vmem:[%s1 + $0x240] sm:$0xff]
  %v1548 = vld [vmem:[%s1 + $0x248] sm:$0xff]
  %v1549 = vld [vmem:[%s1 + $0x250] sm:$0xff]
  %v1550 = vld [vmem:[%s1 + $0x258] sm:$0xff]
  %v1551 = vld [vmem:[%s1 + $0x260] sm:$0xff]
  %v1552 = vld [vmem:[%s1 + $0x268] sm:$0xff]
  %v1553 = vld [vmem:[%s1 + $0x270] sm:$0xff]
  %v1554 = vld [vmem:[%s1 + $0x278] sm:$0xff]
  %v1555 = vld [vmem:[%s1 + $0x280] sm:$0xff]
  %v1556 = vld [vmem:[%s1 + $0x288] sm:$0xff]
  %v1557 = vld [vmem:[%s1 + $0x290] sm:$0xff]
  %v1558 = vld [vmem:[%s1 + $0x298] sm:$0xff]
  %v1559 = vld [vmem:[%s1 + $0x2a0] sm:$0xff]
  %v1560 = vld [vmem:[%s1 + $0x2a8] sm:$0xff]
  %v1561 = vld [vmem:[%s1 + $0x2b0] sm:$0xff]
  %v1562 = vld [vmem:[%s1 + $0x2b8] sm:$0xff]
  %v1563 = vld [vmem:[%s1 + $0x2c0] sm:$0xff]
  %v1564 = vld [vmem:[%s1 + $0x2c8] sm:$0xff]
  %v1565 = vld [vmem:[%s1 + $0x2d0] sm:$0xff]
  %v1566 = vld [vmem:[%s1 + $0x2d8] sm:$0xff]
  %v1567 = vld [vmem:[%s1 + $0x2e0] sm:$0xff]
  %v1568 = vld [vmem:[%s1 + $0x2e8] sm:$0xff]
  %v1569 = vld [vmem:[%s1 + $0x2f0] sm:$0xff]
  %v1570 = vld [vmem:[%s1 + $0x2f8] sm:$0xff]
  %v1571 = vld [vmem:[%s1 + $0x300] sm:$0xff]
  %v1572 = vld [vmem:[%s1 + $0x308] sm:$0xff]
  %v1573 = vld [vmem:[%s1 + $0x310] sm:$0xff]
  %v1574 = vld [vmem:[%s1 + $0x318] sm:$0xff]
  %v1575 = vld [vmem:[%s1 + $0x320] sm:$0xff]
  %v1576 = vld [vmem:[%s1 + $0x328] sm:$0xff]
  %v1577 = vld [vmem:[%s1 + $0x330] sm:$0xff]
  %v1578 = vld [vmem:[%s1 + $0x338] sm:$0xff]
  %v1579 = vld [vmem:[%s1 + $0x340] sm:$0xff]
  %v1580 = vld [vmem:[%s1 + $0x348] sm:$0xff]
  %v1581 = vld [vmem:[%s1 + $0x350] sm:$0xff]
  %v1582 = vld [vmem:[%s1 + $0x358] sm:$0xff]
  %v1583 = vld [vmem:[%s1 + $0x360] sm:$0xff]
  %v1584 = vld [vmem:[%s1 + $0x368] sm:$0xff]
  %v1585 = vld [vmem:[%s1 + $0x370] sm:$0xff]
  %v1586 = vld [vmem:[%s1 + $0x378] sm:$0xff]
  %v1587 = vld [vmem:[%s1 + $0x380] sm:$0xff]
  %v1588 = vld [vmem:[%s1 + $0x388] sm:$0xff]
  %v1589 = vld [vmem:[%s1 + $0x390] sm:$0xff]
  %v1590 = vld [vmem:[%s1 + $0x398] sm:$0xff]
  %v1591 = vld [vmem:[%s1 + $0x3a0] sm:$0xff]
  %v1592 = vld [vmem:[%s1 + $0x3a8] sm:$0xff]
  %v1593 = vld [vmem:[%s1 + $0x3b0] sm:$0xff]
  %v1594 = vld [vmem:[%s1 + $0x3b8] sm:$0xff]
  %v1595 = vld [vmem:[%s1 + $0x3c0] sm:$0xff]
  %v1596 = vld [vmem:[%s1 + $0x3c8] sm:$0xff]
  %v1597 = vld [vmem:[%s1 + $0x3d0] sm:$0xff]
  %v1598 = vld [vmem:[%s1 + $0x3d8] sm:$0xff]
  %v1599 = vld [vmem:[%s1 + $0x3e0] sm:$0xff]
  %v1600 = vld [vmem:[%s1 + $0x3e8] sm:$0xff]
  %v1601 = vld [vmem:[%s1 + $0x3f0] sm:$0xff]
  %v1602 = vld [vmem:[%s1 + $0x3f8] sm:$0xff]
  %v1603 = vpack.c.bf16 %v1476, %v1475
  %v1604 = vpack.c.bf16 %v1478, %v1477
  %v1605 = vpack.c.bf16 %v1480, %v1479
  %v1606 = vpack.c.bf16 %v1482, %v1481
  %v1607 = vpack.c.bf16 %v1484, %v1483
  %v1608 = vpack.c.bf16 %v1486, %v1485
  %v1609 = vpack.c.bf16 %v1488, %v1487
  %v1610 = vpack.c.bf16 %v1490, %v1489
  %v1611 = vpack.c.bf16 %v1492, %v1491
  %v1612 = vpack.c.bf16 %v1494, %v1493
  %v1613 = vpack.c.bf16 %v1496, %v1495
  %v1614 = vpack.c.bf16 %v1498, %v1497
  %v1615 = vpack.c.bf16 %v1500, %v1499
  %v1616 = vpack.c.bf16 %v1502, %v1501
  %v1617 = vpack.c.bf16 %v1504, %v1503
  %v1618 = vpack.c.bf16 %v1506, %v1505
  %v1619 = vpack.c.bf16 %v1508, %v1507
  %v1620 = vpack.c.bf16 %v1510, %v1509
  %v1621 = vpack.c.bf16 %v1512, %v1511
  %v1622 = vpack.c.bf16 %v1514, %v1513
  %v1623 = vpack.c.bf16 %v1516, %v1515
  %v1624 = vpack.c.bf16 %v1518, %v1517
  %v1625 = vpack.c.bf16 %v1520, %v1519
  %v1626 = vpack.c.bf16 %v1522, %v1521
  %v1627 = vpack.c.bf16 %v1524, %v1523
  %v1628 = vpack.c.bf16 %v1526, %v1525
  %v1629 = vpack.c.bf16 %v1528, %v1527
  %v1630 = vpack.c.bf16 %v1530, %v1529
  %v1631 = vpack.c.bf16 %v1532, %v1531
  %v1632 = vpack.c.bf16 %v1534, %v1533
  %v1633 = vpack.c.bf16 %v1536, %v1535
  %v1634 = vpack.c.bf16 %v1538, %v1537
  %v1635 = vpack.c.bf16 %v1540, %v1539
  %v1636 = vpack.c.bf16 %v1542, %v1541
  %v1637 = vpack.c.bf16 %v1544, %v1543
  %v1638 = vpack.c.bf16 %v1546, %v1545
  %v1639 = vpack.c.bf16 %v1548, %v1547
  %v1640 = vpack.c.bf16 %v1550, %v1549
  %v1641 = vpack.c.bf16 %v1552, %v1551
  %v1642 = vpack.c.bf16 %v1554, %v1553
  %v1643 = vpack.c.bf16 %v1556, %v1555
  %v1644 = vpack.c.bf16 %v1558, %v1557
  %v1645 = vpack.c.bf16 %v1560, %v1559
  %v1646 = vpack.c.bf16 %v1562, %v1561
  %v1647 = vpack.c.bf16 %v1564, %v1563
  %v1648 = vpack.c.bf16 %v1566, %v1565
  %v1649 = vpack.c.bf16 %v1568, %v1567
  %v1650 = vpack.c.bf16 %v1570, %v1569
  %v1651 = vpack.c.bf16 %v1572, %v1571
  %v1652 = vpack.c.bf16 %v1574, %v1573
  %v1653 = vpack.c.bf16 %v1576, %v1575
  %v1654 = vpack.c.bf16 %v1578, %v1577
  %v1655 = vpack.c.bf16 %v1580, %v1579
  %v1656 = vpack.c.bf16 %v1582, %v1581
  %v1657 = vpack.c.bf16 %v1584, %v1583
  %v1658 = vpack.c.bf16 %v1586, %v1585
  %v1659 = vpack.c.bf16 %v1588, %v1587
  %v1660 = vpack.c.bf16 %v1590, %v1589
  %v1661 = vpack.c.bf16 %v1592, %v1591
  %v1662 = vpack.c.bf16 %v1594, %v1593
  %v1663 = vpack.c.bf16 %v1596, %v1595
  %v1664 = vpack.c.bf16 %v1598, %v1597
  %v1665 = vpack.c.bf16 %v1600, %v1599
  %v1666 = vpack.c.bf16 %v1602, %v1601
  %v1667 = vld [vmem:[%s11] sm:$0x3]
  %v1668 = vld [vmem:[%s12] sm:$0x1]
  %v1670 = vperm.slane %v1668, 0
  %v1673 = vsel %vm166, %v1603, 0
  %v1676 = vsel %vm166, %v1604, 0
  %v1679 = vsel %vm166, %v1605, 0
  %v1682 = vsel %vm166, %v1606, 0
  %v1685 = vsel %vm166, %v1607, 0
  %v1688 = vsel %vm166, %v1608, 0
  %v1691 = vsel %vm166, %v1609, 0
  %v1694 = vsel %vm166, %v1610, 0
  %v1697 = vsel %vm166, %v1611, 0
  %v1700 = vsel %vm166, %v1612, 0
  %v1703 = vsel %vm166, %v1613, 0
  %v1706 = vsel %vm166, %v1614, 0
  %v1709 = vsel %vm166, %v1615, 0
  %v1712 = vsel %vm166, %v1616, 0
  %v1715 = vsel %vm166, %v1617, 0
  %v1718 = vsel %vm166, %v1618, 0
  %v1721 = vsel %vm166, %v1619, 0
  %v1724 = vsel %vm166, %v1620, 0
  %v1727 = vsel %vm166, %v1621, 0
  %v1730 = vsel %vm166, %v1622, 0
  %v1733 = vsel %vm166, %v1623, 0
  %v1736 = vsel %vm166, %v1624, 0
  %v1739 = vsel %vm166, %v1625, 0
  %v1742 = vsel %vm166, %v1626, 0
  %v1745 = vsel %vm166, %v1627, 0
  %v1748 = vsel %vm166, %v1628, 0
  %v1751 = vsel %vm166, %v1629, 0
  %v1754 = vsel %vm166, %v1630, 0
  %v1757 = vsel %vm166, %v1631, 0
  %v1760 = vsel %vm166, %v1632, 0
  %v1763 = vsel %vm166, %v1633, 0
  %v1766 = vsel %vm166, %v1634, 0
  %v1769 = vsel %vm166, %v1635, 0
  %v1772 = vsel %vm166, %v1636, 0
  %v1775 = vsel %vm166, %v1637, 0
  %v1778 = vsel %vm166, %v1638, 0
  %v1781 = vsel %vm166, %v1639, 0
  %v1784 = vsel %vm166, %v1640, 0
  %v1787 = vsel %vm166, %v1641, 0
  %v1790 = vsel %vm166, %v1642, 0
  %v1793 = vsel %vm166, %v1643, 0
  %v1796 = vsel %vm166, %v1644, 0
  %v1799 = vsel %vm166, %v1645, 0
  %v1802 = vsel %vm166, %v1646, 0
  %v1805 = vsel %vm166, %v1647, 0
  %v1808 = vsel %vm166, %v1648, 0
  %v1811 = vsel %vm166, %v1649, 0
  %v1814 = vsel %vm166, %v1650, 0
  %v1817 = vsel %vm166, %v1651, 0
  %v1820 = vsel %vm166, %v1652, 0
  %v1823 = vsel %vm166, %v1653, 0
  %v1826 = vsel %vm166, %v1654, 0
  %v1829 = vsel %vm166, %v1655, 0
  %v1832 = vsel %vm166, %v1656, 0
  %v1835 = vsel %vm166, %v1657, 0
  %v1838 = vsel %vm166, %v1658, 0
  %v1841 = vsel %vm166, %v1659, 0
  %v1844 = vsel %vm166, %v1660, 0
  %v1847 = vsel %vm166, %v1661, 0
  %v1850 = vsel %vm166, %v1662, 0
  %v1853 = vsel %vm166, %v1663, 0
  %v1856 = vsel %vm166, %v1664, 0
  %v1859 = vsel %vm166, %v1665, 0
  %v1862 = vsel %vm166, %v1666, 0
  %v1865 = vsel %vm263, %v1667, 0
  %1867 = vmatpush.bf16.msra.mxu0 0
  %1868 = vmatpush.bf16.msra.mxu0 0
  %1869 = vmatpush.bf16.msra.mxu0 0
  %1870 = vmatpush.bf16.msra.mxu0 0
  %1871 = vmatpush.bf16.msra.mxu0 0
  %1872 = vmatpush.bf16.msra.mxu0 0
  %1873 = vmatpush.bf16.msra.mxu0 0
  %1874 = vmatpush.bf16.msra.mxu0 %v1865
  %1875 = vmatmul.bf16.gmra.mxu0 %v1673
  %v1876 = vpop.f32.mrf.mxu0
  %v1877 = vadd.f32 %v1670, %v1876
  %v1878 = vpop.f32.mrf.mxu0
  %v1879 = vadd.f32 %v1670, %v1878
  %1880 = vmatmul.bf16.gmra.mxu0 %v1676
  %v1881 = vpop.f32.mrf.mxu0
  %v1882 = vadd.f32 %v1670, %v1881
  %v1883 = vpop.f32.mrf.mxu0
  %v1884 = vadd.f32 %v1670, %v1883
  %1885 = vmatmul.bf16.gmra.mxu0 %v1679
  %v1886 = vpop.f32.mrf.mxu0
  %v1887 = vadd.f32 %v1670, %v1886
  %v1888 = vpop.f32.mrf.mxu0
  %v1889 = vadd.f32 %v1670, %v1888
  %1890 = vmatmul.bf16.gmra.mxu0 %v1682
  %v1891 = vpop.f32.mrf.mxu0
  %v1892 = vadd.f32 %v1670, %v1891
  %v1893 = vpop.f32.mrf.mxu0
  %v1894 = vadd.f32 %v1670, %v1893
  %1895 = vmatmul.bf16.gmra.mxu0 %v1685
  %v1896 = vpop.f32.mrf.mxu0
  %v1897 = vadd.f32 %v1670, %v1896
  %v1898 = vpop.f32.mrf.mxu0
  %v1899 = vadd.f32 %v1670, %v1898
  %1900 = vmatmul.bf16.gmra.mxu0 %v1688
  %v1901 = vpop.f32.mrf.mxu0
  %v1902 = vadd.f32 %v1670, %v1901
  %v1903 = vpop.f32.mrf.mxu0
  %v1904 = vadd.f32 %v1670, %v1903
  %1905 = vmatmul.bf16.gmra.mxu0 %v1691
  %v1906 = vpop.f32.mrf.mxu0
  %v1907 = vadd.f32 %v1670, %v1906
  %v1908 = vpop.f32.mrf.mxu0
  %v1909 = vadd.f32 %v1670, %v1908
  %1910 = vmatmul.bf16.gmra.mxu0 %v1694
  %v1911 = vpop.f32.mrf.mxu0
  %v1912 = vadd.f32 %v1670, %v1911
  %v1913 = vpop.f32.mrf.mxu0
  %v1914 = vadd.f32 %v1670, %v1913
  %1915 = vmatmul.bf16.gmra.mxu0 %v1697
  %v1916 = vpop.f32.mrf.mxu0
  %v1917 = vadd.f32 %v1670, %v1916
  %v1918 = vpop.f32.mrf.mxu0
  %v1919 = vadd.f32 %v1670, %v1918
  %1920 = vmatmul.bf16.gmra.mxu0 %v1700
  %v1921 = vpop.f32.mrf.mxu0
  %v1922 = vadd.f32 %v1670, %v1921
  %v1923 = vpop.f32.mrf.mxu0
  %v1924 = vadd.f32 %v1670, %v1923
  %1925 = vmatmul.bf16.gmra.mxu0 %v1703
  %v1926 = vpop.f32.mrf.mxu0
  %v1927 = vadd.f32 %v1670, %v1926
  %v1928 = vpop.f32.mrf.mxu0
  %v1929 = vadd.f32 %v1670, %v1928
  %1930 = vmatmul.bf16.gmra.mxu0 %v1706
  %v1931 = vpop.f32.mrf.mxu0
  %v1932 = vadd.f32 %v1670, %v1931
  %v1933 = vpop.f32.mrf.mxu0
  %v1934 = vadd.f32 %v1670, %v1933
  %1935 = vmatmul.bf16.gmra.mxu0 %v1709
  %v1936 = vpop.f32.mrf.mxu0
  %v1937 = vadd.f32 %v1670, %v1936
  %v1938 = vpop.f32.mrf.mxu0
  %v1939 = vadd.f32 %v1670, %v1938
  %1940 = vmatmul.bf16.gmra.mxu0 %v1712
  %v1941 = vpop.f32.mrf.mxu0
  %v1942 = vadd.f32 %v1670, %v1941
  %v1943 = vpop.f32.mrf.mxu0
  %v1944 = vadd.f32 %v1670, %v1943
  %1945 = vmatmul.bf16.gmra.mxu0 %v1715
  %v1946 = vpop.f32.mrf.mxu0
  %v1947 = vadd.f32 %v1670, %v1946
  %v1948 = vpop.f32.mrf.mxu0
  %v1949 = vadd.f32 %v1670, %v1948
  %1950 = vmatmul.bf16.gmra.mxu0 %v1718
  %v1951 = vpop.f32.mrf.mxu0
  %v1952 = vadd.f32 %v1670, %v1951
  %v1953 = vpop.f32.mrf.mxu0
  %v1954 = vadd.f32 %v1670, %v1953
  %1955 = vmatmul.bf16.gmra.mxu0 %v1721
  %v1956 = vpop.f32.mrf.mxu0
  %v1957 = vadd.f32 %v1670, %v1956
  %v1958 = vpop.f32.mrf.mxu0
  %v1959 = vadd.f32 %v1670, %v1958
  %1960 = vmatmul.bf16.gmra.mxu0 %v1724
  %v1961 = vpop.f32.mrf.mxu0
  %v1962 = vadd.f32 %v1670, %v1961
  %v1963 = vpop.f32.mrf.mxu0
  %v1964 = vadd.f32 %v1670, %v1963
  %1965 = vmatmul.bf16.gmra.mxu0 %v1727
  %v1966 = vpop.f32.mrf.mxu0
  %v1967 = vadd.f32 %v1670, %v1966
  %v1968 = vpop.f32.mrf.mxu0
  %v1969 = vadd.f32 %v1670, %v1968
  %1970 = vmatmul.bf16.gmra.mxu0 %v1730
  %v1971 = vpop.f32.mrf.mxu0
  %v1972 = vadd.f32 %v1670, %v1971
  %v1973 = vpop.f32.mrf.mxu0
  %v1974 = vadd.f32 %v1670, %v1973
  %1975 = vmatmul.bf16.gmra.mxu0 %v1733
  %v1976 = vpop.f32.mrf.mxu0
  %v1977 = vadd.f32 %v1670, %v1976
  %v1978 = vpop.f32.mrf.mxu0
  %v1979 = vadd.f32 %v1670, %v1978
  %1980 = vmatmul.bf16.gmra.mxu0 %v1736
  %v1981 = vpop.f32.mrf.mxu0
  %v1982 = vadd.f32 %v1670, %v1981
  %v1983 = vpop.f32.mrf.mxu0
  %v1984 = vadd.f32 %v1670, %v1983
  %1985 = vmatmul.bf16.gmra.mxu0 %v1739
  %v1986 = vpop.f32.mrf.mxu0
  %v1987 = vadd.f32 %v1670, %v1986
  %v1988 = vpop.f32.mrf.mxu0
  %v1989 = vadd.f32 %v1670, %v1988
  %1990 = vmatmul.bf16.gmra.mxu0 %v1742
  %v1991 = vpop.f32.mrf.mxu0
  %v1992 = vadd.f32 %v1670, %v1991
  %v1993 = vpop.f32.mrf.mxu0
  %v1994 = vadd.f32 %v1670, %v1993
  %1995 = vmatmul.bf16.gmra.mxu0 %v1745
  %v1996 = vpop.f32.mrf.mxu0
  %v1997 = vadd.f32 %v1670, %v1996
  %v1998 = vpop.f32.mrf.mxu0
  %v1999 = vadd.f32 %v1670, %v1998
  %2000 = vmatmul.bf16.gmra.mxu0 %v1748
  %v2001 = vpop.f32.mrf.mxu0
  %v2002 = vadd.f32 %v1670, %v2001
  %v2003 = vpop.f32.mrf.mxu0
  %v2004 = vadd.f32 %v1670, %v2003
  %2005 = vmatmul.bf16.gmra.mxu0 %v1751
  %v2006 = vpop.f32.mrf.mxu0
  %v2007 = vadd.f32 %v1670, %v2006
  %v2008 = vpop.f32.mrf.mxu0
  %v2009 = vadd.f32 %v1670, %v2008
  %2010 = vmatmul.bf16.gmra.mxu0 %v1754
  %v2011 = vpop.f32.mrf.mxu0
  %v2012 = vadd.f32 %v1670, %v2011
  %v2013 = vpop.f32.mrf.mxu0
  %v2014 = vadd.f32 %v1670, %v2013
  %2015 = vmatmul.bf16.gmra.mxu0 %v1757
  %v2016 = vpop.f32.mrf.mxu0
  %v2017 = vadd.f32 %v1670, %v2016
  %v2018 = vpop.f32.mrf.mxu0
  %v2019 = vadd.f32 %v1670, %v2018
  %2020 = vmatmul.bf16.gmra.mxu0 %v1760
  %v2021 = vpop.f32.mrf.mxu0
  %v2022 = vadd.f32 %v1670, %v2021
  %v2023 = vpop.f32.mrf.mxu0
  %v2024 = vadd.f32 %v1670, %v2023
  %2025 = vmatmul.bf16.gmra.mxu0 %v1763
  %v2026 = vpop.f32.mrf.mxu0
  %v2027 = vadd.f32 %v1670, %v2026
  %v2028 = vpop.f32.mrf.mxu0
  %v2029 = vadd.f32 %v1670, %v2028
  %2030 = vmatmul.bf16.gmra.mxu0 %v1766
  %v2031 = vpop.f32.mrf.mxu0
  %v2032 = vadd.f32 %v1670, %v2031
  %v2033 = vpop.f32.mrf.mxu0
  %v2034 = vadd.f32 %v1670, %v2033
  %2035 = vmatmul.bf16.gmra.mxu0 %v1769
  %v2036 = vpop.f32.mrf.mxu0
  %v2037 = vadd.f32 %v1670, %v2036
  %v2038 = vpop.f32.mrf.mxu0
  %v2039 = vadd.f32 %v1670, %v2038
  %2040 = vmatmul.bf16.gmra.mxu0 %v1772
  %v2041 = vpop.f32.mrf.mxu0
  %v2042 = vadd.f32 %v1670, %v2041
  %v2043 = vpop.f32.mrf.mxu0
  %v2044 = vadd.f32 %v1670, %v2043
  %2045 = vmatmul.bf16.gmra.mxu0 %v1775
  %v2046 = vpop.f32.mrf.mxu0
  %v2047 = vadd.f32 %v1670, %v2046
  %v2048 = vpop.f32.mrf.mxu0
  %v2049 = vadd.f32 %v1670, %v2048
  %2050 = vmatmul.bf16.gmra.mxu0 %v1778
  %v2051 = vpop.f32.mrf.mxu0
  %v2052 = vadd.f32 %v1670, %v2051
  %v2053 = vpop.f32.mrf.mxu0
  %v2054 = vadd.f32 %v1670, %v2053
  %2055 = vmatmul.bf16.gmra.mxu0 %v1781
  %v2056 = vpop.f32.mrf.mxu0
  %v2057 = vadd.f32 %v1670, %v2056
  %v2058 = vpop.f32.mrf.mxu0
  %v2059 = vadd.f32 %v1670, %v2058
  %2060 = vmatmul.bf16.gmra.mxu0 %v1784
  %v2061 = vpop.f32.mrf.mxu0
  %v2062 = vadd.f32 %v1670, %v2061
  %v2063 = vpop.f32.mrf.mxu0
  %v2064 = vadd.f32 %v1670, %v2063
  %2065 = vmatmul.bf16.gmra.mxu0 %v1787
  %v2066 = vpop.f32.mrf.mxu0
  %v2067 = vadd.f32 %v1670, %v2066
  %v2068 = vpop.f32.mrf.mxu0
  %v2069 = vadd.f32 %v1670, %v2068
  %2070 = vmatmul.bf16.gmra.mxu0 %v1790
  %v2071 = vpop.f32.mrf.mxu0
  %v2072 = vadd.f32 %v1670, %v2071
  %v2073 = vpop.f32.mrf.mxu0
  %v2074 = vadd.f32 %v1670, %v2073
  %2075 = vmatmul.bf16.gmra.mxu0 %v1793
  %v2076 = vpop.f32.mrf.mxu0
  %v2077 = vadd.f32 %v1670, %v2076
  %v2078 = vpop.f32.mrf.mxu0
  %v2079 = vadd.f32 %v1670, %v2078
  %2080 = vmatmul.bf16.gmra.mxu0 %v1796
  %v2081 = vpop.f32.mrf.mxu0
  %v2082 = vadd.f32 %v1670, %v2081
  %v2083 = vpop.f32.mrf.mxu0
  %v2084 = vadd.f32 %v1670, %v2083
  %2085 = vmatmul.bf16.gmra.mxu0 %v1799
  %v2086 = vpop.f32.mrf.mxu0
  %v2087 = vadd.f32 %v1670, %v2086
  %v2088 = vpop.f32.mrf.mxu0
  %v2089 = vadd.f32 %v1670, %v2088
  %2090 = vmatmul.bf16.gmra.mxu0 %v1802
  %v2091 = vpop.f32.mrf.mxu0
  %v2092 = vadd.f32 %v1670, %v2091
  %v2093 = vpop.f32.mrf.mxu0
  %v2094 = vadd.f32 %v1670, %v2093
  %2095 = vmatmul.bf16.gmra.mxu0 %v1805
  %v2096 = vpop.f32.mrf.mxu0
  %v2097 = vadd.f32 %v1670, %v2096
  %v2098 = vpop.f32.mrf.mxu0
  %v2099 = vadd.f32 %v1670, %v2098
  %2100 = vmatmul.bf16.gmra.mxu0 %v1808
  %v2101 = vpop.f32.mrf.mxu0
  %v2102 = vadd.f32 %v1670, %v2101
  %v2103 = vpop.f32.mrf.mxu0
  %v2104 = vadd.f32 %v1670, %v2103
  %2105 = vmatmul.bf16.gmra.mxu0 %v1811
  %v2106 = vpop.f32.mrf.mxu0
  %v2107 = vadd.f32 %v1670, %v2106
  %v2108 = vpop.f32.mrf.mxu0
  %v2109 = vadd.f32 %v1670, %v2108
  %2110 = vmatmul.bf16.gmra.mxu0 %v1814
  %v2111 = vpop.f32.mrf.mxu0
  %v2112 = vadd.f32 %v1670, %v2111
  %v2113 = vpop.f32.mrf.mxu0
  %v2114 = vadd.f32 %v1670, %v2113
  %2115 = vmatmul.bf16.gmra.mxu0 %v1817
  %v2116 = vpop.f32.mrf.mxu0
  %v2117 = vadd.f32 %v1670, %v2116
  %v2118 = vpop.f32.mrf.mxu0
  %v2119 = vadd.f32 %v1670, %v2118
  %2120 = vmatmul.bf16.gmra.mxu0 %v1820
  %v2121 = vpop.f32.mrf.mxu0
  %v2122 = vadd.f32 %v1670, %v2121
  %v2123 = vpop.f32.mrf.mxu0
  %v2124 = vadd.f32 %v1670, %v2123
  %2125 = vmatmul.bf16.gmra.mxu0 %v1823
  %v2126 = vpop.f32.mrf.mxu0
  %v2127 = vadd.f32 %v1670, %v2126
  %v2128 = vpop.f32.mrf.mxu0
  %v2129 = vadd.f32 %v1670, %v2128
  %2130 = vmatmul.bf16.gmra.mxu0 %v1826
  %v2131 = vpop.f32.mrf.mxu0
  %v2132 = vadd.f32 %v1670, %v2131
  %v2133 = vpop.f32.mrf.mxu0
  %v2134 = vadd.f32 %v1670, %v2133
  %2135 = vmatmul.bf16.gmra.mxu0 %v1829
  %v2136 = vpop.f32.mrf.mxu0
  %v2137 = vadd.f32 %v1670, %v2136
  %v2138 = vpop.f32.mrf.mxu0
  %v2139 = vadd.f32 %v1670, %v2138
  %2140 = vmatmul.bf16.gmra.mxu0 %v1832
  %v2141 = vpop.f32.mrf.mxu0
  %v2142 = vadd.f32 %v1670, %v2141
  %v2143 = vpop.f32.mrf.mxu0
  %v2144 = vadd.f32 %v1670, %v2143
  %2145 = vmatmul.bf16.gmra.mxu0 %v1835
  %v2146 = vpop.f32.mrf.mxu0
  %v2147 = vadd.f32 %v1670, %v2146
  %v2148 = vpop.f32.mrf.mxu0
  %v2149 = vadd.f32 %v1670, %v2148
  %2150 = vmatmul.bf16.gmra.mxu0 %v1838
  %v2151 = vpop.f32.mrf.mxu0
  %v2152 = vadd.f32 %v1670, %v2151
  %v2153 = vpop.f32.mrf.mxu0
  %v2154 = vadd.f32 %v1670, %v2153
  %2155 = vmatmul.bf16.gmra.mxu0 %v1841
  %v2156 = vpop.f32.mrf.mxu0
  %v2157 = vadd.f32 %v1670, %v2156
  %v2158 = vpop.f32.mrf.mxu0
  %v2159 = vadd.f32 %v1670, %v2158
  %2160 = vmatmul.bf16.gmra.mxu0 %v1844
  %v2161 = vpop.f32.mrf.mxu0
  %v2162 = vadd.f32 %v1670, %v2161
  %v2163 = vpop.f32.mrf.mxu0
  %v2164 = vadd.f32 %v1670, %v2163
  %2165 = vmatmul.bf16.gmra.mxu0 %v1847
  %v2166 = vpop.f32.mrf.mxu0
  %v2167 = vadd.f32 %v1670, %v2166
  %v2168 = vpop.f32.mrf.mxu0
  %v2169 = vadd.f32 %v1670, %v2168
  %2170 = vmatmul.bf16.gmra.mxu0 %v1850
  %v2171 = vpop.f32.mrf.mxu0
  %v2172 = vadd.f32 %v1670, %v2171
  %v2173 = vpop.f32.mrf.mxu0
  %v2174 = vadd.f32 %v1670, %v2173
  %2175 = vmatmul.bf16.gmra.mxu0 %v1853
  %v2176 = vpop.f32.mrf.mxu0
  %v2177 = vadd.f32 %v1670, %v2176
  %v2178 = vpop.f32.mrf.mxu0
  %v2179 = vadd.f32 %v1670, %v2178
  %2180 = vmatmul.bf16.gmra.mxu0 %v1856
  %v2181 = vpop.f32.mrf.mxu0
  %v2182 = vadd.f32 %v1670, %v2181
  %v2183 = vpop.f32.mrf.mxu0
  %v2184 = vadd.f32 %v1670, %v2183
  %2185 = vmatmul.bf16.gmra.mxu0 %v1859
  %v2186 = vpop.f32.mrf.mxu0
  %v2187 = vadd.f32 %v1670, %v2186
  %v2188 = vpop.f32.mrf.mxu0
  %v2189 = vadd.f32 %v1670, %v2188
  %2190 = vmatmul.bf16.gmra.mxu0 %v1862
  %v2191 = vpop.f32.mrf.mxu0
  %v2192 = vadd.f32 %v1670, %v2191
  %v2193 = vpop.f32.mrf.mxu0
  %v2194 = vadd.f32 %v1670, %v2193
  %2195 = vdwg.mxu0
  %v2196 = vmax.f32 %v1877, 0.0
  %v2197 = vmax.f32 %v1879, 0.0
  %v2198 = vmax.f32 %v1882, 0.0
  %v2199 = vmax.f32 %v1884, 0.0
  %v2200 = vmax.f32 %v1887, 0.0
  %v2201 = vmax.f32 %v1889, 0.0
  %v2202 = vmax.f32 %v1892, 0.0
  %v2203 = vmax.f32 %v1894, 0.0
  %v2204 = vmax.f32 %v1897, 0.0
  %v2205 = vmax.f32 %v1899, 0.0
  %v2206 = vmax.f32 %v1902, 0.0
  %v2207 = vmax.f32 %v1904, 0.0
  %v2208 = vmax.f32 %v1907, 0.0
  %v2209 = vmax.f32 %v1909, 0.0
  %v2210 = vmax.f32 %v1912, 0.0
  %v2211 = vmax.f32 %v1914, 0.0
  %v2212 = vmax.f32 %v1917, 0.0
  %v2213 = vmax.f32 %v1919, 0.0
  %v2214 = vmax.f32 %v1922, 0.0
  %v2215 = vmax.f32 %v1924, 0.0
  %v2216 = vmax.f32 %v1927, 0.0
  %v2217 = vmax.f32 %v1929, 0.0
  %v2218 = vmax.f32 %v1932, 0.0
  %v2219 = vmax.f32 %v1934, 0.0
  %v2220 = vmax.f32 %v1937, 0.0
  %v2221 = vmax.f32 %v1939, 0.0
  %v2222 = vmax.f32 %v1942, 0.0
  %v2223 = vmax.f32 %v1944, 0.0
  %v2224 = vmax.f32 %v1947, 0.0
  %v2225 = vmax.f32 %v1949, 0.0
  %v2226 = vmax.f32 %v1952, 0.0
  %v2227 = vmax.f32 %v1954, 0.0
  %v2228 = vmax.f32 %v1957, 0.0
  %v2229 = vmax.f32 %v1959, 0.0
  %v2230 = vmax.f32 %v1962, 0.0
  %v2231 = vmax.f32 %v1964, 0.0
  %v2232 = vmax.f32 %v1967, 0.0
  %v2233 = vmax.f32 %v1969, 0.0
  %v2234 = vmax.f32 %v1972, 0.0
  %v2235 = vmax.f32 %v1974, 0.0
  %v2236 = vmax.f32 %v1977, 0.0
  %v2237 = vmax.f32 %v1979, 0.0
  %v2238 = vmax.f32 %v1982, 0.0
  %v2239 = vmax.f32 %v1984, 0.0
  %v2240 = vmax.f32 %v1987, 0.0
  %v2241 = vmax.f32 %v1989, 0.0
  %v2242 = vmax.f32 %v1992, 0.0
  %v2243 = vmax.f32 %v1994, 0.0
  %v2244 = vmax.f32 %v1997, 0.0
  %v2245 = vmax.f32 %v1999, 0.0
  %v2246 = vmax.f32 %v2002, 0.0
  %v2247 = vmax.f32 %v2004, 0.0
  %v2248 = vmax.f32 %v2007, 0.0
  %v2249 = vmax.f32 %v2009, 0.0
  %v2250 = vmax.f32 %v2012, 0.0
  %v2251 = vmax.f32 %v2014, 0.0
  %v2252 = vmax.f32 %v2017, 0.0
  %v2253 = vmax.f32 %v2019, 0.0
  %v2254 = vmax.f32 %v2022, 0.0
  %v2255 = vmax.f32 %v2024, 0.0
  %v2256 = vmax.f32 %v2027, 0.0
  %v2257 = vmax.f32 %v2029, 0.0
  %v2258 = vmax.f32 %v2032, 0.0
  %v2259 = vmax.f32 %v2034, 0.0
  %v2260 = vmax.f32 %v2037, 0.0
  %v2261 = vmax.f32 %v2039, 0.0
  %v2262 = vmax.f32 %v2042, 0.0
  %v2263 = vmax.f32 %v2044, 0.0
  %v2264 = vmax.f32 %v2047, 0.0
  %v2265 = vmax.f32 %v2049, 0.0
  %v2266 = vmax.f32 %v2052, 0.0
  %v2267 = vmax.f32 %v2054, 0.0
  %v2268 = vmax.f32 %v2057, 0.0
  %v2269 = vmax.f32 %v2059, 0.0
  %v2270 = vmax.f32 %v2062, 0.0
  %v2271 = vmax.f32 %v2064, 0.0
  %v2272 = vmax.f32 %v2067, 0.0
  %v2273 = vmax.f32 %v2069, 0.0
  %v2274 = vmax.f32 %v2072, 0.0
  %v2275 = vmax.f32 %v2074, 0.0
  %v2276 = vmax.f32 %v2077, 0.0
  %v2277 = vmax.f32 %v2079, 0.0
  %v2278 = vmax.f32 %v2082, 0.0
  %v2279 = vmax.f32 %v2084, 0.0
  %v2280 = vmax.f32 %v2087, 0.0
  %v2281 = vmax.f32 %v2089, 0.0
  %v2282 = vmax.f32 %v2092, 0.0
  %v2283 = vmax.f32 %v2094, 0.0
  %v2284 = vmax.f32 %v2097, 0.0
  %v2285 = vmax.f32 %v2099, 0.0
  %v2286 = vmax.f32 %v2102, 0.0
  %v2287 = vmax.f32 %v2104, 0.0
  %v2288 = vmax.f32 %v2107, 0.0
  %v2289 = vmax.f32 %v2109, 0.0
  %v2290 = vmax.f32 %v2112, 0.0
  %v2291 = vmax.f32 %v2114, 0.0
  %v2292 = vmax.f32 %v2117, 0.0
  %v2293 = vmax.f32 %v2119, 0.0
  %v2294 = vmax.f32 %v2122, 0.0
  %v2295 = vmax.f32 %v2124, 0.0
  %v2296 = vmax.f32 %v2127, 0.0
  %v2297 = vmax.f32 %v2129, 0.0
  %v2298 = vmax.f32 %v2132, 0.0
  %v2299 = vmax.f32 %v2134, 0.0
  %v2300 = vmax.f32 %v2137, 0.0
  %v2301 = vmax.f32 %v2139, 0.0
  %v2302 = vmax.f32 %v2142, 0.0
  %v2303 = vmax.f32 %v2144, 0.0
  %v2304 = vmax.f32 %v2147, 0.0
  %v2305 = vmax.f32 %v2149, 0.0
  %v2306 = vmax.f32 %v2152, 0.0
  %v2307 = vmax.f32 %v2154, 0.0
  %v2308 = vmax.f32 %v2157, 0.0
  %v2309 = vmax.f32 %v2159, 0.0
  %v2310 = vmax.f32 %v2162, 0.0
  %v2311 = vmax.f32 %v2164, 0.0
  %v2312 = vmax.f32 %v2167, 0.0
  %v2313 = vmax.f32 %v2169, 0.0
  %v2314 = vmax.f32 %v2172, 0.0
  %v2315 = vmax.f32 %v2174, 0.0
  %v2316 = vmax.f32 %v2177, 0.0
  %v2317 = vmax.f32 %v2179, 0.0
  %v2318 = vmax.f32 %v2182, 0.0
  %v2319 = vmax.f32 %v2184, 0.0
  %v2320 = vmax.f32 %v2187, 0.0
  %v2321 = vmax.f32 %v2189, 0.0
  %v2322 = vmax.f32 %v2192, 0.0
  %v2323 = vmax.f32 %v2194, 0.0
  %v2324 = vpack.c.bf16 %v2197, %v2196
  %v2325 = vpack.c.bf16 %v2199, %v2198
  %v2326 = vpack.c.bf16 %v2201, %v2200
  %v2327 = vpack.c.bf16 %v2203, %v2202
  %v2328 = vpack.c.bf16 %v2205, %v2204
  %v2329 = vpack.c.bf16 %v2207, %v2206
  %v2330 = vpack.c.bf16 %v2209, %v2208
  %v2331 = vpack.c.bf16 %v2211, %v2210
  %v2332 = vpack.c.bf16 %v2213, %v2212
  %v2333 = vpack.c.bf16 %v2215, %v2214
  %v2334 = vpack.c.bf16 %v2217, %v2216
  %v2335 = vpack.c.bf16 %v2219, %v2218
  %v2336 = vpack.c.bf16 %v2221, %v2220
  %v2337 = vpack.c.bf16 %v2223, %v2222
  %v2338 = vpack.c.bf16 %v2225, %v2224
  %v2339 = vpack.c.bf16 %v2227, %v2226
  %v2340 = vpack.c.bf16 %v2229, %v2228
  %v2341 = vpack.c.bf16 %v2231, %v2230
  %v2342 = vpack.c.bf16 %v2233, %v2232
  %v2343 = vpack.c.bf16 %v2235, %v2234
  %v2344 = vpack.c.bf16 %v2237, %v2236
  %v2345 = vpack.c.bf16 %v2239, %v2238
  %v2346 = vpack.c.bf16 %v2241, %v2240
  %v2347 = vpack.c.bf16 %v2243, %v2242
  %v2348 = vpack.c.bf16 %v2245, %v2244
  %v2349 = vpack.c.bf16 %v2247, %v2246
  %v2350 = vpack.c.bf16 %v2249, %v2248
  %v2351 = vpack.c.bf16 %v2251, %v2250
  %v2352 = vpack.c.bf16 %v2253, %v2252
  %v2353 = vpack.c.bf16 %v2255, %v2254
  %v2354 = vpack.c.bf16 %v2257, %v2256
  %v2355 = vpack.c.bf16 %v2259, %v2258
  %v2356 = vpack.c.bf16 %v2261, %v2260
  %v2357 = vpack.c.bf16 %v2263, %v2262
  %v2358 = vpack.c.bf16 %v2265, %v2264
  %v2359 = vpack.c.bf16 %v2267, %v2266
  %v2360 = vpack.c.bf16 %v2269, %v2268
  %v2361 = vpack.c.bf16 %v2271, %v2270
  %v2362 = vpack.c.bf16 %v2273, %v2272
  %v2363 = vpack.c.bf16 %v2275, %v2274
  %v2364 = vpack.c.bf16 %v2277, %v2276
  %v2365 = vpack.c.bf16 %v2279, %v2278
  %v2366 = vpack.c.bf16 %v2281, %v2280
  %v2367 = vpack.c.bf16 %v2283, %v2282
  %v2368 = vpack.c.bf16 %v2285, %v2284
  %v2369 = vpack.c.bf16 %v2287, %v2286
  %v2370 = vpack.c.bf16 %v2289, %v2288
  %v2371 = vpack.c.bf16 %v2291, %v2290
  %v2372 = vpack.c.bf16 %v2293, %v2292
  %v2373 = vpack.c.bf16 %v2295, %v2294
  %v2374 = vpack.c.bf16 %v2297, %v2296
  %v2375 = vpack.c.bf16 %v2299, %v2298
  %v2376 = vpack.c.bf16 %v2301, %v2300
  %v2377 = vpack.c.bf16 %v2303, %v2302
  %v2378 = vpack.c.bf16 %v2305, %v2304
  %v2379 = vpack.c.bf16 %v2307, %v2306
  %v2380 = vpack.c.bf16 %v2309, %v2308
  %v2381 = vpack.c.bf16 %v2311, %v2310
  %v2382 = vpack.c.bf16 %v2313, %v2312
  %v2383 = vpack.c.bf16 %v2315, %v2314
  %v2384 = vpack.c.bf16 %v2317, %v2316
  %v2385 = vpack.c.bf16 %v2319, %v2318
  %v2386 = vpack.c.bf16 %v2321, %v2320
  %v2387 = vpack.c.bf16 %v2323, %v2322
  %v2388 = vld [vmem:[%s13] sm:$0xf]
  %v2389 = vld [vmem:[%s14] sm:$0x1]
  %v2391 = vperm.slane %v2389, 0
  %v2394 = vsel %vm537, %v2324, 0
  %v2397 = vsel %vm537, %v2325, 0
  %v2400 = vsel %vm537, %v2326, 0
  %v2403 = vsel %vm537, %v2327, 0
  %v2406 = vsel %vm537, %v2328, 0
  %v2409 = vsel %vm537, %v2329, 0
  %v2412 = vsel %vm537, %v2330, 0
  %v2415 = vsel %vm537, %v2331, 0
  %v2418 = vsel %vm537, %v2332, 0
  %v2421 = vsel %vm537, %v2333, 0
  %v2424 = vsel %vm537, %v2334, 0
  %v2427 = vsel %vm537, %v2335, 0
  %v2430 = vsel %vm537, %v2336, 0
  %v2433 = vsel %vm537, %v2337, 0
  %v2436 = vsel %vm537, %v2338, 0
  %v2439 = vsel %vm537, %v2339, 0
  %v2442 = vsel %vm537, %v2340, 0
  %v2445 = vsel %vm537, %v2341, 0
  %v2448 = vsel %vm537, %v2342, 0
  %v2451 = vsel %vm537, %v2343, 0
  %v2454 = vsel %vm537, %v2344, 0
  %v2457 = vsel %vm537, %v2345, 0
  %v2460 = vsel %vm537, %v2346, 0
  %v2463 = vsel %vm537, %v2347, 0
  %v2466 = vsel %vm537, %v2348, 0
  %v2469 = vsel %vm537, %v2349, 0
  %v2472 = vsel %vm537, %v2350, 0
  %v2475 = vsel %vm537, %v2351, 0
  %v2478 = vsel %vm537, %v2352, 0
  %v2481 = vsel %vm537, %v2353, 0
  %v2484 = vsel %vm537, %v2354, 0
  %v2487 = vsel %vm537, %v2355, 0
  %v2490 = vsel %vm537, %v2356, 0
  %v2493 = vsel %vm537, %v2357, 0
  %v2496 = vsel %vm537, %v2358, 0
  %v2499 = vsel %vm537, %v2359, 0
  %v2502 = vsel %vm537, %v2360, 0
  %v2505 = vsel %vm537, %v2361, 0
  %v2508 = vsel %vm537, %v2362, 0
  %v2511 = vsel %vm537, %v2363, 0
  %v2514 = vsel %vm537, %v2364, 0
  %v2517 = vsel %vm537, %v2365, 0
  %v2520 = vsel %vm537, %v2366, 0
  %v2523 = vsel %vm537, %v2367, 0
  %v2526 = vsel %vm537, %v2368, 0
  %v2529 = vsel %vm537, %v2369, 0
  %v2532 = vsel %vm537, %v2370, 0
  %v2535 = vsel %vm537, %v2371, 0
  %v2538 = vsel %vm537, %v2372, 0
  %v2541 = vsel %vm537, %v2373, 0
  %v2544 = vsel %vm537, %v2374, 0
  %v2547 = vsel %vm537, %v2375, 0
  %v2550 = vsel %vm537, %v2376, 0
  %v2553 = vsel %vm537, %v2377, 0
  %v2556 = vsel %vm537, %v2378, 0
  %v2559 = vsel %vm537, %v2379, 0
  %v2562 = vsel %vm537, %v2380, 0
  %v2565 = vsel %vm537, %v2381, 0
  %v2568 = vsel %vm537, %v2382, 0
  %v2571 = vsel %vm537, %v2383, 0
  %v2574 = vsel %vm537, %v2384, 0
  %v2577 = vsel %vm537, %v2385, 0
  %v2580 = vsel %vm537, %v2386, 0
  %v2583 = vsel %vm537, %v2387, 0
  %v2586 = vsel %vm634, %v2388, 0
  %2588 = vmatpush.bf16.msra.mxu0 0
  %2589 = vmatpush.bf16.msra.mxu0 0
  %2590 = vmatpush.bf16.msra.mxu0 0
  %2591 = vmatpush.bf16.msra.mxu0 0
  %2592 = vmatpush.bf16.msra.mxu0 0
  %2593 = vmatpush.bf16.msra.mxu0 0
  %2594 = vmatpush.bf16.msra.mxu0 0
  %2595 = vmatpush.bf16.msra.mxu0 %v2586
  %2596 = vmatmul.bf16.gmra.mxu0 %v2394
  %v2597 = vpop.f32.mrf.mxu0
  %v2598 = vadd.f32 %v2391, %v2597
  %v2599 = vpop.f32.mrf.mxu0
  %v2600 = vadd.f32 %v2391, %v2599
  %2601 = vmatmul.bf16.gmra.mxu0 %v2397
  %v2602 = vpop.f32.mrf.mxu0
  %v2603 = vadd.f32 %v2391, %v2602
  %v2604 = vpop.f32.mrf.mxu0
  %v2605 = vadd.f32 %v2391, %v2604
  %2606 = vmatmul.bf16.gmra.mxu0 %v2400
  %v2607 = vpop.f32.mrf.mxu0
  %v2608 = vadd.f32 %v2391, %v2607
  %v2609 = vpop.f32.mrf.mxu0
  %v2610 = vadd.f32 %v2391, %v2609
  %2611 = vmatmul.bf16.gmra.mxu0 %v2403
  %v2612 = vpop.f32.mrf.mxu0
  %v2613 = vadd.f32 %v2391, %v2612
  %v2614 = vpop.f32.mrf.mxu0
  %v2615 = vadd.f32 %v2391, %v2614
  %2616 = vmatmul.bf16.gmra.mxu0 %v2406
  %v2617 = vpop.f32.mrf.mxu0
  %v2618 = vadd.f32 %v2391, %v2617
  %v2619 = vpop.f32.mrf.mxu0
  %v2620 = vadd.f32 %v2391, %v2619
  %2621 = vmatmul.bf16.gmra.mxu0 %v2409
  %v2622 = vpop.f32.mrf.mxu0
  %v2623 = vadd.f32 %v2391, %v2622
  %v2624 = vpop.f32.mrf.mxu0
  %v2625 = vadd.f32 %v2391, %v2624
  %2626 = vmatmul.bf16.gmra.mxu0 %v2412
  %v2627 = vpop.f32.mrf.mxu0
  %v2628 = vadd.f32 %v2391, %v2627
  %v2629 = vpop.f32.mrf.mxu0
  %v2630 = vadd.f32 %v2391, %v2629
  %2631 = vmatmul.bf16.gmra.mxu0 %v2415
  %v2632 = vpop.f32.mrf.mxu0
  %v2633 = vadd.f32 %v2391, %v2632
  %v2634 = vpop.f32.mrf.mxu0
  %v2635 = vadd.f32 %v2391, %v2634
  %2636 = vmatmul.bf16.gmra.mxu0 %v2418
  %v2637 = vpop.f32.mrf.mxu0
  %v2638 = vadd.f32 %v2391, %v2637
  %v2639 = vpop.f32.mrf.mxu0
  %v2640 = vadd.f32 %v2391, %v2639
  %2641 = vmatmul.bf16.gmra.mxu0 %v2421
  %v2642 = vpop.f32.mrf.mxu0
  %v2643 = vadd.f32 %v2391, %v2642
  %v2644 = vpop.f32.mrf.mxu0
  %v2645 = vadd.f32 %v2391, %v2644
  %2646 = vmatmul.bf16.gmra.mxu0 %v2424
  %v2647 = vpop.f32.mrf.mxu0
  %v2648 = vadd.f32 %v2391, %v2647
  %v2649 = vpop.f32.mrf.mxu0
  %v2650 = vadd.f32 %v2391, %v2649
  %2651 = vmatmul.bf16.gmra.mxu0 %v2427
  %v2652 = vpop.f32.mrf.mxu0
  %v2653 = vadd.f32 %v2391, %v2652
  %v2654 = vpop.f32.mrf.mxu0
  %v2655 = vadd.f32 %v2391, %v2654
  %2656 = vmatmul.bf16.gmra.mxu0 %v2430
  %v2657 = vpop.f32.mrf.mxu0
  %v2658 = vadd.f32 %v2391, %v2657
  %v2659 = vpop.f32.mrf.mxu0
  %v2660 = vadd.f32 %v2391, %v2659
  %2661 = vmatmul.bf16.gmra.mxu0 %v2433
  %v2662 = vpop.f32.mrf.mxu0
  %v2663 = vadd.f32 %v2391, %v2662
  %v2664 = vpop.f32.mrf.mxu0
  %v2665 = vadd.f32 %v2391, %v2664
  %2666 = vmatmul.bf16.gmra.mxu0 %v2436
  %v2667 = vpop.f32.mrf.mxu0
  %v2668 = vadd.f32 %v2391, %v2667
  %v2669 = vpop.f32.mrf.mxu0
  %v2670 = vadd.f32 %v2391, %v2669
  %2671 = vmatmul.bf16.gmra.mxu0 %v2439
  %v2672 = vpop.f32.mrf.mxu0
  %v2673 = vadd.f32 %v2391, %v2672
  %v2674 = vpop.f32.mrf.mxu0
  %v2675 = vadd.f32 %v2391, %v2674
  %2676 = vmatmul.bf16.gmra.mxu0 %v2442
  %v2677 = vpop.f32.mrf.mxu0
  %v2678 = vadd.f32 %v2391, %v2677
  %v2679 = vpop.f32.mrf.mxu0
  %v2680 = vadd.f32 %v2391, %v2679
  %2681 = vmatmul.bf16.gmra.mxu0 %v2445
  %v2682 = vpop.f32.mrf.mxu0
  %v2683 = vadd.f32 %v2391, %v2682
  %v2684 = vpop.f32.mrf.mxu0
  %v2685 = vadd.f32 %v2391, %v2684
  %2686 = vmatmul.bf16.gmra.mxu0 %v2448
  %v2687 = vpop.f32.mrf.mxu0
  %v2688 = vadd.f32 %v2391, %v2687
  %v2689 = vpop.f32.mrf.mxu0
  %v2690 = vadd.f32 %v2391, %v2689
  %2691 = vmatmul.bf16.gmra.mxu0 %v2451
  %v2692 = vpop.f32.mrf.mxu0
  %v2693 = vadd.f32 %v2391, %v2692
  %v2694 = vpop.f32.mrf.mxu0
  %v2695 = vadd.f32 %v2391, %v2694
  %2696 = vmatmul.bf16.gmra.mxu0 %v2454
  %v2697 = vpop.f32.mrf.mxu0
  %v2698 = vadd.f32 %v2391, %v2697
  %v2699 = vpop.f32.mrf.mxu0
  %v2700 = vadd.f32 %v2391, %v2699
  %2701 = vmatmul.bf16.gmra.mxu0 %v2457
  %v2702 = vpop.f32.mrf.mxu0
  %v2703 = vadd.f32 %v2391, %v2702
  %v2704 = vpop.f32.mrf.mxu0
  %v2705 = vadd.f32 %v2391, %v2704
  %2706 = vmatmul.bf16.gmra.mxu0 %v2460
  %v2707 = vpop.f32.mrf.mxu0
  %v2708 = vadd.f32 %v2391, %v2707
  %v2709 = vpop.f32.mrf.mxu0
  %v2710 = vadd.f32 %v2391, %v2709
  %2711 = vmatmul.bf16.gmra.mxu0 %v2463
  %v2712 = vpop.f32.mrf.mxu0
  %v2713 = vadd.f32 %v2391, %v2712
  %v2714 = vpop.f32.mrf.mxu0
  %v2715 = vadd.f32 %v2391, %v2714
  %2716 = vmatmul.bf16.gmra.mxu0 %v2466
  %v2717 = vpop.f32.mrf.mxu0
  %v2718 = vadd.f32 %v2391, %v2717
  %v2719 = vpop.f32.mrf.mxu0
  %v2720 = vadd.f32 %v2391, %v2719
  %2721 = vmatmul.bf16.gmra.mxu0 %v2469
  %v2722 = vpop.f32.mrf.mxu0
  %v2723 = vadd.f32 %v2391, %v2722
  %v2724 = vpop.f32.mrf.mxu0
  %v2725 = vadd.f32 %v2391, %v2724
  %2726 = vmatmul.bf16.gmra.mxu0 %v2472
  %v2727 = vpop.f32.mrf.mxu0
  %v2728 = vadd.f32 %v2391, %v2727
  %v2729 = vpop.f32.mrf.mxu0
  %v2730 = vadd.f32 %v2391, %v2729
  %2731 = vmatmul.bf16.gmra.mxu0 %v2475
  %v2732 = vpop.f32.mrf.mxu0
  %v2733 = vadd.f32 %v2391, %v2732
  %v2734 = vpop.f32.mrf.mxu0
  %v2735 = vadd.f32 %v2391, %v2734
  %2736 = vmatmul.bf16.gmra.mxu0 %v2478
  %v2737 = vpop.f32.mrf.mxu0
  %v2738 = vadd.f32 %v2391, %v2737
  %v2739 = vpop.f32.mrf.mxu0
  %v2740 = vadd.f32 %v2391, %v2739
  %2741 = vmatmul.bf16.gmra.mxu0 %v2481
  %v2742 = vpop.f32.mrf.mxu0
  %v2743 = vadd.f32 %v2391, %v2742
  %v2744 = vpop.f32.mrf.mxu0
  %v2745 = vadd.f32 %v2391, %v2744
  %2746 = vmatmul.bf16.gmra.mxu0 %v2484
  %v2747 = vpop.f32.mrf.mxu0
  %v2748 = vadd.f32 %v2391, %v2747
  %v2749 = vpop.f32.mrf.mxu0
  %v2750 = vadd.f32 %v2391, %v2749
  %2751 = vmatmul.bf16.gmra.mxu0 %v2487
  %v2752 = vpop.f32.mrf.mxu0
  %v2753 = vadd.f32 %v2391, %v2752
  %v2754 = vpop.f32.mrf.mxu0
  %v2755 = vadd.f32 %v2391, %v2754
  %2756 = vmatmul.bf16.gmra.mxu0 %v2490
  %v2757 = vpop.f32.mrf.mxu0
  %v2758 = vadd.f32 %v2391, %v2757
  %v2759 = vpop.f32.mrf.mxu0
  %v2760 = vadd.f32 %v2391, %v2759
  %2761 = vmatmul.bf16.gmra.mxu0 %v2493
  %v2762 = vpop.f32.mrf.mxu0
  %v2763 = vadd.f32 %v2391, %v2762
  %v2764 = vpop.f32.mrf.mxu0
  %v2765 = vadd.f32 %v2391, %v2764
  %2766 = vmatmul.bf16.gmra.mxu0 %v2496
  %v2767 = vpop.f32.mrf.mxu0
  %v2768 = vadd.f32 %v2391, %v2767
  %v2769 = vpop.f32.mrf.mxu0
  %v2770 = vadd.f32 %v2391, %v2769
  %2771 = vmatmul.bf16.gmra.mxu0 %v2499
  %v2772 = vpop.f32.mrf.mxu0
  %v2773 = vadd.f32 %v2391, %v2772
  %v2774 = vpop.f32.mrf.mxu0
  %v2775 = vadd.f32 %v2391, %v2774
  %2776 = vmatmul.bf16.gmra.mxu0 %v2502
  %v2777 = vpop.f32.mrf.mxu0
  %v2778 = vadd.f32 %v2391, %v2777
  %v2779 = vpop.f32.mrf.mxu0
  %v2780 = vadd.f32 %v2391, %v2779
  %2781 = vmatmul.bf16.gmra.mxu0 %v2505
  %v2782 = vpop.f32.mrf.mxu0
  %v2783 = vadd.f32 %v2391, %v2782
  %v2784 = vpop.f32.mrf.mxu0
  %v2785 = vadd.f32 %v2391, %v2784
  %2786 = vmatmul.bf16.gmra.mxu0 %v2508
  %v2787 = vpop.f32.mrf.mxu0
  %v2788 = vadd.f32 %v2391, %v2787
  %v2789 = vpop.f32.mrf.mxu0
  %v2790 = vadd.f32 %v2391, %v2789
  %2791 = vmatmul.bf16.gmra.mxu0 %v2511
  %v2792 = vpop.f32.mrf.mxu0
  %v2793 = vadd.f32 %v2391, %v2792
  %v2794 = vpop.f32.mrf.mxu0
  %v2795 = vadd.f32 %v2391, %v2794
  %2796 = vmatmul.bf16.gmra.mxu0 %v2514
  %v2797 = vpop.f32.mrf.mxu0
  %v2798 = vadd.f32 %v2391, %v2797
  %v2799 = vpop.f32.mrf.mxu0
  %v2800 = vadd.f32 %v2391, %v2799
  %2801 = vmatmul.bf16.gmra.mxu0 %v2517
  %v2802 = vpop.f32.mrf.mxu0
  %v2803 = vadd.f32 %v2391, %v2802
  %v2804 = vpop.f32.mrf.mxu0
  %v2805 = vadd.f32 %v2391, %v2804
  %2806 = vmatmul.bf16.gmra.mxu0 %v2520
  %v2807 = vpop.f32.mrf.mxu0
  %v2808 = vadd.f32 %v2391, %v2807
  %v2809 = vpop.f32.mrf.mxu0
  %v2810 = vadd.f32 %v2391, %v2809
  %2811 = vmatmul.bf16.gmra.mxu0 %v2523
  %v2812 = vpop.f32.mrf.mxu0
  %v2813 = vadd.f32 %v2391, %v2812
  %v2814 = vpop.f32.mrf.mxu0
  %v2815 = vadd.f32 %v2391, %v2814
  %2816 = vmatmul.bf16.gmra.mxu0 %v2526
  %v2817 = vpop.f32.mrf.mxu0
  %v2818 = vadd.f32 %v2391, %v2817
  %v2819 = vpop.f32.mrf.mxu0
  %v2820 = vadd.f32 %v2391, %v2819
  %2821 = vmatmul.bf16.gmra.mxu0 %v2529
  %v2822 = vpop.f32.mrf.mxu0
  %v2823 = vadd.f32 %v2391, %v2822
  %v2824 = vpop.f32.mrf.mxu0
  %v2825 = vadd.f32 %v2391, %v2824
  %2826 = vmatmul.bf16.gmra.mxu0 %v2532
  %v2827 = vpop.f32.mrf.mxu0
  %v2828 = vadd.f32 %v2391, %v2827
  %v2829 = vpop.f32.mrf.mxu0
  %v2830 = vadd.f32 %v2391, %v2829
  %2831 = vmatmul.bf16.gmra.mxu0 %v2535
  %v2832 = vpop.f32.mrf.mxu0
  %v2833 = vadd.f32 %v2391, %v2832
  %v2834 = vpop.f32.mrf.mxu0
  %v2835 = vadd.f32 %v2391, %v2834
  %2836 = vmatmul.bf16.gmra.mxu0 %v2538
  %v2837 = vpop.f32.mrf.mxu0
  %v2838 = vadd.f32 %v2391, %v2837
  %v2839 = vpop.f32.mrf.mxu0
  %v2840 = vadd.f32 %v2391, %v2839
  %2841 = vmatmul.bf16.gmra.mxu0 %v2541
  %v2842 = vpop.f32.mrf.mxu0
  %v2843 = vadd.f32 %v2391, %v2842
  %v2844 = vpop.f32.mrf.mxu0
  %v2845 = vadd.f32 %v2391, %v2844
  %2846 = vmatmul.bf16.gmra.mxu0 %v2544
  %v2847 = vpop.f32.mrf.mxu0
  %v2848 = vadd.f32 %v2391, %v2847
  %v2849 = vpop.f32.mrf.mxu0
  %v2850 = vadd.f32 %v2391, %v2849
  %2851 = vmatmul.bf16.gmra.mxu0 %v2547
  %v2852 = vpop.f32.mrf.mxu0
  %v2853 = vadd.f32 %v2391, %v2852
  %v2854 = vpop.f32.mrf.mxu0
  %v2855 = vadd.f32 %v2391, %v2854
  %2856 = vmatmul.bf16.gmra.mxu0 %v2550
  %v2857 = vpop.f32.mrf.mxu0
  %v2858 = vadd.f32 %v2391, %v2857
  %v2859 = vpop.f32.mrf.mxu0
  %v2860 = vadd.f32 %v2391, %v2859
  %2861 = vmatmul.bf16.gmra.mxu0 %v2553
  %v2862 = vpop.f32.mrf.mxu0
  %v2863 = vadd.f32 %v2391, %v2862
  %v2864 = vpop.f32.mrf.mxu0
  %v2865 = vadd.f32 %v2391, %v2864
  %2866 = vmatmul.bf16.gmra.mxu0 %v2556
  %v2867 = vpop.f32.mrf.mxu0
  %v2868 = vadd.f32 %v2391, %v2867
  %v2869 = vpop.f32.mrf.mxu0
  %v2870 = vadd.f32 %v2391, %v2869
  %2871 = vmatmul.bf16.gmra.mxu0 %v2559
  %v2872 = vpop.f32.mrf.mxu0
  %v2873 = vadd.f32 %v2391, %v2872
  %v2874 = vpop.f32.mrf.mxu0
  %v2875 = vadd.f32 %v2391, %v2874
  %2876 = vmatmul.bf16.gmra.mxu0 %v2562
  %v2877 = vpop.f32.mrf.mxu0
  %v2878 = vadd.f32 %v2391, %v2877
  %v2879 = vpop.f32.mrf.mxu0
  %v2880 = vadd.f32 %v2391, %v2879
  %2881 = vmatmul.bf16.gmra.mxu0 %v2565
  %v2882 = vpop.f32.mrf.mxu0
  %v2883 = vadd.f32 %v2391, %v2882
  %v2884 = vpop.f32.mrf.mxu0
  %v2885 = vadd.f32 %v2391, %v2884
  %2886 = vmatmul.bf16.gmra.mxu0 %v2568
  %v2887 = vpop.f32.mrf.mxu0
  %v2888 = vadd.f32 %v2391, %v2887
  %v2889 = vpop.f32.mrf.mxu0
  %v2890 = vadd.f32 %v2391, %v2889
  %2891 = vmatmul.bf16.gmra.mxu0 %v2571
  %v2892 = vpop.f32.mrf.mxu0
  %v2893 = vadd.f32 %v2391, %v2892
  %v2894 = vpop.f32.mrf.mxu0
  %v2895 = vadd.f32 %v2391, %v2894
  %2896 = vmatmul.bf16.gmra.mxu0 %v2574
  %v2897 = vpop.f32.mrf.mxu0
  %v2898 = vadd.f32 %v2391, %v2897
  %v2899 = vpop.f32.mrf.mxu0
  %v2900 = vadd.f32 %v2391, %v2899
  %2901 = vmatmul.bf16.gmra.mxu0 %v2577
  %v2902 = vpop.f32.mrf.mxu0
  %v2903 = vadd.f32 %v2391, %v2902
  %v2904 = vpop.f32.mrf.mxu0
  %v2905 = vadd.f32 %v2391, %v2904
  %2906 = vmatmul.bf16.gmra.mxu0 %v2580
  %v2907 = vpop.f32.mrf.mxu0
  %v2908 = vadd.f32 %v2391, %v2907
  %v2909 = vpop.f32.mrf.mxu0
  %v2910 = vadd.f32 %v2391, %v2909
  %2911 = vmatmul.bf16.gmra.mxu0 %v2583
  %v2912 = vpop.f32.mrf.mxu0
  %v2913 = vadd.f32 %v2391, %v2912
  %v2914 = vpop.f32.mrf.mxu0
  %v2915 = vadd.f32 %v2391, %v2914
  %2916 = vdwg.mxu0
  %v2917 = vmax.f32 %v2598, 0.0
  %v2918 = vmax.f32 %v2600, 0.0
  %v2919 = vmax.f32 %v2603, 0.0
  %v2920 = vmax.f32 %v2605, 0.0
  %v2921 = vmax.f32 %v2608, 0.0
  %v2922 = vmax.f32 %v2610, 0.0
  %v2923 = vmax.f32 %v2613, 0.0
  %v2924 = vmax.f32 %v2615, 0.0
  %v2925 = vmax.f32 %v2618, 0.0
  %v2926 = vmax.f32 %v2620, 0.0
  %v2927 = vmax.f32 %v2623, 0.0
  %v2928 = vmax.f32 %v2625, 0.0
  %v2929 = vmax.f32 %v2628, 0.0
  %v2930 = vmax.f32 %v2630, 0.0
  %v2931 = vmax.f32 %v2633, 0.0
  %v2932 = vmax.f32 %v2635, 0.0
  %v2933 = vmax.f32 %v2638, 0.0
  %v2934 = vmax.f32 %v2640, 0.0
  %v2935 = vmax.f32 %v2643, 0.0
  %v2936 = vmax.f32 %v2645, 0.0
  %v2937 = vmax.f32 %v2648, 0.0
  %v2938 = vmax.f32 %v2650, 0.0
  %v2939 = vmax.f32 %v2653, 0.0
  %v2940 = vmax.f32 %v2655, 0.0
  %v2941 = vmax.f32 %v2658, 0.0
  %v2942 = vmax.f32 %v2660, 0.0
  %v2943 = vmax.f32 %v2663, 0.0
  %v2944 = vmax.f32 %v2665, 0.0
  %v2945 = vmax.f32 %v2668, 0.0
  %v2946 = vmax.f32 %v2670, 0.0
  %v2947 = vmax.f32 %v2673, 0.0
  %v2948 = vmax.f32 %v2675, 0.0
  %v2949 = vmax.f32 %v2678, 0.0
  %v2950 = vmax.f32 %v2680, 0.0
  %v2951 = vmax.f32 %v2683, 0.0
  %v2952 = vmax.f32 %v2685, 0.0
  %v2953 = vmax.f32 %v2688, 0.0
  %v2954 = vmax.f32 %v2690, 0.0
  %v2955 = vmax.f32 %v2693, 0.0
  %v2956 = vmax.f32 %v2695, 0.0
  %v2957 = vmax.f32 %v2698, 0.0
  %v2958 = vmax.f32 %v2700, 0.0
  %v2959 = vmax.f32 %v2703, 0.0
  %v2960 = vmax.f32 %v2705, 0.0
  %v2961 = vmax.f32 %v2708, 0.0
  %v2962 = vmax.f32 %v2710, 0.0
  %v2963 = vmax.f32 %v2713, 0.0
  %v2964 = vmax.f32 %v2715, 0.0
  %v2965 = vmax.f32 %v2718, 0.0
  %v2966 = vmax.f32 %v2720, 0.0
  %v2967 = vmax.f32 %v2723, 0.0
  %v2968 = vmax.f32 %v2725, 0.0
  %v2969 = vmax.f32 %v2728, 0.0
  %v2970 = vmax.f32 %v2730, 0.0
  %v2971 = vmax.f32 %v2733, 0.0
  %v2972 = vmax.f32 %v2735, 0.0
  %v2973 = vmax.f32 %v2738, 0.0
  %v2974 = vmax.f32 %v2740, 0.0
  %v2975 = vmax.f32 %v2743, 0.0
  %v2976 = vmax.f32 %v2745, 0.0
  %v2977 = vmax.f32 %v2748, 0.0
  %v2978 = vmax.f32 %v2750, 0.0
  %v2979 = vmax.f32 %v2753, 0.0
  %v2980 = vmax.f32 %v2755, 0.0
  %v2981 = vmax.f32 %v2758, 0.0
  %v2982 = vmax.f32 %v2760, 0.0
  %v2983 = vmax.f32 %v2763, 0.0
  %v2984 = vmax.f32 %v2765, 0.0
  %v2985 = vmax.f32 %v2768, 0.0
  %v2986 = vmax.f32 %v2770, 0.0
  %v2987 = vmax.f32 %v2773, 0.0
  %v2988 = vmax.f32 %v2775, 0.0
  %v2989 = vmax.f32 %v2778, 0.0
  %v2990 = vmax.f32 %v2780, 0.0
  %v2991 = vmax.f32 %v2783, 0.0
  %v2992 = vmax.f32 %v2785, 0.0
  %v2993 = vmax.f32 %v2788, 0.0
  %v2994 = vmax.f32 %v2790, 0.0
  %v2995 = vmax.f32 %v2793, 0.0
  %v2996 = vmax.f32 %v2795, 0.0
  %v2997 = vmax.f32 %v2798, 0.0
  %v2998 = vmax.f32 %v2800, 0.0
  %v2999 = vmax.f32 %v2803, 0.0
  %v3000 = vmax.f32 %v2805, 0.0
  %v3001 = vmax.f32 %v2808, 0.0
  %v3002 = vmax.f32 %v2810, 0.0
  %v3003 = vmax.f32 %v2813, 0.0
  %v3004 = vmax.f32 %v2815, 0.0
  %v3005 = vmax.f32 %v2818, 0.0
  %v3006 = vmax.f32 %v2820, 0.0
  %v3007 = vmax.f32 %v2823, 0.0
  %v3008 = vmax.f32 %v2825, 0.0
  %v3009 = vmax.f32 %v2828, 0.0
  %v3010 = vmax.f32 %v2830, 0.0
  %v3011 = vmax.f32 %v2833, 0.0
  %v3012 = vmax.f32 %v2835, 0.0
  %v3013 = vmax.f32 %v2838, 0.0
  %v3014 = vmax.f32 %v2840, 0.0
  %v3015 = vmax.f32 %v2843, 0.0
  %v3016 = vmax.f32 %v2845, 0.0
  %v3017 = vmax.f32 %v2848, 0.0
  %v3018 = vmax.f32 %v2850, 0.0
  %v3019 = vmax.f32 %v2853, 0.0
  %v3020 = vmax.f32 %v2855, 0.0
  %v3021 = vmax.f32 %v2858, 0.0
  %v3022 = vmax.f32 %v2860, 0.0
  %v3023 = vmax.f32 %v2863, 0.0
  %v3024 = vmax.f32 %v2865, 0.0
  %v3025 = vmax.f32 %v2868, 0.0
  %v3026 = vmax.f32 %v2870, 0.0
  %v3027 = vmax.f32 %v2873, 0.0
  %v3028 = vmax.f32 %v2875, 0.0
  %v3029 = vmax.f32 %v2878, 0.0
  %v3030 = vmax.f32 %v2880, 0.0
  %v3031 = vmax.f32 %v2883, 0.0
  %v3032 = vmax.f32 %v2885, 0.0
  %v3033 = vmax.f32 %v2888, 0.0
  %v3034 = vmax.f32 %v2890, 0.0
  %v3035 = vmax.f32 %v2893, 0.0
  %v3036 = vmax.f32 %v2895, 0.0
  %v3037 = vmax.f32 %v2898, 0.0
  %v3038 = vmax.f32 %v2900, 0.0
  %v3039 = vmax.f32 %v2903, 0.0
  %v3040 = vmax.f32 %v2905, 0.0
  %v3041 = vmax.f32 %v2908, 0.0
  %v3042 = vmax.f32 %v2910, 0.0
  %v3043 = vmax.f32 %v2913, 0.0
  %v3044 = vmax.f32 %v2915, 0.0
  %v3045 = vpack.c.bf16 %v2918, %v2917
  %v3046 = vpack.c.bf16 %v2920, %v2919
  %v3047 = vpack.c.bf16 %v2922, %v2921
  %v3048 = vpack.c.bf16 %v2924, %v2923
  %v3049 = vpack.c.bf16 %v2926, %v2925
  %v3050 = vpack.c.bf16 %v2928, %v2927
  %v3051 = vpack.c.bf16 %v2930, %v2929
  %v3052 = vpack.c.bf16 %v2932, %v2931
  %v3053 = vpack.c.bf16 %v2934, %v2933
  %v3054 = vpack.c.bf16 %v2936, %v2935
  %v3055 = vpack.c.bf16 %v2938, %v2937
  %v3056 = vpack.c.bf16 %v2940, %v2939
  %v3057 = vpack.c.bf16 %v2942, %v2941
  %v3058 = vpack.c.bf16 %v2944, %v2943
  %v3059 = vpack.c.bf16 %v2946, %v2945
  %v3060 = vpack.c.bf16 %v2948, %v2947
  %v3061 = vpack.c.bf16 %v2950, %v2949
  %v3062 = vpack.c.bf16 %v2952, %v2951
  %v3063 = vpack.c.bf16 %v2954, %v2953
  %v3064 = vpack.c.bf16 %v2956, %v2955
  %v3065 = vpack.c.bf16 %v2958, %v2957
  %v3066 = vpack.c.bf16 %v2960, %v2959
  %v3067 = vpack.c.bf16 %v2962, %v2961
  %v3068 = vpack.c.bf16 %v2964, %v2963
  %v3069 = vpack.c.bf16 %v2966, %v2965
  %v3070 = vpack.c.bf16 %v2968, %v2967
  %v3071 = vpack.c.bf16 %v2970, %v2969
  %v3072 = vpack.c.bf16 %v2972, %v2971
  %v3073 = vpack.c.bf16 %v2974, %v2973
  %v3074 = vpack.c.bf16 %v2976, %v2975
  %v3075 = vpack.c.bf16 %v2978, %v2977
  %v3076 = vpack.c.bf16 %v2980, %v2979
  %v3077 = vpack.c.bf16 %v2982, %v2981
  %v3078 = vpack.c.bf16 %v2984, %v2983
  %v3079 = vpack.c.bf16 %v2986, %v2985
  %v3080 = vpack.c.bf16 %v2988, %v2987
  %v3081 = vpack.c.bf16 %v2990, %v2989
  %v3082 = vpack.c.bf16 %v2992, %v2991
  %v3083 = vpack.c.bf16 %v2994, %v2993
  %v3084 = vpack.c.bf16 %v2996, %v2995
  %v3085 = vpack.c.bf16 %v2998, %v2997
  %v3086 = vpack.c.bf16 %v3000, %v2999
  %v3087 = vpack.c.bf16 %v3002, %v3001
  %v3088 = vpack.c.bf16 %v3004, %v3003
  %v3089 = vpack.c.bf16 %v3006, %v3005
  %v3090 = vpack.c.bf16 %v3008, %v3007
  %v3091 = vpack.c.bf16 %v3010, %v3009
  %v3092 = vpack.c.bf16 %v3012, %v3011
  %v3093 = vpack.c.bf16 %v3014, %v3013
  %v3094 = vpack.c.bf16 %v3016, %v3015
  %v3095 = vpack.c.bf16 %v3018, %v3017
  %v3096 = vpack.c.bf16 %v3020, %v3019
  %v3097 = vpack.c.bf16 %v3022, %v3021
  %v3098 = vpack.c.bf16 %v3024, %v3023
  %v3099 = vpack.c.bf16 %v3026, %v3025
  %v3100 = vpack.c.bf16 %v3028, %v3027
  %v3101 = vpack.c.bf16 %v3030, %v3029
  %v3102 = vpack.c.bf16 %v3032, %v3031
  %v3103 = vpack.c.bf16 %v3034, %v3033
  %v3104 = vpack.c.bf16 %v3036, %v3035
  %v3105 = vpack.c.bf16 %v3038, %v3037
  %v3106 = vpack.c.bf16 %v3040, %v3039
  %v3107 = vpack.c.bf16 %v3042, %v3041
  %v3108 = vpack.c.bf16 %v3044, %v3043
  %v3109 = vld [vmem:[%s15] sm:$0xf]
  %v3110 = vld [vmem:[%s16] sm:$0x1]
  %v3112 = vperm.slane %v3110, 0
  %v3115 = vsel %vm537, %v3045, 0
  %v3118 = vsel %vm537, %v3046, 0
  %v3121 = vsel %vm537, %v3047, 0
  %v3124 = vsel %vm537, %v3048, 0
  %v3127 = vsel %vm537, %v3049, 0
  %v3130 = vsel %vm537, %v3050, 0
  %v3133 = vsel %vm537, %v3051, 0
  %v3136 = vsel %vm537, %v3052, 0
  %v3139 = vsel %vm537, %v3053, 0
  %v3142 = vsel %vm537, %v3054, 0
  %v3145 = vsel %vm537, %v3055, 0
  %v3148 = vsel %vm537, %v3056, 0
  %v3151 = vsel %vm537, %v3057, 0
  %v3154 = vsel %vm537, %v3058, 0
  %v3157 = vsel %vm537, %v3059, 0
  %v3160 = vsel %vm537, %v3060, 0
  %v3163 = vsel %vm537, %v3061, 0
  %v3166 = vsel %vm537, %v3062, 0
  %v3169 = vsel %vm537, %v3063, 0
  %v3172 = vsel %vm537, %v3064, 0
  %v3175 = vsel %vm537, %v3065, 0
  %v3178 = vsel %vm537, %v3066, 0
  %v3181 = vsel %vm537, %v3067, 0
  %v3184 = vsel %vm537, %v3068, 0
  %v3187 = vsel %vm537, %v3069, 0
  %v3190 = vsel %vm537, %v3070, 0
  %v3193 = vsel %vm537, %v3071, 0
  %v3196 = vsel %vm537, %v3072, 0
  %v3199 = vsel %vm537, %v3073, 0
  %v3202 = vsel %vm537, %v3074, 0
  %v3205 = vsel %vm537, %v3075, 0
  %v3208 = vsel %vm537, %v3076, 0
  %v3211 = vsel %vm537, %v3077, 0
  %v3214 = vsel %vm537, %v3078, 0
  %v3217 = vsel %vm537, %v3079, 0
  %v3220 = vsel %vm537, %v3080, 0
  %v3223 = vsel %vm537, %v3081, 0
  %v3226 = vsel %vm537, %v3082, 0
  %v3229 = vsel %vm537, %v3083, 0
  %v3232 = vsel %vm537, %v3084, 0
  %v3235 = vsel %vm537, %v3085, 0
  %v3238 = vsel %vm537, %v3086, 0
  %v3241 = vsel %vm537, %v3087, 0
  %v3244 = vsel %vm537, %v3088, 0
  %v3247 = vsel %vm537, %v3089, 0
  %v3250 = vsel %vm537, %v3090, 0
  %v3253 = vsel %vm537, %v3091, 0
  %v3256 = vsel %vm537, %v3092, 0
  %v3259 = vsel %vm537, %v3093, 0
  %v3262 = vsel %vm537, %v3094, 0
  %v3265 = vsel %vm537, %v3095, 0
  %v3268 = vsel %vm537, %v3096, 0
  %v3271 = vsel %vm537, %v3097, 0
  %v3274 = vsel %vm537, %v3098, 0
  %v3277 = vsel %vm537, %v3099, 0
  %v3280 = vsel %vm537, %v3100, 0
  %v3283 = vsel %vm537, %v3101, 0
  %v3286 = vsel %vm537, %v3102, 0
  %v3289 = vsel %vm537, %v3103, 0
  %v3292 = vsel %vm537, %v3104, 0
  %v3295 = vsel %vm537, %v3105, 0
  %v3298 = vsel %vm537, %v3106, 0
  %v3301 = vsel %vm537, %v3107, 0
  %v3304 = vsel %vm537, %v3108, 0
  %v3307 = vsel %vm634, %v3109, 0
  %3309 = vmatpush.bf16.msra.mxu0 0
  %3310 = vmatpush.bf16.msra.mxu0 0
  %3311 = vmatpush.bf16.msra.mxu0 0
  %3312 = vmatpush.bf16.msra.mxu0 0
  %3313 = vmatpush.bf16.msra.mxu0 0
  %3314 = vmatpush.bf16.msra.mxu0 0
  %3315 = vmatpush.bf16.msra.mxu0 0
  %3316 = vmatpush.bf16.msra.mxu0 %v3307
  %3317 = vmatmul.bf16.gmra.mxu0 %v3115
  %v3318 = vpop.f32.mrf.mxu0
  %v3319 = vadd.f32 %v3112, %v3318
  %v3320 = vpop.f32.mrf.mxu0
  %v3321 = vadd.f32 %v3112, %v3320
  %3322 = vmatmul.bf16.gmra.mxu0 %v3118
  %v3323 = vpop.f32.mrf.mxu0
  %v3324 = vadd.f32 %v3112, %v3323
  %v3325 = vpop.f32.mrf.mxu0
  %v3326 = vadd.f32 %v3112, %v3325
  %3327 = vmatmul.bf16.gmra.mxu0 %v3121
  %v3328 = vpop.f32.mrf.mxu0
  %v3329 = vadd.f32 %v3112, %v3328
  %v3330 = vpop.f32.mrf.mxu0
  %v3331 = vadd.f32 %v3112, %v3330
  %3332 = vmatmul.bf16.gmra.mxu0 %v3124
  %v3333 = vpop.f32.mrf.mxu0
  %v3334 = vadd.f32 %v3112, %v3333
  %v3335 = vpop.f32.mrf.mxu0
  %v3336 = vadd.f32 %v3112, %v3335
  %3337 = vmatmul.bf16.gmra.mxu0 %v3127
  %v3338 = vpop.f32.mrf.mxu0
  %v3339 = vadd.f32 %v3112, %v3338
  %v3340 = vpop.f32.mrf.mxu0
  %v3341 = vadd.f32 %v3112, %v3340
  %3342 = vmatmul.bf16.gmra.mxu0 %v3130
  %v3343 = vpop.f32.mrf.mxu0
  %v3344 = vadd.f32 %v3112, %v3343
  %v3345 = vpop.f32.mrf.mxu0
  %v3346 = vadd.f32 %v3112, %v3345
  %3347 = vmatmul.bf16.gmra.mxu0 %v3133
  %v3348 = vpop.f32.mrf.mxu0
  %v3349 = vadd.f32 %v3112, %v3348
  %v3350 = vpop.f32.mrf.mxu0
  %v3351 = vadd.f32 %v3112, %v3350
  %3352 = vmatmul.bf16.gmra.mxu0 %v3136
  %v3353 = vpop.f32.mrf.mxu0
  %v3354 = vadd.f32 %v3112, %v3353
  %v3355 = vpop.f32.mrf.mxu0
  %v3356 = vadd.f32 %v3112, %v3355
  %3357 = vmatmul.bf16.gmra.mxu0 %v3139
  %v3358 = vpop.f32.mrf.mxu0
  %v3359 = vadd.f32 %v3112, %v3358
  %v3360 = vpop.f32.mrf.mxu0
  %v3361 = vadd.f32 %v3112, %v3360
  %3362 = vmatmul.bf16.gmra.mxu0 %v3142
  %v3363 = vpop.f32.mrf.mxu0
  %v3364 = vadd.f32 %v3112, %v3363
  %v3365 = vpop.f32.mrf.mxu0
  %v3366 = vadd.f32 %v3112, %v3365
  %3367 = vmatmul.bf16.gmra.mxu0 %v3145
  %v3368 = vpop.f32.mrf.mxu0
  %v3369 = vadd.f32 %v3112, %v3368
  %v3370 = vpop.f32.mrf.mxu0
  %v3371 = vadd.f32 %v3112, %v3370
  %3372 = vmatmul.bf16.gmra.mxu0 %v3148
  %v3373 = vpop.f32.mrf.mxu0
  %v3374 = vadd.f32 %v3112, %v3373
  %v3375 = vpop.f32.mrf.mxu0
  %v3376 = vadd.f32 %v3112, %v3375
  %3377 = vmatmul.bf16.gmra.mxu0 %v3151
  %v3378 = vpop.f32.mrf.mxu0
  %v3379 = vadd.f32 %v3112, %v3378
  %v3380 = vpop.f32.mrf.mxu0
  %v3381 = vadd.f32 %v3112, %v3380
  %3382 = vmatmul.bf16.gmra.mxu0 %v3154
  %v3383 = vpop.f32.mrf.mxu0
  %v3384 = vadd.f32 %v3112, %v3383
  %v3385 = vpop.f32.mrf.mxu0
  %v3386 = vadd.f32 %v3112, %v3385
  %3387 = vmatmul.bf16.gmra.mxu0 %v3157
  %v3388 = vpop.f32.mrf.mxu0
  %v3389 = vadd.f32 %v3112, %v3388
  %v3390 = vpop.f32.mrf.mxu0
  %v3391 = vadd.f32 %v3112, %v3390
  %3392 = vmatmul.bf16.gmra.mxu0 %v3160
  %v3393 = vpop.f32.mrf.mxu0
  %v3394 = vadd.f32 %v3112, %v3393
  %v3395 = vpop.f32.mrf.mxu0
  %v3396 = vadd.f32 %v3112, %v3395
  %3397 = vmatmul.bf16.gmra.mxu0 %v3163
  %v3398 = vpop.f32.mrf.mxu0
  %v3399 = vadd.f32 %v3112, %v3398
  %v3400 = vpop.f32.mrf.mxu0
  %v3401 = vadd.f32 %v3112, %v3400
  %3402 = vmatmul.bf16.gmra.mxu0 %v3166
  %v3403 = vpop.f32.mrf.mxu0
  %v3404 = vadd.f32 %v3112, %v3403
  %v3405 = vpop.f32.mrf.mxu0
  %v3406 = vadd.f32 %v3112, %v3405
  %3407 = vmatmul.bf16.gmra.mxu0 %v3169
  %v3408 = vpop.f32.mrf.mxu0
  %v3409 = vadd.f32 %v3112, %v3408
  %v3410 = vpop.f32.mrf.mxu0
  %v3411 = vadd.f32 %v3112, %v3410
  %3412 = vmatmul.bf16.gmra.mxu0 %v3172
  %v3413 = vpop.f32.mrf.mxu0
  %v3414 = vadd.f32 %v3112, %v3413
  %v3415 = vpop.f32.mrf.mxu0
  %v3416 = vadd.f32 %v3112, %v3415
  %3417 = vmatmul.bf16.gmra.mxu0 %v3175
  %v3418 = vpop.f32.mrf.mxu0
  %v3419 = vadd.f32 %v3112, %v3418
  %v3420 = vpop.f32.mrf.mxu0
  %v3421 = vadd.f32 %v3112, %v3420
  %3422 = vmatmul.bf16.gmra.mxu0 %v3178
  %v3423 = vpop.f32.mrf.mxu0
  %v3424 = vadd.f32 %v3112, %v3423
  %v3425 = vpop.f32.mrf.mxu0
  %v3426 = vadd.f32 %v3112, %v3425
  %3427 = vmatmul.bf16.gmra.mxu0 %v3181
  %v3428 = vpop.f32.mrf.mxu0
  %v3429 = vadd.f32 %v3112, %v3428
  %v3430 = vpop.f32.mrf.mxu0
  %v3431 = vadd.f32 %v3112, %v3430
  %3432 = vmatmul.bf16.gmra.mxu0 %v3184
  %v3433 = vpop.f32.mrf.mxu0
  %v3434 = vadd.f32 %v3112, %v3433
  %v3435 = vpop.f32.mrf.mxu0
  %v3436 = vadd.f32 %v3112, %v3435
  %3437 = vmatmul.bf16.gmra.mxu0 %v3187
  %v3438 = vpop.f32.mrf.mxu0
  %v3439 = vadd.f32 %v3112, %v3438
  %v3440 = vpop.f32.mrf.mxu0
  %v3441 = vadd.f32 %v3112, %v3440
  %3442 = vmatmul.bf16.gmra.mxu0 %v3190
  %v3443 = vpop.f32.mrf.mxu0
  %v3444 = vadd.f32 %v3112, %v3443
  %v3445 = vpop.f32.mrf.mxu0
  %v3446 = vadd.f32 %v3112, %v3445
  %3447 = vmatmul.bf16.gmra.mxu0 %v3193
  %v3448 = vpop.f32.mrf.mxu0
  %v3449 = vadd.f32 %v3112, %v3448
  %v3450 = vpop.f32.mrf.mxu0
  %v3451 = vadd.f32 %v3112, %v3450
  %3452 = vmatmul.bf16.gmra.mxu0 %v3196
  %v3453 = vpop.f32.mrf.mxu0
  %v3454 = vadd.f32 %v3112, %v3453
  %v3455 = vpop.f32.mrf.mxu0
  %v3456 = vadd.f32 %v3112, %v3455
  %3457 = vmatmul.bf16.gmra.mxu0 %v3199
  %v3458 = vpop.f32.mrf.mxu0
  %v3459 = vadd.f32 %v3112, %v3458
  %v3460 = vpop.f32.mrf.mxu0
  %v3461 = vadd.f32 %v3112, %v3460
  %3462 = vmatmul.bf16.gmra.mxu0 %v3202
  %v3463 = vpop.f32.mrf.mxu0
  %v3464 = vadd.f32 %v3112, %v3463
  %v3465 = vpop.f32.mrf.mxu0
  %v3466 = vadd.f32 %v3112, %v3465
  %3467 = vmatmul.bf16.gmra.mxu0 %v3205
  %v3468 = vpop.f32.mrf.mxu0
  %v3469 = vadd.f32 %v3112, %v3468
  %v3470 = vpop.f32.mrf.mxu0
  %v3471 = vadd.f32 %v3112, %v3470
  %3472 = vmatmul.bf16.gmra.mxu0 %v3208
  %v3473 = vpop.f32.mrf.mxu0
  %v3474 = vadd.f32 %v3112, %v3473
  %v3475 = vpop.f32.mrf.mxu0
  %v3476 = vadd.f32 %v3112, %v3475
  %3477 = vmatmul.bf16.gmra.mxu0 %v3211
  %v3478 = vpop.f32.mrf.mxu0
  %v3479 = vadd.f32 %v3112, %v3478
  %v3480 = vpop.f32.mrf.mxu0
  %v3481 = vadd.f32 %v3112, %v3480
  %3482 = vmatmul.bf16.gmra.mxu0 %v3214
  %v3483 = vpop.f32.mrf.mxu0
  %v3484 = vadd.f32 %v3112, %v3483
  %v3485 = vpop.f32.mrf.mxu0
  %v3486 = vadd.f32 %v3112, %v3485
  %3487 = vmatmul.bf16.gmra.mxu0 %v3217
  %v3488 = vpop.f32.mrf.mxu0
  %v3489 = vadd.f32 %v3112, %v3488
  %v3490 = vpop.f32.mrf.mxu0
  %v3491 = vadd.f32 %v3112, %v3490
  %3492 = vmatmul.bf16.gmra.mxu0 %v3220
  %v3493 = vpop.f32.mrf.mxu0
  %v3494 = vadd.f32 %v3112, %v3493
  %v3495 = vpop.f32.mrf.mxu0
  %v3496 = vadd.f32 %v3112, %v3495
  %3497 = vmatmul.bf16.gmra.mxu0 %v3223
  %v3498 = vpop.f32.mrf.mxu0
  %v3499 = vadd.f32 %v3112, %v3498
  %v3500 = vpop.f32.mrf.mxu0
  %v3501 = vadd.f32 %v3112, %v3500
  %3502 = vmatmul.bf16.gmra.mxu0 %v3226
  %v3503 = vpop.f32.mrf.mxu0
  %v3504 = vadd.f32 %v3112, %v3503
  %v3505 = vpop.f32.mrf.mxu0
  %v3506 = vadd.f32 %v3112, %v3505
  %3507 = vmatmul.bf16.gmra.mxu0 %v3229
  %v3508 = vpop.f32.mrf.mxu0
  %v3509 = vadd.f32 %v3112, %v3508
  %v3510 = vpop.f32.mrf.mxu0
  %v3511 = vadd.f32 %v3112, %v3510
  %3512 = vmatmul.bf16.gmra.mxu0 %v3232
  %v3513 = vpop.f32.mrf.mxu0
  %v3514 = vadd.f32 %v3112, %v3513
  %v3515 = vpop.f32.mrf.mxu0
  %v3516 = vadd.f32 %v3112, %v3515
  %3517 = vmatmul.bf16.gmra.mxu0 %v3235
  %v3518 = vpop.f32.mrf.mxu0
  %v3519 = vadd.f32 %v3112, %v3518
  %v3520 = vpop.f32.mrf.mxu0
  %v3521 = vadd.f32 %v3112, %v3520
  %3522 = vmatmul.bf16.gmra.mxu0 %v3238
  %v3523 = vpop.f32.mrf.mxu0
  %v3524 = vadd.f32 %v3112, %v3523
  %v3525 = vpop.f32.mrf.mxu0
  %v3526 = vadd.f32 %v3112, %v3525
  %3527 = vmatmul.bf16.gmra.mxu0 %v3241
  %v3528 = vpop.f32.mrf.mxu0
  %v3529 = vadd.f32 %v3112, %v3528
  %v3530 = vpop.f32.mrf.mxu0
  %v3531 = vadd.f32 %v3112, %v3530
  %3532 = vmatmul.bf16.gmra.mxu0 %v3244
  %v3533 = vpop.f32.mrf.mxu0
  %v3534 = vadd.f32 %v3112, %v3533
  %v3535 = vpop.f32.mrf.mxu0
  %v3536 = vadd.f32 %v3112, %v3535
  %3537 = vmatmul.bf16.gmra.mxu0 %v3247
  %v3538 = vpop.f32.mrf.mxu0
  %v3539 = vadd.f32 %v3112, %v3538
  %v3540 = vpop.f32.mrf.mxu0
  %v3541 = vadd.f32 %v3112, %v3540
  %3542 = vmatmul.bf16.gmra.mxu0 %v3250
  %v3543 = vpop.f32.mrf.mxu0
  %v3544 = vadd.f32 %v3112, %v3543
  %v3545 = vpop.f32.mrf.mxu0
  %v3546 = vadd.f32 %v3112, %v3545
  %3547 = vmatmul.bf16.gmra.mxu0 %v3253
  %v3548 = vpop.f32.mrf.mxu0
  %v3549 = vadd.f32 %v3112, %v3548
  %v3550 = vpop.f32.mrf.mxu0
  %v3551 = vadd.f32 %v3112, %v3550
  %3552 = vmatmul.bf16.gmra.mxu0 %v3256
  %v3553 = vpop.f32.mrf.mxu0
  %v3554 = vadd.f32 %v3112, %v3553
  %v3555 = vpop.f32.mrf.mxu0
  %v3556 = vadd.f32 %v3112, %v3555
  %3557 = vmatmul.bf16.gmra.mxu0 %v3259
  %v3558 = vpop.f32.mrf.mxu0
  %v3559 = vadd.f32 %v3112, %v3558
  %v3560 = vpop.f32.mrf.mxu0
  %v3561 = vadd.f32 %v3112, %v3560
  %3562 = vmatmul.bf16.gmra.mxu0 %v3262
  %v3563 = vpop.f32.mrf.mxu0
  %v3564 = vadd.f32 %v3112, %v3563
  %v3565 = vpop.f32.mrf.mxu0
  %v3566 = vadd.f32 %v3112, %v3565
  %3567 = vmatmul.bf16.gmra.mxu0 %v3265
  %v3568 = vpop.f32.mrf.mxu0
  %v3569 = vadd.f32 %v3112, %v3568
  %v3570 = vpop.f32.mrf.mxu0
  %v3571 = vadd.f32 %v3112, %v3570
  %3572 = vmatmul.bf16.gmra.mxu0 %v3268
  %v3573 = vpop.f32.mrf.mxu0
  %v3574 = vadd.f32 %v3112, %v3573
  %v3575 = vpop.f32.mrf.mxu0
  %v3576 = vadd.f32 %v3112, %v3575
  %3577 = vmatmul.bf16.gmra.mxu0 %v3271
  %v3578 = vpop.f32.mrf.mxu0
  %v3579 = vadd.f32 %v3112, %v3578
  %v3580 = vpop.f32.mrf.mxu0
  %v3581 = vadd.f32 %v3112, %v3580
  %3582 = vmatmul.bf16.gmra.mxu0 %v3274
  %v3583 = vpop.f32.mrf.mxu0
  %v3584 = vadd.f32 %v3112, %v3583
  %v3585 = vpop.f32.mrf.mxu0
  %v3586 = vadd.f32 %v3112, %v3585
  %3587 = vmatmul.bf16.gmra.mxu0 %v3277
  %v3588 = vpop.f32.mrf.mxu0
  %v3589 = vadd.f32 %v3112, %v3588
  %v3590 = vpop.f32.mrf.mxu0
  %v3591 = vadd.f32 %v3112, %v3590
  %3592 = vmatmul.bf16.gmra.mxu0 %v3280
  %v3593 = vpop.f32.mrf.mxu0
  %v3594 = vadd.f32 %v3112, %v3593
  %v3595 = vpop.f32.mrf.mxu0
  %v3596 = vadd.f32 %v3112, %v3595
  %3597 = vmatmul.bf16.gmra.mxu0 %v3283
  %v3598 = vpop.f32.mrf.mxu0
  %v3599 = vadd.f32 %v3112, %v3598
  %v3600 = vpop.f32.mrf.mxu0
  %v3601 = vadd.f32 %v3112, %v3600
  %3602 = vmatmul.bf16.gmra.mxu0 %v3286
  %v3603 = vpop.f32.mrf.mxu0
  %v3604 = vadd.f32 %v3112, %v3603
  %v3605 = vpop.f32.mrf.mxu0
  %v3606 = vadd.f32 %v3112, %v3605
  %3607 = vmatmul.bf16.gmra.mxu0 %v3289
  %v3608 = vpop.f32.mrf.mxu0
  %v3609 = vadd.f32 %v3112, %v3608
  %v3610 = vpop.f32.mrf.mxu0
  %v3611 = vadd.f32 %v3112, %v3610
  %3612 = vmatmul.bf16.gmra.mxu0 %v3292
  %v3613 = vpop.f32.mrf.mxu0
  %v3614 = vadd.f32 %v3112, %v3613
  %v3615 = vpop.f32.mrf.mxu0
  %v3616 = vadd.f32 %v3112, %v3615
  %3617 = vmatmul.bf16.gmra.mxu0 %v3295
  %v3618 = vpop.f32.mrf.mxu0
  %v3619 = vadd.f32 %v3112, %v3618
  %v3620 = vpop.f32.mrf.mxu0
  %v3621 = vadd.f32 %v3112, %v3620
  %3622 = vmatmul.bf16.gmra.mxu0 %v3298
  %v3623 = vpop.f32.mrf.mxu0
  %v3624 = vadd.f32 %v3112, %v3623
  %v3625 = vpop.f32.mrf.mxu0
  %v3626 = vadd.f32 %v3112, %v3625
  %3627 = vmatmul.bf16.gmra.mxu0 %v3301
  %v3628 = vpop.f32.mrf.mxu0
  %v3629 = vadd.f32 %v3112, %v3628
  %v3630 = vpop.f32.mrf.mxu0
  %v3631 = vadd.f32 %v3112, %v3630
  %3632 = vmatmul.bf16.gmra.mxu0 %v3304
  %v3633 = vpop.f32.mrf.mxu0
  %v3634 = vadd.f32 %v3112, %v3633
  %v3635 = vpop.f32.mrf.mxu0
  %v3636 = vadd.f32 %v3112, %v3635
  %3637 = vdwg.mxu0
  %v3638 = vmax.f32 %v3319, 0.0
  %v3639 = vmax.f32 %v3321, 0.0
  %v3640 = vmax.f32 %v3324, 0.0
  %v3641 = vmax.f32 %v3326, 0.0
  %v3642 = vmax.f32 %v3329, 0.0
  %v3643 = vmax.f32 %v3331, 0.0
  %v3644 = vmax.f32 %v3334, 0.0
  %v3645 = vmax.f32 %v3336, 0.0
  %v3646 = vmax.f32 %v3339, 0.0
  %v3647 = vmax.f32 %v3341, 0.0
  %v3648 = vmax.f32 %v3344, 0.0
  %v3649 = vmax.f32 %v3346, 0.0
  %v3650 = vmax.f32 %v3349, 0.0
  %v3651 = vmax.f32 %v3351, 0.0
  %v3652 = vmax.f32 %v3354, 0.0
  %v3653 = vmax.f32 %v3356, 0.0
  %v3654 = vmax.f32 %v3359, 0.0
  %v3655 = vmax.f32 %v3361, 0.0
  %v3656 = vmax.f32 %v3364, 0.0
  %v3657 = vmax.f32 %v3366, 0.0
  %v3658 = vmax.f32 %v3369, 0.0
  %v3659 = vmax.f32 %v3371, 0.0
  %v3660 = vmax.f32 %v3374, 0.0
  %v3661 = vmax.f32 %v3376, 0.0
  %v3662 = vmax.f32 %v3379, 0.0
  %v3663 = vmax.f32 %v3381, 0.0
  %v3664 = vmax.f32 %v3384, 0.0
  %v3665 = vmax.f32 %v3386, 0.0
  %v3666 = vmax.f32 %v3389, 0.0
  %v3667 = vmax.f32 %v3391, 0.0
  %v3668 = vmax.f32 %v3394, 0.0
  %v3669 = vmax.f32 %v3396, 0.0
  %v3670 = vmax.f32 %v3399, 0.0
  %v3671 = vmax.f32 %v3401, 0.0
  %v3672 = vmax.f32 %v3404, 0.0
  %v3673 = vmax.f32 %v3406, 0.0
  %v3674 = vmax.f32 %v3409, 0.0
  %v3675 = vmax.f32 %v3411, 0.0
  %v3676 = vmax.f32 %v3414, 0.0
  %v3677 = vmax.f32 %v3416, 0.0
  %v3678 = vmax.f32 %v3419, 0.0
  %v3679 = vmax.f32 %v3421, 0.0
  %v3680 = vmax.f32 %v3424, 0.0
  %v3681 = vmax.f32 %v3426, 0.0
  %v3682 = vmax.f32 %v3429, 0.0
  %v3683 = vmax.f32 %v3431, 0.0
  %v3684 = vmax.f32 %v3434, 0.0
  %v3685 = vmax.f32 %v3436, 0.0
  %v3686 = vmax.f32 %v3439, 0.0
  %v3687 = vmax.f32 %v3441, 0.0
  %v3688 = vmax.f32 %v3444, 0.0
  %v3689 = vmax.f32 %v3446, 0.0
  %v3690 = vmax.f32 %v3449, 0.0
  %v3691 = vmax.f32 %v3451, 0.0
  %v3692 = vmax.f32 %v3454, 0.0
  %v3693 = vmax.f32 %v3456, 0.0
  %v3694 = vmax.f32 %v3459, 0.0
  %v3695 = vmax.f32 %v3461, 0.0
  %v3696 = vmax.f32 %v3464, 0.0
  %v3697 = vmax.f32 %v3466, 0.0
  %v3698 = vmax.f32 %v3469, 0.0
  %v3699 = vmax.f32 %v3471, 0.0
  %v3700 = vmax.f32 %v3474, 0.0
  %v3701 = vmax.f32 %v3476, 0.0
  %v3702 = vmax.f32 %v3479, 0.0
  %v3703 = vmax.f32 %v3481, 0.0
  %v3704 = vmax.f32 %v3484, 0.0
  %v3705 = vmax.f32 %v3486, 0.0
  %v3706 = vmax.f32 %v3489, 0.0
  %v3707 = vmax.f32 %v3491, 0.0
  %v3708 = vmax.f32 %v3494, 0.0
  %v3709 = vmax.f32 %v3496, 0.0
  %v3710 = vmax.f32 %v3499, 0.0
  %v3711 = vmax.f32 %v3501, 0.0
  %v3712 = vmax.f32 %v3504, 0.0
  %v3713 = vmax.f32 %v3506, 0.0
  %v3714 = vmax.f32 %v3509, 0.0
  %v3715 = vmax.f32 %v3511, 0.0
  %v3716 = vmax.f32 %v3514, 0.0
  %v3717 = vmax.f32 %v3516, 0.0
  %v3718 = vmax.f32 %v3519, 0.0
  %v3719 = vmax.f32 %v3521, 0.0
  %v3720 = vmax.f32 %v3524, 0.0
  %v3721 = vmax.f32 %v3526, 0.0
  %v3722 = vmax.f32 %v3529, 0.0
  %v3723 = vmax.f32 %v3531, 0.0
  %v3724 = vmax.f32 %v3534, 0.0
  %v3725 = vmax.f32 %v3536, 0.0
  %v3726 = vmax.f32 %v3539, 0.0
  %v3727 = vmax.f32 %v3541, 0.0
  %v3728 = vmax.f32 %v3544, 0.0
  %v3729 = vmax.f32 %v3546, 0.0
  %v3730 = vmax.f32 %v3549, 0.0
  %v3731 = vmax.f32 %v3551, 0.0
  %v3732 = vmax.f32 %v3554, 0.0
  %v3733 = vmax.f32 %v3556, 0.0
  %v3734 = vmax.f32 %v3559, 0.0
  %v3735 = vmax.f32 %v3561, 0.0
  %v3736 = vmax.f32 %v3564, 0.0
  %v3737 = vmax.f32 %v3566, 0.0
  %v3738 = vmax.f32 %v3569, 0.0
  %v3739 = vmax.f32 %v3571, 0.0
  %v3740 = vmax.f32 %v3574, 0.0
  %v3741 = vmax.f32 %v3576, 0.0
  %v3742 = vmax.f32 %v3579, 0.0
  %v3743 = vmax.f32 %v3581, 0.0
  %v3744 = vmax.f32 %v3584, 0.0
  %v3745 = vmax.f32 %v3586, 0.0
  %v3746 = vmax.f32 %v3589, 0.0
  %v3747 = vmax.f32 %v3591, 0.0
  %v3748 = vmax.f32 %v3594, 0.0
  %v3749 = vmax.f32 %v3596, 0.0
  %v3750 = vmax.f32 %v3599, 0.0
  %v3751 = vmax.f32 %v3601, 0.0
  %v3752 = vmax.f32 %v3604, 0.0
  %v3753 = vmax.f32 %v3606, 0.0
  %v3754 = vmax.f32 %v3609, 0.0
  %v3755 = vmax.f32 %v3611, 0.0
  %v3756 = vmax.f32 %v3614, 0.0
  %v3757 = vmax.f32 %v3616, 0.0
  %v3758 = vmax.f32 %v3619, 0.0
  %v3759 = vmax.f32 %v3621, 0.0
  %v3760 = vmax.f32 %v3624, 0.0
  %v3761 = vmax.f32 %v3626, 0.0
  %v3762 = vmax.f32 %v3629, 0.0
  %v3763 = vmax.f32 %v3631, 0.0
  %v3764 = vmax.f32 %v3634, 0.0
  %v3765 = vmax.f32 %v3636, 0.0
  %v3766 = vsel %vm1240, %v3638, -inf
  %v3767 = vsel %vm1240, %v3646, -inf
  %v3768 = vmax.f32 %v3766, %v3767
  %v3769 = vsel %vm1240, %v3654, -inf
  %v3770 = vmax.f32 %v3768, %v3769
  %v3771 = vsel %vm1240, %v3662, -inf
  %v3772 = vmax.f32 %v3770, %v3771
  %v3773 = vsel %vm1240, %v3670, -inf
  %v3774 = vmax.f32 %v3772, %v3773
  %v3775 = vsel %vm1240, %v3678, -inf
  %v3776 = vmax.f32 %v3774, %v3775
  %v3777 = vsel %vm1240, %v3686, -inf
  %v3778 = vmax.f32 %v3776, %v3777
  %v3779 = vsel %vm1240, %v3694, -inf
  %v3780 = vmax.f32 %v3778, %v3779
  %v3781 = vsel %vm1240, %v3702, -inf
  %v3782 = vmax.f32 %v3780, %v3781
  %v3783 = vsel %vm1240, %v3710, -inf
  %v3784 = vmax.f32 %v3782, %v3783
  %v3785 = vsel %vm1240, %v3718, -inf
  %v3786 = vmax.f32 %v3784, %v3785
  %v3787 = vsel %vm1240, %v3726, -inf
  %v3788 = vmax.f32 %v3786, %v3787
  %v3789 = vsel %vm1240, %v3734, -inf
  %v3790 = vmax.f32 %v3788, %v3789
  %v3791 = vsel %vm1240, %v3742, -inf
  %v3792 = vmax.f32 %v3790, %v3791
  %v3793 = vsel %vm1240, %v3750, -inf
  %v3794 = vmax.f32 %v3792, %v3793
  %v3795 = vsel %vm1240, %v3758, -inf
  %v3796 = vmax.f32 %v3794, %v3795
  %v3797 = vsel %vm1240, %v3639, -inf
  %v3798 = vsel %vm1240, %v3647, -inf
  %v3799 = vmax.f32 %v3797, %v3798
  %v3800 = vsel %vm1240, %v3655, -inf
  %v3801 = vmax.f32 %v3799, %v3800
  %v3802 = vsel %vm1240, %v3663, -inf
  %v3803 = vmax.f32 %v3801, %v3802
  %v3804 = vsel %vm1240, %v3671, -inf
  %v3805 = vmax.f32 %v3803, %v3804
  %v3806 = vsel %vm1240, %v3679, -inf
  %v3807 = vmax.f32 %v3805, %v3806
  %v3808 = vsel %vm1240, %v3687, -inf
  %v3809 = vmax.f32 %v3807, %v3808
  %v3810 = vsel %vm1240, %v3695, -inf
  %v3811 = vmax.f32 %v3809, %v3810
  %v3812 = vsel %vm1240, %v3703, -inf
  %v3813 = vmax.f32 %v3811, %v3812
  %v3814 = vsel %vm1240, %v3711, -inf
  %v3815 = vmax.f32 %v3813, %v3814
  %v3816 = vsel %vm1240, %v3719, -inf
  %v3817 = vmax.f32 %v3815, %v3816
  %v3818 = vsel %vm1240, %v3727, -inf
  %v3819 = vmax.f32 %v3817, %v3818
  %v3820 = vsel %vm1240, %v3735, -inf
  %v3821 = vmax.f32 %v3819, %v3820
  %v3822 = vsel %vm1240, %v3743, -inf
  %v3823 = vmax.f32 %v3821, %v3822
  %v3824 = vsel %vm1240, %v3751, -inf
  %v3825 = vmax.f32 %v3823, %v3824
  %v3826 = vsel %vm1240, %v3759, -inf
  %v3827 = vmax.f32 %v3825, %v3826
  %v3828 = vsel %vm1240, %v3640, -inf
  %v3829 = vsel %vm1240, %v3648, -inf
  %v3830 = vmax.f32 %v3828, %v3829
  %v3831 = vsel %vm1240, %v3656, -inf
  %v3832 = vmax.f32 %v3830, %v3831
  %v3833 = vsel %vm1240, %v3664, -inf
  %v3834 = vmax.f32 %v3832, %v3833
  %v3835 = vsel %vm1240, %v3672, -inf
  %v3836 = vmax.f32 %v3834, %v3835
  %v3837 = vsel %vm1240, %v3680, -inf
  %v3838 = vmax.f32 %v3836, %v3837
  %v3839 = vsel %vm1240, %v3688, -inf
  %v3840 = vmax.f32 %v3838, %v3839
  %v3841 = vsel %vm1240, %v3696, -inf
  %v3842 = vmax.f32 %v3840, %v3841
  %v3843 = vsel %vm1240, %v3704, -inf
  %v3844 = vmax.f32 %v3842, %v3843
  %v3845 = vsel %vm1240, %v3712, -inf
  %v3846 = vmax.f32 %v3844, %v3845
  %v3847 = vsel %vm1240, %v3720, -inf
  %v3848 = vmax.f32 %v3846, %v3847
  %v3849 = vsel %vm1240, %v3728, -inf
  %v3850 = vmax.f32 %v3848, %v3849
  %v3851 = vsel %vm1240, %v3736, -inf
  %v3852 = vmax.f32 %v3850, %v3851
  %v3853 = vsel %vm1240, %v3744, -inf
  %v3854 = vmax.f32 %v3852, %v3853
  %v3855 = vsel %vm1240, %v3752, -inf
  %v3856 = vmax.f32 %v3854, %v3855
  %v3857 = vsel %vm1240, %v3760, -inf
  %v3858 = vmax.f32 %v3856, %v3857
  %v3859 = vsel %vm1240, %v3641, -inf
  %v3860 = vsel %vm1240, %v3649, -inf
  %v3861 = vmax.f32 %v3859, %v3860
  %v3862 = vsel %vm1240, %v3657, -inf
  %v3863 = vmax.f32 %v3861, %v3862
  %v3864 = vsel %vm1240, %v3665, -inf
  %v3865 = vmax.f32 %v3863, %v3864
  %v3866 = vsel %vm1240, %v3673, -inf
  %v3867 = vmax.f32 %v3865, %v3866
  %v3868 = vsel %vm1240, %v3681, -inf
  %v3869 = vmax.f32 %v3867, %v3868
  %v3870 = vsel %vm1240, %v3689, -inf
  %v3871 = vmax.f32 %v3869, %v3870
  %v3872 = vsel %vm1240, %v3697, -inf
  %v3873 = vmax.f32 %v3871, %v3872
  %v3874 = vsel %vm1240, %v3705, -inf
  %v3875 = vmax.f32 %v3873, %v3874
  %v3876 = vsel %vm1240, %v3713, -inf
  %v3877 = vmax.f32 %v3875, %v3876
  %v3878 = vsel %vm1240, %v3721, -inf
  %v3879 = vmax.f32 %v3877, %v3878
  %v3880 = vsel %vm1240, %v3729, -inf
  %v3881 = vmax.f32 %v3879, %v3880
  %v3882 = vsel %vm1240, %v3737, -inf
  %v3883 = vmax.f32 %v3881, %v3882
  %v3884 = vsel %vm1240, %v3745, -inf
  %v3885 = vmax.f32 %v3883, %v3884
  %v3886 = vsel %vm1240, %v3753, -inf
  %v3887 = vmax.f32 %v3885, %v3886
  %v3888 = vsel %vm1240, %v3761, -inf
  %v3889 = vmax.f32 %v3887, %v3888
  %v3890 = vsel %vm1240, %v3642, -inf
  %v3891 = vsel %vm1240, %v3650, -inf
  %v3892 = vmax.f32 %v3890, %v3891
  %v3893 = vsel %vm1240, %v3658, -inf
  %v3894 = vmax.f32 %v3892, %v3893
  %v3895 = vsel %vm1240, %v3666, -inf
  %v3896 = vmax.f32 %v3894, %v3895
  %v3897 = vsel %vm1240, %v3674, -inf
  %v3898 = vmax.f32 %v3896, %v3897
  %v3899 = vsel %vm1240, %v3682, -inf
  %v3900 = vmax.f32 %v3898, %v3899
  %v3901 = vsel %vm1240, %v3690, -inf
  %v3902 = vmax.f32 %v3900, %v3901
  %v3903 = vsel %vm1240, %v3698, -inf
  %v3904 = vmax.f32 %v3902, %v3903
  %v3905 = vsel %vm1240, %v3706, -inf
  %v3906 = vmax.f32 %v3904, %v3905
  %v3907 = vsel %vm1240, %v3714, -inf
  %v3908 = vmax.f32 %v3906, %v3907
  %v3909 = vsel %vm1240, %v3722, -inf
  %v3910 = vmax.f32 %v3908, %v3909
  %v3911 = vsel %vm1240, %v3730, -inf
  %v3912 = vmax.f32 %v3910, %v3911
  %v3913 = vsel %vm1240, %v3738, -inf
  %v3914 = vmax.f32 %v3912, %v3913
  %v3915 = vsel %vm1240, %v3746, -inf
  %v3916 = vmax.f32 %v3914, %v3915
  %v3917 = vsel %vm1240, %v3754, -inf
  %v3918 = vmax.f32 %v3916, %v3917
  %v3919 = vsel %vm1240, %v3762, -inf
  %v3920 = vmax.f32 %v3918, %v3919
  %v3921 = vsel %vm1240, %v3643, -inf
  %v3922 = vsel %vm1240, %v3651, -inf
  %v3923 = vmax.f32 %v3921, %v3922
  %v3924 = vsel %vm1240, %v3659, -inf
  %v3925 = vmax.f32 %v3923, %v3924
  %v3926 = vsel %vm1240, %v3667, -inf
  %v3927 = vmax.f32 %v3925, %v3926
  %v3928 = vsel %vm1240, %v3675, -inf
  %v3929 = vmax.f32 %v3927, %v3928
  %v3930 = vsel %vm1240, %v3683, -inf
  %v3931 = vmax.f32 %v3929, %v3930
  %v3932 = vsel %vm1240, %v3691, -inf
  %v3933 = vmax.f32 %v3931, %v3932
  %v3934 = vsel %vm1240, %v3699, -inf
  %v3935 = vmax.f32 %v3933, %v3934
  %v3936 = vsel %vm1240, %v3707, -inf
  %v3937 = vmax.f32 %v3935, %v3936
  %v3938 = vsel %vm1240, %v3715, -inf
  %v3939 = vmax.f32 %v3937, %v3938
  %v3940 = vsel %vm1240, %v3723, -inf
  %v3941 = vmax.f32 %v3939, %v3940
  %v3942 = vsel %vm1240, %v3731, -inf
  %v3943 = vmax.f32 %v3941, %v3942
  %v3944 = vsel %vm1240, %v3739, -inf
  %v3945 = vmax.f32 %v3943, %v3944
  %v3946 = vsel %vm1240, %v3747, -inf
  %v3947 = vmax.f32 %v3945, %v3946
  %v3948 = vsel %vm1240, %v3755, -inf
  %v3949 = vmax.f32 %v3947, %v3948
  %v3950 = vsel %vm1240, %v3763, -inf
  %v3951 = vmax.f32 %v3949, %v3950
  %v3952 = vsel %vm1240, %v3644, -inf
  %v3953 = vsel %vm1240, %v3652, -inf
  %v3954 = vmax.f32 %v3952, %v3953
  %v3955 = vsel %vm1240, %v3660, -inf
  %v3956 = vmax.f32 %v3954, %v3955
  %v3957 = vsel %vm1240, %v3668, -inf
  %v3958 = vmax.f32 %v3956, %v3957
  %v3959 = vsel %vm1240, %v3676, -inf
  %v3960 = vmax.f32 %v3958, %v3959
  %v3961 = vsel %vm1240, %v3684, -inf
  %v3962 = vmax.f32 %v3960, %v3961
  %v3963 = vsel %vm1240, %v3692, -inf
  %v3964 = vmax.f32 %v3962, %v3963
  %v3965 = vsel %vm1240, %v3700, -inf
  %v3966 = vmax.f32 %v3964, %v3965
  %v3967 = vsel %vm1240, %v3708, -inf
  %v3968 = vmax.f32 %v3966, %v3967
  %v3969 = vsel %vm1240, %v3716, -inf
  %v3970 = vmax.f32 %v3968, %v3969
  %v3971 = vsel %vm1240, %v3724, -inf
  %v3972 = vmax.f32 %v3970, %v3971
  %v3973 = vsel %vm1240, %v3732, -inf
  %v3974 = vmax.f32 %v3972, %v3973
  %v3975 = vsel %vm1240, %v3740, -inf
  %v3976 = vmax.f32 %v3974, %v3975
  %v3977 = vsel %vm1240, %v3748, -inf
  %v3978 = vmax.f32 %v3976, %v3977
  %v3979 = vsel %vm1240, %v3756, -inf
  %v3980 = vmax.f32 %v3978, %v3979
  %v3981 = vsel %vm1240, %v3764, -inf
  %v3982 = vmax.f32 %v3980, %v3981
  %v3983 = vsel %vm1240, %v3645, -inf
  %v3984 = vsel %vm1240, %v3653, -inf
  %v3985 = vmax.f32 %v3983, %v3984
  %v3986 = vsel %vm1240, %v3661, -inf
  %v3987 = vmax.f32 %v3985, %v3986
  %v3988 = vsel %vm1240, %v3669, -inf
  %v3989 = vmax.f32 %v3987, %v3988
  %v3990 = vsel %vm1240, %v3677, -inf
  %v3991 = vmax.f32 %v3989, %v3990
  %v3992 = vsel %vm1240, %v3685, -inf
  %v3993 = vmax.f32 %v3991, %v3992
  %v3994 = vsel %vm1240, %v3693, -inf
  %v3995 = vmax.f32 %v3993, %v3994
  %v3996 = vsel %vm1240, %v3701, -inf
  %v3997 = vmax.f32 %v3995, %v3996
  %v3998 = vsel %vm1240, %v3709, -inf
  %v3999 = vmax.f32 %v3997, %v3998
  %v4000 = vsel %vm1240, %v3717, -inf
  %v4001 = vmax.f32 %v3999, %v4000
  %v4002 = vsel %vm1240, %v3725, -inf
  %v4003 = vmax.f32 %v4001, %v4002
  %v4004 = vsel %vm1240, %v3733, -inf
  %v4005 = vmax.f32 %v4003, %v4004
  %v4006 = vsel %vm1240, %v3741, -inf
  %v4007 = vmax.f32 %v4005, %v4006
  %v4008 = vsel %vm1240, %v3749, -inf
  %v4009 = vmax.f32 %v4007, %v4008
  %v4010 = vsel %vm1240, %v3757, -inf
  %v4011 = vmax.f32 %v4009, %v4010
  %v4012 = vsel %vm1240, %v3765, -inf
  %v4013 = vmax.f32 %v4011, %v4012
  %v4014 = vld [vmem:[%s17] sm:$0xf]
  %v4015 = vld [vmem:[%s17 + $0x4] sm:$0xf]
  %v4016 = vld [vmem:[%s18] sm:$0xff]
  %v4017 = vld [vmem:[%s18 + $0x8] sm:$0xff]
  %4019 = vset.pattern.permute.xlu0 0
  %4020 = vperm.xlu0 %4019, %v4016
  %v4021 = vpop.permute.xlu0 %4020
  %4024 = vset.pattern.permute.xlu0 0
  %4025 = vperm.xlu0 %4024, %v4017
  %v4026 = vpop.permute.xlu0 %4025
  %v4030 = vunpack.c.l.b16 %v4014
  %v4031 = vunpack.c.l.b16 %v4015
  %v4032 = vpack.c.b16 %v4031, %v4030
  %v4034 = vsel %vm537, %v4032, 0
  %4036 = vmatpush.bf16.msra.mxu0 0
  %4037 = vmatpush.bf16.msra.mxu0 0
  %4038 = vmatpush.bf16.msra.mxu0 0
  %4039 = vmatpush.bf16.msra.mxu0 0
  %4040 = vmatpush.bf16.msra.mxu0 0
  %4041 = vmatpush.bf16.msra.mxu0 0
  %4042 = vmatpush.bf16.msra.mxu0 0
  %4043 = vmatpush.bf16.msra.mxu0 %v1384
  %4044 = vmatmul.bf16.gmra.mxu0 %v4034
  %v4045 = vpop.f32.mrf.mxu0
  %v4046 = vadd.f32 %v4021, %v4045
  %v4047 = vpop.f32.mrf.mxu0
  %v4048 = vadd.f32 %v4026, %v4047
  %4049 = vdwg.mxu0
  %v4050 = vxor.u32 %v4046, 2147483648
  %v4051 = vxor.u32 %v4048, 2147483648
  %v4052 = vmul.f32 %v4050, 1.442695
  %v4053 = vpow.pop %v4052
  %v4054 = vmul.f32 %v4051, 1.442695
  %v4055 = vpow.pop %v4054
  %v4056 = vadd.f32 %v4053, 1.0
  %v4057 = vadd.f32 %v4055, 1.0
  %v4058 = vrcp.pop %v4056
  %v4059 = vmul.f32 %v4056, %v4058
  %v4060 = vsub.f32 1.0, %v4059
  %v4061 = vmul.f32 %v4058, %v4060
  %v4062 = vadd.f32 %v4058, %v4061
  %vm4063 = vweird.f32 %v4056
  %vm4064 = vweird.f32 %v4058
  %vm4065 = vmor %vm4063, %vm4064
  %v4066 = vsel %vm4065, %v4058, %v4062
  %v4067 = vand.u32 2147483647, %v4056
  %vm4068 = vcmp.eq.f32.partialorder %v4067, 8.507059e+37
  %v4069 = vand.u32 %v4056, 2147483648
  %v4070 = vor.u32 1.1754944e-38, %v4069
  %v4071 = vsel %vm4068, %v4070, %v4066
  %v4072 = vmul.f32 1.0, %v4071
  %v4073 = vrcp.pop %v4057
  %v4074 = vmul.f32 %v4057, %v4073
  %v4075 = vsub.f32 1.0, %v4074
  %v4076 = vmul.f32 %v4073, %v4075
  %v4077 = vadd.f32 %v4073, %v4076
  %vm4078 = vweird.f32 %v4057
  %vm4079 = vweird.f32 %v4073
  %vm4080 = vmor %vm4078, %vm4079
  %v4081 = vsel %vm4080, %v4073, %v4077
  %v4082 = vand.u32 2147483647, %v4057
  %vm4083 = vcmp.eq.f32.partialorder %v4082, 8.507059e+37
  %v4084 = vand.u32 %v4057, 2147483648
  %v4085 = vor.u32 1.1754944e-38, %v4084
  %v4086 = vsel %vm4083, %v4085, %v4081
  %v4087 = vmul.f32 1.0, %v4086
  %4088 = vxpose.xlu0.b32.start [1/16] %v3796, 128
  %4089 = vxpose.xlu0.b32.cont [2/16] %v3827, 128
  %4090 = vxpose.xlu0.b32.cont [3/16] %v3858, 128
  %4091 = vxpose.xlu0.b32.cont [4/16] %v3889, 128
  %4092 = vxpose.xlu0.b32.cont [5/16] %v3920, 128
  %4093 = vxpose.xlu0.b32.cont [6/16] %v3951, 128
  %4094 = vxpose.xlu0.b32.cont [7/16] %v3982, 128
  %4095 = vxpose.xlu0.b32.cont [8/16] %v4013, 128
  %4096 = vxpose.xlu0.b32.cont [9/16] 0.0, 128
  %4097 = vxpose.xlu0.b32.cont [10/16] 0.0, 128
  %4098 = vxpose.xlu0.b32.cont [11/16] 0.0, 128
  %4099 = vxpose.xlu0.b32.cont [12/16] 0.0, 128
  %4100 = vxpose.xlu0.b32.cont [13/16] 0.0, 128
  %4101 = vxpose.xlu0.b32.cont [14/16] 0.0, 128
  %4102 = vxpose.xlu0.b32.cont [15/16] 0.0, 128
  %4103 = vxpose.xlu0.b32.end [16/16] 0.0, 128
  %v4104 = vpop.trf.xlu0
  %v4105 = vpop.trf.xlu0
  %v4106 = vpop.trf.xlu0
  %v4107 = vpop.trf.xlu0
  %v4108 = vpop.trf.xlu0
  %v4109 = vpop.trf.xlu0
  %v4110 = vpop.trf.xlu0
  %v4111 = vpop.trf.xlu0
  %v4112 = vpop.trf.xlu0
  %v4113 = vpop.trf.xlu0
  %v4114 = vpop.trf.xlu0
  %v4115 = vpop.trf.xlu0
  %v4116 = vpop.trf.xlu0
  %v4117 = vpop.trf.xlu0
  %v4118 = vpop.trf.xlu0
  %v4119 = vpop.trf.xlu0
  %v4120 = vmul.f32 %v4072, %v4104
  %v4121 = vmul.f32 %v4087, %v4105
  %4122 = vst.msk [vmem:[%s19 + $0x10] sm:$0xff] %vm1472, %v4120
  %4123 = vst.msk [vmem:[%s19 + $0x18] sm:$0xff] %vm1472, %v4121
  // Predicated region
  $region78: #{forward.4} parent=0 // pred_check
    _
  $region79: #{forward.4} parent=0 // pred_check_branch
    %4125 = sbr.rel (0) target = $region81
  $region80: #{forward.4} parent=0 // pred_region
    _
  $region81: #{forward.4} parent=0 // pred_fallthru
    _
  // Predicated region
  $region82: #{forward.4} parent=0 // pred_check
    _
  $region83: #{forward.4} parent=0 // pred_check_branch
    %4127 = sbr.rel (0) target = $region85
  $region84: #{forward.4} parent=0 // pred_region
    _
  $region85: #{forward.4} parent=0 // pred_fallthru
    _

// kernel: neg.4
$region0: #{neg.4}
  #allocation0 [shape = 's32[1]{0}', space=sflag, size = 0x4, scoped, tag = 'scoped memory for neg.4']
  %s0 = inlined_call_operand.vmem [shape: f32[2,32,16], index: 0, kind: input, shape index: {}]
  %s1 = inlined_call_operand.vmem [shape: f32[2,32,16], index: 1, kind: output, shape index: {}]
  %v2 = vld [vmem:[%s0] sm:$0xff]
  %3 = xla_tuple %v2
  %4 = xla_tuple %3
  %v5 = vxor.u32 %v2, 2147483648
  %6 = xla_tuple %v5
  %7 = vst [vmem:[%s1] sm:$0xff] %v5
  %s8 = scalar_lea.vmem %s0, 16
  %v9 = vld [vmem:[%s8] sm:$0xff]
  %10 = xla_tuple %v9
  %11 = xla_tuple %10
  %v12 = vxor.u32 %v9, 2147483648
  %13 = xla_tuple %v12
  %s14 = scalar_lea.vmem %s1, 16
  %15 = vst [vmem:[%s14] sm:$0xff] %v12
  %s16 = scalar_lea.vmem %s0, 8
  %v17 = vld [vmem:[%s16] sm:$0xff]
  %18 = xla_tuple %v17
  %19 = xla_tuple %18
  %v20 = vxor.u32 %v17, 2147483648
  %21 = xla_tuple %v20
  %s22 = scalar_lea.vmem %s1, 8
  %23 = vst [vmem:[%s22] sm:$0xff] %v20
  %s24 = scalar_lea.vmem %s0, 24
  %v25 = vld [vmem:[%s24] sm:$0xff]
  %26 = xla_tuple %v25
  %27 = xla_tuple %26
  %v28 = vxor.u32 %v25, 2147483648
  %29 = xla_tuple %v28
  %s30 = scalar_lea.vmem %s1, 24
  %31 = vst [vmem:[%s30] sm:$0xff] %v28

// kernel: forward.6
$region0: #{forward.6}
  #allocation0 [shape = 'u32[]', space=smem, size = 0x4, offset = 0x4, fixed_abs, tag = 'smem constant byte address 0x4 - core index']
  #allocation1 [shape = 'u32[72,128]{1,0:T(1,128)}', space=vmem, size = 0x9000, scoped, tag = 'internal scratch']
  %s0 = inlined_call_operand.vmem [shape: f32[64,96], index: 0, kind: input, shape index: {}]
  %s1 = inlined_call_operand.vmem [shape: f32[8,64], index: 1, kind: input, shape index: {}]
  %s2 = inlined_call_operand.vmem [shape: bf16[96,32], index: 2, kind: input, shape index: {}]
  %s3 = inlined_call_operand.vmem [shape: f32[1,32], index: 3, kind: input, shape index: {}]
  %s4 = inlined_call_operand.vmem [shape: bf16[32,32], index: 4, kind: input, shape index: {}]
  %s5 = inlined_call_operand.vmem [shape: f32[1,32], index: 5, kind: input, shape index: {}]
  %s6 = inlined_call_operand.vmem [shape: bf16[32,8], index: 6, kind: input, shape index: {}]
  %s7 = inlined_call_operand.vmem [shape: f32[32,1], index: 7, kind: input, shape index: {}]
  %s8 = inlined_call_operand.vmem [shape: f32[32,64], index: 8, kind: output, shape index: {}]
  %s9 = sld [smem:[#allocation0]]
  $region42: #{forward.6} parent=0
    _
  %s11 = ssub.s32 1, %s9
  %s12 = scalar_select 0, %s11, %s9
  // Predicated region
  $region2: #{forward.6} parent=0 // pred_check
    _
  $region3: #{forward.6} parent=0 // pred_check_branch
    %14 = sbr.rel (0) target = $region5
  $region4: #{forward.6} parent=0 // pred_region
    _
  $region5: #{forward.6} parent=0 // pred_fallthru
    _
  // Predicated region
  $region6: #{forward.6} parent=0 // pred_check
    _
  $region7: #{forward.6} parent=0 // pred_check_branch
    %16 = sbr.rel (0) target = $region9
  $region8: #{forward.6} parent=0 // pred_region
    _
  $region9: #{forward.6} parent=0 // pred_fallthru
    _
  // Predicated region
  $region10: #{forward.6} parent=0 // pred_check
    _
  $region11: #{forward.6} parent=0 // pred_check_branch
    %18 = sbr.rel (0) target = $region13
  $region12: #{forward.6} parent=0 // pred_region
    _
  $region13: #{forward.6} parent=0 // pred_fallthru
    _
  // Predicated region
  $region14: #{forward.6} parent=0 // pred_check
    _
  $region15: #{forward.6} parent=0 // pred_check_branch
    %20 = sbr.rel (0) target = $region17
  $region16: #{forward.6} parent=0 // pred_region
    _
  $region17: #{forward.6} parent=0 // pred_fallthru
    _
  // Predicated region
  $region18: #{forward.6} parent=0 // pred_check
    _
  $region19: #{forward.6} parent=0 // pred_check_branch
    %22 = sbr.rel (0) target = $region21
  $region20: #{forward.6} parent=0 // pred_region
    _
  $region21: #{forward.6} parent=0 // pred_fallthru
    _
  // Predicated region
  $region22: #{forward.6} parent=0 // pred_check
    _
  $region23: #{forward.6} parent=0 // pred_check_branch
    %24 = sbr.rel (0) target = $region25
  $region24: #{forward.6} parent=0 // pred_region
    _
  $region25: #{forward.6} parent=0 // pred_fallthru
    _
  // Predicated region
  $region26: #{forward.6} parent=0 // pred_check
    _
  $region27: #{forward.6} parent=0 // pred_check_branch
    %26 = sbr.rel (0) target = $region29
  $region28: #{forward.6} parent=0 // pred_region
    _
  $region29: #{forward.6} parent=0 // pred_fallthru
    _
  // Predicated region
  $region30: #{forward.6} parent=0 // pred_check
    _
  $region31: #{forward.6} parent=0 // pred_check_branch
    %28 = sbr.rel (0) target = $region33
  $region32: #{forward.6} parent=0 // pred_region
    _
  $region33: #{forward.6} parent=0 // pred_fallthru
    _
  %v30 = vld [vmem:[%s0] sm:$0xff]
  %v31 = vld [vmem:[%s0 + $0x8] sm:$0xff]
  %v32 = vld [vmem:[%s0 + $0x10] sm:$0xff]
  %v33 = vld [vmem:[%s0 + $0x18] sm:$0xff]
  %v34 = vld [vmem:[%s0 + $0x20] sm:$0xff]
  %v35 = vld [vmem:[%s0 + $0x28] sm:$0xff]
  %v36 = vld [vmem:[%s0 + $0x30] sm:$0xff]
  %v37 = vld [vmem:[%s0 + $0x38] sm:$0xff]
  %v38 = vpack.c.bf16 %v31, %v30
  %v39 = vpack.c.bf16 %v33, %v32
  %v40 = vpack.c.bf16 %v35, %v34
  %v41 = vpack.c.bf16 %v37, %v36
  %v42 = vld [vmem:[%s2] sm:$0xf]
  %v43 = vld [vmem:[%s2 + $0x4] sm:$0xf]
  %v44 = vld [vmem:[%s2 + $0x8] sm:$0xf]
  %v45 = vld [vmem:[%s2 + $0xc] sm:$0xf]
  %v46 = vld [vmem:[%s2 + $0x10] sm:$0xf]
  %v47 = vld [vmem:[%s2 + $0x14] sm:$0xf]
  %v48 = vld [vmem:[%s2 + $0x18] sm:$0xf]
  %v49 = vld [vmem:[%s2 + $0x1c] sm:$0xf]
  %v50 = vld [vmem:[%s2 + $0x20] sm:$0xf]
  %v51 = vld [vmem:[%s2 + $0x24] sm:$0xf]
  %v52 = vld [vmem:[%s2 + $0x28] sm:$0xf]
  %v53 = vld [vmem:[%s2 + $0x2c] sm:$0xf]
  %v54 = vld [vmem:[%s3] sm:$0x1]
  %v56 = vperm.slane %v54, 0
  %v70 = vunpack.c.l.b16 %v42
  %v71 = vunpack.c.l.b16 %v43
  %v72 = vunpack.c.l.b16 %v44
  %v73 = vunpack.c.l.b16 %v45
  %v74 = vunpack.c.l.b16 %v46
  %v75 = vunpack.c.l.b16 %v47
  %v76 = vunpack.c.l.b16 %v48
  %v77 = vunpack.c.l.b16 %v49
  %v78 = vunpack.c.l.b16 %v50
  %v79 = vunpack.c.l.b16 %v51
  %v80 = vunpack.c.l.b16 %v52
  %v81 = vunpack.c.l.b16 %v53
  %v82 = vpack.c.b16 %v71, %v70
  %v83 = vpack.c.b16 %v73, %v72
  %v84 = vpack.c.b16 %v75, %v74
  %v85 = vpack.c.b16 %v77, %v76
  %v86 = vpack.c.b16 %v79, %v78
  %v87 = vpack.c.b16 %v81, %v80
  %vm94 = vcmask 785408
  %v96 = vsel %vm94, %v38, 0
  %v99 = vsel %vm94, %v39, 0
  %v102 = vsel %vm94, %v40, 0
  %v105 = vsel %vm94, %v41, 0
  %107 = vmatpush.bf16.msra.mxu0 0
  %108 = vmatpush.bf16.msra.mxu0 0
  %109 = vmatpush.bf16.msra.mxu0 %v87
  %110 = vmatpush.bf16.msra.mxu0 %v86
  %111 = vmatpush.bf16.msra.mxu0 %v85
  %112 = vmatpush.bf16.msra.mxu0 %v84
  %113 = vmatpush.bf16.msra.mxu0 %v83
  %114 = vmatpush.bf16.msra.mxu0 %v82
  %115 = vmatmul.bf16.gmra.mxu0 %v96
  %v116 = vpop.f32.mrf.mxu0
  %v117 = vadd.f32 %v56, %v116
  %v118 = vpop.f32.mrf.mxu0
  %v119 = vadd.f32 %v56, %v118
  %120 = vmatmul.bf16.gmra.mxu0 %v99
  %v121 = vpop.f32.mrf.mxu0
  %v122 = vadd.f32 %v56, %v121
  %v123 = vpop.f32.mrf.mxu0
  %v124 = vadd.f32 %v56, %v123
  %125 = vmatmul.bf16.gmra.mxu0 %v102
  %v126 = vpop.f32.mrf.mxu0
  %v127 = vadd.f32 %v56, %v126
  %v128 = vpop.f32.mrf.mxu0
  %v129 = vadd.f32 %v56, %v128
  %130 = vmatmul.bf16.gmra.mxu0 %v105
  %v131 = vpop.f32.mrf.mxu0
  %v132 = vadd.f32 %v56, %v131
  %v133 = vpop.f32.mrf.mxu0
  %v134 = vadd.f32 %v56, %v133
  %135 = vdwg.mxu0
  %v136 = vmax.f32 %v117, 0.0
  %v137 = vmax.f32 %v119, 0.0
  %v138 = vmax.f32 %v122, 0.0
  %v139 = vmax.f32 %v124, 0.0
  %v140 = vmax.f32 %v127, 0.0
  %v141 = vmax.f32 %v129, 0.0
  %v142 = vmax.f32 %v132, 0.0
  %v143 = vmax.f32 %v134, 0.0
  %v144 = vpack.c.bf16 %v137, %v136
  %v145 = vpack.c.bf16 %v139, %v138
  %v146 = vpack.c.bf16 %v141, %v140
  %v147 = vpack.c.bf16 %v143, %v142
  %v148 = vld [vmem:[%s4] sm:$0xf]
  %v149 = vld [vmem:[%s4 + $0x4] sm:$0xf]
  %v150 = vld [vmem:[%s4 + $0x8] sm:$0xf]
  %v151 = vld [vmem:[%s4 + $0xc] sm:$0xf]
  %v152 = vld [vmem:[%s5] sm:$0x1]
  %v154 = vperm.slane %v152, 0
  %v160 = vunpack.c.l.b16 %v148
  %v161 = vunpack.c.l.b16 %v149
  %v162 = vunpack.c.l.b16 %v150
  %v163 = vunpack.c.l.b16 %v151
  %v164 = vpack.c.b16 %v161, %v160
  %v165 = vpack.c.b16 %v163, %v162
  %vm168 = vcmask 261120
  %v170 = vsel %vm168, %v144, 0
  %v173 = vsel %vm168, %v145, 0
  %v176 = vsel %vm168, %v146, 0
  %v179 = vsel %vm168, %v147, 0
  %181 = vmatpush.bf16.msra.mxu0 0
  %182 = vmatpush.bf16.msra.mxu0 0
  %183 = vmatpush.bf16.msra.mxu0 0
  %184 = vmatpush.bf16.msra.mxu0 0
  %185 = vmatpush.bf16.msra.mxu0 0
  %186 = vmatpush.bf16.msra.mxu0 0
  %187 = vmatpush.bf16.msra.mxu0 %v165
  %188 = vmatpush.bf16.msra.mxu0 %v164
  %189 = vmatmul.bf16.gmra.mxu0 %v170
  %v190 = vpop.f32.mrf.mxu0
  %v191 = vadd.f32 %v154, %v190
  %v192 = vpop.f32.mrf.mxu0
  %v193 = vadd.f32 %v154, %v192
  %194 = vmatmul.bf16.gmra.mxu0 %v173
  %v195 = vpop.f32.mrf.mxu0
  %v196 = vadd.f32 %v154, %v195
  %v197 = vpop.f32.mrf.mxu0
  %v198 = vadd.f32 %v154, %v197
  %199 = vmatmul.bf16.gmra.mxu0 %v176
  %v200 = vpop.f32.mrf.mxu0
  %v201 = vadd.f32 %v154, %v200
  %v202 = vpop.f32.mrf.mxu0
  %v203 = vadd.f32 %v154, %v202
  %204 = vmatmul.bf16.gmra.mxu0 %v179
  %v205 = vpop.f32.mrf.mxu0
  %v206 = vadd.f32 %v154, %v205
  %v207 = vpop.f32.mrf.mxu0
  %v208 = vadd.f32 %v154, %v207
  %209 = vdwg.mxu0
  %v210 = vmax.f32 %v191, 0.0
  %v211 = vmax.f32 %v193, 0.0
  %v212 = vmax.f32 %v196, 0.0
  %v213 = vmax.f32 %v198, 0.0
  %v214 = vmax.f32 %v201, 0.0
  %v215 = vmax.f32 %v203, 0.0
  %v216 = vmax.f32 %v206, 0.0
  %v217 = vmax.f32 %v208, 0.0
  %v218 = vld [vmem:[%s6] sm:$0xf]
  %v219 = vld [vmem:[%s6 + $0x4] sm:$0xf]
  %v220 = vld [vmem:[%s6 + $0x8] sm:$0xf]
  %v221 = vld [vmem:[%s6 + $0xc] sm:$0xf]
  %v222 = vld [vmem:[%s1] sm:$0xff]
  %v223 = vpack.c.bf16 %v222, %v222
  %v224 = vld [vmem:[%s7] sm:$0xff]
  %v225 = vld [vmem:[%s7 + $0x8] sm:$0xff]
  %v226 = vld [vmem:[%s7 + $0x10] sm:$0xff]
  %v227 = vld [vmem:[%s7 + $0x18] sm:$0xff]
  %229 = vset.pattern.permute.xlu0 0
  %230 = vperm.xlu0 %229, %v224
  %v231 = vpop.permute.xlu0 %230
  %234 = vset.pattern.permute.xlu0 0
  %235 = vperm.xlu0 %234, %v225
  %v236 = vpop.permute.xlu0 %235
  %239 = vset.pattern.permute.xlu0 0
  %240 = vperm.xlu0 %239, %v226
  %v241 = vpop.permute.xlu0 %240
  %244 = vset.pattern.permute.xlu0 0
  %245 = vperm.xlu0 %244, %v227
  %v246 = vpop.permute.xlu0 %245
  %v252 = vunpack.c.l.b16 %v218
  %v253 = vunpack.c.l.b16 %v219
  %v254 = vunpack.c.l.b16 %v220
  %v255 = vunpack.c.l.b16 %v221
  %v256 = vpack.c.b16 %v253, %v252
  %v257 = vpack.c.b16 %v255, %v254
  %vm258 = vcmask 64512
  %v260 = vsel %vm258, %v256, 0
  %v263 = vsel %vm258, %v257, 0
  %vm265 = vcmask 1043456
  %v267 = vsel %vm265, %v223, 0
  %269 = vmatpush.bf16.msra.mxu0 0
  %270 = vmatpush.bf16.msra.mxu0 0
  %271 = vmatpush.bf16.msra.mxu0 0
  %272 = vmatpush.bf16.msra.mxu0 0
  %273 = vmatpush.bf16.msra.mxu0 0
  %274 = vmatpush.bf16.msra.mxu0 0
  %275 = vmatpush.bf16.msra.mxu0 0
  %276 = vmatpush.bf16.msra.mxu0 %v267
  %277 = vmatmul.bf16.gmra.mxu0 %v260
  %v278 = vpop.f32.mrf.mxu0
  %v279 = vadd.f32 %v231, %v278
  %v280 = vpop.f32.mrf.mxu0
  %v281 = vadd.f32 %v236, %v280
  %282 = vmatmul.bf16.gmra.mxu0 %v263
  %v283 = vpop.f32.mrf.mxu0
  %v284 = vadd.f32 %v241, %v283
  %v285 = vpop.f32.mrf.mxu0
  %v286 = vadd.f32 %v246, %v285
  %287 = vdwg.mxu0
  %v288 = vxor.u32 %v279, 2147483648
  %v289 = vxor.u32 %v281, 2147483648
  %v290 = vxor.u32 %v284, 2147483648
  %v291 = vxor.u32 %v286, 2147483648
  %v292 = vmul.f32 %v288, 1.442695
  %v293 = vpow.pop %v292
  %v294 = vmul.f32 %v289, 1.442695
  %v295 = vpow.pop %v294
  %v296 = vmul.f32 %v290, 1.442695
  %v297 = vpow.pop %v296
  %v298 = vmul.f32 %v291, 1.442695
  %v299 = vpow.pop %v298
  %v300 = vadd.f32 %v293, 1.0
  %v301 = vadd.f32 %v295, 1.0
  %v302 = vadd.f32 %v297, 1.0
  %v303 = vadd.f32 %v299, 1.0
  %v304 = vrcp.pop %v300
  %v305 = vmul.f32 %v300, %v304
  %v306 = vsub.f32 1.0, %v305
  %v307 = vmul.f32 %v304, %v306
  %v308 = vadd.f32 %v304, %v307
  %vm309 = vweird.f32 %v300
  %vm310 = vweird.f32 %v304
  %vm311 = vmor %vm309, %vm310
  %v312 = vsel %vm311, %v304, %v308
  %v313 = vand.u32 2147483647, %v300
  %vm314 = vcmp.eq.f32.partialorder %v313, 8.507059e+37
  %v315 = vand.u32 %v300, 2147483648
  %v316 = vor.u32 1.1754944e-38, %v315
  %v317 = vsel %vm314, %v316, %v312
  %v318 = vmul.f32 1.0, %v317
  %v319 = vrcp.pop %v301
  %v320 = vmul.f32 %v301, %v319
  %v321 = vsub.f32 1.0, %v320
  %v322 = vmul.f32 %v319, %v321
  %v323 = vadd.f32 %v319, %v322
  %vm324 = vweird.f32 %v301
  %vm325 = vweird.f32 %v319
  %vm326 = vmor %vm324, %vm325
  %v327 = vsel %vm326, %v319, %v323
  %v328 = vand.u32 2147483647, %v301
  %vm329 = vcmp.eq.f32.partialorder %v328, 8.507059e+37
  %v330 = vand.u32 %v301, 2147483648
  %v331 = vor.u32 1.1754944e-38, %v330
  %v332 = vsel %vm329, %v331, %v327
  %v333 = vmul.f32 1.0, %v332
  %v334 = vrcp.pop %v302
  %v335 = vmul.f32 %v302, %v334
  %v336 = vsub.f32 1.0, %v335
  %v337 = vmul.f32 %v334, %v336
  %v338 = vadd.f32 %v334, %v337
  %vm339 = vweird.f32 %v302
  %vm340 = vweird.f32 %v334
  %vm341 = vmor %vm339, %vm340
  %v342 = vsel %vm341, %v334, %v338
  %v343 = vand.u32 2147483647, %v302
  %vm344 = vcmp.eq.f32.partialorder %v343, 8.507059e+37
  %v345 = vand.u32 %v302, 2147483648
  %v346 = vor.u32 1.1754944e-38, %v345
  %v347 = vsel %vm344, %v346, %v342
  %v348 = vmul.f32 1.0, %v347
  %v349 = vrcp.pop %v303
  %v350 = vmul.f32 %v303, %v349
  %v351 = vsub.f32 1.0, %v350
  %v352 = vmul.f32 %v349, %v351
  %v353 = vadd.f32 %v349, %v352
  %vm354 = vweird.f32 %v303
  %vm355 = vweird.f32 %v349
  %vm356 = vmor %vm354, %vm355
  %v357 = vsel %vm356, %v349, %v353
  %v358 = vand.u32 2147483647, %v303
  %vm359 = vcmp.eq.f32.partialorder %v358, 8.507059e+37
  %v360 = vand.u32 %v303, 2147483648
  %v361 = vor.u32 1.1754944e-38, %v360
  %v362 = vsel %vm359, %v361, %v357
  %v363 = vmul.f32 1.0, %v362
  %364 = vxpose.xlu0.b32.start [1/16] %v210, 128
  %365 = vxpose.xlu0.b32.cont [2/16] %v211, 128
  %366 = vxpose.xlu0.b32.cont [3/16] %v212, 128
  %367 = vxpose.xlu0.b32.cont [4/16] %v213, 128
  %368 = vxpose.xlu0.b32.cont [5/16] %v214, 128
  %369 = vxpose.xlu0.b32.cont [6/16] %v215, 128
  %370 = vxpose.xlu0.b32.cont [7/16] %v216, 128
  %371 = vxpose.xlu0.b32.cont [8/16] %v217, 128
  %372 = vxpose.xlu0.b32.cont [9/16] 0.0, 128
  %373 = vxpose.xlu0.b32.cont [10/16] 0.0, 128
  %374 = vxpose.xlu0.b32.cont [11/16] 0.0, 128
  %375 = vxpose.xlu0.b32.cont [12/16] 0.0, 128
  %376 = vxpose.xlu0.b32.cont [13/16] 0.0, 128
  %377 = vxpose.xlu0.b32.cont [14/16] 0.0, 128
  %378 = vxpose.xlu0.b32.cont [15/16] 0.0, 128
  %379 = vxpose.xlu0.b32.end [16/16] 0.0, 128
  %v380 = vpop.trf.xlu0
  %v381 = vpop.trf.xlu0
  %v382 = vpop.trf.xlu0
  %v383 = vpop.trf.xlu0
  %v384 = vpop.trf.xlu0
  %v385 = vpop.trf.xlu0
  %v386 = vpop.trf.xlu0
  %v387 = vpop.trf.xlu0
  %v388 = vpop.trf.xlu0
  %v389 = vpop.trf.xlu0
  %v390 = vpop.trf.xlu0
  %v391 = vpop.trf.xlu0
  %v392 = vpop.trf.xlu0
  %v393 = vpop.trf.xlu0
  %v394 = vpop.trf.xlu0
  %v395 = vpop.trf.xlu0
  %v396 = vmul.f32 %v318, %v380
  %v397 = vmul.f32 %v333, %v381
  %v398 = vmul.f32 %v348, %v382
  %v399 = vmul.f32 %v363, %v383
  %vm400 = vcmask 523264
  %401 = vst.msk [vmem:[%s8] sm:$0xff] %vm400, %v396
  %402 = vst.msk [vmem:[%s8 + $0x8] sm:$0xff] %vm400, %v397
  %403 = vst.msk [vmem:[%s8 + $0x10] sm:$0xff] %vm400, %v398
  %404 = vst.msk [vmem:[%s8 + $0x18] sm:$0xff] %vm400, %v399
  // Predicated region
  $region34: #{forward.6} parent=0 // pred_check
    _
  $region35: #{forward.6} parent=0 // pred_check_branch
    %406 = sbr.rel (0) target = $region37
  $region36: #{forward.6} parent=0 // pred_region
    _
  $region37: #{forward.6} parent=0 // pred_fallthru
    _
  // Predicated region
  $region38: #{forward.6} parent=0 // pred_check
    _
  $region39: #{forward.6} parent=0 // pred_check_branch
    %408 = sbr.rel (0) target = $region41
  $region40: #{forward.6} parent=0 // pred_region
    _
  $region41: #{forward.6} parent=0 // pred_fallthru
    _

// kernel: neg.6
$region0: #{neg.6}
  #allocation0 [shape = 's32[1]{0}', space=sflag, size = 0x4, scoped, tag = 'scoped memory for neg.6']
  %s0 = inlined_call_operand.vmem [shape: f32[2,64,32], index: 0, kind: input, shape index: {}]
  %s1 = inlined_call_operand.vmem [shape: f32[2,64,32], index: 1, kind: output, shape index: {}]
  %v2 = vld [vmem:[%s0] sm:$0xff]
  %3 = xla_tuple %v2
  %4 = xla_tuple %3
  %v5 = vxor.u32 %v2, 2147483648
  %6 = xla_tuple %v5
  %7 = vst [vmem:[%s1] sm:$0xff] %v5
  %s8 = scalar_lea.vmem %s0, 32
  %v9 = vld [vmem:[%s8] sm:$0xff]
  %10 = xla_tuple %v9
  %11 = xla_tuple %10
  %v12 = vxor.u32 %v9, 2147483648
  %13 = xla_tuple %v12
  %s14 = scalar_lea.vmem %s1, 32
  %15 = vst [vmem:[%s14] sm:$0xff] %v12
  %s16 = scalar_lea.vmem %s0, 8
  %v17 = vld [vmem:[%s16] sm:$0xff]
  %18 = xla_tuple %v17
  %19 = xla_tuple %18
  %v20 = vxor.u32 %v17, 2147483648
  %21 = xla_tuple %v20
  %s22 = scalar_lea.vmem %s1, 8
  %23 = vst [vmem:[%s22] sm:$0xff] %v20
  %s24 = scalar_lea.vmem %s0, 40
  %v25 = vld [vmem:[%s24] sm:$0xff]
  %26 = xla_tuple %v25
  %27 = xla_tuple %26
  %v28 = vxor.u32 %v25, 2147483648
  %29 = xla_tuple %v28
  %s30 = scalar_lea.vmem %s1, 40
  %31 = vst [vmem:[%s30] sm:$0xff] %v28
  %s32 = scalar_lea.vmem %s0, 16
  %v33 = vld [vmem:[%s32] sm:$0xff]
  %34 = xla_tuple %v33
  %35 = xla_tuple %34
  %v36 = vxor.u32 %v33, 2147483648
  %37 = xla_tuple %v36
  %s38 = scalar_lea.vmem %s1, 16
  %39 = vst [vmem:[%s38] sm:$0xff] %v36
  %s40 = scalar_lea.vmem %s0, 48
  %v41 = vld [vmem:[%s40] sm:$0xff]
  %42 = xla_tuple %v41
  %43 = xla_tuple %42
  %v44 = vxor.u32 %v41, 2147483648
  %45 = xla_tuple %v44
  %s46 = scalar_lea.vmem %s1, 48
  %47 = vst [vmem:[%s46] sm:$0xff] %v44
  %s48 = scalar_lea.vmem %s0, 24
  %v49 = vld [vmem:[%s48] sm:$0xff]
  %50 = xla_tuple %v49
  %51 = xla_tuple %50
  %v52 = vxor.u32 %v49, 2147483648
  %53 = xla_tuple %v52
  %s54 = scalar_lea.vmem %s1, 24
  %55 = vst [vmem:[%s54] sm:$0xff] %v52
  %s56 = scalar_lea.vmem %s0, 56
  %v57 = vld [vmem:[%s56] sm:$0xff]
  %58 = xla_tuple %v57
  %59 = xla_tuple %58
  %v60 = vxor.u32 %v57, 2147483648
  %61 = xla_tuple %v60
  %s62 = scalar_lea.vmem %s1, 56
  %63 = vst [vmem:[%s62] sm:$0xff] %v60

// kernel: forward.5
$region0: #{forward.5}
  #allocation0 [shape = 'u32[]', space=smem, size = 0x4, offset = 0x4, fixed_abs, tag = 'smem constant byte address 0x4 - core index']
  #allocation1 [shape = 'u32[72,128]{1,0:T(1,128)}', space=vmem, size = 0x9000, scoped, tag = 'internal scratch']
  %s0 = inlined_call_operand.vmem [shape: f32[8,32,35], index: 0, kind: input, shape index: {}]
  %s1 = inlined_call_operand.vmem [shape: f32[16,32,35], index: 1, kind: input, shape index: {}]
  %s2 = inlined_call_operand.vmem [shape: f32[8,32], index: 2, kind: input, shape index: {}]
  %s3 = inlined_call_operand.vmem [shape: bf16[35,16], index: 3, kind: input, shape index: {}]
  %s4 = inlined_call_operand.vmem [shape: f32[1,16], index: 4, kind: input, shape index: {}]
  %s5 = inlined_call_operand.vmem [shape: bf16[16,16], index: 5, kind: input, shape index: {}]
  %s6 = inlined_call_operand.vmem [shape: f32[1,16], index: 6, kind: input, shape index: {}]
  %s7 = inlined_call_operand.vmem [shape: bf16[16,32], index: 7, kind: input, shape index: {}]
  %s8 = inlined_call_operand.vmem [shape: f32[1,32], index: 8, kind: input, shape index: {}]
  %s9 = inlined_call_operand.vmem [shape: bf16[32,8], index: 9, kind: input, shape index: {}]
  %s10 = inlined_call_operand.vmem [shape: f32[32,1], index: 10, kind: input, shape index: {}]
  %s11 = inlined_call_operand.vmem [shape: bf16[35,16], index: 11, kind: input, shape index: {}]
  %s12 = inlined_call_operand.vmem [shape: f32[1,16], index: 12, kind: input, shape index: {}]
  %s13 = inlined_call_operand.vmem [shape: bf16[16,16], index: 13, kind: input, shape index: {}]
  %s14 = inlined_call_operand.vmem [shape: f32[1,16], index: 14, kind: input, shape index: {}]
  %s15 = inlined_call_operand.vmem [shape: bf16[16,32], index: 15, kind: input, shape index: {}]
  %s16 = inlined_call_operand.vmem [shape: f32[1,32], index: 16, kind: input, shape index: {}]
  %s17 = inlined_call_operand.vmem [shape: bf16[32,8], index: 17, kind: input, shape index: {}]
  %s18 = inlined_call_operand.vmem [shape: f32[32,1], index: 18, kind: input, shape index: {}]
  %s19 = inlined_call_operand.vmem [shape: f32[64,32], index: 19, kind: output, shape index: {}]
  %s20 = sld [smem:[#allocation0]]
  $region86: #{forward.5} parent=0
    _
  %s22 = ssub.s32 1, %s20
  %s23 = scalar_select 0, %s22, %s20
  // Predicated region
  $region2: #{forward.5} parent=0 // pred_check
    _
  $region3: #{forward.5} parent=0 // pred_check_branch
    %25 = sbr.rel (0) target = $region5
  $region4: #{forward.5} parent=0 // pred_region
    _
  $region5: #{forward.5} parent=0 // pred_fallthru
    _
  // Predicated region
  $region6: #{forward.5} parent=0 // pred_check
    _
  $region7: #{forward.5} parent=0 // pred_check_branch
    %27 = sbr.rel (0) target = $region9
  $region8: #{forward.5} parent=0 // pred_region
    _
  $region9: #{forward.5} parent=0 // pred_fallthru
    _
  // Predicated region
  $region10: #{forward.5} parent=0 // pred_check
    _
  $region11: #{forward.5} parent=0 // pred_check_branch
    %29 = sbr.rel (0) target = $region13
  $region12: #{forward.5} parent=0 // pred_region
    _
  $region13: #{forward.5} parent=0 // pred_fallthru
    _
  // Predicated region
  $region14: #{forward.5} parent=0 // pred_check
    _
  $region15: #{forward.5} parent=0 // pred_check_branch
    %31 = sbr.rel (0) target = $region17
  $region16: #{forward.5} parent=0 // pred_region
    _
  $region17: #{forward.5} parent=0 // pred_fallthru
    _
  // Predicated region
  $region18: #{forward.5} parent=0 // pred_check
    _
  $region19: #{forward.5} parent=0 // pred_check_branch
    %33 = sbr.rel (0) target = $region21
  $region20: #{forward.5} parent=0 // pred_region
    _
  $region21: #{forward.5} parent=0 // pred_fallthru
    _
  // Predicated region
  $region22: #{forward.5} parent=0 // pred_check
    _
  $region23: #{forward.5} parent=0 // pred_check_branch
    %35 = sbr.rel (0) target = $region25
  $region24: #{forward.5} parent=0 // pred_region
    _
  $region25: #{forward.5} parent=0 // pred_fallthru
    _
  // Predicated region
  $region26: #{forward.5} parent=0 // pred_check
    _
  $region27: #{forward.5} parent=0 // pred_check_branch
    %37 = sbr.rel (0) target = $region29
  $region28: #{forward.5} parent=0 // pred_region
    _
  $region29: #{forward.5} parent=0 // pred_fallthru
    _
  // Predicated region
  $region30: #{forward.5} parent=0 // pred_check
    _
  $region31: #{forward.5} parent=0 // pred_check_branch
    %39 = sbr.rel (0) target = $region33
  $region32: #{forward.5} parent=0 // pred_region
    _
  $region33: #{forward.5} parent=0 // pred_fallthru
    _
  // Predicated region
  $region34: #{forward.5} parent=0 // pred_check
    _
  $region35: #{forward.5} parent=0 // pred_check_branch
    %41 = sbr.rel (0) target = $region37
  $region36: #{forward.5} parent=0 // pred_region
    _
  $region37: #{forward.5} parent=0 // pred_fallthru
    _
  // Predicated region
  $region38: #{forward.5} parent=0 // pred_check
    _
  $region39: #{forward.5} parent=0 // pred_check_branch
    %43 = sbr.rel (0) target = $region41
  $region40: #{forward.5} parent=0 // pred_region
    _
  $region41: #{forward.5} parent=0 // pred_fallthru
    _
  // Predicated region
  $region42: #{forward.5} parent=0 // pred_check
    _
  $region43: #{forward.5} parent=0 // pred_check_branch
    %45 = sbr.rel (0) target = $region45
  $region44: #{forward.5} parent=0 // pred_region
    _
  $region45: #{forward.5} parent=0 // pred_fallthru
    _
  // Predicated region
  $region46: #{forward.5} parent=0 // pred_check
    _
  $region47: #{forward.5} parent=0 // pred_check_branch
    %47 = sbr.rel (0) target = $region49
  $region48: #{forward.5} parent=0 // pred_region
    _
  $region49: #{forward.5} parent=0 // pred_fallthru
    _
  // Predicated region
  $region50: #{forward.5} parent=0 // pred_check
    _
  $region51: #{forward.5} parent=0 // pred_check_branch
    %49 = sbr.rel (0) target = $region53
  $region52: #{forward.5} parent=0 // pred_region
    _
  $region53: #{forward.5} parent=0 // pred_fallthru
    _
  // Predicated region
  $region54: #{forward.5} parent=0 // pred_check
    _
  $region55: #{forward.5} parent=0 // pred_check_branch
    %51 = sbr.rel (0) target = $region57
  $region56: #{forward.5} parent=0 // pred_region
    _
  $region57: #{forward.5} parent=0 // pred_fallthru
    _
  // Predicated region
  $region58: #{forward.5} parent=0 // pred_check
    _
  $region59: #{forward.5} parent=0 // pred_check_branch
    %53 = sbr.rel (0) target = $region61
  $region60: #{forward.5} parent=0 // pred_region
    _
  $region61: #{forward.5} parent=0 // pred_fallthru
    _
  // Predicated region
  $region62: #{forward.5} parent=0 // pred_check
    _
  $region63: #{forward.5} parent=0 // pred_check_branch
    %55 = sbr.rel (0) target = $region65
  $region64: #{forward.5} parent=0 // pred_region
    _
  $region65: #{forward.5} parent=0 // pred_fallthru
    _
  // Predicated region
  $region66: #{forward.5} parent=0 // pred_check
    _
  $region67: #{forward.5} parent=0 // pred_check_branch
    %57 = sbr.rel (0) target = $region69
  $region68: #{forward.5} parent=0 // pred_region
    _
  $region69: #{forward.5} parent=0 // pred_fallthru
    _
  // Predicated region
  $region70: #{forward.5} parent=0 // pred_check
    _
  $region71: #{forward.5} parent=0 // pred_check_branch
    %59 = sbr.rel (0) target = $region73
  $region72: #{forward.5} parent=0 // pred_region
    _
  $region73: #{forward.5} parent=0 // pred_fallthru
    _
  // Predicated region
  $region74: #{forward.5} parent=0 // pred_check
    _
  $region75: #{forward.5} parent=0 // pred_check_branch
    %61 = sbr.rel (0) target = $region77
  $region76: #{forward.5} parent=0 // pred_region
    _
  $region77: #{forward.5} parent=0 // pred_fallthru
    _
  %v63 = vld [vmem:[%s2] sm:$0xff]
  %v64 = vpack.c.bf16 %v63, %v63
  %v65 = vld [vmem:[%s0] sm:$0xff]
  %v66 = vld [vmem:[%s0 + $0x8] sm:$0xff]
  %v67 = vld [vmem:[%s0 + $0x10] sm:$0xff]
  %v68 = vld [vmem:[%s0 + $0x18] sm:$0xff]
  %v69 = vld [vmem:[%s0 + $0x20] sm:$0xff]
  %v70 = vld [vmem:[%s0 + $0x28] sm:$0xff]
  %v71 = vld [vmem:[%s0 + $0x30] sm:$0xff]
  %v72 = vld [vmem:[%s0 + $0x38] sm:$0xff]
  %v73 = vld [vmem:[%s0 + $0x40] sm:$0xff]
  %v74 = vld [vmem:[%s0 + $0x48] sm:$0xff]
  %v75 = vld [vmem:[%s0 + $0x50] sm:$0xff]
  %v76 = vld [vmem:[%s0 + $0x58] sm:$0xff]
  %v77 = vld [vmem:[%s0 + $0x60] sm:$0xff]
  %v78 = vld [vmem:[%s0 + $0x68] sm:$0xff]
  %v79 = vld [vmem:[%s0 + $0x70] sm:$0xff]
  %v80 = vld [vmem:[%s0 + $0x78] sm:$0xff]
  %v81 = vld [vmem:[%s0 + $0x80] sm:$0xff]
  %v82 = vld [vmem:[%s0 + $0x88] sm:$0xff]
  %v83 = vld [vmem:[%s0 + $0x90] sm:$0xff]
  %v84 = vld [vmem:[%s0 + $0x98] sm:$0xff]
  %v85 = vld [vmem:[%s0 + $0xa0] sm:$0xff]
  %v86 = vld [vmem:[%s0 + $0xa8] sm:$0xff]
  %v87 = vld [vmem:[%s0 + $0xb0] sm:$0xff]
  %v88 = vld [vmem:[%s0 + $0xb8] sm:$0xff]
  %v89 = vld [vmem:[%s0 + $0xc0] sm:$0xff]
  %v90 = vld [vmem:[%s0 + $0xc8] sm:$0xff]
  %v91 = vld [vmem:[%s0 + $0xd0] sm:$0xff]
  %v92 = vld [vmem:[%s0 + $0xd8] sm:$0xff]
  %v93 = vld [vmem:[%s0 + $0xe0] sm:$0xff]
  %v94 = vld [vmem:[%s0 + $0xe8] sm:$0xff]
  %v95 = vld [vmem:[%s0 + $0xf0] sm:$0xff]
  %v96 = vld [vmem:[%s0 + $0xf8] sm:$0xff]
  %v97 = vpack.c.bf16 %v66, %v65
  %v98 = vpack.c.bf16 %v68, %v67
  %v99 = vpack.c.bf16 %v70, %v69
  %v100 = vpack.c.bf16 %v72, %v71
  %v101 = vpack.c.bf16 %v74, %v73
  %v102 = vpack.c.bf16 %v76, %v75
  %v103 = vpack.c.bf16 %v78, %v77
  %v104 = vpack.c.bf16 %v80, %v79
  %v105 = vpack.c.bf16 %v82, %v81
  %v106 = vpack.c.bf16 %v84, %v83
  %v107 = vpack.c.bf16 %v86, %v85
  %v108 = vpack.c.bf16 %v88, %v87
  %v109 = vpack.c.bf16 %v90, %v89
  %v110 = vpack.c.bf16 %v92, %v91
  %v111 = vpack.c.bf16 %v94, %v93
  %v112 = vpack.c.bf16 %v96, %v95
  %v113 = vld [vmem:[%s3] sm:$0xf]
  %v114 = vld [vmem:[%s3 + $0x4] sm:$0xf]
  %v115 = vld [vmem:[%s3 + $0x8] sm:$0xf]
  %v116 = vld [vmem:[%s3 + $0xc] sm:$0xf]
  %v117 = vld [vmem:[%s3 + $0x10] sm:$0x3]
  %v118 = vld [vmem:[%s4] sm:$0x1]
  %v120 = vperm.slane %v118, 0
  %v127 = vunpack.c.l.b16 %v113
  %v128 = vunpack.c.l.b16 %v114
  %v129 = vunpack.c.l.b16 %v115
  %v130 = vunpack.c.l.b16 %v116
  %v131 = vunpack.c.l.b16 %v117
  %v132 = vpack.c.b16 %v128, %v127
  %v133 = vpack.c.b16 %v130, %v129
  %v134 = vpack.c.b16 %v131, %v131
  %vm137 = vcmask 285696
  %v139 = vsel %vm137, %v97, 0
  %v142 = vsel %vm137, %v98, 0
  %v145 = vsel %vm137, %v99, 0
  %v148 = vsel %vm137, %v100, 0
  %v151 = vsel %vm137, %v101, 0
  %v154 = vsel %vm137, %v102, 0
  %v157 = vsel %vm137, %v103, 0
  %v160 = vsel %vm137, %v104, 0
  %v163 = vsel %vm137, %v105, 0
  %v166 = vsel %vm137, %v106, 0
  %v169 = vsel %vm137, %v107, 0
  %v172 = vsel %vm137, %v108, 0
  %v175 = vsel %vm137, %v109, 0
  %v178 = vsel %vm137, %v110, 0
  %v181 = vsel %vm137, %v111, 0
  %v184 = vsel %vm137, %v112, 0
  %vm186 = vcmask 1040384
  %vm187 = vcmask 1041408
  %v188 = vsel %vm186, 4294967295, 65535
  %v189 = vsel %vm187, %v188, 0
  %v191 = vand.u32 %v134, %v189
  %193 = vmatpush.bf16.msra.mxu0 0
  %194 = vmatpush.bf16.msra.mxu0 0
  %195 = vmatpush.bf16.msra.mxu0 0
  %196 = vmatpush.bf16.msra.mxu0 0
  %197 = vmatpush.bf16.msra.mxu0 0
  %198 = vmatpush.bf16.msra.mxu0 %v191
  %199 = vmatpush.bf16.msra.mxu0 %v133
  %200 = vmatpush.bf16.msra.mxu0 %v132
  %201 = vmatmul.bf16.gmra.mxu0 %v139
  %v202 = vpop.f32.mrf.mxu0
  %v203 = vadd.f32 %v120, %v202
  %v204 = vpop.f32.mrf.mxu0
  %v205 = vadd.f32 %v120, %v204
  %206 = vmatmul.bf16.gmra.mxu0 %v142
  %v207 = vpop.f32.mrf.mxu0
  %v208 = vadd.f32 %v120, %v207
  %v209 = vpop.f32.mrf.mxu0
  %v210 = vadd.f32 %v120, %v209
  %211 = vmatmul.bf16.gmra.mxu0 %v145
  %v212 = vpop.f32.mrf.mxu0
  %v213 = vadd.f32 %v120, %v212
  %v214 = vpop.f32.mrf.mxu0
  %v215 = vadd.f32 %v120, %v214
  %216 = vmatmul.bf16.gmra.mxu0 %v148
  %v217 = vpop.f32.mrf.mxu0
  %v218 = vadd.f32 %v120, %v217
  %v219 = vpop.f32.mrf.mxu0
  %v220 = vadd.f32 %v120, %v219
  %221 = vmatmul.bf16.gmra.mxu0 %v151
  %v222 = vpop.f32.mrf.mxu0
  %v223 = vadd.f32 %v120, %v222
  %v224 = vpop.f32.mrf.mxu0
  %v225 = vadd.f32 %v120, %v224
  %226 = vmatmul.bf16.gmra.mxu0 %v154
  %v227 = vpop.f32.mrf.mxu0
  %v228 = vadd.f32 %v120, %v227
  %v229 = vpop.f32.mrf.mxu0
  %v230 = vadd.f32 %v120, %v229
  %231 = vmatmul.bf16.gmra.mxu0 %v157
  %v232 = vpop.f32.mrf.mxu0
  %v233 = vadd.f32 %v120, %v232
  %v234 = vpop.f32.mrf.mxu0
  %v235 = vadd.f32 %v120, %v234
  %236 = vmatmul.bf16.gmra.mxu0 %v160
  %v237 = vpop.f32.mrf.mxu0
  %v238 = vadd.f32 %v120, %v237
  %v239 = vpop.f32.mrf.mxu0
  %v240 = vadd.f32 %v120, %v239
  %241 = vmatmul.bf16.gmra.mxu0 %v163
  %v242 = vpop.f32.mrf.mxu0
  %v243 = vadd.f32 %v120, %v242
  %v244 = vpop.f32.mrf.mxu0
  %v245 = vadd.f32 %v120, %v244
  %246 = vmatmul.bf16.gmra.mxu0 %v166
  %v247 = vpop.f32.mrf.mxu0
  %v248 = vadd.f32 %v120, %v247
  %v249 = vpop.f32.mrf.mxu0
  %v250 = vadd.f32 %v120, %v249
  %251 = vmatmul.bf16.gmra.mxu0 %v169
  %v252 = vpop.f32.mrf.mxu0
  %v253 = vadd.f32 %v120, %v252
  %v254 = vpop.f32.mrf.mxu0
  %v255 = vadd.f32 %v120, %v254
  %256 = vmatmul.bf16.gmra.mxu0 %v172
  %v257 = vpop.f32.mrf.mxu0
  %v258 = vadd.f32 %v120, %v257
  %v259 = vpop.f32.mrf.mxu0
  %v260 = vadd.f32 %v120, %v259
  %261 = vmatmul.bf16.gmra.mxu0 %v175
  %v262 = vpop.f32.mrf.mxu0
  %v263 = vadd.f32 %v120, %v262
  %v264 = vpop.f32.mrf.mxu0
  %v265 = vadd.f32 %v120, %v264
  %266 = vmatmul.bf16.gmra.mxu0 %v178
  %v267 = vpop.f32.mrf.mxu0
  %v268 = vadd.f32 %v120, %v267
  %v269 = vpop.f32.mrf.mxu0
  %v270 = vadd.f32 %v120, %v269
  %271 = vmatmul.bf16.gmra.mxu0 %v181
  %v272 = vpop.f32.mrf.mxu0
  %v273 = vadd.f32 %v120, %v272
  %v274 = vpop.f32.mrf.mxu0
  %v275 = vadd.f32 %v120, %v274
  %276 = vmatmul.bf16.gmra.mxu0 %v184
  %v277 = vpop.f32.mrf.mxu0
  %v278 = vadd.f32 %v120, %v277
  %v279 = vpop.f32.mrf.mxu0
  %v280 = vadd.f32 %v120, %v279
  %281 = vdwg.mxu0
  %v282 = vmax.f32 %v203, 0.0
  %v283 = vmax.f32 %v205, 0.0
  %v284 = vmax.f32 %v208, 0.0
  %v285 = vmax.f32 %v210, 0.0
  %v286 = vmax.f32 %v213, 0.0
  %v287 = vmax.f32 %v215, 0.0
  %v288 = vmax.f32 %v218, 0.0
  %v289 = vmax.f32 %v220, 0.0
  %v290 = vmax.f32 %v223, 0.0
  %v291 = vmax.f32 %v225, 0.0
  %v292 = vmax.f32 %v228, 0.0
  %v293 = vmax.f32 %v230, 0.0
  %v294 = vmax.f32 %v233, 0.0
  %v295 = vmax.f32 %v235, 0.0
  %v296 = vmax.f32 %v238, 0.0
  %v297 = vmax.f32 %v240, 0.0
  %v298 = vmax.f32 %v243, 0.0
  %v299 = vmax.f32 %v245, 0.0
  %v300 = vmax.f32 %v248, 0.0
  %v301 = vmax.f32 %v250, 0.0
  %v302 = vmax.f32 %v253, 0.0
  %v303 = vmax.f32 %v255, 0.0
  %v304 = vmax.f32 %v258, 0.0
  %v305 = vmax.f32 %v260, 0.0
  %v306 = vmax.f32 %v263, 0.0
  %v307 = vmax.f32 %v265, 0.0
  %v308 = vmax.f32 %v268, 0.0
  %v309 = vmax.f32 %v270, 0.0
  %v310 = vmax.f32 %v273, 0.0
  %v311 = vmax.f32 %v275, 0.0
  %v312 = vmax.f32 %v278, 0.0
  %v313 = vmax.f32 %v280, 0.0
  %v314 = vpack.c.bf16 %v283, %v282
  %v315 = vpack.c.bf16 %v285, %v284
  %v316 = vpack.c.bf16 %v287, %v286
  %v317 = vpack.c.bf16 %v289, %v288
  %v318 = vpack.c.bf16 %v291, %v290
  %v319 = vpack.c.bf16 %v293, %v292
  %v320 = vpack.c.bf16 %v295, %v294
  %v321 = vpack.c.bf16 %v297, %v296
  %v322 = vpack.c.bf16 %v299, %v298
  %v323 = vpack.c.bf16 %v301, %v300
  %v324 = vpack.c.bf16 %v303, %v302
  %v325 = vpack.c.bf16 %v305, %v304
  %v326 = vpack.c.bf16 %v307, %v306
  %v327 = vpack.c.bf16 %v309, %v308
  %v328 = vpack.c.bf16 %v311, %v310
  %v329 = vpack.c.bf16 %v313, %v312
  %v330 = vld [vmem:[%s5] sm:$0xf]
  %v331 = vld [vmem:[%s5 + $0x4] sm:$0xf]
  %v332 = vld [vmem:[%s6] sm:$0x1]
  %v334 = vperm.slane %v332, 0
  %v338 = vunpack.c.l.b16 %v330
  %v339 = vunpack.c.l.b16 %v331
  %v340 = vpack.c.b16 %v339, %v338
  %vm342 = vcmask 130048
  %v344 = vsel %vm342, %v314, 0
  %v347 = vsel %vm342, %v315, 0
  %v350 = vsel %vm342, %v316, 0
  %v353 = vsel %vm342, %v317, 0
  %v356 = vsel %vm342, %v318, 0
  %v359 = vsel %vm342, %v319, 0
  %v362 = vsel %vm342, %v320, 0
  %v365 = vsel %vm342, %v321, 0
  %v368 = vsel %vm342, %v322, 0
  %v371 = vsel %vm342, %v323, 0
  %v374 = vsel %vm342, %v324, 0
  %v377 = vsel %vm342, %v325, 0
  %v380 = vsel %vm342, %v326, 0
  %v383 = vsel %vm342, %v327, 0
  %v386 = vsel %vm342, %v328, 0
  %v389 = vsel %vm342, %v329, 0
  %391 = vmatpush.bf16.msra.mxu0 0
  %392 = vmatpush.bf16.msra.mxu0 0
  %393 = vmatpush.bf16.msra.mxu0 0
  %394 = vmatpush.bf16.msra.mxu0 0
  %395 = vmatpush.bf16.msra.mxu0 0
  %396 = vmatpush.bf16.msra.mxu0 0
  %397 = vmatpush.bf16.msra.mxu0 0
  %398 = vmatpush.bf16.msra.mxu0 %v340
  %399 = vmatmul.bf16.gmra.mxu0 %v344
  %v400 = vpop.f32.mrf.mxu0
  %v401 = vadd.f32 %v334, %v400
  %v402 = vpop.f32.mrf.mxu0
  %v403 = vadd.f32 %v334, %v402
  %404 = vmatmul.bf16.gmra.mxu0 %v347
  %v405 = vpop.f32.mrf.mxu0
  %v406 = vadd.f32 %v334, %v405
  %v407 = vpop.f32.mrf.mxu0
  %v408 = vadd.f32 %v334, %v407
  %409 = vmatmul.bf16.gmra.mxu0 %v350
  %v410 = vpop.f32.mrf.mxu0
  %v411 = vadd.f32 %v334, %v410
  %v412 = vpop.f32.mrf.mxu0
  %v413 = vadd.f32 %v334, %v412
  %414 = vmatmul.bf16.gmra.mxu0 %v353
  %v415 = vpop.f32.mrf.mxu0
  %v416 = vadd.f32 %v334, %v415
  %v417 = vpop.f32.mrf.mxu0
  %v418 = vadd.f32 %v334, %v417
  %419 = vmatmul.bf16.gmra.mxu0 %v356
  %v420 = vpop.f32.mrf.mxu0
  %v421 = vadd.f32 %v334, %v420
  %v422 = vpop.f32.mrf.mxu0
  %v423 = vadd.f32 %v334, %v422
  %424 = vmatmul.bf16.gmra.mxu0 %v359
  %v425 = vpop.f32.mrf.mxu0
  %v426 = vadd.f32 %v334, %v425
  %v427 = vpop.f32.mrf.mxu0
  %v428 = vadd.f32 %v334, %v427
  %429 = vmatmul.bf16.gmra.mxu0 %v362
  %v430 = vpop.f32.mrf.mxu0
  %v431 = vadd.f32 %v334, %v430
  %v432 = vpop.f32.mrf.mxu0
  %v433 = vadd.f32 %v334, %v432
  %434 = vmatmul.bf16.gmra.mxu0 %v365
  %v435 = vpop.f32.mrf.mxu0
  %v436 = vadd.f32 %v334, %v435
  %v437 = vpop.f32.mrf.mxu0
  %v438 = vadd.f32 %v334, %v437
  %439 = vmatmul.bf16.gmra.mxu0 %v368
  %v440 = vpop.f32.mrf.mxu0
  %v441 = vadd.f32 %v334, %v440
  %v442 = vpop.f32.mrf.mxu0
  %v443 = vadd.f32 %v334, %v442
  %444 = vmatmul.bf16.gmra.mxu0 %v371
  %v445 = vpop.f32.mrf.mxu0
  %v446 = vadd.f32 %v334, %v445
  %v447 = vpop.f32.mrf.mxu0
  %v448 = vadd.f32 %v334, %v447
  %449 = vmatmul.bf16.gmra.mxu0 %v374
  %v450 = vpop.f32.mrf.mxu0
  %v451 = vadd.f32 %v334, %v450
  %v452 = vpop.f32.mrf.mxu0
  %v453 = vadd.f32 %v334, %v452
  %454 = vmatmul.bf16.gmra.mxu0 %v377
  %v455 = vpop.f32.mrf.mxu0
  %v456 = vadd.f32 %v334, %v455
  %v457 = vpop.f32.mrf.mxu0
  %v458 = vadd.f32 %v334, %v457
  %459 = vmatmul.bf16.gmra.mxu0 %v380
  %v460 = vpop.f32.mrf.mxu0
  %v461 = vadd.f32 %v334, %v460
  %v462 = vpop.f32.mrf.mxu0
  %v463 = vadd.f32 %v334, %v462
  %464 = vmatmul.bf16.gmra.mxu0 %v383
  %v465 = vpop.f32.mrf.mxu0
  %v466 = vadd.f32 %v334, %v465
  %v467 = vpop.f32.mrf.mxu0
  %v468 = vadd.f32 %v334, %v467
  %469 = vmatmul.bf16.gmra.mxu0 %v386
  %v470 = vpop.f32.mrf.mxu0
  %v471 = vadd.f32 %v334, %v470
  %v472 = vpop.f32.mrf.mxu0
  %v473 = vadd.f32 %v334, %v472
  %474 = vmatmul.bf16.gmra.mxu0 %v389
  %v475 = vpop.f32.mrf.mxu0
  %v476 = vadd.f32 %v334, %v475
  %v477 = vpop.f32.mrf.mxu0
  %v478 = vadd.f32 %v334, %v477
  %479 = vdwg.mxu0
  %v480 = vmax.f32 %v401, 0.0
  %v481 = vmax.f32 %v403, 0.0
  %v482 = vmax.f32 %v406, 0.0
  %v483 = vmax.f32 %v408, 0.0
  %v484 = vmax.f32 %v411, 0.0
  %v485 = vmax.f32 %v413, 0.0
  %v486 = vmax.f32 %v416, 0.0
  %v487 = vmax.f32 %v418, 0.0
  %v488 = vmax.f32 %v421, 0.0
  %v489 = vmax.f32 %v423, 0.0
  %v490 = vmax.f32 %v426, 0.0
  %v491 = vmax.f32 %v428, 0.0
  %v492 = vmax.f32 %v431, 0.0
  %v493 = vmax.f32 %v433, 0.0
  %v494 = vmax.f32 %v436, 0.0
  %v495 = vmax.f32 %v438, 0.0
  %v496 = vmax.f32 %v441, 0.0
  %v497 = vmax.f32 %v443, 0.0
  %v498 = vmax.f32 %v446, 0.0
  %v499 = vmax.f32 %v448, 0.0
  %v500 = vmax.f32 %v451, 0.0
  %v501 = vmax.f32 %v453, 0.0
  %v502 = vmax.f32 %v456, 0.0
  %v503 = vmax.f32 %v458, 0.0
  %v504 = vmax.f32 %v461, 0.0
  %v505 = vmax.f32 %v463, 0.0
  %v506 = vmax.f32 %v466, 0.0
  %v507 = vmax.f32 %v468, 0.0
  %v508 = vmax.f32 %v471, 0.0
  %v509 = vmax.f32 %v473, 0.0
  %v510 = vmax.f32 %v476, 0.0
  %v511 = vmax.f32 %v478, 0.0
  %v512 = vpack.c.bf16 %v481, %v480
  %v513 = vpack.c.bf16 %v483, %v482
  %v514 = vpack.c.bf16 %v485, %v484
  %v515 = vpack.c.bf16 %v487, %v486
  %v516 = vpack.c.bf16 %v489, %v488
  %v517 = vpack.c.bf16 %v491, %v490
  %v518 = vpack.c.bf16 %v493, %v492
  %v519 = vpack.c.bf16 %v495, %v494
  %v520 = vpack.c.bf16 %v497, %v496
  %v521 = vpack.c.bf16 %v499, %v498
  %v522 = vpack.c.bf16 %v501, %v500
  %v523 = vpack.c.bf16 %v503, %v502
  %v524 = vpack.c.bf16 %v505, %v504
  %v525 = vpack.c.bf16 %v507, %v506
  %v526 = vpack.c.bf16 %v509, %v508
  %v527 = vpack.c.bf16 %v511, %v510
  %v528 = vld [vmem:[%s7] sm:$0xf]
  %v529 = vld [vmem:[%s7 + $0x4] sm:$0xf]
  %v530 = vld [vmem:[%s8] sm:$0x1]
  %v532 = vperm.slane %v530, 0
  %v536 = vunpack.c.l.b16 %v528
  %v537 = vunpack.c.l.b16 %v529
  %v538 = vpack.c.b16 %v537, %v536
  %v541 = vsel %vm342, %v512, 0
  %v544 = vsel %vm342, %v513, 0
  %v547 = vsel %vm342, %v514, 0
  %v550 = vsel %vm342, %v515, 0
  %v553 = vsel %vm342, %v516, 0
  %v556 = vsel %vm342, %v517, 0
  %v559 = vsel %vm342, %v518, 0
  %v562 = vsel %vm342, %v519, 0
  %v565 = vsel %vm342, %v520, 0
  %v568 = vsel %vm342, %v521, 0
  %v571 = vsel %vm342, %v522, 0
  %v574 = vsel %vm342, %v523, 0
  %v577 = vsel %vm342, %v524, 0
  %v580 = vsel %vm342, %v525, 0
  %v583 = vsel %vm342, %v526, 0
  %v586 = vsel %vm342, %v527, 0
  %588 = vmatpush.bf16.msra.mxu0 0
  %589 = vmatpush.bf16.msra.mxu0 0
  %590 = vmatpush.bf16.msra.mxu0 0
  %591 = vmatpush.bf16.msra.mxu0 0
  %592 = vmatpush.bf16.msra.mxu0 0
  %593 = vmatpush.bf16.msra.mxu0 0
  %594 = vmatpush.bf16.msra.mxu0 0
  %595 = vmatpush.bf16.msra.mxu0 %v538
  %596 = vmatmul.bf16.gmra.mxu0 %v541
  %v597 = vpop.f32.mrf.mxu0
  %v598 = vadd.f32 %v532, %v597
  %v599 = vpop.f32.mrf.mxu0
  %v600 = vadd.f32 %v532, %v599
  %601 = vmatmul.bf16.gmra.mxu0 %v544
  %v602 = vpop.f32.mrf.mxu0
  %v603 = vadd.f32 %v532, %v602
  %v604 = vpop.f32.mrf.mxu0
  %v605 = vadd.f32 %v532, %v604
  %606 = vmatmul.bf16.gmra.mxu0 %v547
  %v607 = vpop.f32.mrf.mxu0
  %v608 = vadd.f32 %v532, %v607
  %v609 = vpop.f32.mrf.mxu0
  %v610 = vadd.f32 %v532, %v609
  %611 = vmatmul.bf16.gmra.mxu0 %v550
  %v612 = vpop.f32.mrf.mxu0
  %v613 = vadd.f32 %v532, %v612
  %v614 = vpop.f32.mrf.mxu0
  %v615 = vadd.f32 %v532, %v614
  %616 = vmatmul.bf16.gmra.mxu0 %v553
  %v617 = vpop.f32.mrf.mxu0
  %v618 = vadd.f32 %v532, %v617
  %v619 = vpop.f32.mrf.mxu0
  %v620 = vadd.f32 %v532, %v619
  %621 = vmatmul.bf16.gmra.mxu0 %v556
  %v622 = vpop.f32.mrf.mxu0
  %v623 = vadd.f32 %v532, %v622
  %v624 = vpop.f32.mrf.mxu0
  %v625 = vadd.f32 %v532, %v624
  %626 = vmatmul.bf16.gmra.mxu0 %v559
  %v627 = vpop.f32.mrf.mxu0
  %v628 = vadd.f32 %v532, %v627
  %v629 = vpop.f32.mrf.mxu0
  %v630 = vadd.f32 %v532, %v629
  %631 = vmatmul.bf16.gmra.mxu0 %v562
  %v632 = vpop.f32.mrf.mxu0
  %v633 = vadd.f32 %v532, %v632
  %v634 = vpop.f32.mrf.mxu0
  %v635 = vadd.f32 %v532, %v634
  %636 = vmatmul.bf16.gmra.mxu0 %v565
  %v637 = vpop.f32.mrf.mxu0
  %v638 = vadd.f32 %v532, %v637
  %v639 = vpop.f32.mrf.mxu0
  %v640 = vadd.f32 %v532, %v639
  %641 = vmatmul.bf16.gmra.mxu0 %v568
  %v642 = vpop.f32.mrf.mxu0
  %v643 = vadd.f32 %v532, %v642
  %v644 = vpop.f32.mrf.mxu0
  %v645 = vadd.f32 %v532, %v644
  %646 = vmatmul.bf16.gmra.mxu0 %v571
  %v647 = vpop.f32.mrf.mxu0
  %v648 = vadd.f32 %v532, %v647
  %v649 = vpop.f32.mrf.mxu0
  %v650 = vadd.f32 %v532, %v649
  %651 = vmatmul.bf16.gmra.mxu0 %v574
  %v652 = vpop.f32.mrf.mxu0
  %v653 = vadd.f32 %v532, %v652
  %v654 = vpop.f32.mrf.mxu0
  %v655 = vadd.f32 %v532, %v654
  %656 = vmatmul.bf16.gmra.mxu0 %v577
  %v657 = vpop.f32.mrf.mxu0
  %v658 = vadd.f32 %v532, %v657
  %v659 = vpop.f32.mrf.mxu0
  %v660 = vadd.f32 %v532, %v659
  %661 = vmatmul.bf16.gmra.mxu0 %v580
  %v662 = vpop.f32.mrf.mxu0
  %v663 = vadd.f32 %v532, %v662
  %v664 = vpop.f32.mrf.mxu0
  %v665 = vadd.f32 %v532, %v664
  %666 = vmatmul.bf16.gmra.mxu0 %v583
  %v667 = vpop.f32.mrf.mxu0
  %v668 = vadd.f32 %v532, %v667
  %v669 = vpop.f32.mrf.mxu0
  %v670 = vadd.f32 %v532, %v669
  %671 = vmatmul.bf16.gmra.mxu0 %v586
  %v672 = vpop.f32.mrf.mxu0
  %v673 = vadd.f32 %v532, %v672
  %v674 = vpop.f32.mrf.mxu0
  %v675 = vadd.f32 %v532, %v674
  %676 = vdwg.mxu0
  %v677 = vmax.f32 %v598, 0.0
  %v678 = vmax.f32 %v600, 0.0
  %v679 = vmax.f32 %v603, 0.0
  %v680 = vmax.f32 %v605, 0.0
  %v681 = vmax.f32 %v608, 0.0
  %v682 = vmax.f32 %v610, 0.0
  %v683 = vmax.f32 %v613, 0.0
  %v684 = vmax.f32 %v615, 0.0
  %v685 = vmax.f32 %v618, 0.0
  %v686 = vmax.f32 %v620, 0.0
  %v687 = vmax.f32 %v623, 0.0
  %v688 = vmax.f32 %v625, 0.0
  %v689 = vmax.f32 %v628, 0.0
  %v690 = vmax.f32 %v630, 0.0
  %v691 = vmax.f32 %v633, 0.0
  %v692 = vmax.f32 %v635, 0.0
  %v693 = vmax.f32 %v638, 0.0
  %v694 = vmax.f32 %v640, 0.0
  %v695 = vmax.f32 %v643, 0.0
  %v696 = vmax.f32 %v645, 0.0
  %v697 = vmax.f32 %v648, 0.0
  %v698 = vmax.f32 %v650, 0.0
  %v699 = vmax.f32 %v653, 0.0
  %v700 = vmax.f32 %v655, 0.0
  %v701 = vmax.f32 %v658, 0.0
  %v702 = vmax.f32 %v660, 0.0
  %v703 = vmax.f32 %v663, 0.0
  %v704 = vmax.f32 %v665, 0.0
  %v705 = vmax.f32 %v668, 0.0
  %v706 = vmax.f32 %v670, 0.0
  %v707 = vmax.f32 %v673, 0.0
  %v708 = vmax.f32 %v675, 0.0
  %vm709 = vcmask 261120
  %v710 = vsel %vm709, %v677, -inf
  %v711 = vsel %vm709, %v681, -inf
  %v712 = vmax.f32 %v710, %v711
  %v713 = vsel %vm709, %v685, -inf
  %v714 = vmax.f32 %v712, %v713
  %v715 = vsel %vm709, %v689, -inf
  %v716 = vmax.f32 %v714, %v715
  %v717 = vsel %vm709, %v693, -inf
  %v718 = vmax.f32 %v716, %v717
  %v719 = vsel %vm709, %v697, -inf
  %v720 = vmax.f32 %v718, %v719
  %v721 = vsel %vm709, %v701, -inf
  %v722 = vmax.f32 %v720, %v721
  %v723 = vsel %vm709, %v705, -inf
  %v724 = vmax.f32 %v722, %v723
  %v725 = vsel %vm709, %v678, -inf
  %v726 = vsel %vm709, %v682, -inf
  %v727 = vmax.f32 %v725, %v726
  %v728 = vsel %vm709, %v686, -inf
  %v729 = vmax.f32 %v727, %v728
  %v730 = vsel %vm709, %v690, -inf
  %v731 = vmax.f32 %v729, %v730
  %v732 = vsel %vm709, %v694, -inf
  %v733 = vmax.f32 %v731, %v732
  %v734 = vsel %vm709, %v698, -inf
  %v735 = vmax.f32 %v733, %v734
  %v736 = vsel %vm709, %v702, -inf
  %v737 = vmax.f32 %v735, %v736
  %v738 = vsel %vm709, %v706, -inf
  %v739 = vmax.f32 %v737, %v738
  %v740 = vsel %vm709, %v679, -inf
  %v741 = vsel %vm709, %v683, -inf
  %v742 = vmax.f32 %v740, %v741
  %v743 = vsel %vm709, %v687, -inf
  %v744 = vmax.f32 %v742, %v743
  %v745 = vsel %vm709, %v691, -inf
  %v746 = vmax.f32 %v744, %v745
  %v747 = vsel %vm709, %v695, -inf
  %v748 = vmax.f32 %v746, %v747
  %v749 = vsel %vm709, %v699, -inf
  %v750 = vmax.f32 %v748, %v749
  %v751 = vsel %vm709, %v703, -inf
  %v752 = vmax.f32 %v750, %v751
  %v753 = vsel %vm709, %v707, -inf
  %v754 = vmax.f32 %v752, %v753
  %v755 = vsel %vm709, %v680, -inf
  %v756 = vsel %vm709, %v684, -inf
  %v757 = vmax.f32 %v755, %v756
  %v758 = vsel %vm709, %v688, -inf
  %v759 = vmax.f32 %v757, %v758
  %v760 = vsel %vm709, %v692, -inf
  %v761 = vmax.f32 %v759, %v760
  %v762 = vsel %vm709, %v696, -inf
  %v763 = vmax.f32 %v761, %v762
  %v764 = vsel %vm709, %v700, -inf
  %v765 = vmax.f32 %v763, %v764
  %v766 = vsel %vm709, %v704, -inf
  %v767 = vmax.f32 %v765, %v766
  %v768 = vsel %vm709, %v708, -inf
  %v769 = vmax.f32 %v767, %v768
  %v770 = vld [vmem:[%s9] sm:$0xf]
  %v771 = vld [vmem:[%s9 + $0x4] sm:$0xf]
  %v772 = vld [vmem:[%s9 + $0x8] sm:$0xf]
  %v773 = vld [vmem:[%s9 + $0xc] sm:$0xf]
  %v774 = vld [vmem:[%s10] sm:$0xff]
  %v775 = vld [vmem:[%s10 + $0x8] sm:$0xff]
  %v776 = vld [vmem:[%s10 + $0x10] sm:$0xff]
  %v777 = vld [vmem:[%s10 + $0x18] sm:$0xff]
  %779 = vset.pattern.permute.xlu0 0
  %780 = vperm.xlu0 %779, %v774
  %v781 = vpop.permute.xlu0 %780
  %784 = vset.pattern.permute.xlu0 0
  %785 = vperm.xlu0 %784, %v775
  %v786 = vpop.permute.xlu0 %785
  %789 = vset.pattern.permute.xlu0 0
  %790 = vperm.xlu0 %789, %v776
  %v791 = vpop.permute.xlu0 %790
  %794 = vset.pattern.permute.xlu0 0
  %795 = vperm.xlu0 %794, %v777
  %v796 = vpop.permute.xlu0 %795
  %v802 = vunpack.c.l.b16 %v770
  %v803 = vunpack.c.l.b16 %v771
  %v804 = vunpack.c.l.b16 %v772
  %v805 = vunpack.c.l.b16 %v773
  %v806 = vpack.c.b16 %v803, %v802
  %v807 = vpack.c.b16 %v805, %v804
  %vm808 = vcmask 64512
  %v810 = vsel %vm808, %v806, 0
  %v813 = vsel %vm808, %v807, 0
  %vm815 = vcmask 1043456
  %v817 = vsel %vm815, %v64, 0
  %819 = vmatpush.bf16.msra.mxu0 0
  %820 = vmatpush.bf16.msra.mxu0 0
  %821 = vmatpush.bf16.msra.mxu0 0
  %822 = vmatpush.bf16.msra.mxu0 0
  %823 = vmatpush.bf16.msra.mxu0 0
  %824 = vmatpush.bf16.msra.mxu0 0
  %825 = vmatpush.bf16.msra.mxu0 0
  %826 = vmatpush.bf16.msra.mxu0 %v817
  %827 = vmatmul.bf16.gmra.mxu0 %v810
  %v828 = vpop.f32.mrf.mxu0
  %v829 = vadd.f32 %v781, %v828
  %v830 = vpop.f32.mrf.mxu0
  %v831 = vadd.f32 %v786, %v830
  %832 = vmatmul.bf16.gmra.mxu0 %v813
  %v833 = vpop.f32.mrf.mxu0
  %v834 = vadd.f32 %v791, %v833
  %v835 = vpop.f32.mrf.mxu0
  %v836 = vadd.f32 %v796, %v835
  %837 = vdwg.mxu0
  %v838 = vxor.u32 %v829, 2147483648
  %v839 = vxor.u32 %v831, 2147483648
  %v840 = vxor.u32 %v834, 2147483648
  %v841 = vxor.u32 %v836, 2147483648
  %v842 = vmul.f32 %v838, 1.442695
  %v843 = vpow.pop %v842
  %v844 = vmul.f32 %v839, 1.442695
  %v845 = vpow.pop %v844
  %v846 = vmul.f32 %v840, 1.442695
  %v847 = vpow.pop %v846
  %v848 = vmul.f32 %v841, 1.442695
  %v849 = vpow.pop %v848
  %v850 = vadd.f32 %v843, 1.0
  %v851 = vadd.f32 %v845, 1.0
  %v852 = vadd.f32 %v847, 1.0
  %v853 = vadd.f32 %v849, 1.0
  %v854 = vrcp.pop %v850
  %v855 = vmul.f32 %v850, %v854
  %v856 = vsub.f32 1.0, %v855
  %v857 = vmul.f32 %v854, %v856
  %v858 = vadd.f32 %v854, %v857
  %vm859 = vweird.f32 %v850
  %vm860 = vweird.f32 %v854
  %vm861 = vmor %vm859, %vm860
  %v862 = vsel %vm861, %v854, %v858
  %v863 = vand.u32 2147483647, %v850
  %vm864 = vcmp.eq.f32.partialorder %v863, 8.507059e+37
  %v865 = vand.u32 %v850, 2147483648
  %v866 = vor.u32 1.1754944e-38, %v865
  %v867 = vsel %vm864, %v866, %v862
  %v868 = vmul.f32 1.0, %v867
  %v869 = vrcp.pop %v851
  %v870 = vmul.f32 %v851, %v869
  %v871 = vsub.f32 1.0, %v870
  %v872 = vmul.f32 %v869, %v871
  %v873 = vadd.f32 %v869, %v872
  %vm874 = vweird.f32 %v851
  %vm875 = vweird.f32 %v869
  %vm876 = vmor %vm874, %vm875
  %v877 = vsel %vm876, %v869, %v873
  %v878 = vand.u32 2147483647, %v851
  %vm879 = vcmp.eq.f32.partialorder %v878, 8.507059e+37
  %v880 = vand.u32 %v851, 2147483648
  %v881 = vor.u32 1.1754944e-38, %v880
  %v882 = vsel %vm879, %v881, %v877
  %v883 = vmul.f32 1.0, %v882
  %v884 = vrcp.pop %v852
  %v885 = vmul.f32 %v852, %v884
  %v886 = vsub.f32 1.0, %v885
  %v887 = vmul.f32 %v884, %v886
  %v888 = vadd.f32 %v884, %v887
  %vm889 = vweird.f32 %v852
  %vm890 = vweird.f32 %v884
  %vm891 = vmor %vm889, %vm890
  %v892 = vsel %vm891, %v884, %v888
  %v893 = vand.u32 2147483647, %v852
  %vm894 = vcmp.eq.f32.partialorder %v893, 8.507059e+37
  %v895 = vand.u32 %v852, 2147483648
  %v896 = vor.u32 1.1754944e-38, %v895
  %v897 = vsel %vm894, %v896, %v892
  %v898 = vmul.f32 1.0, %v897
  %v899 = vrcp.pop %v853
  %v900 = vmul.f32 %v853, %v899
  %v901 = vsub.f32 1.0, %v900
  %v902 = vmul.f32 %v899, %v901
  %v903 = vadd.f32 %v899, %v902
  %vm904 = vweird.f32 %v853
  %vm905 = vweird.f32 %v899
  %vm906 = vmor %vm904, %vm905
  %v907 = vsel %vm906, %v899, %v903
  %v908 = vand.u32 2147483647, %v853
  %vm909 = vcmp.eq.f32.partialorder %v908, 8.507059e+37
  %v910 = vand.u32 %v853, 2147483648
  %v911 = vor.u32 1.1754944e-38, %v910
  %v912 = vsel %vm909, %v911, %v907
  %v913 = vmul.f32 1.0, %v912
  %914 = vxpose.xlu0.b32.start [1/16] %v724, 128
  %915 = vxpose.xlu0.b32.cont [2/16] %v739, 128
  %916 = vxpose.xlu0.b32.cont [3/16] %v754, 128
  %917 = vxpose.xlu0.b32.cont [4/16] %v769, 128
  %918 = vxpose.xlu0.b32.cont [5/16] 0.0, 128
  %919 = vxpose.xlu0.b32.cont [6/16] 0.0, 128
  %920 = vxpose.xlu0.b32.cont [7/16] 0.0, 128
  %921 = vxpose.xlu0.b32.cont [8/16] 0.0, 128
  %922 = vxpose.xlu0.b32.cont [9/16] 0.0, 128
  %923 = vxpose.xlu0.b32.cont [10/16] 0.0, 128
  %924 = vxpose.xlu0.b32.cont [11/16] 0.0, 128
  %925 = vxpose.xlu0.b32.cont [12/16] 0.0, 128
  %926 = vxpose.xlu0.b32.cont [13/16] 0.0, 128
  %927 = vxpose.xlu0.b32.cont [14/16] 0.0, 128
  %928 = vxpose.xlu0.b32.cont [15/16] 0.0, 128
  %929 = vxpose.xlu0.b32.end [16/16] 0.0, 128
  %v930 = vpop.trf.xlu0
  %v931 = vpop.trf.xlu0
  %v932 = vpop.trf.xlu0
  %v933 = vpop.trf.xlu0
  %v934 = vpop.trf.xlu0
  %v935 = vpop.trf.xlu0
  %v936 = vpop.trf.xlu0
  %v937 = vpop.trf.xlu0
  %v938 = vpop.trf.xlu0
  %v939 = vpop.trf.xlu0
  %v940 = vpop.trf.xlu0
  %v941 = vpop.trf.xlu0
  %v942 = vpop.trf.xlu0
  %v943 = vpop.trf.xlu0
  %v944 = vpop.trf.xlu0
  %v945 = vpop.trf.xlu0
  %v946 = vmul.f32 %v868, %v930
  %v947 = vmul.f32 %v883, %v931
  %v948 = vmul.f32 %v898, %v932
  %v949 = vmul.f32 %v913, %v933
  %950 = vst.msk [vmem:[%s19] sm:$0xff] %vm709, %v946
  %951 = vst.msk [vmem:[%s19 + $0x8] sm:$0xff] %vm709, %v947
  %952 = vst.msk [vmem:[%s19 + $0x10] sm:$0xff] %vm709, %v948
  %953 = vst.msk [vmem:[%s19 + $0x18] sm:$0xff] %vm709, %v949
  %v954 = vld [vmem:[%s1] sm:$0xff]
  %v955 = vld [vmem:[%s1 + $0x8] sm:$0xff]
  %v956 = vld [vmem:[%s1 + $0x10] sm:$0xff]
  %v957 = vld [vmem:[%s1 + $0x18] sm:$0xff]
  %v958 = vld [vmem:[%s1 + $0x20] sm:$0xff]
  %v959 = vld [vmem:[%s1 + $0x28] sm:$0xff]
  %v960 = vld [vmem:[%s1 + $0x30] sm:$0xff]
  %v961 = vld [vmem:[%s1 + $0x38] sm:$0xff]
  %v962 = vld [vmem:[%s1 + $0x40] sm:$0xff]
  %v963 = vld [vmem:[%s1 + $0x48] sm:$0xff]
  %v964 = vld [vmem:[%s1 + $0x50] sm:$0xff]
  %v965 = vld [vmem:[%s1 + $0x58] sm:$0xff]
  %v966 = vld [vmem:[%s1 + $0x60] sm:$0xff]
  %v967 = vld [vmem:[%s1 + $0x68] sm:$0xff]
  %v968 = vld [vmem:[%s1 + $0x70] sm:$0xff]
  %v969 = vld [vmem:[%s1 + $0x78] sm:$0xff]
  %v970 = vld [vmem:[%s1 + $0x80] sm:$0xff]
  %v971 = vld [vmem:[%s1 + $0x88] sm:$0xff]
  %v972 = vld [vmem:[%s1 + $0x90] sm:$0xff]
  %v973 = vld [vmem:[%s1 + $0x98] sm:$0xff]
  %v974 = vld [vmem:[%s1 + $0xa0] sm:$0xff]
  %v975 = vld [vmem:[%s1 + $0xa8] sm:$0xff]
  %v976 = vld [vmem:[%s1 + $0xb0] sm:$0xff]
  %v977 = vld [vmem:[%s1 + $0xb8] sm:$0xff]
  %v978 = vld [vmem:[%s1 + $0xc0] sm:$0xff]
  %v979 = vld [vmem:[%s1 + $0xc8] sm:$0xff]
  %v980 = vld [vmem:[%s1 + $0xd0] sm:$0xff]
  %v981 = vld [vmem:[%s1 + $0xd8] sm:$0xff]
  %v982 = vld [vmem:[%s1 + $0xe0] sm:$0xff]
  %v983 = vld [vmem:[%s1 + $0xe8] sm:$0xff]
  %v984 = vld [vmem:[%s1 + $0xf0] sm:$0xff]
  %v985 = vld [vmem:[%s1 + $0xf8] sm:$0xff]
  %v986 = vld [vmem:[%s1 + $0x100] sm:$0xff]
  %v987 = vld [vmem:[%s1 + $0x108] sm:$0xff]
  %v988 = vld [vmem:[%s1 + $0x110] sm:$0xff]
  %v989 = vld [vmem:[%s1 + $0x118] sm:$0xff]
  %v990 = vld [vmem:[%s1 + $0x120] sm:$0xff]
  %v991 = vld [vmem:[%s1 + $0x128] sm:$0xff]
  %v992 = vld [vmem:[%s1 + $0x130] sm:$0xff]
  %v993 = vld [vmem:[%s1 + $0x138] sm:$0xff]
  %v994 = vld [vmem:[%s1 + $0x140] sm:$0xff]
  %v995 = vld [vmem:[%s1 + $0x148] sm:$0xff]
  %v996 = vld [vmem:[%s1 + $0x150] sm:$0xff]
  %v997 = vld [vmem:[%s1 + $0x158] sm:$0xff]
  %v998 = vld [vmem:[%s1 + $0x160] sm:$0xff]
  %v999 = vld [vmem:[%s1 + $0x168] sm:$0xff]
  %v1000 = vld [vmem:[%s1 + $0x170] sm:$0xff]
  %v1001 = vld [vmem:[%s1 + $0x178] sm:$0xff]
  %v1002 = vld [vmem:[%s1 + $0x180] sm:$0xff]
  %v1003 = vld [vmem:[%s1 + $0x188] sm:$0xff]
  %v1004 = vld [vmem:[%s1 + $0x190] sm:$0xff]
  %v1005 = vld [vmem:[%s1 + $0x198] sm:$0xff]
  %v1006 = vld [vmem:[%s1 + $0x1a0] sm:$0xff]
  %v1007 = vld [vmem:[%s1 + $0x1a8] sm:$0xff]
  %v1008 = vld [vmem:[%s1 + $0x1b0] sm:$0xff]
  %v1009 = vld [vmem:[%s1 + $0x1b8] sm:$0xff]
  %v1010 = vld [vmem:[%s1 + $0x1c0] sm:$0xff]
  %v1011 = vld [vmem:[%s1 + $0x1c8] sm:$0xff]
  %v1012 = vld [vmem:[%s1 + $0x1d0] sm:$0xff]
  %v1013 = vld [vmem:[%s1 + $0x1d8] sm:$0xff]
  %v1014 = vld [vmem:[%s1 + $0x1e0] sm:$0xff]
  %v1015 = vld [vmem:[%s1 + $0x1e8] sm:$0xff]
  %v1016 = vld [vmem:[%s1 + $0x1f0] sm:$0xff]
  %v1017 = vld [vmem:[%s1 + $0x1f8] sm:$0xff]
  %v1018 = vpack.c.bf16 %v955, %v954
  %v1019 = vpack.c.bf16 %v957, %v956
  %v1020 = vpack.c.bf16 %v959, %v958
  %v1021 = vpack.c.bf16 %v961, %v960
  %v1022 = vpack.c.bf16 %v963, %v962
  %v1023 = vpack.c.bf16 %v965, %v964
  %v1024 = vpack.c.bf16 %v967, %v966
  %v1025 = vpack.c.bf16 %v969, %v968
  %v1026 = vpack.c.bf16 %v971, %v970
  %v1027 = vpack.c.bf16 %v973, %v972
  %v1028 = vpack.c.bf16 %v975, %v974
  %v1029 = vpack.c.bf16 %v977, %v976
  %v1030 = vpack.c.bf16 %v979, %v978
  %v1031 = vpack.c.bf16 %v981, %v980
  %v1032 = vpack.c.bf16 %v983, %v982
  %v1033 = vpack.c.bf16 %v985, %v984
  %v1034 = vpack.c.bf16 %v987, %v986
  %v1035 = vpack.c.bf16 %v989, %v988
  %v1036 = vpack.c.bf16 %v991, %v990
  %v1037 = vpack.c.bf16 %v993, %v992
  %v1038 = vpack.c.bf16 %v995, %v994
  %v1039 = vpack.c.bf16 %v997, %v996
  %v1040 = vpack.c.bf16 %v999, %v998
  %v1041 = vpack.c.bf16 %v1001, %v1000
  %v1042 = vpack.c.bf16 %v1003, %v1002
  %v1043 = vpack.c.bf16 %v1005, %v1004
  %v1044 = vpack.c.bf16 %v1007, %v1006
  %v1045 = vpack.c.bf16 %v1009, %v1008
  %v1046 = vpack.c.bf16 %v1011, %v1010
  %v1047 = vpack.c.bf16 %v1013, %v1012
  %v1048 = vpack.c.bf16 %v1015, %v1014
  %v1049 = vpack.c.bf16 %v1017, %v1016
  %v1050 = vld [vmem:[%s11] sm:$0xf]
  %v1051 = vld [vmem:[%s11 + $0x4] sm:$0xf]
  %v1052 = vld [vmem:[%s11 + $0x8] sm:$0xf]
  %v1053 = vld [vmem:[%s11 + $0xc] sm:$0xf]
  %v1054 = vld [vmem:[%s11 + $0x10] sm:$0x3]
  %v1055 = vld [vmem:[%s12] sm:$0x1]
  %v1057 = vperm.slane %v1055, 0
  %v1064 = vunpack.c.l.b16 %v1050
  %v1065 = vunpack.c.l.b16 %v1051
  %v1066 = vunpack.c.l.b16 %v1052
  %v1067 = vunpack.c.l.b16 %v1053
  %v1068 = vunpack.c.l.b16 %v1054
  %v1069 = vpack.c.b16 %v1065, %v1064
  %v1070 = vpack.c.b16 %v1067, %v1066
  %v1071 = vpack.c.b16 %v1068, %v1068
  %v1075 = vsel %vm137, %v1018, 0
  %v1078 = vsel %vm137, %v1019, 0
  %v1081 = vsel %vm137, %v1020, 0
  %v1084 = vsel %vm137, %v1021, 0
  %v1087 = vsel %vm137, %v1022, 0
  %v1090 = vsel %vm137, %v1023, 0
  %v1093 = vsel %vm137, %v1024, 0
  %v1096 = vsel %vm137, %v1025, 0
  %v1099 = vsel %vm137, %v1026, 0
  %v1102 = vsel %vm137, %v1027, 0
  %v1105 = vsel %vm137, %v1028, 0
  %v1108 = vsel %vm137, %v1029, 0
  %v1111 = vsel %vm137, %v1030, 0
  %v1114 = vsel %vm137, %v1031, 0
  %v1117 = vsel %vm137, %v1032, 0
  %v1120 = vsel %vm137, %v1033, 0
  %v1123 = vsel %vm137, %v1034, 0
  %v1126 = vsel %vm137, %v1035, 0
  %v1129 = vsel %vm137, %v1036, 0
  %v1132 = vsel %vm137, %v1037, 0
  %v1135 = vsel %vm137, %v1038, 0
  %v1138 = vsel %vm137, %v1039, 0
  %v1141 = vsel %vm137, %v1040, 0
  %v1144 = vsel %vm137, %v1041, 0
  %v1147 = vsel %vm137, %v1042, 0
  %v1150 = vsel %vm137, %v1043, 0
  %v1153 = vsel %vm137, %v1044, 0
  %v1156 = vsel %vm137, %v1045, 0
  %v1159 = vsel %vm137, %v1046, 0
  %v1162 = vsel %vm137, %v1047, 0
  %v1165 = vsel %vm137, %v1048, 0
  %v1168 = vsel %vm137, %v1049, 0
  %v1171 = vand.u32 %v1071, %v189
  %1173 = vmatpush.bf16.msra.mxu0 0
  %1174 = vmatpush.bf16.msra.mxu0 0
  %1175 = vmatpush.bf16.msra.mxu0 0
  %1176 = vmatpush.bf16.msra.mxu0 0
  %1177 = vmatpush.bf16.msra.mxu0 0
  %1178 = vmatpush.bf16.msra.mxu0 %v1171
  %1179 = vmatpush.bf16.msra.mxu0 %v1070
  %1180 = vmatpush.bf16.msra.mxu0 %v1069
  %1181 = vmatmul.bf16.gmra.mxu0 %v1075
  %v1182 = vpop.f32.mrf.mxu0
  %v1183 = vadd.f32 %v1057, %v1182
  %v1184 = vpop.f32.mrf.mxu0
  %v1185 = vadd.f32 %v1057, %v1184
  %1186 = vmatmul.bf16.gmra.mxu0 %v1078
  %v1187 = vpop.f32.mrf.mxu0
  %v1188 = vadd.f32 %v1057, %v1187
  %v1189 = vpop.f32.mrf.mxu0
  %v1190 = vadd.f32 %v1057, %v1189
  %1191 = vmatmul.bf16.gmra.mxu0 %v1081
  %v1192 = vpop.f32.mrf.mxu0
  %v1193 = vadd.f32 %v1057, %v1192
  %v1194 = vpop.f32.mrf.mxu0
  %v1195 = vadd.f32 %v1057, %v1194
  %1196 = vmatmul.bf16.gmra.mxu0 %v1084
  %v1197 = vpop.f32.mrf.mxu0
  %v1198 = vadd.f32 %v1057, %v1197
  %v1199 = vpop.f32.mrf.mxu0
  %v1200 = vadd.f32 %v1057, %v1199
  %1201 = vmatmul.bf16.gmra.mxu0 %v1087
  %v1202 = vpop.f32.mrf.mxu0
  %v1203 = vadd.f32 %v1057, %v1202
  %v1204 = vpop.f32.mrf.mxu0
  %v1205 = vadd.f32 %v1057, %v1204
  %1206 = vmatmul.bf16.gmra.mxu0 %v1090
  %v1207 = vpop.f32.mrf.mxu0
  %v1208 = vadd.f32 %v1057, %v1207
  %v1209 = vpop.f32.mrf.mxu0
  %v1210 = vadd.f32 %v1057, %v1209
  %1211 = vmatmul.bf16.gmra.mxu0 %v1093
  %v1212 = vpop.f32.mrf.mxu0
  %v1213 = vadd.f32 %v1057, %v1212
  %v1214 = vpop.f32.mrf.mxu0
  %v1215 = vadd.f32 %v1057, %v1214
  %1216 = vmatmul.bf16.gmra.mxu0 %v1096
  %v1217 = vpop.f32.mrf.mxu0
  %v1218 = vadd.f32 %v1057, %v1217
  %v1219 = vpop.f32.mrf.mxu0
  %v1220 = vadd.f32 %v1057, %v1219
  %1221 = vmatmul.bf16.gmra.mxu0 %v1099
  %v1222 = vpop.f32.mrf.mxu0
  %v1223 = vadd.f32 %v1057, %v1222
  %v1224 = vpop.f32.mrf.mxu0
  %v1225 = vadd.f32 %v1057, %v1224
  %1226 = vmatmul.bf16.gmra.mxu0 %v1102
  %v1227 = vpop.f32.mrf.mxu0
  %v1228 = vadd.f32 %v1057, %v1227
  %v1229 = vpop.f32.mrf.mxu0
  %v1230 = vadd.f32 %v1057, %v1229
  %1231 = vmatmul.bf16.gmra.mxu0 %v1105
  %v1232 = vpop.f32.mrf.mxu0
  %v1233 = vadd.f32 %v1057, %v1232
  %v1234 = vpop.f32.mrf.mxu0
  %v1235 = vadd.f32 %v1057, %v1234
  %1236 = vmatmul.bf16.gmra.mxu0 %v1108
  %v1237 = vpop.f32.mrf.mxu0
  %v1238 = vadd.f32 %v1057, %v1237
  %v1239 = vpop.f32.mrf.mxu0
  %v1240 = vadd.f32 %v1057, %v1239
  %1241 = vmatmul.bf16.gmra.mxu0 %v1111
  %v1242 = vpop.f32.mrf.mxu0
  %v1243 = vadd.f32 %v1057, %v1242
  %v1244 = vpop.f32.mrf.mxu0
  %v1245 = vadd.f32 %v1057, %v1244
  %1246 = vmatmul.bf16.gmra.mxu0 %v1114
  %v1247 = vpop.f32.mrf.mxu0
  %v1248 = vadd.f32 %v1057, %v1247
  %v1249 = vpop.f32.mrf.mxu0
  %v1250 = vadd.f32 %v1057, %v1249
  %1251 = vmatmul.bf16.gmra.mxu0 %v1117
  %v1252 = vpop.f32.mrf.mxu0
  %v1253 = vadd.f32 %v1057, %v1252
  %v1254 = vpop.f32.mrf.mxu0
  %v1255 = vadd.f32 %v1057, %v1254
  %1256 = vmatmul.bf16.gmra.mxu0 %v1120
  %v1257 = vpop.f32.mrf.mxu0
  %v1258 = vadd.f32 %v1057, %v1257
  %v1259 = vpop.f32.mrf.mxu0
  %v1260 = vadd.f32 %v1057, %v1259
  %1261 = vmatmul.bf16.gmra.mxu0 %v1123
  %v1262 = vpop.f32.mrf.mxu0
  %v1263 = vadd.f32 %v1057, %v1262
  %v1264 = vpop.f32.mrf.mxu0
  %v1265 = vadd.f32 %v1057, %v1264
  %1266 = vmatmul.bf16.gmra.mxu0 %v1126
  %v1267 = vpop.f32.mrf.mxu0
  %v1268 = vadd.f32 %v1057, %v1267
  %v1269 = vpop.f32.mrf.mxu0
  %v1270 = vadd.f32 %v1057, %v1269
  %1271 = vmatmul.bf16.gmra.mxu0 %v1129
  %v1272 = vpop.f32.mrf.mxu0
  %v1273 = vadd.f32 %v1057, %v1272
  %v1274 = vpop.f32.mrf.mxu0
  %v1275 = vadd.f32 %v1057, %v1274
  %1276 = vmatmul.bf16.gmra.mxu0 %v1132
  %v1277 = vpop.f32.mrf.mxu0
  %v1278 = vadd.f32 %v1057, %v1277
  %v1279 = vpop.f32.mrf.mxu0
  %v1280 = vadd.f32 %v1057, %v1279
  %1281 = vmatmul.bf16.gmra.mxu0 %v1135
  %v1282 = vpop.f32.mrf.mxu0
  %v1283 = vadd.f32 %v1057, %v1282
  %v1284 = vpop.f32.mrf.mxu0
  %v1285 = vadd.f32 %v1057, %v1284
  %1286 = vmatmul.bf16.gmra.mxu0 %v1138
  %v1287 = vpop.f32.mrf.mxu0
  %v1288 = vadd.f32 %v1057, %v1287
  %v1289 = vpop.f32.mrf.mxu0
  %v1290 = vadd.f32 %v1057, %v1289
  %1291 = vmatmul.bf16.gmra.mxu0 %v1141
  %v1292 = vpop.f32.mrf.mxu0
  %v1293 = vadd.f32 %v1057, %v1292
  %v1294 = vpop.f32.mrf.mxu0
  %v1295 = vadd.f32 %v1057, %v1294
  %1296 = vmatmul.bf16.gmra.mxu0 %v1144
  %v1297 = vpop.f32.mrf.mxu0
  %v1298 = vadd.f32 %v1057, %v1297
  %v1299 = vpop.f32.mrf.mxu0
  %v1300 = vadd.f32 %v1057, %v1299
  %1301 = vmatmul.bf16.gmra.mxu0 %v1147
  %v1302 = vpop.f32.mrf.mxu0
  %v1303 = vadd.f32 %v1057, %v1302
  %v1304 = vpop.f32.mrf.mxu0
  %v1305 = vadd.f32 %v1057, %v1304
  %1306 = vmatmul.bf16.gmra.mxu0 %v1150
  %v1307 = vpop.f32.mrf.mxu0
  %v1308 = vadd.f32 %v1057, %v1307
  %v1309 = vpop.f32.mrf.mxu0
  %v1310 = vadd.f32 %v1057, %v1309
  %1311 = vmatmul.bf16.gmra.mxu0 %v1153
  %v1312 = vpop.f32.mrf.mxu0
  %v1313 = vadd.f32 %v1057, %v1312
  %v1314 = vpop.f32.mrf.mxu0
  %v1315 = vadd.f32 %v1057, %v1314
  %1316 = vmatmul.bf16.gmra.mxu0 %v1156
  %v1317 = vpop.f32.mrf.mxu0
  %v1318 = vadd.f32 %v1057, %v1317
  %v1319 = vpop.f32.mrf.mxu0
  %v1320 = vadd.f32 %v1057, %v1319
  %1321 = vmatmul.bf16.gmra.mxu0 %v1159
  %v1322 = vpop.f32.mrf.mxu0
  %v1323 = vadd.f32 %v1057, %v1322
  %v1324 = vpop.f32.mrf.mxu0
  %v1325 = vadd.f32 %v1057, %v1324
  %1326 = vmatmul.bf16.gmra.mxu0 %v1162
  %v1327 = vpop.f32.mrf.mxu0
  %v1328 = vadd.f32 %v1057, %v1327
  %v1329 = vpop.f32.mrf.mxu0
  %v1330 = vadd.f32 %v1057, %v1329
  %1331 = vmatmul.bf16.gmra.mxu0 %v1165
  %v1332 = vpop.f32.mrf.mxu0
  %v1333 = vadd.f32 %v1057, %v1332
  %v1334 = vpop.f32.mrf.mxu0
  %v1335 = vadd.f32 %v1057, %v1334
  %1336 = vmatmul.bf16.gmra.mxu0 %v1168
  %v1337 = vpop.f32.mrf.mxu0
  %v1338 = vadd.f32 %v1057, %v1337
  %v1339 = vpop.f32.mrf.mxu0
  %v1340 = vadd.f32 %v1057, %v1339
  %1341 = vdwg.mxu0
  %v1342 = vmax.f32 %v1183, 0.0
  %v1343 = vmax.f32 %v1185, 0.0
  %v1344 = vmax.f32 %v1188, 0.0
  %v1345 = vmax.f32 %v1190, 0.0
  %v1346 = vmax.f32 %v1193, 0.0
  %v1347 = vmax.f32 %v1195, 0.0
  %v1348 = vmax.f32 %v1198, 0.0
  %v1349 = vmax.f32 %v1200, 0.0
  %v1350 = vmax.f32 %v1203, 0.0
  %v1351 = vmax.f32 %v1205, 0.0
  %v1352 = vmax.f32 %v1208, 0.0
  %v1353 = vmax.f32 %v1210, 0.0
  %v1354 = vmax.f32 %v1213, 0.0
  %v1355 = vmax.f32 %v1215, 0.0
  %v1356 = vmax.f32 %v1218, 0.0
  %v1357 = vmax.f32 %v1220, 0.0
  %v1358 = vmax.f32 %v1223, 0.0
  %v1359 = vmax.f32 %v1225, 0.0
  %v1360 = vmax.f32 %v1228, 0.0
  %v1361 = vmax.f32 %v1230, 0.0
  %v1362 = vmax.f32 %v1233, 0.0
  %v1363 = vmax.f32 %v1235, 0.0
  %v1364 = vmax.f32 %v1238, 0.0
  %v1365 = vmax.f32 %v1240, 0.0
  %v1366 = vmax.f32 %v1243, 0.0
  %v1367 = vmax.f32 %v1245, 0.0
  %v1368 = vmax.f32 %v1248, 0.0
  %v1369 = vmax.f32 %v1250, 0.0
  %v1370 = vmax.f32 %v1253, 0.0
  %v1371 = vmax.f32 %v1255, 0.0
  %v1372 = vmax.f32 %v1258, 0.0
  %v1373 = vmax.f32 %v1260, 0.0
  %v1374 = vmax.f32 %v1263, 0.0
  %v1375 = vmax.f32 %v1265, 0.0
  %v1376 = vmax.f32 %v1268, 0.0
  %v1377 = vmax.f32 %v1270, 0.0
  %v1378 = vmax.f32 %v1273, 0.0
  %v1379 = vmax.f32 %v1275, 0.0
  %v1380 = vmax.f32 %v1278, 0.0
  %v1381 = vmax.f32 %v1280, 0.0
  %v1382 = vmax.f32 %v1283, 0.0
  %v1383 = vmax.f32 %v1285, 0.0
  %v1384 = vmax.f32 %v1288, 0.0
  %v1385 = vmax.f32 %v1290, 0.0
  %v1386 = vmax.f32 %v1293, 0.0
  %v1387 = vmax.f32 %v1295, 0.0
  %v1388 = vmax.f32 %v1298, 0.0
  %v1389 = vmax.f32 %v1300, 0.0
  %v1390 = vmax.f32 %v1303, 0.0
  %v1391 = vmax.f32 %v1305, 0.0
  %v1392 = vmax.f32 %v1308, 0.0
  %v1393 = vmax.f32 %v1310, 0.0
  %v1394 = vmax.f32 %v1313, 0.0
  %v1395 = vmax.f32 %v1315, 0.0
  %v1396 = vmax.f32 %v1318, 0.0
  %v1397 = vmax.f32 %v1320, 0.0
  %v1398 = vmax.f32 %v1323, 0.0
  %v1399 = vmax.f32 %v1325, 0.0
  %v1400 = vmax.f32 %v1328, 0.0
  %v1401 = vmax.f32 %v1330, 0.0
  %v1402 = vmax.f32 %v1333, 0.0
  %v1403 = vmax.f32 %v1335, 0.0
  %v1404 = vmax.f32 %v1338, 0.0
  %v1405 = vmax.f32 %v1340, 0.0
  %v1406 = vpack.c.bf16 %v1343, %v1342
  %v1407 = vpack.c.bf16 %v1345, %v1344
  %v1408 = vpack.c.bf16 %v1347, %v1346
  %v1409 = vpack.c.bf16 %v1349, %v1348
  %v1410 = vpack.c.bf16 %v1351, %v1350
  %v1411 = vpack.c.bf16 %v1353, %v1352
  %v1412 = vpack.c.bf16 %v1355, %v1354
  %v1413 = vpack.c.bf16 %v1357, %v1356
  %v1414 = vpack.c.bf16 %v1359, %v1358
  %v1415 = vpack.c.bf16 %v1361, %v1360
  %v1416 = vpack.c.bf16 %v1363, %v1362
  %v1417 = vpack.c.bf16 %v1365, %v1364
  %v1418 = vpack.c.bf16 %v1367, %v1366
  %v1419 = vpack.c.bf16 %v1369, %v1368
  %v1420 = vpack.c.bf16 %v1371, %v1370
  %v1421 = vpack.c.bf16 %v1373, %v1372
  %v1422 = vpack.c.bf16 %v1375, %v1374
  %v1423 = vpack.c.bf16 %v1377, %v1376
  %v1424 = vpack.c.bf16 %v1379, %v1378
  %v1425 = vpack.c.bf16 %v1381, %v1380
  %v1426 = vpack.c.bf16 %v1383, %v1382
  %v1427 = vpack.c.bf16 %v1385, %v1384
  %v1428 = vpack.c.bf16 %v1387, %v1386
  %v1429 = vpack.c.bf16 %v1389, %v1388
  %v1430 = vpack.c.bf16 %v1391, %v1390
  %v1431 = vpack.c.bf16 %v1393, %v1392
  %v1432 = vpack.c.bf16 %v1395, %v1394
  %v1433 = vpack.c.bf16 %v1397, %v1396
  %v1434 = vpack.c.bf16 %v1399, %v1398
  %v1435 = vpack.c.bf16 %v1401, %v1400
  %v1436 = vpack.c.bf16 %v1403, %v1402
  %v1437 = vpack.c.bf16 %v1405, %v1404
  %v1438 = vld [vmem:[%s13] sm:$0xf]
  %v1439 = vld [vmem:[%s13 + $0x4] sm:$0xf]
  %v1440 = vld [vmem:[%s14] sm:$0x1]
  %v1442 = vperm.slane %v1440, 0
  %v1446 = vunpack.c.l.b16 %v1438
  %v1447 = vunpack.c.l.b16 %v1439
  %v1448 = vpack.c.b16 %v1447, %v1446
  %v1451 = vsel %vm342, %v1406, 0
  %v1454 = vsel %vm342, %v1407, 0
  %v1457 = vsel %vm342, %v1408, 0
  %v1460 = vsel %vm342, %v1409, 0
  %v1463 = vsel %vm342, %v1410, 0
  %v1466 = vsel %vm342, %v1411, 0
  %v1469 = vsel %vm342, %v1412, 0
  %v1472 = vsel %vm342, %v1413, 0
  %v1475 = vsel %vm342, %v1414, 0
  %v1478 = vsel %vm342, %v1415, 0
  %v1481 = vsel %vm342, %v1416, 0
  %v1484 = vsel %vm342, %v1417, 0
  %v1487 = vsel %vm342, %v1418, 0
  %v1490 = vsel %vm342, %v1419, 0
  %v1493 = vsel %vm342, %v1420, 0
  %v1496 = vsel %vm342, %v1421, 0
  %v1499 = vsel %vm342, %v1422, 0
  %v1502 = vsel %vm342, %v1423, 0
  %v1505 = vsel %vm342, %v1424, 0
  %v1508 = vsel %vm342, %v1425, 0
  %v1511 = vsel %vm342, %v1426, 0
  %v1514 = vsel %vm342, %v1427, 0
  %v1517 = vsel %vm342, %v1428, 0
  %v1520 = vsel %vm342, %v1429, 0
  %v1523 = vsel %vm342, %v1430, 0
  %v1526 = vsel %vm342, %v1431, 0
  %v1529 = vsel %vm342, %v1432, 0
  %v1532 = vsel %vm342, %v1433, 0
  %v1535 = vsel %vm342, %v1434, 0
  %v1538 = vsel %vm342, %v1435, 0
  %v1541 = vsel %vm342, %v1436, 0
  %v1544 = vsel %vm342, %v1437, 0
  %1546 = vmatpush.bf16.msra.mxu0 0
  %1547 = vmatpush.bf16.msra.mxu0 0
  %1548 = vmatpush.bf16.msra.mxu0 0
  %1549 = vmatpush.bf16.msra.mxu0 0
  %1550 = vmatpush.bf16.msra.mxu0 0
  %1551 = vmatpush.bf16.msra.mxu0 0
  %1552 = vmatpush.bf16.msra.mxu0 0
  %1553 = vmatpush.bf16.msra.mxu0 %v1448
  %1554 = vmatmul.bf16.gmra.mxu0 %v1451
  %v1555 = vpop.f32.mrf.mxu0
  %v1556 = vadd.f32 %v1442, %v1555
  %v1557 = vpop.f32.mrf.mxu0
  %v1558 = vadd.f32 %v1442, %v1557
  %1559 = vmatmul.bf16.gmra.mxu0 %v1454
  %v1560 = vpop.f32.mrf.mxu0
  %v1561 = vadd.f32 %v1442, %v1560
  %v1562 = vpop.f32.mrf.mxu0
  %v1563 = vadd.f32 %v1442, %v1562
  %1564 = vmatmul.bf16.gmra.mxu0 %v1457
  %v1565 = vpop.f32.mrf.mxu0
  %v1566 = vadd.f32 %v1442, %v1565
  %v1567 = vpop.f32.mrf.mxu0
  %v1568 = vadd.f32 %v1442, %v1567
  %1569 = vmatmul.bf16.gmra.mxu0 %v1460
  %v1570 = vpop.f32.mrf.mxu0
  %v1571 = vadd.f32 %v1442, %v1570
  %v1572 = vpop.f32.mrf.mxu0
  %v1573 = vadd.f32 %v1442, %v1572
  %1574 = vmatmul.bf16.gmra.mxu0 %v1463
  %v1575 = vpop.f32.mrf.mxu0
  %v1576 = vadd.f32 %v1442, %v1575
  %v1577 = vpop.f32.mrf.mxu0
  %v1578 = vadd.f32 %v1442, %v1577
  %1579 = vmatmul.bf16.gmra.mxu0 %v1466
  %v1580 = vpop.f32.mrf.mxu0
  %v1581 = vadd.f32 %v1442, %v1580
  %v1582 = vpop.f32.mrf.mxu0
  %v1583 = vadd.f32 %v1442, %v1582
  %1584 = vmatmul.bf16.gmra.mxu0 %v1469
  %v1585 = vpop.f32.mrf.mxu0
  %v1586 = vadd.f32 %v1442, %v1585
  %v1587 = vpop.f32.mrf.mxu0
  %v1588 = vadd.f32 %v1442, %v1587
  %1589 = vmatmul.bf16.gmra.mxu0 %v1472
  %v1590 = vpop.f32.mrf.mxu0
  %v1591 = vadd.f32 %v1442, %v1590
  %v1592 = vpop.f32.mrf.mxu0
  %v1593 = vadd.f32 %v1442, %v1592
  %1594 = vmatmul.bf16.gmra.mxu0 %v1475
  %v1595 = vpop.f32.mrf.mxu0
  %v1596 = vadd.f32 %v1442, %v1595
  %v1597 = vpop.f32.mrf.mxu0
  %v1598 = vadd.f32 %v1442, %v1597
  %1599 = vmatmul.bf16.gmra.mxu0 %v1478
  %v1600 = vpop.f32.mrf.mxu0
  %v1601 = vadd.f32 %v1442, %v1600
  %v1602 = vpop.f32.mrf.mxu0
  %v1603 = vadd.f32 %v1442, %v1602
  %1604 = vmatmul.bf16.gmra.mxu0 %v1481
  %v1605 = vpop.f32.mrf.mxu0
  %v1606 = vadd.f32 %v1442, %v1605
  %v1607 = vpop.f32.mrf.mxu0
  %v1608 = vadd.f32 %v1442, %v1607
  %1609 = vmatmul.bf16.gmra.mxu0 %v1484
  %v1610 = vpop.f32.mrf.mxu0
  %v1611 = vadd.f32 %v1442, %v1610
  %v1612 = vpop.f32.mrf.mxu0
  %v1613 = vadd.f32 %v1442, %v1612
  %1614 = vmatmul.bf16.gmra.mxu0 %v1487
  %v1615 = vpop.f32.mrf.mxu0
  %v1616 = vadd.f32 %v1442, %v1615
  %v1617 = vpop.f32.mrf.mxu0
  %v1618 = vadd.f32 %v1442, %v1617
  %1619 = vmatmul.bf16.gmra.mxu0 %v1490
  %v1620 = vpop.f32.mrf.mxu0
  %v1621 = vadd.f32 %v1442, %v1620
  %v1622 = vpop.f32.mrf.mxu0
  %v1623 = vadd.f32 %v1442, %v1622
  %1624 = vmatmul.bf16.gmra.mxu0 %v1493
  %v1625 = vpop.f32.mrf.mxu0
  %v1626 = vadd.f32 %v1442, %v1625
  %v1627 = vpop.f32.mrf.mxu0
  %v1628 = vadd.f32 %v1442, %v1627
  %1629 = vmatmul.bf16.gmra.mxu0 %v1496
  %v1630 = vpop.f32.mrf.mxu0
  %v1631 = vadd.f32 %v1442, %v1630
  %v1632 = vpop.f32.mrf.mxu0
  %v1633 = vadd.f32 %v1442, %v1632
  %1634 = vmatmul.bf16.gmra.mxu0 %v1499
  %v1635 = vpop.f32.mrf.mxu0
  %v1636 = vadd.f32 %v1442, %v1635
  %v1637 = vpop.f32.mrf.mxu0
  %v1638 = vadd.f32 %v1442, %v1637
  %1639 = vmatmul.bf16.gmra.mxu0 %v1502
  %v1640 = vpop.f32.mrf.mxu0
  %v1641 = vadd.f32 %v1442, %v1640
  %v1642 = vpop.f32.mrf.mxu0
  %v1643 = vadd.f32 %v1442, %v1642
  %1644 = vmatmul.bf16.gmra.mxu0 %v1505
  %v1645 = vpop.f32.mrf.mxu0
  %v1646 = vadd.f32 %v1442, %v1645
  %v1647 = vpop.f32.mrf.mxu0
  %v1648 = vadd.f32 %v1442, %v1647
  %1649 = vmatmul.bf16.gmra.mxu0 %v1508
  %v1650 = vpop.f32.mrf.mxu0
  %v1651 = vadd.f32 %v1442, %v1650
  %v1652 = vpop.f32.mrf.mxu0
  %v1653 = vadd.f32 %v1442, %v1652
  %1654 = vmatmul.bf16.gmra.mxu0 %v1511
  %v1655 = vpop.f32.mrf.mxu0
  %v1656 = vadd.f32 %v1442, %v1655
  %v1657 = vpop.f32.mrf.mxu0
  %v1658 = vadd.f32 %v1442, %v1657
  %1659 = vmatmul.bf16.gmra.mxu0 %v1514
  %v1660 = vpop.f32.mrf.mxu0
  %v1661 = vadd.f32 %v1442, %v1660
  %v1662 = vpop.f32.mrf.mxu0
  %v1663 = vadd.f32 %v1442, %v1662
  %1664 = vmatmul.bf16.gmra.mxu0 %v1517
  %v1665 = vpop.f32.mrf.mxu0
  %v1666 = vadd.f32 %v1442, %v1665
  %v1667 = vpop.f32.mrf.mxu0
  %v1668 = vadd.f32 %v1442, %v1667
  %1669 = vmatmul.bf16.gmra.mxu0 %v1520
  %v1670 = vpop.f32.mrf.mxu0
  %v1671 = vadd.f32 %v1442, %v1670
  %v1672 = vpop.f32.mrf.mxu0
  %v1673 = vadd.f32 %v1442, %v1672
  %1674 = vmatmul.bf16.gmra.mxu0 %v1523
  %v1675 = vpop.f32.mrf.mxu0
  %v1676 = vadd.f32 %v1442, %v1675
  %v1677 = vpop.f32.mrf.mxu0
  %v1678 = vadd.f32 %v1442, %v1677
  %1679 = vmatmul.bf16.gmra.mxu0 %v1526
  %v1680 = vpop.f32.mrf.mxu0
  %v1681 = vadd.f32 %v1442, %v1680
  %v1682 = vpop.f32.mrf.mxu0
  %v1683 = vadd.f32 %v1442, %v1682
  %1684 = vmatmul.bf16.gmra.mxu0 %v1529
  %v1685 = vpop.f32.mrf.mxu0
  %v1686 = vadd.f32 %v1442, %v1685
  %v1687 = vpop.f32.mrf.mxu0
  %v1688 = vadd.f32 %v1442, %v1687
  %1689 = vmatmul.bf16.gmra.mxu0 %v1532
  %v1690 = vpop.f32.mrf.mxu0
  %v1691 = vadd.f32 %v1442, %v1690
  %v1692 = vpop.f32.mrf.mxu0
  %v1693 = vadd.f32 %v1442, %v1692
  %1694 = vmatmul.bf16.gmra.mxu0 %v1535
  %v1695 = vpop.f32.mrf.mxu0
  %v1696 = vadd.f32 %v1442, %v1695
  %v1697 = vpop.f32.mrf.mxu0
  %v1698 = vadd.f32 %v1442, %v1697
  %1699 = vmatmul.bf16.gmra.mxu0 %v1538
  %v1700 = vpop.f32.mrf.mxu0
  %v1701 = vadd.f32 %v1442, %v1700
  %v1702 = vpop.f32.mrf.mxu0
  %v1703 = vadd.f32 %v1442, %v1702
  %1704 = vmatmul.bf16.gmra.mxu0 %v1541
  %v1705 = vpop.f32.mrf.mxu0
  %v1706 = vadd.f32 %v1442, %v1705
  %v1707 = vpop.f32.mrf.mxu0
  %v1708 = vadd.f32 %v1442, %v1707
  %1709 = vmatmul.bf16.gmra.mxu0 %v1544
  %v1710 = vpop.f32.mrf.mxu0
  %v1711 = vadd.f32 %v1442, %v1710
  %v1712 = vpop.f32.mrf.mxu0
  %v1713 = vadd.f32 %v1442, %v1712
  %1714 = vdwg.mxu0
  %v1715 = vmax.f32 %v1556, 0.0
  %v1716 = vmax.f32 %v1558, 0.0
  %v1717 = vmax.f32 %v1561, 0.0
  %v1718 = vmax.f32 %v1563, 0.0
  %v1719 = vmax.f32 %v1566, 0.0
  %v1720 = vmax.f32 %v1568, 0.0
  %v1721 = vmax.f32 %v1571, 0.0
  %v1722 = vmax.f32 %v1573, 0.0
  %v1723 = vmax.f32 %v1576, 0.0
  %v1724 = vmax.f32 %v1578, 0.0
  %v1725 = vmax.f32 %v1581, 0.0
  %v1726 = vmax.f32 %v1583, 0.0
  %v1727 = vmax.f32 %v1586, 0.0
  %v1728 = vmax.f32 %v1588, 0.0
  %v1729 = vmax.f32 %v1591, 0.0
  %v1730 = vmax.f32 %v1593, 0.0
  %v1731 = vmax.f32 %v1596, 0.0
  %v1732 = vmax.f32 %v1598, 0.0
  %v1733 = vmax.f32 %v1601, 0.0
  %v1734 = vmax.f32 %v1603, 0.0
  %v1735 = vmax.f32 %v1606, 0.0
  %v1736 = vmax.f32 %v1608, 0.0
  %v1737 = vmax.f32 %v1611, 0.0
  %v1738 = vmax.f32 %v1613, 0.0
  %v1739 = vmax.f32 %v1616, 0.0
  %v1740 = vmax.f32 %v1618, 0.0
  %v1741 = vmax.f32 %v1621, 0.0
  %v1742 = vmax.f32 %v1623, 0.0
  %v1743 = vmax.f32 %v1626, 0.0
  %v1744 = vmax.f32 %v1628, 0.0
  %v1745 = vmax.f32 %v1631, 0.0
  %v1746 = vmax.f32 %v1633, 0.0
  %v1747 = vmax.f32 %v1636, 0.0
  %v1748 = vmax.f32 %v1638, 0.0
  %v1749 = vmax.f32 %v1641, 0.0
  %v1750 = vmax.f32 %v1643, 0.0
  %v1751 = vmax.f32 %v1646, 0.0
  %v1752 = vmax.f32 %v1648, 0.0
  %v1753 = vmax.f32 %v1651, 0.0
  %v1754 = vmax.f32 %v1653, 0.0
  %v1755 = vmax.f32 %v1656, 0.0
  %v1756 = vmax.f32 %v1658, 0.0
  %v1757 = vmax.f32 %v1661, 0.0
  %v1758 = vmax.f32 %v1663, 0.0
  %v1759 = vmax.f32 %v1666, 0.0
  %v1760 = vmax.f32 %v1668, 0.0
  %v1761 = vmax.f32 %v1671, 0.0
  %v1762 = vmax.f32 %v1673, 0.0
  %v1763 = vmax.f32 %v1676, 0.0
  %v1764 = vmax.f32 %v1678, 0.0
  %v1765 = vmax.f32 %v1681, 0.0
  %v1766 = vmax.f32 %v1683, 0.0
  %v1767 = vmax.f32 %v1686, 0.0
  %v1768 = vmax.f32 %v1688, 0.0
  %v1769 = vmax.f32 %v1691, 0.0
  %v1770 = vmax.f32 %v1693, 0.0
  %v1771 = vmax.f32 %v1696, 0.0
  %v1772 = vmax.f32 %v1698, 0.0
  %v1773 = vmax.f32 %v1701, 0.0
  %v1774 = vmax.f32 %v1703, 0.0
  %v1775 = vmax.f32 %v1706, 0.0
  %v1776 = vmax.f32 %v1708, 0.0
  %v1777 = vmax.f32 %v1711, 0.0
  %v1778 = vmax.f32 %v1713, 0.0
  %v1779 = vpack.c.bf16 %v1716, %v1715
  %v1780 = vpack.c.bf16 %v1718, %v1717
  %v1781 = vpack.c.bf16 %v1720, %v1719
  %v1782 = vpack.c.bf16 %v1722, %v1721
  %v1783 = vpack.c.bf16 %v1724, %v1723
  %v1784 = vpack.c.bf16 %v1726, %v1725
  %v1785 = vpack.c.bf16 %v1728, %v1727
  %v1786 = vpack.c.bf16 %v1730, %v1729
  %v1787 = vpack.c.bf16 %v1732, %v1731
  %v1788 = vpack.c.bf16 %v1734, %v1733
  %v1789 = vpack.c.bf16 %v1736, %v1735
  %v1790 = vpack.c.bf16 %v1738, %v1737
  %v1791 = vpack.c.bf16 %v1740, %v1739
  %v1792 = vpack.c.bf16 %v1742, %v1741
  %v1793 = vpack.c.bf16 %v1744, %v1743
  %v1794 = vpack.c.bf16 %v1746, %v1745
  %v1795 = vpack.c.bf16 %v1748, %v1747
  %v1796 = vpack.c.bf16 %v1750, %v1749
  %v1797 = vpack.c.bf16 %v1752, %v1751
  %v1798 = vpack.c.bf16 %v1754, %v1753
  %v1799 = vpack.c.bf16 %v1756, %v1755
  %v1800 = vpack.c.bf16 %v1758, %v1757
  %v1801 = vpack.c.bf16 %v1760, %v1759
  %v1802 = vpack.c.bf16 %v1762, %v1761
  %v1803 = vpack.c.bf16 %v1764, %v1763
  %v1804 = vpack.c.bf16 %v1766, %v1765
  %v1805 = vpack.c.bf16 %v1768, %v1767
  %v1806 = vpack.c.bf16 %v1770, %v1769
  %v1807 = vpack.c.bf16 %v1772, %v1771
  %v1808 = vpack.c.bf16 %v1774, %v1773
  %v1809 = vpack.c.bf16 %v1776, %v1775
  %v1810 = vpack.c.bf16 %v1778, %v1777
  %v1811 = vld [vmem:[%s15] sm:$0xf]
  %v1812 = vld [vmem:[%s15 + $0x4] sm:$0xf]
  %v1813 = vld [vmem:[%s16] sm:$0x1]
  %v1815 = vperm.slane %v1813, 0
  %v1819 = vunpack.c.l.b16 %v1811
  %v1820 = vunpack.c.l.b16 %v1812
  %v1821 = vpack.c.b16 %v1820, %v1819
  %v1824 = vsel %vm342, %v1779, 0
  %v1827 = vsel %vm342, %v1780, 0
  %v1830 = vsel %vm342, %v1781, 0
  %v1833 = vsel %vm342, %v1782, 0
  %v1836 = vsel %vm342, %v1783, 0
  %v1839 = vsel %vm342, %v1784, 0
  %v1842 = vsel %vm342, %v1785, 0
  %v1845 = vsel %vm342, %v1786, 0
  %v1848 = vsel %vm342, %v1787, 0
  %v1851 = vsel %vm342, %v1788, 0
  %v1854 = vsel %vm342, %v1789, 0
  %v1857 = vsel %vm342, %v1790, 0
  %v1860 = vsel %vm342, %v1791, 0
  %v1863 = vsel %vm342, %v1792, 0
  %v1866 = vsel %vm342, %v1793, 0
  %v1869 = vsel %vm342, %v1794, 0
  %v1872 = vsel %vm342, %v1795, 0
  %v1875 = vsel %vm342, %v1796, 0
  %v1878 = vsel %vm342, %v1797, 0
  %v1881 = vsel %vm342, %v1798, 0
  %v1884 = vsel %vm342, %v1799, 0
  %v1887 = vsel %vm342, %v1800, 0
  %v1890 = vsel %vm342, %v1801, 0
  %v1893 = vsel %vm342, %v1802, 0
  %v1896 = vsel %vm342, %v1803, 0
  %v1899 = vsel %vm342, %v1804, 0
  %v1902 = vsel %vm342, %v1805, 0
  %v1905 = vsel %vm342, %v1806, 0
  %v1908 = vsel %vm342, %v1807, 0
  %v1911 = vsel %vm342, %v1808, 0
  %v1914 = vsel %vm342, %v1809, 0
  %v1917 = vsel %vm342, %v1810, 0
  %1919 = vmatpush.bf16.msra.mxu0 0
  %1920 = vmatpush.bf16.msra.mxu0 0
  %1921 = vmatpush.bf16.msra.mxu0 0
  %1922 = vmatpush.bf16.msra.mxu0 0
  %1923 = vmatpush.bf16.msra.mxu0 0
  %1924 = vmatpush.bf16.msra.mxu0 0
  %1925 = vmatpush.bf16.msra.mxu0 0
  %1926 = vmatpush.bf16.msra.mxu0 %v1821
  %1927 = vmatmul.bf16.gmra.mxu0 %v1824
  %v1928 = vpop.f32.mrf.mxu0
  %v1929 = vadd.f32 %v1815, %v1928
  %v1930 = vpop.f32.mrf.mxu0
  %v1931 = vadd.f32 %v1815, %v1930
  %1932 = vmatmul.bf16.gmra.mxu0 %v1827
  %v1933 = vpop.f32.mrf.mxu0
  %v1934 = vadd.f32 %v1815, %v1933
  %v1935 = vpop.f32.mrf.mxu0
  %v1936 = vadd.f32 %v1815, %v1935
  %1937 = vmatmul.bf16.gmra.mxu0 %v1830
  %v1938 = vpop.f32.mrf.mxu0
  %v1939 = vadd.f32 %v1815, %v1938
  %v1940 = vpop.f32.mrf.mxu0
  %v1941 = vadd.f32 %v1815, %v1940
  %1942 = vmatmul.bf16.gmra.mxu0 %v1833
  %v1943 = vpop.f32.mrf.mxu0
  %v1944 = vadd.f32 %v1815, %v1943
  %v1945 = vpop.f32.mrf.mxu0
  %v1946 = vadd.f32 %v1815, %v1945
  %1947 = vmatmul.bf16.gmra.mxu0 %v1836
  %v1948 = vpop.f32.mrf.mxu0
  %v1949 = vadd.f32 %v1815, %v1948
  %v1950 = vpop.f32.mrf.mxu0
  %v1951 = vadd.f32 %v1815, %v1950
  %1952 = vmatmul.bf16.gmra.mxu0 %v1839
  %v1953 = vpop.f32.mrf.mxu0
  %v1954 = vadd.f32 %v1815, %v1953
  %v1955 = vpop.f32.mrf.mxu0
  %v1956 = vadd.f32 %v1815, %v1955
  %1957 = vmatmul.bf16.gmra.mxu0 %v1842
  %v1958 = vpop.f32.mrf.mxu0
  %v1959 = vadd.f32 %v1815, %v1958
  %v1960 = vpop.f32.mrf.mxu0
  %v1961 = vadd.f32 %v1815, %v1960
  %1962 = vmatmul.bf16.gmra.mxu0 %v1845
  %v1963 = vpop.f32.mrf.mxu0
  %v1964 = vadd.f32 %v1815, %v1963
  %v1965 = vpop.f32.mrf.mxu0
  %v1966 = vadd.f32 %v1815, %v1965
  %1967 = vmatmul.bf16.gmra.mxu0 %v1848
  %v1968 = vpop.f32.mrf.mxu0
  %v1969 = vadd.f32 %v1815, %v1968
  %v1970 = vpop.f32.mrf.mxu0
  %v1971 = vadd.f32 %v1815, %v1970
  %1972 = vmatmul.bf16.gmra.mxu0 %v1851
  %v1973 = vpop.f32.mrf.mxu0
  %v1974 = vadd.f32 %v1815, %v1973
  %v1975 = vpop.f32.mrf.mxu0
  %v1976 = vadd.f32 %v1815, %v1975
  %1977 = vmatmul.bf16.gmra.mxu0 %v1854
  %v1978 = vpop.f32.mrf.mxu0
  %v1979 = vadd.f32 %v1815, %v1978
  %v1980 = vpop.f32.mrf.mxu0
  %v1981 = vadd.f32 %v1815, %v1980
  %1982 = vmatmul.bf16.gmra.mxu0 %v1857
  %v1983 = vpop.f32.mrf.mxu0
  %v1984 = vadd.f32 %v1815, %v1983
  %v1985 = vpop.f32.mrf.mxu0
  %v1986 = vadd.f32 %v1815, %v1985
  %1987 = vmatmul.bf16.gmra.mxu0 %v1860
  %v1988 = vpop.f32.mrf.mxu0
  %v1989 = vadd.f32 %v1815, %v1988
  %v1990 = vpop.f32.mrf.mxu0
  %v1991 = vadd.f32 %v1815, %v1990
  %1992 = vmatmul.bf16.gmra.mxu0 %v1863
  %v1993 = vpop.f32.mrf.mxu0
  %v1994 = vadd.f32 %v1815, %v1993
  %v1995 = vpop.f32.mrf.mxu0
  %v1996 = vadd.f32 %v1815, %v1995
  %1997 = vmatmul.bf16.gmra.mxu0 %v1866
  %v1998 = vpop.f32.mrf.mxu0
  %v1999 = vadd.f32 %v1815, %v1998
  %v2000 = vpop.f32.mrf.mxu0
  %v2001 = vadd.f32 %v1815, %v2000
  %2002 = vmatmul.bf16.gmra.mxu0 %v1869
  %v2003 = vpop.f32.mrf.mxu0
  %v2004 = vadd.f32 %v1815, %v2003
  %v2005 = vpop.f32.mrf.mxu0
  %v2006 = vadd.f32 %v1815, %v2005
  %2007 = vmatmul.bf16.gmra.mxu0 %v1872
  %v2008 = vpop.f32.mrf.mxu0
  %v2009 = vadd.f32 %v1815, %v2008
  %v2010 = vpop.f32.mrf.mxu0
  %v2011 = vadd.f32 %v1815, %v2010
  %2012 = vmatmul.bf16.gmra.mxu0 %v1875
  %v2013 = vpop.f32.mrf.mxu0
  %v2014 = vadd.f32 %v1815, %v2013
  %v2015 = vpop.f32.mrf.mxu0
  %v2016 = vadd.f32 %v1815, %v2015
  %2017 = vmatmul.bf16.gmra.mxu0 %v1878
  %v2018 = vpop.f32.mrf.mxu0
  %v2019 = vadd.f32 %v1815, %v2018
  %v2020 = vpop.f32.mrf.mxu0
  %v2021 = vadd.f32 %v1815, %v2020
  %2022 = vmatmul.bf16.gmra.mxu0 %v1881
  %v2023 = vpop.f32.mrf.mxu0
  %v2024 = vadd.f32 %v1815, %v2023
  %v2025 = vpop.f32.mrf.mxu0
  %v2026 = vadd.f32 %v1815, %v2025
  %2027 = vmatmul.bf16.gmra.mxu0 %v1884
  %v2028 = vpop.f32.mrf.mxu0
  %v2029 = vadd.f32 %v1815, %v2028
  %v2030 = vpop.f32.mrf.mxu0
  %v2031 = vadd.f32 %v1815, %v2030
  %2032 = vmatmul.bf16.gmra.mxu0 %v1887
  %v2033 = vpop.f32.mrf.mxu0
  %v2034 = vadd.f32 %v1815, %v2033
  %v2035 = vpop.f32.mrf.mxu0
  %v2036 = vadd.f32 %v1815, %v2035
  %2037 = vmatmul.bf16.gmra.mxu0 %v1890
  %v2038 = vpop.f32.mrf.mxu0
  %v2039 = vadd.f32 %v1815, %v2038
  %v2040 = vpop.f32.mrf.mxu0
  %v2041 = vadd.f32 %v1815, %v2040
  %2042 = vmatmul.bf16.gmra.mxu0 %v1893
  %v2043 = vpop.f32.mrf.mxu0
  %v2044 = vadd.f32 %v1815, %v2043
  %v2045 = vpop.f32.mrf.mxu0
  %v2046 = vadd.f32 %v1815, %v2045
  %2047 = vmatmul.bf16.gmra.mxu0 %v1896
  %v2048 = vpop.f32.mrf.mxu0
  %v2049 = vadd.f32 %v1815, %v2048
  %v2050 = vpop.f32.mrf.mxu0
  %v2051 = vadd.f32 %v1815, %v2050
  %2052 = vmatmul.bf16.gmra.mxu0 %v1899
  %v2053 = vpop.f32.mrf.mxu0
  %v2054 = vadd.f32 %v1815, %v2053
  %v2055 = vpop.f32.mrf.mxu0
  %v2056 = vadd.f32 %v1815, %v2055
  %2057 = vmatmul.bf16.gmra.mxu0 %v1902
  %v2058 = vpop.f32.mrf.mxu0
  %v2059 = vadd.f32 %v1815, %v2058
  %v2060 = vpop.f32.mrf.mxu0
  %v2061 = vadd.f32 %v1815, %v2060
  %2062 = vmatmul.bf16.gmra.mxu0 %v1905
  %v2063 = vpop.f32.mrf.mxu0
  %v2064 = vadd.f32 %v1815, %v2063
  %v2065 = vpop.f32.mrf.mxu0
  %v2066 = vadd.f32 %v1815, %v2065
  %2067 = vmatmul.bf16.gmra.mxu0 %v1908
  %v2068 = vpop.f32.mrf.mxu0
  %v2069 = vadd.f32 %v1815, %v2068
  %v2070 = vpop.f32.mrf.mxu0
  %v2071 = vadd.f32 %v1815, %v2070
  %2072 = vmatmul.bf16.gmra.mxu0 %v1911
  %v2073 = vpop.f32.mrf.mxu0
  %v2074 = vadd.f32 %v1815, %v2073
  %v2075 = vpop.f32.mrf.mxu0
  %v2076 = vadd.f32 %v1815, %v2075
  %2077 = vmatmul.bf16.gmra.mxu0 %v1914
  %v2078 = vpop.f32.mrf.mxu0
  %v2079 = vadd.f32 %v1815, %v2078
  %v2080 = vpop.f32.mrf.mxu0
  %v2081 = vadd.f32 %v1815, %v2080
  %2082 = vmatmul.bf16.gmra.mxu0 %v1917
  %v2083 = vpop.f32.mrf.mxu0
  %v2084 = vadd.f32 %v1815, %v2083
  %v2085 = vpop.f32.mrf.mxu0
  %v2086 = vadd.f32 %v1815, %v2085
  %2087 = vdwg.mxu0
  %v2088 = vmax.f32 %v1929, 0.0
  %v2089 = vmax.f32 %v1931, 0.0
  %v2090 = vmax.f32 %v1934, 0.0
  %v2091 = vmax.f32 %v1936, 0.0
  %v2092 = vmax.f32 %v1939, 0.0
  %v2093 = vmax.f32 %v1941, 0.0
  %v2094 = vmax.f32 %v1944, 0.0
  %v2095 = vmax.f32 %v1946, 0.0
  %v2096 = vmax.f32 %v1949, 0.0
  %v2097 = vmax.f32 %v1951, 0.0
  %v2098 = vmax.f32 %v1954, 0.0
  %v2099 = vmax.f32 %v1956, 0.0
  %v2100 = vmax.f32 %v1959, 0.0
  %v2101 = vmax.f32 %v1961, 0.0
  %v2102 = vmax.f32 %v1964, 0.0
  %v2103 = vmax.f32 %v1966, 0.0
  %v2104 = vmax.f32 %v1969, 0.0
  %v2105 = vmax.f32 %v1971, 0.0
  %v2106 = vmax.f32 %v1974, 0.0
  %v2107 = vmax.f32 %v1976, 0.0
  %v2108 = vmax.f32 %v1979, 0.0
  %v2109 = vmax.f32 %v1981, 0.0
  %v2110 = vmax.f32 %v1984, 0.0
  %v2111 = vmax.f32 %v1986, 0.0
  %v2112 = vmax.f32 %v1989, 0.0
  %v2113 = vmax.f32 %v1991, 0.0
  %v2114 = vmax.f32 %v1994, 0.0
  %v2115 = vmax.f32 %v1996, 0.0
  %v2116 = vmax.f32 %v1999, 0.0
  %v2117 = vmax.f32 %v2001, 0.0
  %v2118 = vmax.f32 %v2004, 0.0
  %v2119 = vmax.f32 %v2006, 0.0
  %v2120 = vmax.f32 %v2009, 0.0
  %v2121 = vmax.f32 %v2011, 0.0
  %v2122 = vmax.f32 %v2014, 0.0
  %v2123 = vmax.f32 %v2016, 0.0
  %v2124 = vmax.f32 %v2019, 0.0
  %v2125 = vmax.f32 %v2021, 0.0
  %v2126 = vmax.f32 %v2024, 0.0
  %v2127 = vmax.f32 %v2026, 0.0
  %v2128 = vmax.f32 %v2029, 0.0
  %v2129 = vmax.f32 %v2031, 0.0
  %v2130 = vmax.f32 %v2034, 0.0
  %v2131 = vmax.f32 %v2036, 0.0
  %v2132 = vmax.f32 %v2039, 0.0
  %v2133 = vmax.f32 %v2041, 0.0
  %v2134 = vmax.f32 %v2044, 0.0
  %v2135 = vmax.f32 %v2046, 0.0
  %v2136 = vmax.f32 %v2049, 0.0
  %v2137 = vmax.f32 %v2051, 0.0
  %v2138 = vmax.f32 %v2054, 0.0
  %v2139 = vmax.f32 %v2056, 0.0
  %v2140 = vmax.f32 %v2059, 0.0
  %v2141 = vmax.f32 %v2061, 0.0
  %v2142 = vmax.f32 %v2064, 0.0
  %v2143 = vmax.f32 %v2066, 0.0
  %v2144 = vmax.f32 %v2069, 0.0
  %v2145 = vmax.f32 %v2071, 0.0
  %v2146 = vmax.f32 %v2074, 0.0
  %v2147 = vmax.f32 %v2076, 0.0
  %v2148 = vmax.f32 %v2079, 0.0
  %v2149 = vmax.f32 %v2081, 0.0
  %v2150 = vmax.f32 %v2084, 0.0
  %v2151 = vmax.f32 %v2086, 0.0
  %v2152 = vsel %vm709, %v2088, -inf
  %v2153 = vsel %vm709, %v2092, -inf
  %v2154 = vmax.f32 %v2152, %v2153
  %v2155 = vsel %vm709, %v2096, -inf
  %v2156 = vmax.f32 %v2154, %v2155
  %v2157 = vsel %vm709, %v2100, -inf
  %v2158 = vmax.f32 %v2156, %v2157
  %v2159 = vsel %vm709, %v2104, -inf
  %v2160 = vmax.f32 %v2158, %v2159
  %v2161 = vsel %vm709, %v2108, -inf
  %v2162 = vmax.f32 %v2160, %v2161
  %v2163 = vsel %vm709, %v2112, -inf
  %v2164 = vmax.f32 %v2162, %v2163
  %v2165 = vsel %vm709, %v2116, -inf
  %v2166 = vmax.f32 %v2164, %v2165
  %v2167 = vsel %vm709, %v2120, -inf
  %v2168 = vmax.f32 %v2166, %v2167
  %v2169 = vsel %vm709, %v2124, -inf
  %v2170 = vmax.f32 %v2168, %v2169
  %v2171 = vsel %vm709, %v2128, -inf
  %v2172 = vmax.f32 %v2170, %v2171
  %v2173 = vsel %vm709, %v2132, -inf
  %v2174 = vmax.f32 %v2172, %v2173
  %v2175 = vsel %vm709, %v2136, -inf
  %v2176 = vmax.f32 %v2174, %v2175
  %v2177 = vsel %vm709, %v2140, -inf
  %v2178 = vmax.f32 %v2176, %v2177
  %v2179 = vsel %vm709, %v2144, -inf
  %v2180 = vmax.f32 %v2178, %v2179
  %v2181 = vsel %vm709, %v2148, -inf
  %v2182 = vmax.f32 %v2180, %v2181
  %v2183 = vsel %vm709, %v2089, -inf
  %v2184 = vsel %vm709, %v2093, -inf
  %v2185 = vmax.f32 %v2183, %v2184
  %v2186 = vsel %vm709, %v2097, -inf
  %v2187 = vmax.f32 %v2185, %v2186
  %v2188 = vsel %vm709, %v2101, -inf
  %v2189 = vmax.f32 %v2187, %v2188
  %v2190 = vsel %vm709, %v2105, -inf
  %v2191 = vmax.f32 %v2189, %v2190
  %v2192 = vsel %vm709, %v2109, -inf
  %v2193 = vmax.f32 %v2191, %v2192
  %v2194 = vsel %vm709, %v2113, -inf
  %v2195 = vmax.f32 %v2193, %v2194
  %v2196 = vsel %vm709, %v2117, -inf
  %v2197 = vmax.f32 %v2195, %v2196
  %v2198 = vsel %vm709, %v2121, -inf
  %v2199 = vmax.f32 %v2197, %v2198
  %v2200 = vsel %vm709, %v2125, -inf
  %v2201 = vmax.f32 %v2199, %v2200
  %v2202 = vsel %vm709, %v2129, -inf
  %v2203 = vmax.f32 %v2201, %v2202
  %v2204 = vsel %vm709, %v2133, -inf
  %v2205 = vmax.f32 %v2203, %v2204
  %v2206 = vsel %vm709, %v2137, -inf
  %v2207 = vmax.f32 %v2205, %v2206
  %v2208 = vsel %vm709, %v2141, -inf
  %v2209 = vmax.f32 %v2207, %v2208
  %v2210 = vsel %vm709, %v2145, -inf
  %v2211 = vmax.f32 %v2209, %v2210
  %v2212 = vsel %vm709, %v2149, -inf
  %v2213 = vmax.f32 %v2211, %v2212
  %v2214 = vsel %vm709, %v2090, -inf
  %v2215 = vsel %vm709, %v2094, -inf
  %v2216 = vmax.f32 %v2214, %v2215
  %v2217 = vsel %vm709, %v2098, -inf
  %v2218 = vmax.f32 %v2216, %v2217
  %v2219 = vsel %vm709, %v2102, -inf
  %v2220 = vmax.f32 %v2218, %v2219
  %v2221 = vsel %vm709, %v2106, -inf
  %v2222 = vmax.f32 %v2220, %v2221
  %v2223 = vsel %vm709, %v2110, -inf
  %v2224 = vmax.f32 %v2222, %v2223
  %v2225 = vsel %vm709, %v2114, -inf
  %v2226 = vmax.f32 %v2224, %v2225
  %v2227 = vsel %vm709, %v2118, -inf
  %v2228 = vmax.f32 %v2226, %v2227
  %v2229 = vsel %vm709, %v2122, -inf
  %v2230 = vmax.f32 %v2228, %v2229
  %v2231 = vsel %vm709, %v2126, -inf
  %v2232 = vmax.f32 %v2230, %v2231
  %v2233 = vsel %vm709, %v2130, -inf
  %v2234 = vmax.f32 %v2232, %v2233
  %v2235 = vsel %vm709, %v2134, -inf
  %v2236 = vmax.f32 %v2234, %v2235
  %v2237 = vsel %vm709, %v2138, -inf
  %v2238 = vmax.f32 %v2236, %v2237
  %v2239 = vsel %vm709, %v2142, -inf
  %v2240 = vmax.f32 %v2238, %v2239
  %v2241 = vsel %vm709, %v2146, -inf
  %v2242 = vmax.f32 %v2240, %v2241
  %v2243 = vsel %vm709, %v2150, -inf
  %v2244 = vmax.f32 %v2242, %v2243
  %v2245 = vsel %vm709, %v2091, -inf
  %v2246 = vsel %vm709, %v2095, -inf
  %v2247 = vmax.f32 %v2245, %v2246
  %v2248 = vsel %vm709, %v2099, -inf
  %v2249 = vmax.f32 %v2247, %v2248
  %v2250 = vsel %vm709, %v2103, -inf
  %v2251 = vmax.f32 %v2249, %v2250
  %v2252 = vsel %vm709, %v2107, -inf
  %v2253 = vmax.f32 %v2251, %v2252
  %v2254 = vsel %vm709, %v2111, -inf
  %v2255 = vmax.f32 %v2253, %v2254
  %v2256 = vsel %vm709, %v2115, -inf
  %v2257 = vmax.f32 %v2255, %v2256
  %v2258 = vsel %vm709, %v2119, -inf
  %v2259 = vmax.f32 %v2257, %v2258
  %v2260 = vsel %vm709, %v2123, -inf
  %v2261 = vmax.f32 %v2259, %v2260
  %v2262 = vsel %vm709, %v2127, -inf
  %v2263 = vmax.f32 %v2261, %v2262
  %v2264 = vsel %vm709, %v2131, -inf
  %v2265 = vmax.f32 %v2263, %v2264
  %v2266 = vsel %vm709, %v2135, -inf
  %v2267 = vmax.f32 %v2265, %v2266
  %v2268 = vsel %vm709, %v2139, -inf
  %v2269 = vmax.f32 %v2267, %v2268
  %v2270 = vsel %vm709, %v2143, -inf
  %v2271 = vmax.f32 %v2269, %v2270
  %v2272 = vsel %vm709, %v2147, -inf
  %v2273 = vmax.f32 %v2271, %v2272
  %v2274 = vsel %vm709, %v2151, -inf
  %v2275 = vmax.f32 %v2273, %v2274
  %v2276 = vld [vmem:[%s17] sm:$0xf]
  %v2277 = vld [vmem:[%s17 + $0x4] sm:$0xf]
  %v2278 = vld [vmem:[%s17 + $0x8] sm:$0xf]
  %v2279 = vld [vmem:[%s17 + $0xc] sm:$0xf]
  %v2280 = vld [vmem:[%s18] sm:$0xff]
  %v2281 = vld [vmem:[%s18 + $0x8] sm:$0xff]
  %v2282 = vld [vmem:[%s18 + $0x10] sm:$0xff]
  %v2283 = vld [vmem:[%s18 + $0x18] sm:$0xff]
  %2285 = vset.pattern.permute.xlu0 0
  %2286 = vperm.xlu0 %2285, %v2280
  %v2287 = vpop.permute.xlu0 %2286
  %2290 = vset.pattern.permute.xlu0 0
  %2291 = vperm.xlu0 %2290, %v2281
  %v2292 = vpop.permute.xlu0 %2291
  %2295 = vset.pattern.permute.xlu0 0
  %2296 = vperm.xlu0 %2295, %v2282
  %v2297 = vpop.permute.xlu0 %2296
  %2300 = vset.pattern.permute.xlu0 0
  %2301 = vperm.xlu0 %2300, %v2283
  %v2302 = vpop.permute.xlu0 %2301
  %v2308 = vunpack.c.l.b16 %v2276
  %v2309 = vunpack.c.l.b16 %v2277
  %v2310 = vunpack.c.l.b16 %v2278
  %v2311 = vunpack.c.l.b16 %v2279
  %v2312 = vpack.c.b16 %v2309, %v2308
  %v2313 = vpack.c.b16 %v2311, %v2310
  %v2315 = vsel %vm808, %v2312, 0
  %v2318 = vsel %vm808, %v2313, 0
  %2320 = vmatpush.bf16.msra.mxu0 0
  %2321 = vmatpush.bf16.msra.mxu0 0
  %2322 = vmatpush.bf16.msra.mxu0 0
  %2323 = vmatpush.bf16.msra.mxu0 0
  %2324 = vmatpush.bf16.msra.mxu0 0
  %2325 = vmatpush.bf16.msra.mxu0 0
  %2326 = vmatpush.bf16.msra.mxu0 0
  %2327 = vmatpush.bf16.msra.mxu0 %v817
  %2328 = vmatmul.bf16.gmra.mxu0 %v2315
  %v2329 = vpop.f32.mrf.mxu0
  %v2330 = vadd.f32 %v2287, %v2329
  %v2331 = vpop.f32.mrf.mxu0
  %v2332 = vadd.f32 %v2292, %v2331
  %2333 = vmatmul.bf16.gmra.mxu0 %v2318
  %v2334 = vpop.f32.mrf.mxu0
  %v2335 = vadd.f32 %v2297, %v2334
  %v2336 = vpop.f32.mrf.mxu0
  %v2337 = vadd.f32 %v2302, %v2336
  %2338 = vdwg.mxu0
  %v2339 = vxor.u32 %v2330, 2147483648
  %v2340 = vxor.u32 %v2332, 2147483648
  %v2341 = vxor.u32 %v2335, 2147483648
  %v2342 = vxor.u32 %v2337, 2147483648
  %v2343 = vmul.f32 %v2339, 1.442695
  %v2344 = vpow.pop %v2343
  %v2345 = vmul.f32 %v2340, 1.442695
  %v2346 = vpow.pop %v2345
  %v2347 = vmul.f32 %v2341, 1.442695
  %v2348 = vpow.pop %v2347
  %v2349 = vmul.f32 %v2342, 1.442695
  %v2350 = vpow.pop %v2349
  %v2351 = vadd.f32 %v2344, 1.0
  %v2352 = vadd.f32 %v2346, 1.0
  %v2353 = vadd.f32 %v2348, 1.0
  %v2354 = vadd.f32 %v2350, 1.0
  %v2355 = vrcp.pop %v2351
  %v2356 = vmul.f32 %v2351, %v2355
  %v2357 = vsub.f32 1.0, %v2356
  %v2358 = vmul.f32 %v2355, %v2357
  %v2359 = vadd.f32 %v2355, %v2358
  %vm2360 = vweird.f32 %v2351
  %vm2361 = vweird.f32 %v2355
  %vm2362 = vmor %vm2360, %vm2361
  %v2363 = vsel %vm2362, %v2355, %v2359
  %v2364 = vand.u32 2147483647, %v2351
  %vm2365 = vcmp.eq.f32.partialorder %v2364, 8.507059e+37
  %v2366 = vand.u32 %v2351, 2147483648
  %v2367 = vor.u32 1.1754944e-38, %v2366
  %v2368 = vsel %vm2365, %v2367, %v2363
  %v2369 = vmul.f32 1.0, %v2368
  %v2370 = vrcp.pop %v2352
  %v2371 = vmul.f32 %v2352, %v2370
  %v2372 = vsub.f32 1.0, %v2371
  %v2373 = vmul.f32 %v2370, %v2372
  %v2374 = vadd.f32 %v2370, %v2373
  %vm2375 = vweird.f32 %v2352
  %vm2376 = vweird.f32 %v2370
  %vm2377 = vmor %vm2375, %vm2376
  %v2378 = vsel %vm2377, %v2370, %v2374
  %v2379 = vand.u32 2147483647, %v2352
  %vm2380 = vcmp.eq.f32.partialorder %v2379, 8.507059e+37
  %v2381 = vand.u32 %v2352, 2147483648
  %v2382 = vor.u32 1.1754944e-38, %v2381
  %v2383 = vsel %vm2380, %v2382, %v2378
  %v2384 = vmul.f32 1.0, %v2383
  %v2385 = vrcp.pop %v2353
  %v2386 = vmul.f32 %v2353, %v2385
  %v2387 = vsub.f32 1.0, %v2386
  %v2388 = vmul.f32 %v2385, %v2387
  %v2389 = vadd.f32 %v2385, %v2388
  %vm2390 = vweird.f32 %v2353
  %vm2391 = vweird.f32 %v2385
  %vm2392 = vmor %vm2390, %vm2391
  %v2393 = vsel %vm2392, %v2385, %v2389
  %v2394 = vand.u32 2147483647, %v2353
  %vm2395 = vcmp.eq.f32.partialorder %v2394, 8.507059e+37
  %v2396 = vand.u32 %v2353, 2147483648
  %v2397 = vor.u32 1.1754944e-38, %v2396
  %v2398 = vsel %vm2395, %v2397, %v2393
  %v2399 = vmul.f32 1.0, %v2398
  %v2400 = vrcp.pop %v2354
  %v2401 = vmul.f32 %v2354, %v2400
  %v2402 = vsub.f32 1.0, %v2401
  %v2403 = vmul.f32 %v2400, %v2402
  %v2404 = vadd.f32 %v2400, %v2403
  %vm2405 = vweird.f32 %v2354
  %vm2406 = vweird.f32 %v2400
  %vm2407 = vmor %vm2405, %vm2406
  %v2408 = vsel %vm2407, %v2400, %v2404
  %v2409 = vand.u32 2147483647, %v2354
  %vm2410 = vcmp.eq.f32.partialorder %v2409, 8.507059e+37
  %v2411 = vand.u32 %v2354, 2147483648
  %v2412 = vor.u32 1.1754944e-38, %v2411
  %v2413 = vsel %vm2410, %v2412, %v2408
  %v2414 = vmul.f32 1.0, %v2413
  %2415 = vxpose.xlu0.b32.start [1/16] %v2182, 128
  %2416 = vxpose.xlu0.b32.cont [2/16] %v2213, 128
  %2417 = vxpose.xlu0.b32.cont [3/16] %v2244, 128
  %2418 = vxpose.xlu0.b32.cont [4/16] %v2275, 128
  %2419 = vxpose.xlu0.b32.cont [5/16] 0.0, 128
  %2420 = vxpose.xlu0.b32.cont [6/16] 0.0, 128
  %2421 = vxpose.xlu0.b32.cont [7/16] 0.0, 128
  %2422 = vxpose.xlu0.b32.cont [8/16] 0.0, 128
  %2423 = vxpose.xlu0.b32.cont [9/16] 0.0, 128
  %2424 = vxpose.xlu0.b32.cont [10/16] 0.0, 128
  %2425 = vxpose.xlu0.b32.cont [11/16] 0.0, 128
  %2426 = vxpose.xlu0.b32.cont [12/16] 0.0, 128
  %2427 = vxpose.xlu0.b32.cont [13/16] 0.0, 128
  %2428 = vxpose.xlu0.b32.cont [14/16] 0.0, 128
  %2429 = vxpose.xlu0.b32.cont [15/16] 0.0, 128
  %2430 = vxpose.xlu0.b32.end [16/16] 0.0, 128
  %v2431 = vpop.trf.xlu0
  %v2432 = vpop.trf.xlu0
  %v2433 = vpop.trf.xlu0
  %v2434 = vpop.trf.xlu0
  %v2435 = vpop.trf.xlu0
  %v2436 = vpop.trf.xlu0
  %v2437 = vpop.trf.xlu0
  %v2438 = vpop.trf.xlu0
  %v2439 = vpop.trf.xlu0
  %v2440 = vpop.trf.xlu0
  %v2441 = vpop.trf.xlu0
  %v2442 = vpop.trf.xlu0
  %v2443 = vpop.trf.xlu0
  %v2444 = vpop.trf.xlu0
  %v2445 = vpop.trf.xlu0
  %v2446 = vpop.trf.xlu0
  %v2447 = vmul.f32 %v2369, %v2431
  %v2448 = vmul.f32 %v2384, %v2432
  %v2449 = vmul.f32 %v2399, %v2433
  %v2450 = vmul.f32 %v2414, %v2434
  %2451 = vst.msk [vmem:[%s19 + $0x20] sm:$0xff] %vm709, %v2447
  %2452 = vst.msk [vmem:[%s19 + $0x28] sm:$0xff] %vm709, %v2448
  %2453 = vst.msk [vmem:[%s19 + $0x30] sm:$0xff] %vm709, %v2449
  %2454 = vst.msk [vmem:[%s19 + $0x38] sm:$0xff] %vm709, %v2450
  // Predicated region
  $region78: #{forward.5} parent=0 // pred_check
    _
  $region79: #{forward.5} parent=0 // pred_check_branch
    %2456 = sbr.rel (0) target = $region81
  $region80: #{forward.5} parent=0 // pred_region
    _
  $region81: #{forward.5} parent=0 // pred_fallthru
    _
  // Predicated region
  $region82: #{forward.5} parent=0 // pred_check
    _
  $region83: #{forward.5} parent=0 // pred_check_branch
    %2458 = sbr.rel (0) target = $region85
  $region84: #{forward.5} parent=0 // pred_region
    _
  $region85: #{forward.5} parent=0 // pred_fallthru
    _

// kernel: forward.7
$region0: #{forward.7}
  #allocation0 [shape = 'u32[]', space=smem, size = 0x4, offset = 0x4, fixed_abs, tag = 'smem constant byte address 0x4 - core index']
  #allocation1 [shape = 'u32[72,128]{1,0:T(1,128)}', space=vmem, size = 0x9000, scoped, tag = 'internal scratch']
  %s0 = inlined_call_operand.vmem [shape: f32[128,33], index: 0, kind: input, shape index: {}]
  %s1 = inlined_call_operand.vmem [shape: f32[8,128], index: 1, kind: input, shape index: {}]
  %s2 = inlined_call_operand.vmem [shape: bf16[33,32], index: 2, kind: input, shape index: {}]
  %s3 = inlined_call_operand.vmem [shape: f32[1,32], index: 3, kind: input, shape index: {}]
  %s4 = inlined_call_operand.vmem [shape: bf16[32,32], index: 4, kind: input, shape index: {}]
  %s5 = inlined_call_operand.vmem [shape: f32[1,32], index: 5, kind: input, shape index: {}]
  %s6 = inlined_call_operand.vmem [shape: bf16[32,8], index: 6, kind: input, shape index: {}]
  %s7 = inlined_call_operand.vmem [shape: f32[32,1], index: 7, kind: input, shape index: {}]
  %s8 = inlined_call_operand.hbm [shape: f32[32,128], index: 8, kind: output, shape index: {}]
  %s9 = sld [smem:[#allocation0]]
  $region42: #{forward.7} parent=0
    _
  %s11 = ssub.s32 1, %s9
  %s12 = scalar_select 0, %s11, %s9
  $region1: #{forward.7} parent=0
    #allocation2 [shape = 'u8[16384]{0}', space=vmem, size = 0x4000, scoped, tag = 'output window, operand 0, single buffered']
    #allocation3 [shape = 's32[1]{0}', space=sflag, size = 0x4, scoped, tag = 'scoped memory for forward.7']
    %13 = vsyncpa [#allocation3], 0
    // Predicated region
    $region2: #{forward.7} parent=1 // pred_check
      _
    $region3: #{forward.7} parent=1 // pred_check_branch
      %15 = sbr.rel (0) target = $region5
    $region4: #{forward.7} parent=1 // pred_region
      _
    $region5: #{forward.7} parent=1 // pred_fallthru
      _
    // Predicated region
    $region6: #{forward.7} parent=1 // pred_check
      _
    $region7: #{forward.7} parent=1 // pred_check_branch
      %17 = sbr.rel (0) target = $region9
    $region8: #{forward.7} parent=1 // pred_region
      _
    $region9: #{forward.7} parent=1 // pred_fallthru
      _
    // Predicated region
    $region10: #{forward.7} parent=1 // pred_check
      _
    $region11: #{forward.7} parent=1 // pred_check_branch
      %19 = sbr.rel (0) target = $region13
    $region12: #{forward.7} parent=1 // pred_region
      _
    $region13: #{forward.7} parent=1 // pred_fallthru
      _
    // Predicated region
    $region14: #{forward.7} parent=1 // pred_check
      _
    $region15: #{forward.7} parent=1 // pred_check_branch
      %21 = sbr.rel (0) target = $region17
    $region16: #{forward.7} parent=1 // pred_region
      _
    $region17: #{forward.7} parent=1 // pred_fallthru
      _
    // Predicated region
    $region18: #{forward.7} parent=1 // pred_check
      _
    $region19: #{forward.7} parent=1 // pred_check_branch
      %23 = sbr.rel (0) target = $region21
    $region20: #{forward.7} parent=1 // pred_region
      _
    $region21: #{forward.7} parent=1 // pred_fallthru
      _
    // Predicated region
    $region22: #{forward.7} parent=1 // pred_check
      _
    $region23: #{forward.7} parent=1 // pred_check_branch
      %25 = sbr.rel (0) target = $region25
    $region24: #{forward.7} parent=1 // pred_region
      _
    $region25: #{forward.7} parent=1 // pred_fallthru
      _
    // Predicated region
    $region26: #{forward.7} parent=1 // pred_check
      _
    $region27: #{forward.7} parent=1 // pred_check_branch
      %27 = sbr.rel (0) target = $region29
    $region28: #{forward.7} parent=1 // pred_region
      _
    $region29: #{forward.7} parent=1 // pred_fallthru
      _
    // Predicated region
    $region30: #{forward.7} parent=1 // pred_check
      _
    $region31: #{forward.7} parent=1 // pred_check_branch
      %29 = sbr.rel (0) target = $region33
    $region32: #{forward.7} parent=1 // pred_region
      _
    $region33: #{forward.7} parent=1 // pred_fallthru
      _
    %v31 = vld [vmem:[%s0] sm:$0xff]
    %v32 = vld [vmem:[%s0 + $0x8] sm:$0xff]
    %v33 = vld [vmem:[%s0 + $0x10] sm:$0xff]
    %v34 = vld [vmem:[%s0 + $0x18] sm:$0xff]
    %v35 = vld [vmem:[%s0 + $0x20] sm:$0xff]
    %v36 = vld [vmem:[%s0 + $0x28] sm:$0xff]
    %v37 = vld [vmem:[%s0 + $0x30] sm:$0xff]
    %v38 = vld [vmem:[%s0 + $0x38] sm:$0xff]
    %v39 = vld [vmem:[%s0 + $0x40] sm:$0xff]
    %v40 = vld [vmem:[%s0 + $0x48] sm:$0xff]
    %v41 = vld [vmem:[%s0 + $0x50] sm:$0xff]
    %v42 = vld [vmem:[%s0 + $0x58] sm:$0xff]
    %v43 = vld [vmem:[%s0 + $0x60] sm:$0xff]
    %v44 = vld [vmem:[%s0 + $0x68] sm:$0xff]
    %v45 = vld [vmem:[%s0 + $0x70] sm:$0xff]
    %v46 = vld [vmem:[%s0 + $0x78] sm:$0xff]
    %v47 = vpack.c.bf16 %v32, %v31
    %v48 = vpack.c.bf16 %v34, %v33
    %v49 = vpack.c.bf16 %v36, %v35
    %v50 = vpack.c.bf16 %v38, %v37
    %v51 = vpack.c.bf16 %v40, %v39
    %v52 = vpack.c.bf16 %v42, %v41
    %v53 = vpack.c.bf16 %v44, %v43
    %v54 = vpack.c.bf16 %v46, %v45
    %v55 = vld [vmem:[%s2] sm:$0xf]
    %v56 = vld [vmem:[%s2 + $0x4] sm:$0xf]
    %v57 = vld [vmem:[%s2 + $0x8] sm:$0xf]
    %v58 = vld [vmem:[%s2 + $0xc] sm:$0xf]
    %v59 = vld [vmem:[%s2 + $0x10] sm:$0x1]
    %v60 = vld [vmem:[%s3] sm:$0x1]
    %v62 = vperm.slane %v60, 0
    %v69 = vunpack.c.l.b16 %v55
    %v70 = vunpack.c.l.b16 %v56
    %v71 = vunpack.c.l.b16 %v57
    %v72 = vunpack.c.l.b16 %v58
    %v73 = vunpack.c.l.b16 %v59
    %v74 = vpack.c.b16 %v70, %v69
    %v75 = vpack.c.b16 %v72, %v71
    %v76 = vpack.c.b16 %v73, %v73
    %vm79 = vcmask 269312
    %v81 = vsel %vm79, %v47, 0
    %v84 = vsel %vm79, %v48, 0
    %v87 = vsel %vm79, %v49, 0
    %v90 = vsel %vm79, %v50, 0
    %v93 = vsel %vm79, %v51, 0
    %v96 = vsel %vm79, %v52, 0
    %v99 = vsel %vm79, %v53, 0
    %v102 = vsel %vm79, %v54, 0
    %vm104 = vcmask 1040384
    %v105 = vsel 0, 4294967295, 65535
    %v106 = vsel %vm104, %v105, 0
    %v108 = vand.u32 %v76, %v106
    %110 = vmatpush.bf16.msra.mxu0 0
    %111 = vmatpush.bf16.msra.mxu0 0
    %112 = vmatpush.bf16.msra.mxu0 0
    %113 = vmatpush.bf16.msra.mxu0 0
    %114 = vmatpush.bf16.msra.mxu0 0
    %115 = vmatpush.bf16.msra.mxu0 %v108
    %116 = vmatpush.bf16.msra.mxu0 %v75
    %117 = vmatpush.bf16.msra.mxu0 %v74
    %118 = vmatmul.bf16.gmra.mxu0 %v81
    %v119 = vpop.f32.mrf.mxu0
    %v120 = vadd.f32 %v62, %v119
    %v121 = vpop.f32.mrf.mxu0
    %v122 = vadd.f32 %v62, %v121
    %123 = vmatmul.bf16.gmra.mxu0 %v84
    %v124 = vpop.f32.mrf.mxu0
    %v125 = vadd.f32 %v62, %v124
    %v126 = vpop.f32.mrf.mxu0
    %v127 = vadd.f32 %v62, %v126
    %128 = vmatmul.bf16.gmra.mxu0 %v87
    %v129 = vpop.f32.mrf.mxu0
    %v130 = vadd.f32 %v62, %v129
    %v131 = vpop.f32.mrf.mxu0
    %v132 = vadd.f32 %v62, %v131
    %133 = vmatmul.bf16.gmra.mxu0 %v90
    %v134 = vpop.f32.mrf.mxu0
    %v135 = vadd.f32 %v62, %v134
    %v136 = vpop.f32.mrf.mxu0
    %v137 = vadd.f32 %v62, %v136
    %138 = vmatmul.bf16.gmra.mxu0 %v93
    %v139 = vpop.f32.mrf.mxu0
    %v140 = vadd.f32 %v62, %v139
    %v141 = vpop.f32.mrf.mxu0
    %v142 = vadd.f32 %v62, %v141
    %143 = vmatmul.bf16.gmra.mxu0 %v96
    %v144 = vpop.f32.mrf.mxu0
    %v145 = vadd.f32 %v62, %v144
    %v146 = vpop.f32.mrf.mxu0
    %v147 = vadd.f32 %v62, %v146
    %148 = vmatmul.bf16.gmra.mxu0 %v99
    %v149 = vpop.f32.mrf.mxu0
    %v150 = vadd.f32 %v62, %v149
    %v151 = vpop.f32.mrf.mxu0
    %v152 = vadd.f32 %v62, %v151
    %153 = vmatmul.bf16.gmra.mxu0 %v102
    %v154 = vpop.f32.mrf.mxu0
    %v155 = vadd.f32 %v62, %v154
    %v156 = vpop.f32.mrf.mxu0
    %v157 = vadd.f32 %v62, %v156
    %158 = vdwg.mxu0
    %v159 = vmax.f32 %v120, 0.0
    %v160 = vmax.f32 %v122, 0.0
    %v161 = vmax.f32 %v125, 0.0
    %v162 = vmax.f32 %v127, 0.0
    %v163 = vmax.f32 %v130, 0.0
    %v164 = vmax.f32 %v132, 0.0
    %v165 = vmax.f32 %v135, 0.0
    %v166 = vmax.f32 %v137, 0.0
    %v167 = vmax.f32 %v140, 0.0
    %v168 = vmax.f32 %v142, 0.0
    %v169 = vmax.f32 %v145, 0.0
    %v170 = vmax.f32 %v147, 0.0
    %v171 = vmax.f32 %v150, 0.0
    %v172 = vmax.f32 %v152, 0.0
    %v173 = vmax.f32 %v155, 0.0
    %v174 = vmax.f32 %v157, 0.0
    %v175 = vpack.c.bf16 %v160, %v159
    %v176 = vpack.c.bf16 %v162, %v161
    %v177 = vpack.c.bf16 %v164, %v163
    %v178 = vpack.c.bf16 %v166, %v165
    %v179 = vpack.c.bf16 %v168, %v167
    %v180 = vpack.c.bf16 %v170, %v169
    %v181 = vpack.c.bf16 %v172, %v171
    %v182 = vpack.c.bf16 %v174, %v173
    %v183 = vld [vmem:[%s4] sm:$0xf]
    %v184 = vld [vmem:[%s4 + $0x4] sm:$0xf]
    %v185 = vld [vmem:[%s4 + $0x8] sm:$0xf]
    %v186 = vld [vmem:[%s4 + $0xc] sm:$0xf]
    %v187 = vld [vmem:[%s5] sm:$0x1]
    %v189 = vperm.slane %v187, 0
    %v195 = vunpack.c.l.b16 %v183
    %v196 = vunpack.c.l.b16 %v184
    %v197 = vunpack.c.l.b16 %v185
    %v198 = vunpack.c.l.b16 %v186
    %v199 = vpack.c.b16 %v196, %v195
    %v200 = vpack.c.b16 %v198, %v197
    %vm203 = vcmask 261120
    %v205 = vsel %vm203, %v175, 0
    %v208 = vsel %vm203, %v176, 0
    %v211 = vsel %vm203, %v177, 0
    %v214 = vsel %vm203, %v178, 0
    %v217 = vsel %vm203, %v179, 0
    %v220 = vsel %vm203, %v180, 0
    %v223 = vsel %vm203, %v181, 0
    %v226 = vsel %vm203, %v182, 0
    %228 = vmatpush.bf16.msra.mxu0 0
    %229 = vmatpush.bf16.msra.mxu0 0
    %230 = vmatpush.bf16.msra.mxu0 0
    %231 = vmatpush.bf16.msra.mxu0 0
    %232 = vmatpush.bf16.msra.mxu0 0
    %233 = vmatpush.bf16.msra.mxu0 0
    %234 = vmatpush.bf16.msra.mxu0 %v200
    %235 = vmatpush.bf16.msra.mxu0 %v199
    %236 = vmatmul.bf16.gmra.mxu0 %v205
    %v237 = vpop.f32.mrf.mxu0
    %v238 = vadd.f32 %v189, %v237
    %v239 = vpop.f32.mrf.mxu0
    %v240 = vadd.f32 %v189, %v239
    %241 = vmatmul.bf16.gmra.mxu0 %v208
    %v242 = vpop.f32.mrf.mxu0
    %v243 = vadd.f32 %v189, %v242
    %v244 = vpop.f32.mrf.mxu0
    %v245 = vadd.f32 %v189, %v244
    %246 = vmatmul.bf16.gmra.mxu0 %v211
    %v247 = vpop.f32.mrf.mxu0
    %v248 = vadd.f32 %v189, %v247
    %v249 = vpop.f32.mrf.mxu0
    %v250 = vadd.f32 %v189, %v249
    %251 = vmatmul.bf16.gmra.mxu0 %v214
    %v252 = vpop.f32.mrf.mxu0
    %v253 = vadd.f32 %v189, %v252
    %v254 = vpop.f32.mrf.mxu0
    %v255 = vadd.f32 %v189, %v254
    %256 = vmatmul.bf16.gmra.mxu0 %v217
    %v257 = vpop.f32.mrf.mxu0
    %v258 = vadd.f32 %v189, %v257
    %v259 = vpop.f32.mrf.mxu0
    %v260 = vadd.f32 %v189, %v259
    %261 = vmatmul.bf16.gmra.mxu0 %v220
    %v262 = vpop.f32.mrf.mxu0
    %v263 = vadd.f32 %v189, %v262
    %v264 = vpop.f32.mrf.mxu0
    %v265 = vadd.f32 %v189, %v264
    %266 = vmatmul.bf16.gmra.mxu0 %v223
    %v267 = vpop.f32.mrf.mxu0
    %v268 = vadd.f32 %v189, %v267
    %v269 = vpop.f32.mrf.mxu0
    %v270 = vadd.f32 %v189, %v269
    %271 = vmatmul.bf16.gmra.mxu0 %v226
    %v272 = vpop.f32.mrf.mxu0
    %v273 = vadd.f32 %v189, %v272
    %v274 = vpop.f32.mrf.mxu0
    %v275 = vadd.f32 %v189, %v274
    %276 = vdwg.mxu0
    %v277 = vmax.f32 %v238, 0.0
    %v278 = vmax.f32 %v240, 0.0
    %v279 = vmax.f32 %v243, 0.0
    %v280 = vmax.f32 %v245, 0.0
    %v281 = vmax.f32 %v248, 0.0
    %v282 = vmax.f32 %v250, 0.0
    %v283 = vmax.f32 %v253, 0.0
    %v284 = vmax.f32 %v255, 0.0
    %v285 = vmax.f32 %v258, 0.0
    %v286 = vmax.f32 %v260, 0.0
    %v287 = vmax.f32 %v263, 0.0
    %v288 = vmax.f32 %v265, 0.0
    %v289 = vmax.f32 %v268, 0.0
    %v290 = vmax.f32 %v270, 0.0
    %v291 = vmax.f32 %v273, 0.0
    %v292 = vmax.f32 %v275, 0.0
    %v293 = vld [vmem:[%s6] sm:$0xf]
    %v294 = vld [vmem:[%s6 + $0x4] sm:$0xf]
    %v295 = vld [vmem:[%s6 + $0x8] sm:$0xf]
    %v296 = vld [vmem:[%s6 + $0xc] sm:$0xf]
    %v297 = vld [vmem:[%s1] sm:$0xff]
    %v298 = vpack.c.bf16 %v297, %v297
    %v299 = vld [vmem:[%s7] sm:$0xff]
    %v300 = vld [vmem:[%s7 + $0x8] sm:$0xff]
    %v301 = vld [vmem:[%s7 + $0x10] sm:$0xff]
    %v302 = vld [vmem:[%s7 + $0x18] sm:$0xff]
    %304 = vset.pattern.permute.xlu0 0
    %305 = vperm.xlu0 %304, %v299
    %v306 = vpop.permute.xlu0 %305
    %309 = vset.pattern.permute.xlu0 0
    %310 = vperm.xlu0 %309, %v300
    %v311 = vpop.permute.xlu0 %310
    %314 = vset.pattern.permute.xlu0 0
    %315 = vperm.xlu0 %314, %v301
    %v316 = vpop.permute.xlu0 %315
    %319 = vset.pattern.permute.xlu0 0
    %320 = vperm.xlu0 %319, %v302
    %v321 = vpop.permute.xlu0 %320
    %v327 = vunpack.c.l.b16 %v293
    %v328 = vunpack.c.l.b16 %v294
    %v329 = vunpack.c.l.b16 %v295
    %v330 = vunpack.c.l.b16 %v296
    %v331 = vpack.c.b16 %v328, %v327
    %v332 = vpack.c.b16 %v330, %v329
    %vm333 = vcmask 64512
    %v335 = vsel %vm333, %v331, 0
    %v338 = vsel %vm333, %v332, 0
    %vm340 = vcmask 1043456
    %v342 = vsel %vm340, %v298, 0
    %344 = vmatpush.bf16.msra.mxu0 0
    %345 = vmatpush.bf16.msra.mxu0 0
    %346 = vmatpush.bf16.msra.mxu0 0
    %347 = vmatpush.bf16.msra.mxu0 0
    %348 = vmatpush.bf16.msra.mxu0 0
    %349 = vmatpush.bf16.msra.mxu0 0
    %350 = vmatpush.bf16.msra.mxu0 0
    %351 = vmatpush.bf16.msra.mxu0 %v342
    %352 = vmatmul.bf16.gmra.mxu0 %v335
    %v353 = vpop.f32.mrf.mxu0
    %v354 = vadd.f32 %v306, %v353
    %v355 = vpop.f32.mrf.mxu0
    %v356 = vadd.f32 %v311, %v355
    %357 = vmatmul.bf16.gmra.mxu0 %v338
    %v358 = vpop.f32.mrf.mxu0
    %v359 = vadd.f32 %v316, %v358
    %v360 = vpop.f32.mrf.mxu0
    %v361 = vadd.f32 %v321, %v360
    %362 = vdwg.mxu0
    %v363 = vxor.u32 %v354, 2147483648
    %v364 = vxor.u32 %v356, 2147483648
    %v365 = vxor.u32 %v359, 2147483648
    %v366 = vxor.u32 %v361, 2147483648
    %v367 = vmul.f32 %v363, 1.442695
    %v368 = vpow.pop %v367
    %v369 = vmul.f32 %v364, 1.442695
    %v370 = vpow.pop %v369
    %v371 = vmul.f32 %v365, 1.442695
    %v372 = vpow.pop %v371
    %v373 = vmul.f32 %v366, 1.442695
    %v374 = vpow.pop %v373
    %v375 = vadd.f32 %v368, 1.0
    %v376 = vadd.f32 %v370, 1.0
    %v377 = vadd.f32 %v372, 1.0
    %v378 = vadd.f32 %v374, 1.0
    %v379 = vrcp.pop %v375
    %v380 = vmul.f32 %v375, %v379
    %v381 = vsub.f32 1.0, %v380
    %v382 = vmul.f32 %v379, %v381
    %v383 = vadd.f32 %v379, %v382
    %vm384 = vweird.f32 %v375
    %vm385 = vweird.f32 %v379
    %vm386 = vmor %vm384, %vm385
    %v387 = vsel %vm386, %v379, %v383
    %v388 = vand.u32 2147483647, %v375
    %vm389 = vcmp.eq.f32.partialorder %v388, 8.507059e+37
    %v390 = vand.u32 %v375, 2147483648
    %v391 = vor.u32 1.1754944e-38, %v390
    %v392 = vsel %vm389, %v391, %v387
    %v393 = vmul.f32 1.0, %v392
    %v394 = vrcp.pop %v376
    %v395 = vmul.f32 %v376, %v394
    %v396 = vsub.f32 1.0, %v395
    %v397 = vmul.f32 %v394, %v396
    %v398 = vadd.f32 %v394, %v397
    %vm399 = vweird.f32 %v376
    %vm400 = vweird.f32 %v394
    %vm401 = vmor %vm399, %vm400
    %v402 = vsel %vm401, %v394, %v398
    %v403 = vand.u32 2147483647, %v376
    %vm404 = vcmp.eq.f32.partialorder %v403, 8.507059e+37
    %v405 = vand.u32 %v376, 2147483648
    %v406 = vor.u32 1.1754944e-38, %v405
    %v407 = vsel %vm404, %v406, %v402
    %v408 = vmul.f32 1.0, %v407
    %v409 = vrcp.pop %v377
    %v410 = vmul.f32 %v377, %v409
    %v411 = vsub.f32 1.0, %v410
    %v412 = vmul.f32 %v409, %v411
    %v413 = vadd.f32 %v409, %v412
    %vm414 = vweird.f32 %v377
    %vm415 = vweird.f32 %v409
    %vm416 = vmor %vm414, %vm415
    %v417 = vsel %vm416, %v409, %v413
    %v418 = vand.u32 2147483647, %v377
    %vm419 = vcmp.eq.f32.partialorder %v418, 8.507059e+37
    %v420 = vand.u32 %v377, 2147483648
    %v421 = vor.u32 1.1754944e-38, %v420
    %v422 = vsel %vm419, %v421, %v417
    %v423 = vmul.f32 1.0, %v422
    %v424 = vrcp.pop %v378
    %v425 = vmul.f32 %v378, %v424
    %v426 = vsub.f32 1.0, %v425
    %v427 = vmul.f32 %v424, %v426
    %v428 = vadd.f32 %v424, %v427
    %vm429 = vweird.f32 %v378
    %vm430 = vweird.f32 %v424
    %vm431 = vmor %vm429, %vm430
    %v432 = vsel %vm431, %v424, %v428
    %v433 = vand.u32 2147483647, %v378
    %vm434 = vcmp.eq.f32.partialorder %v433, 8.507059e+37
    %v435 = vand.u32 %v378, 2147483648
    %v436 = vor.u32 1.1754944e-38, %v435
    %v437 = vsel %vm434, %v436, %v432
    %v438 = vmul.f32 1.0, %v437
    %439 = vxpose.xlu0.b32.start [1/16] %v277, 128
    %440 = vxpose.xlu0.b32.cont [2/16] %v278, 128
    %441 = vxpose.xlu0.b32.cont [3/16] %v279, 128
    %442 = vxpose.xlu0.b32.cont [4/16] %v280, 128
    %443 = vxpose.xlu0.b32.cont [5/16] %v281, 128
    %444 = vxpose.xlu0.b32.cont [6/16] %v282, 128
    %445 = vxpose.xlu0.b32.cont [7/16] %v283, 128
    %446 = vxpose.xlu0.b32.cont [8/16] %v284, 128
    %447 = vxpose.xlu0.b32.cont [9/16] %v285, 128
    %448 = vxpose.xlu0.b32.cont [10/16] %v286, 128
    %449 = vxpose.xlu0.b32.cont [11/16] %v287, 128
    %450 = vxpose.xlu0.b32.cont [12/16] %v288, 128
    %451 = vxpose.xlu0.b32.cont [13/16] %v289, 128
    %452 = vxpose.xlu0.b32.cont [14/16] %v290, 128
    %453 = vxpose.xlu0.b32.cont [15/16] %v291, 128
    %454 = vxpose.xlu0.b32.end [16/16] %v292, 128
    %v455 = vpop.trf.xlu0
    %v456 = vpop.trf.xlu0
    %v457 = vpop.trf.xlu0
    %v458 = vpop.trf.xlu0
    %v459 = vpop.trf.xlu0
    %v460 = vpop.trf.xlu0
    %v461 = vpop.trf.xlu0
    %v462 = vpop.trf.xlu0
    %v463 = vpop.trf.xlu0
    %v464 = vpop.trf.xlu0
    %v465 = vpop.trf.xlu0
    %v466 = vpop.trf.xlu0
    %v467 = vpop.trf.xlu0
    %v468 = vpop.trf.xlu0
    %v469 = vpop.trf.xlu0
    %v470 = vpop.trf.xlu0
    %v471 = vmul.f32 %v393, %v455
    %v472 = vmul.f32 %v408, %v456
    %v473 = vmul.f32 %v423, %v457
    %v474 = vmul.f32 %v438, %v458
    %475 = vst [vmem:[#allocation2] sm:$0xff] %v471
    %476 = vst [vmem:[#allocation2 + $0x8] sm:$0xff] %v472
    %477 = vst [vmem:[#allocation2 + $0x10] sm:$0xff] %v473
    %478 = vst [vmem:[#allocation2 + $0x18] sm:$0xff] %v474
    // Predicated region
    $region34: #{forward.7} parent=1 // pred_check
      _
    $region35: #{forward.7} parent=1 // pred_check_branch
      %480 = sbr.rel (0) target = $region37
    $region36: #{forward.7} parent=1 // pred_region
      %482 = vsyncadd [#allocation3], 0
      %s483 = sshll.u32 [#allocation2], 4
      %s484 = int_to_ptr.vmem [resolvable:$true] %s483
      %s485 = sshll.u32 %s8, 4
      %s486 = int_to_ptr.hbm [resolvable:$true] %s485
      %491 = dma.vmem_to_hbm [thread:$0]  %s484, 512, %s486, [#allocation3], 128, 128, 8
    $region37: #{forward.7} parent=1 // pred_fallthru
      _
    // Predicated region
    $region38: #{forward.7} parent=1 // pred_check
      _
    $region39: #{forward.7} parent=1 // pred_check_branch
      %493 = sbr.rel (0) target = $region41
    $region40: #{forward.7} parent=1 // pred_region
      %495 = dma.done [#allocation3], 512
    $region41: #{forward.7} parent=1 // pred_fallthru
      _
    %496 = vsyncpa [#allocation3], 1

</llo_original>
